<compile_context>
chip_gen: v7x
topology: tpu7x:2x2x1
jax: 0.10.0
libtpu: 0.0.40
codegen_flags: <defaults>
</compile_context>

<pallas_src>
import jax
import jax.numpy as jnp
import numpy as np
from jax.experimental import pallas as pl
from jax.experimental.pallas import tpu as pltpu

# ----------------------------- model config ---------------------------------
INPUT_NUM_CHANN = 1
DIM_MLP_APPEND = 0          # mlp_append=None in this test
NUM_MLP_OUTPUT = 5
OUT_CNN_DIM = 64
Z_CONV_DIM = 4
Z_MLP_DIM = 4
IMG_SIZE = 16               # small spatial size for the test (PyTorch default 128)

KH1 = KW1 = 5
PAD1 = 2
KH2 = KW2 = 3
PAD2 = 1


def _round_up(x, m):
    return ((x + m - 1) // m) * m


# ----------------------------- fused Pallas kernel --------------------------
def _make_fused_kernel(H, W, c1, c2):
    WP1 = W + 2 * PAD1          # conv1 canvas width
    WP2 = W + 2 * PAD2          # conv2 canvas width
    P1 = H * WP1                # conv1 output columns (lane axis)
    P2 = H * WP2                # conv2 output columns (lane axis)

    def kernel(x0_ref, w1t_ref, b1c_ref, p12_ref, w2t_ref, b2c_ref,
               negm_ref, pos_ref, rest_ref,
               w1e_ref, w1o_ref, w1r_ref, b1_ref,
               w2_ref, b2_ref, w3_ref, b3_ref, w4_ref, b4_ref, o_ref):
        f32 = jnp.float32
        x0 = x0_ref[0]                                       # (c_in1, L1)

        # ---- conv_1: 5x5 / pad 2 as 25 shifted-slice matmuls, (c1, P1) ------
        acc1 = jnp.zeros((c1, P1), f32)
        for kh in range(KH1):
            for kw in range(KW1):
                s = kh * WP1 + kw
                acc1 = acc1 + jnp.dot(w1t_ref[kh * KW1 + kw],
                                      x0[:, s:s + P1],
                                      preferred_element_type=f32)
        y1 = jnp.maximum(acc1 + b1c_ref[...], 0.0)           # (c1, P1)

        # ---- relayout: drop junk columns, zero-pad into conv_2 canvas -------
        x2 = jnp.dot(y1, p12_ref[...], preferred_element_type=f32)   # (c1, L2)

        # ---- conv_2: 3x3 / pad 1 as 9 shifted-slice matmuls -----------------
        acc2 = jnp.zeros((c2, P2), f32)
        for kh in range(KH2):
            for kw in range(KW2):
                s = kh * WP2 + kw
                acc2 = acc2 + jnp.dot(w2t_ref[kh * KW2 + kw],
                                      x2[:, s:s + P2],
                                      preferred_element_type=f32)
        y2 = jnp.maximum(acc2 + b2c_ref[...], 0.0)           # (c2, P2)

        # ---- spatial softmax over the valid grid (lane-axis reduction) ------
        fm = y2 + negm_ref[...]                              # junk cols -> -1e30
        m = jnp.max(fm, axis=1, keepdims=True)               # (c2, 1)
        e = jnp.exp(fm - m)                                  # (c2, P2)
        denom = jnp.sum(e, axis=1, keepdims=True)            # (c2, 1)
        exy = jnp.dot(e, pos_ref[...], preferred_element_type=f32)   # (c2, 2)
        kp = exy * pl.reciprocal(denom, approx=False)        # rows = (x_c, y_c)

        # ---- MLP head; keypoint interleave folded into split W1 rows --------
        kp_h = kp[:, 0:1] * w1e_ref[...] + kp[:, 1:2] * w1o_ref[...]  # (c2, dh)
        h = jnp.sum(kp_h, axis=0, keepdims=True)             # (1, dh)
        h = h + jnp.dot(rest_ref[0], w1r_ref[...], preferred_element_type=f32)
        h = jnp.maximum(h + b1_ref[...], 0.0)
        h = jnp.maximum(jnp.dot(h, w2_ref[...], preferred_element_type=f32)
                        + b2_ref[...], 0.0)
        h = jnp.maximum(jnp.dot(h, w3_ref[...], preferred_element_type=f32)
                        + b3_ref[...], 0.0)
        o_ref[0] = (jnp.dot(h, w4_ref[...], preferred_element_type=f32)
                    + b4_ref[...])

    return kernel


# ----------------------------- full forward ---------------------------------
def policy_net_forward(params, img, zs, mlp_append=None):
    """img: (N, 1, H, W) NCHW (PyTorch convention); zs: (N, Z_CONV_DIM + Z_MLP_DIM)."""
    if img.ndim == 3:
        img = img[:, None, :, :]
    N, c_img, H, W = img.shape
    f32 = jnp.float32

    c_in1 = c_img + Z_CONV_DIM
    c1 = OUT_CNN_DIM // 4                       # 16
    c2 = OUT_CNN_DIM // 2                       # 32
    HP1, WP1 = H + 2 * PAD1, W + 2 * PAD1
    HP2, WP2 = H + 2 * PAD2, W + 2 * PAD2
    P1, P2 = H * WP1, H * WP2
    L1 = _round_up(HP1 * WP1 + KW1 - 1, 128)
    L2 = _round_up(HP2 * WP2 + KW2 - 1, 128)

    # ---- conv1 input canvas: (N, c_in1, L1), flattened zero-padded NCHW -----
    x = img.astype(f32)
    if Z_CONV_DIM > 0:
        z_conv = jnp.broadcast_to(zs[:, :Z_CONV_DIM, None, None].astype(f32),
                                  (N, Z_CONV_DIM, H, W))
        x = jnp.concatenate([x, z_conv], axis=1)
    x = jnp.pad(x, ((0, 0), (0, 0), (PAD1, PAD1), (PAD1, PAD1)))
    x = x.reshape(N, c_in1, HP1 * WP1)
    x0 = jnp.pad(x, ((0, 0), (0, 0), (0, L1 - HP1 * WP1)))

    # ---- conv weights as per-tap (Cout, Cin) matrices -----------------------
    w1t = jnp.transpose(params["w1c"], (0, 1, 3, 2)).reshape(KH1 * KW1, c1, c_in1)
    b1c = params["b1c"].reshape(c1, 1)
    w2t = jnp.transpose(params["w2c"], (0, 1, 3, 2)).reshape(KH2 * KW2, c2, c1)
    b2c = params["b2c"].reshape(c2, 1)

    # ---- trace-time constants: relayout / mask / coordinate matrices --------
    hh = np.arange(H)[:, None]
    ww = np.arange(W)[None, :]
    rows1 = (hh * WP1 + ww).ravel()                       # valid conv1 columns
    cols2 = ((hh + PAD2) * WP2 + (ww + PAD2)).ravel()     # conv2 canvas positions
    p12_np = np.zeros((P1, L2), np.float32)
    p12_np[rows1, cols2] = 1.0

    junk = np.broadcast_to(np.arange(WP2)[None, :] >= W, (H, WP2))
    negm_np = np.where(junk, np.float32(-1e30), np.float32(0.0)).reshape(1, P2)

    xs = np.linspace(-1.0, 1.0, W, dtype=np.float32)
    ys = np.linspace(-1.0, 1.0, H, dtype=np.float32)
    q_valid = (hh * WP2 + ww).ravel()
    pos_np = np.zeros((P2, 2), np.float32)
    pos_np[q_valid, 0] = np.tile(xs, H)                   # x coordinate
    pos_np[q_valid, 1] = np.repeat(ys, W)                 # y coordinate

    p12 = jnp.asarray(p12_np)
    negm = jnp.asarray(negm_np)
    pos = jnp.asarray(pos_np)

    # ---- MLP weights: split W1 so the keypoint interleave is free -----------
    rest = zs[:, Z_CONV_DIM:].astype(f32)
    if mlp_append is not None:
        rest = jnp.concatenate([rest, mlp_append.astype(f32)], axis=1)
    n_rest = rest.shape[1]
    rest = rest.reshape(N, 1, n_rest)

    w1 = params["w1"]
    n_kp = 2 * c2
    w1e = w1[0:n_kp:2, :]                                 # rows for x_c
    w1o = w1[1:n_kp:2, :]                                 # rows for y_c
    w1r = w1[n_kp:, :]                                    # rows for [z_mlp, append]
    assert w1r.shape[0] == n_rest, "MLP input-dim mismatch"
    b1 = params["b1"].reshape(1, -1)
    w2, b2 = params["w2"], params["b2"].reshape(1, -1)
    w3, b3 = params["w3"], params["b3"].reshape(1, -1)
    w4, b4 = params["w4"], params["b4"].reshape(1, -1)
    n_out = w4.shape[1]

    kernel = _make_fused_kernel(H, W, c1, c2)

    def full(a):
        return pl.BlockSpec(a.shape, lambda n, _nd=a.ndim: (0,) * _nd)

    out = pl.pallas_call(
        kernel,
        out_shape=jax.ShapeDtypeStruct((N, 1, n_out), f32),
        grid=(N,),
        in_specs=[
            pl.BlockSpec((1, c_in1, L1), lambda n: (n, 0, 0)),   # per-batch canvas
            full(w1t), full(b1c), full(p12), full(w2t), full(b2c),
            full(negm), full(pos),
            pl.BlockSpec((1, 1, n_rest), lambda n: (n, 0, 0)),   # per-batch z_mlp
            full(w1e), full(w1o), full(w1r), full(b1),
            full(w2), full(b2), full(w3), full(b3), full(w4), full(b4),
        ],
        out_specs=pl.BlockSpec((1, 1, n_out), lambda n: (n, 0, 0)),
        compiler_params=pltpu.CompilerParams(
            dimension_semantics=("parallel",)),
    )(x0, w1t, b1c, p12, w2t, b2c, negm, pos, rest,
      w1e, w1o, w1r, b1, w2, b2, w3, b3, w4, b4)

    return out.reshape(N, n_out)


# ----------------------------- params ----------------------------------------
def init_params(key):
    k = jax.random.split(key, 12)
    c1_in = INPUT_NUM_CHANN + Z_CONV_DIM            # 5
    c1_out = OUT_CNN_DIM // 4                       # 16
    c2_out = OUT_CNN_DIM // 2                       # 32
    d_in = OUT_CNN_DIM + DIM_MLP_APPEND + Z_MLP_DIM  # 68
    d_h = OUT_CNN_DIM * 2                           # 128
    return {
        "w1c": jax.random.normal(k[0], (5, 5, c1_in, c1_out), jnp.float32) * 0.1,
        "b1c": jax.random.normal(k[1], (c1_out,), jnp.float32) * 0.01,
        "w2c": jax.random.normal(k[2], (3, 3, c1_out, c2_out), jnp.float32) * 0.1,
        "b2c": jax.random.normal(k[3], (c2_out,), jnp.float32) * 0.01,
        "w1": jax.random.normal(k[4], (d_in, d_h), jnp.float32) * 0.05,
        "b1": jax.random.normal(k[5], (d_h,), jnp.float32) * 0.01,
        "w2": jax.random.normal(k[6], (d_h, d_h), jnp.float32) * 0.05,
        "b2": jax.random.normal(k[7], (d_h,), jnp.float32) * 0.01,
        "w3": jax.random.normal(k[8], (d_h, d_h), jnp.float32) * 0.05,
        "b3": jax.random.normal(k[9], (d_h,), jnp.float32) * 0.01,
        "w4": jax.random.normal(k[10], (d_h, NUM_MLP_OUTPUT), jnp.float32) * 0.05,
        "b4": jax.random.normal(k[11], (NUM_MLP_OUTPUT,), jnp.float32) * 0.01,
    }


# ----------------------------- pure-JAX reference ----------------------------
def reference_forward(params, img, zs):
    N, _, H, W = img.shape
    x = jnp.transpose(img, (0, 2, 3, 1))
    zs_conv = jnp.broadcast_to(zs[:, None, None, :Z_CONV_DIM], (N, H, W, Z_CONV_DIM))
    x = jnp.concatenate([x, zs_conv], axis=-1)

    def conv(x, w, b, pad):
        y = jax.lax.conv_general_dilated(
            x, w, window_strides=(1, 1), padding=[(pad, pad), (pad, pad)],
            dimension_numbers=("NHWC", "HWIO", "NHWC"))
        return jnp.maximum(y + b, 0.0)

    x = conv(x, params["w1c"], params["b1c"], 2)
    x = conv(x, params["w2c"], params["b2c"], 1)

    C = x.shape[-1]
    feat = x.reshape(N, H * W, C)
    att = jax.nn.softmax(feat, axis=1)
    ys = jnp.linspace(-1.0, 1.0, H, dtype=jnp.float32)
    xs = jnp.linspace(-1.0, 1.0, W, dtype=jnp.float32)
    pos_y, pos_x = jnp.meshgrid(ys, xs, indexing="ij")
    ex = jnp.einsum("npc,p->nc", att, pos_x.reshape(-1))
    ey = jnp.einsum("npc,p->nc", att, pos_y.reshape(-1))
    kp = jnp.stack([ex, ey], axis=-1).reshape(N, 2 * C)

    h = jnp.concatenate([kp, zs[:, Z_CONV_DIM:]], axis=1)
    h = jnp.maximum(h @ params["w1"] + params["b1"], 0.0)
    h = jnp.maximum(h @ params["w2"] + params["b2"], 0.0)
    h = jnp.maximum(h @ params["w3"] + params["b3"], 0.0)
    return h @ params["w4"] + params["b4"]


# --------------------------------- main ---------------------------------------
if __name__ == "__main__":
    key = jax.random.PRNGKey(0)
    kparams, kimg, kz = jax.random.split(key, 3)

    params = init_params(kparams)
    N = 2
    img = jax.random.normal(kimg, (N, INPUT_NUM_CHANN, IMG_SIZE, IMG_SIZE), jnp.float32)
    zs = jax.random.normal(kz, (N, Z_CONV_DIM + Z_MLP_DIM), jnp.float32)

    fwd = jax.jit(policy_net_forward)
    out = jax.block_until_ready(fwd(params, img, zs))

    ref = jax.block_until_ready(reference_forward(params, img, zs))
    assert out.shape == (N, NUM_MLP_OUTPUT)
    assert bool(jnp.all(jnp.isfinite(out)))
    assert jnp.allclose(out, ref, atol=1e-3, rtol=1e-3)

    print("KERNEL_OK")
</pallas_src>

<mosaic_0001>
module attributes {stable_mosaic.version = 11 : i64} {
  func.func @kernel(%arg0: i32, %arg1: memref<1x5x512xf32, #tpu.memory_space<vmem>>, %arg2: memref<25x16x5xf32, #tpu.memory_space<vmem>>, %arg3: memref<16x1xf32, #tpu.memory_space<vmem>>, %arg4: memref<320x384xf32, #tpu.memory_space<vmem>>, %arg5: memref<9x32x16xf32, #tpu.memory_space<vmem>>, %arg6: memref<32x1xf32, #tpu.memory_space<vmem>>, %arg7: memref<1x288xf32, #tpu.memory_space<vmem>>, %arg8: memref<288x2xf32, #tpu.memory_space<vmem>>, %arg9: memref<1x1x4xf32, #tpu.memory_space<vmem>>, %arg10: memref<32x128xf32, #tpu.memory_space<vmem>>, %arg11: memref<32x128xf32, #tpu.memory_space<vmem>>, %arg12: memref<4x128xf32, #tpu.memory_space<vmem>>, %arg13: memref<1x128xf32, #tpu.memory_space<vmem>>, %arg14: memref<128x128xf32, #tpu.memory_space<vmem>>, %arg15: memref<1x128xf32, #tpu.memory_space<vmem>>, %arg16: memref<128x128xf32, #tpu.memory_space<vmem>>, %arg17: memref<1x128xf32, #tpu.memory_space<vmem>>, %arg18: memref<128x5xf32, #tpu.memory_space<vmem>>, %arg19: memref<1x5xf32, #tpu.memory_space<vmem>>, %arg20: memref<1x1x5xf32, #tpu.memory_space<vmem>>) attributes {dimension_semantics = [#tpu.dimension_semantics<parallel>], iteration_bounds = array<i64: 2>, scalar_prefetch = 0 : i64, scratch_operands = 0 : i64, tpu.core_type = #tpu.core_type<tc>, window_params = [{transform_indices = @transform_0, window_bounds = array<i64: 1, 5, 512>}, {pipeline_mode = #tpu.pipeline_mode<synchronous>, transform_indices = @transform_1, window_bounds = array<i64: 25, 16, 5>}, {pipeline_mode = #tpu.pipeline_mode<synchronous>, transform_indices = @transform_2, window_bounds = array<i64: 16, 1>}, {pipeline_mode = #tpu.pipeline_mode<synchronous>, transform_indices = @transform_3, window_bounds = array<i64: 320, 384>}, {pipeline_mode = #tpu.pipeline_mode<synchronous>, transform_indices = @transform_4, window_bounds = array<i64: 9, 32, 16>}, {pipeline_mode = #tpu.pipeline_mode<synchronous>, transform_indices = @transform_5, window_bounds = array<i64: 32, 1>}, {pipeline_mode = #tpu.pipeline_mode<synchronous>, transform_indices = @transform_6, window_bounds = array<i64: 1, 288>}, {pipeline_mode = #tpu.pipeline_mode<synchronous>, transform_indices = @transform_7, window_bounds = array<i64: 288, 2>}, {transform_indices = @transform_8, window_bounds = array<i64: 1, 1, 4>}, {pipeline_mode = #tpu.pipeline_mode<synchronous>, transform_indices = @transform_9, window_bounds = array<i64: 32, 128>}, {pipeline_mode = #tpu.pipeline_mode<synchronous>, transform_indices = @transform_10, window_bounds = array<i64: 32, 128>}, {pipeline_mode = #tpu.pipeline_mode<synchronous>, transform_indices = @transform_11, window_bounds = array<i64: 4, 128>}, {pipeline_mode = #tpu.pipeline_mode<synchronous>, transform_indices = @transform_12, window_bounds = array<i64: 1, 128>}, {pipeline_mode = #tpu.pipeline_mode<synchronous>, transform_indices = @transform_13, window_bounds = array<i64: 128, 128>}, {pipeline_mode = #tpu.pipeline_mode<synchronous>, transform_indices = @transform_14, window_bounds = array<i64: 1, 128>}, {pipeline_mode = #tpu.pipeline_mode<synchronous>, transform_indices = @transform_15, window_bounds = array<i64: 128, 128>}, {pipeline_mode = #tpu.pipeline_mode<synchronous>, transform_indices = @transform_16, window_bounds = array<i64: 1, 128>}, {pipeline_mode = #tpu.pipeline_mode<synchronous>, transform_indices = @transform_17, window_bounds = array<i64: 128, 5>}, {pipeline_mode = #tpu.pipeline_mode<synchronous>, transform_indices = @transform_18, window_bounds = array<i64: 1, 5>}, {transform_indices = @transform_19, window_bounds = array<i64: 1, 1, 5>}]} {
    %c0 = arith.constant 0 : index
    %c0_0 = arith.constant 0 : index
    %c0_1 = arith.constant 0 : index
    %0 = vector.load %arg1[%c0, %c0_0, %c0_1] : memref<1x5x512xf32, #tpu.memory_space<vmem>>, vector<1x5x512xf32>
    %1 = vector.shape_cast %0 : vector<1x5x512xf32> to vector<5x512xf32>
    %cst = arith.constant 0.000000e+00 : f32
    %2 = vector.broadcast %cst : f32 to vector<16x320xf32>
    %c0_2 = arith.constant 0 : index
    %c0_3 = arith.constant 0 : index
    %c0_4 = arith.constant 0 : index
    %3 = vector.load %arg2[%c0_2, %c0_3, %c0_4] : memref<25x16x5xf32, #tpu.memory_space<vmem>>, vector<1x16x5xf32>
    %4 = vector.shape_cast %3 : vector<1x16x5xf32> to vector<16x5xf32>
    %5 = vector.extract_strided_slice %1 {offsets = [0, 0], sizes = [5, 320], strides = [1, 1]} : vector<5x512xf32> to vector<5x320xf32>
    %cst_5 = arith.constant dense<0.000000e+00> : vector<16x320xf32>
    %6 = tpu.matmul %4, %5, %cst_5 {dimension_numbers = #tpu.dot_dimension_numbers<[1], [0], [0], [1], [0, 0, 1, 1], [], []>} : vector<16x5xf32>, vector<5x320xf32>, vector<16x320xf32> -> vector<16x320xf32>
    %7 = arith.addf %2, %6 : vector<16x320xf32>
    %c1 = arith.constant 1 : index
    %c0_6 = arith.constant 0 : index
    %c0_7 = arith.constant 0 : index
    %8 = vector.load %arg2[%c1, %c0_6, %c0_7] : memref<25x16x5xf32, #tpu.memory_space<vmem>>, vector<1x16x5xf32>
    %9 = vector.shape_cast %8 : vector<1x16x5xf32> to vector<16x5xf32>
    %10 = vector.extract_strided_slice %1 {offsets = [0, 1], sizes = [5, 320], strides = [1, 1]} : vector<5x512xf32> to vector<5x320xf32>
    %cst_8 = arith.constant dense<0.000000e+00> : vector<16x320xf32>
    %11 = tpu.matmul %9, %10, %cst_8 {dimension_numbers = #tpu.dot_dimension_numbers<[1], [0], [0], [1], [0, 0, 1, 1], [], []>} : vector<16x5xf32>, vector<5x320xf32>, vector<16x320xf32> -> vector<16x320xf32>
    %12 = arith.addf %7, %11 : vector<16x320xf32>
    %c2 = arith.constant 2 : index
    %c0_9 = arith.constant 0 : index
    %c0_10 = arith.constant 0 : index
    %13 = vector.load %arg2[%c2, %c0_9, %c0_10] : memref<25x16x5xf32, #tpu.memory_space<vmem>>, vector<1x16x5xf32>
    %14 = vector.shape_cast %13 : vector<1x16x5xf32> to vector<16x5xf32>
    %15 = vector.extract_strided_slice %1 {offsets = [0, 2], sizes = [5, 320], strides = [1, 1]} : vector<5x512xf32> to vector<5x320xf32>
    %cst_11 = arith.constant dense<0.000000e+00> : vector<16x320xf32>
    %16 = tpu.matmul %14, %15, %cst_11 {dimension_numbers = #tpu.dot_dimension_numbers<[1], [0], [0], [1], [0, 0, 1, 1], [], []>} : vector<16x5xf32>, vector<5x320xf32>, vector<16x320xf32> -> vector<16x320xf32>
    %17 = arith.addf %12, %16 : vector<16x320xf32>
    %c3 = arith.constant 3 : index
    %c0_12 = arith.constant 0 : index
    %c0_13 = arith.constant 0 : index
    %18 = vector.load %arg2[%c3, %c0_12, %c0_13] : memref<25x16x5xf32, #tpu.memory_space<vmem>>, vector<1x16x5xf32>
    %19 = vector.shape_cast %18 : vector<1x16x5xf32> to vector<16x5xf32>
    %20 = vector.extract_strided_slice %1 {offsets = [0, 3], sizes = [5, 320], strides = [1, 1]} : vector<5x512xf32> to vector<5x320xf32>
    %cst_14 = arith.constant dense<0.000000e+00> : vector<16x320xf32>
    %21 = tpu.matmul %19, %20, %cst_14 {dimension_numbers = #tpu.dot_dimension_numbers<[1], [0], [0], [1], [0, 0, 1, 1], [], []>} : vector<16x5xf32>, vector<5x320xf32>, vector<16x320xf32> -> vector<16x320xf32>
    %22 = arith.addf %17, %21 : vector<16x320xf32>
    %c4 = arith.constant 4 : index
    %c0_15 = arith.constant 0 : index
    %c0_16 = arith.constant 0 : index
    %23 = vector.load %arg2[%c4, %c0_15, %c0_16] : memref<25x16x5xf32, #tpu.memory_space<vmem>>, vector<1x16x5xf32>
    %24 = vector.shape_cast %23 : vector<1x16x5xf32> to vector<16x5xf32>
    %25 = vector.extract_strided_slice %1 {offsets = [0, 4], sizes = [5, 320], strides = [1, 1]} : vector<5x512xf32> to vector<5x320xf32>
    %cst_17 = arith.constant dense<0.000000e+00> : vector<16x320xf32>
    %26 = tpu.matmul %24, %25, %cst_17 {dimension_numbers = #tpu.dot_dimension_numbers<[1], [0], [0], [1], [0, 0, 1, 1], [], []>} : vector<16x5xf32>, vector<5x320xf32>, vector<16x320xf32> -> vector<16x320xf32>
    %27 = arith.addf %22, %26 : vector<16x320xf32>
    %c5 = arith.constant 5 : index
    %c0_18 = arith.constant 0 : index
    %c0_19 = arith.constant 0 : index
    %28 = vector.load %arg2[%c5, %c0_18, %c0_19] : memref<25x16x5xf32, #tpu.memory_space<vmem>>, vector<1x16x5xf32>
    %29 = vector.shape_cast %28 : vector<1x16x5xf32> to vector<16x5xf32>
    %30 = vector.extract_strided_slice %1 {offsets = [0, 20], sizes = [5, 320], strides = [1, 1]} : vector<5x512xf32> to vector<5x320xf32>
    %cst_20 = arith.constant dense<0.000000e+00> : vector<16x320xf32>
    %31 = tpu.matmul %29, %30, %cst_20 {dimension_numbers = #tpu.dot_dimension_numbers<[1], [0], [0], [1], [0, 0, 1, 1], [], []>} : vector<16x5xf32>, vector<5x320xf32>, vector<16x320xf32> -> vector<16x320xf32>
    %32 = arith.addf %27, %31 : vector<16x320xf32>
    %c6 = arith.constant 6 : index
    %c0_21 = arith.constant 0 : index
    %c0_22 = arith.constant 0 : index
    %33 = vector.load %arg2[%c6, %c0_21, %c0_22] : memref<25x16x5xf32, #tpu.memory_space<vmem>>, vector<1x16x5xf32>
    %34 = vector.shape_cast %33 : vector<1x16x5xf32> to vector<16x5xf32>
    %35 = vector.extract_strided_slice %1 {offsets = [0, 21], sizes = [5, 320], strides = [1, 1]} : vector<5x512xf32> to vector<5x320xf32>
    %cst_23 = arith.constant dense<0.000000e+00> : vector<16x320xf32>
    %36 = tpu.matmul %34, %35, %cst_23 {dimension_numbers = #tpu.dot_dimension_numbers<[1], [0], [0], [1], [0, 0, 1, 1], [], []>} : vector<16x5xf32>, vector<5x320xf32>, vector<16x320xf32> -> vector<16x320xf32>
    %37 = arith.addf %32, %36 : vector<16x320xf32>
    %c7 = arith.constant 7 : index
    %c0_24 = arith.constant 0 : index
    %c0_25 = arith.constant 0 : index
    %38 = vector.load %arg2[%c7, %c0_24, %c0_25] : memref<25x16x5xf32, #tpu.memory_space<vmem>>, vector<1x16x5xf32>
    %39 = vector.shape_cast %38 : vector<1x16x5xf32> to vector<16x5xf32>
    %40 = vector.extract_strided_slice %1 {offsets = [0, 22], sizes = [5, 320], strides = [1, 1]} : vector<5x512xf32> to vector<5x320xf32>
    %cst_26 = arith.constant dense<0.000000e+00> : vector<16x320xf32>
    %41 = tpu.matmul %39, %40, %cst_26 {dimension_numbers = #tpu.dot_dimension_numbers<[1], [0], [0], [1], [0, 0, 1, 1], [], []>} : vector<16x5xf32>, vector<5x320xf32>, vector<16x320xf32> -> vector<16x320xf32>
    %42 = arith.addf %37, %41 : vector<16x320xf32>
    %c8 = arith.constant 8 : index
    %c0_27 = arith.constant 0 : index
    %c0_28 = arith.constant 0 : index
    %43 = vector.load %arg2[%c8, %c0_27, %c0_28] : memref<25x16x5xf32, #tpu.memory_space<vmem>>, vector<1x16x5xf32>
    %44 = vector.shape_cast %43 : vector<1x16x5xf32> to vector<16x5xf32>
    %45 = vector.extract_strided_slice %1 {offsets = [0, 23], sizes = [5, 320], strides = [1, 1]} : vector<5x512xf32> to vector<5x320xf32>
    %cst_29 = arith.constant dense<0.000000e+00> : vector<16x320xf32>
    %46 = tpu.matmul %44, %45, %cst_29 {dimension_numbers = #tpu.dot_dimension_numbers<[1], [0], [0], [1], [0, 0, 1, 1], [], []>} : vector<16x5xf32>, vector<5x320xf32>, vector<16x320xf32> -> vector<16x320xf32>
    %47 = arith.addf %42, %46 : vector<16x320xf32>
    %c9 = arith.constant 9 : index
    %c0_30 = arith.constant 0 : index
    %c0_31 = arith.constant 0 : index
    %48 = vector.load %arg2[%c9, %c0_30, %c0_31] : memref<25x16x5xf32, #tpu.memory_space<vmem>>, vector<1x16x5xf32>
    %49 = vector.shape_cast %48 : vector<1x16x5xf32> to vector<16x5xf32>
    %50 = vector.extract_strided_slice %1 {offsets = [0, 24], sizes = [5, 320], strides = [1, 1]} : vector<5x512xf32> to vector<5x320xf32>
    %cst_32 = arith.constant dense<0.000000e+00> : vector<16x320xf32>
    %51 = tpu.matmul %49, %50, %cst_32 {dimension_numbers = #tpu.dot_dimension_numbers<[1], [0], [0], [1], [0, 0, 1, 1], [], []>} : vector<16x5xf32>, vector<5x320xf32>, vector<16x320xf32> -> vector<16x320xf32>
    %52 = arith.addf %47, %51 : vector<16x320xf32>
    %c10 = arith.constant 10 : index
    %c0_33 = arith.constant 0 : index
    %c0_34 = arith.constant 0 : index
    %53 = vector.load %arg2[%c10, %c0_33, %c0_34] : memref<25x16x5xf32, #tpu.memory_space<vmem>>, vector<1x16x5xf32>
    %54 = vector.shape_cast %53 : vector<1x16x5xf32> to vector<16x5xf32>
    %55 = vector.extract_strided_slice %1 {offsets = [0, 40], sizes = [5, 320], strides = [1, 1]} : vector<5x512xf32> to vector<5x320xf32>
    %cst_35 = arith.constant dense<0.000000e+00> : vector<16x320xf32>
    %56 = tpu.matmul %54, %55, %cst_35 {dimension_numbers = #tpu.dot_dimension_numbers<[1], [0], [0], [1], [0, 0, 1, 1], [], []>} : vector<16x5xf32>, vector<5x320xf32>, vector<16x320xf32> -> vector<16x320xf32>
    %57 = arith.addf %52, %56 : vector<16x320xf32>
    %c11 = arith.constant 11 : index
    %c0_36 = arith.constant 0 : index
    %c0_37 = arith.constant 0 : index
    %58 = vector.load %arg2[%c11, %c0_36, %c0_37] : memref<25x16x5xf32, #tpu.memory_space<vmem>>, vector<1x16x5xf32>
    %59 = vector.shape_cast %58 : vector<1x16x5xf32> to vector<16x5xf32>
    %60 = vector.extract_strided_slice %1 {offsets = [0, 41], sizes = [5, 320], strides = [1, 1]} : vector<5x512xf32> to vector<5x320xf32>
    %cst_38 = arith.constant dense<0.000000e+00> : vector<16x320xf32>
    %61 = tpu.matmul %59, %60, %cst_38 {dimension_numbers = #tpu.dot_dimension_numbers<[1], [0], [0], [1], [0, 0, 1, 1], [], []>} : vector<16x5xf32>, vector<5x320xf32>, vector<16x320xf32> -> vector<16x320xf32>
    %62 = arith.addf %57, %61 : vector<16x320xf32>
    %c12 = arith.constant 12 : index
    %c0_39 = arith.constant 0 : index
    %c0_40 = arith.constant 0 : index
    %63 = vector.load %arg2[%c12, %c0_39, %c0_40] : memref<25x16x5xf32, #tpu.memory_space<vmem>>, vector<1x16x5xf32>
    %64 = vector.shape_cast %63 : vector<1x16x5xf32> to vector<16x5xf32>
    %65 = vector.extract_strided_slice %1 {offsets = [0, 42], sizes = [5, 320], strides = [1, 1]} : vector<5x512xf32> to vector<5x320xf32>
    %cst_41 = arith.constant dense<0.000000e+00> : vector<16x320xf32>
    %66 = tpu.matmul %64, %65, %cst_41 {dimension_numbers = #tpu.dot_dimension_numbers<[1], [0], [0], [1], [0, 0, 1, 1], [], []>} : vector<16x5xf32>, vector<5x320xf32>, vector<16x320xf32> -> vector<16x320xf32>
    %67 = arith.addf %62, %66 : vector<16x320xf32>
    %c13 = arith.constant 13 : index
    %c0_42 = arith.constant 0 : index
    %c0_43 = arith.constant 0 : index
    %68 = vector.load %arg2[%c13, %c0_42, %c0_43] : memref<25x16x5xf32, #tpu.memory_space<vmem>>, vector<1x16x5xf32>
    %69 = vector.shape_cast %68 : vector<1x16x5xf32> to vector<16x5xf32>
    %70 = vector.extract_strided_slice %1 {offsets = [0, 43], sizes = [5, 320], strides = [1, 1]} : vector<5x512xf32> to vector<5x320xf32>
    %cst_44 = arith.constant dense<0.000000e+00> : vector<16x320xf32>
    %71 = tpu.matmul %69, %70, %cst_44 {dimension_numbers = #tpu.dot_dimension_numbers<[1], [0], [0], [1], [0, 0, 1, 1], [], []>} : vector<16x5xf32>, vector<5x320xf32>, vector<16x320xf32> -> vector<16x320xf32>
    %72 = arith.addf %67, %71 : vector<16x320xf32>
    %c14 = arith.constant 14 : index
    %c0_45 = arith.constant 0 : index
    %c0_46 = arith.constant 0 : index
    %73 = vector.load %arg2[%c14, %c0_45, %c0_46] : memref<25x16x5xf32, #tpu.memory_space<vmem>>, vector<1x16x5xf32>
    %74 = vector.shape_cast %73 : vector<1x16x5xf32> to vector<16x5xf32>
    %75 = vector.extract_strided_slice %1 {offsets = [0, 44], sizes = [5, 320], strides = [1, 1]} : vector<5x512xf32> to vector<5x320xf32>
    %cst_47 = arith.constant dense<0.000000e+00> : vector<16x320xf32>
    %76 = tpu.matmul %74, %75, %cst_47 {dimension_numbers = #tpu.dot_dimension_numbers<[1], [0], [0], [1], [0, 0, 1, 1], [], []>} : vector<16x5xf32>, vector<5x320xf32>, vector<16x320xf32> -> vector<16x320xf32>
    %77 = arith.addf %72, %76 : vector<16x320xf32>
    %c15 = arith.constant 15 : index
    %c0_48 = arith.constant 0 : index
    %c0_49 = arith.constant 0 : index
    %78 = vector.load %arg2[%c15, %c0_48, %c0_49] : memref<25x16x5xf32, #tpu.memory_space<vmem>>, vector<1x16x5xf32>
    %79 = vector.shape_cast %78 : vector<1x16x5xf32> to vector<16x5xf32>
    %80 = vector.extract_strided_slice %1 {offsets = [0, 60], sizes = [5, 320], strides = [1, 1]} : vector<5x512xf32> to vector<5x320xf32>
    %cst_50 = arith.constant dense<0.000000e+00> : vector<16x320xf32>
    %81 = tpu.matmul %79, %80, %cst_50 {dimension_numbers = #tpu.dot_dimension_numbers<[1], [0], [0], [1], [0, 0, 1, 1], [], []>} : vector<16x5xf32>, vector<5x320xf32>, vector<16x320xf32> -> vector<16x320xf32>
    %82 = arith.addf %77, %81 : vector<16x320xf32>
    %c16 = arith.constant 16 : index
    %c0_51 = arith.constant 0 : index
    %c0_52 = arith.constant 0 : index
    %83 = vector.load %arg2[%c16, %c0_51, %c0_52] : memref<25x16x5xf32, #tpu.memory_space<vmem>>, vector<1x16x5xf32>
    %84 = vector.shape_cast %83 : vector<1x16x5xf32> to vector<16x5xf32>
    %85 = vector.extract_strided_slice %1 {offsets = [0, 61], sizes = [5, 320], strides = [1, 1]} : vector<5x512xf32> to vector<5x320xf32>
    %cst_53 = arith.constant dense<0.000000e+00> : vector<16x320xf32>
    %86 = tpu.matmul %84, %85, %cst_53 {dimension_numbers = #tpu.dot_dimension_numbers<[1], [0], [0], [1], [0, 0, 1, 1], [], []>} : vector<16x5xf32>, vector<5x320xf32>, vector<16x320xf32> -> vector<16x320xf32>
    %87 = arith.addf %82, %86 : vector<16x320xf32>
    %c17 = arith.constant 17 : index
    %c0_54 = arith.constant 0 : index
    %c0_55 = arith.constant 0 : index
    %88 = vector.load %arg2[%c17, %c0_54, %c0_55] : memref<25x16x5xf32, #tpu.memory_space<vmem>>, vector<1x16x5xf32>
    %89 = vector.shape_cast %88 : vector<1x16x5xf32> to vector<16x5xf32>
    %90 = vector.extract_strided_slice %1 {offsets = [0, 62], sizes = [5, 320], strides = [1, 1]} : vector<5x512xf32> to vector<5x320xf32>
    %cst_56 = arith.constant dense<0.000000e+00> : vector<16x320xf32>
    %91 = tpu.matmul %89, %90, %cst_56 {dimension_numbers = #tpu.dot_dimension_numbers<[1], [0], [0], [1], [0, 0, 1, 1], [], []>} : vector<16x5xf32>, vector<5x320xf32>, vector<16x320xf32> -> vector<16x320xf32>
    %92 = arith.addf %87, %91 : vector<16x320xf32>
    %c18 = arith.constant 18 : index
    %c0_57 = arith.constant 0 : index
    %c0_58 = arith.constant 0 : index
    %93 = vector.load %arg2[%c18, %c0_57, %c0_58] : memref<25x16x5xf32, #tpu.memory_space<vmem>>, vector<1x16x5xf32>
    %94 = vector.shape_cast %93 : vector<1x16x5xf32> to vector<16x5xf32>
    %95 = vector.extract_strided_slice %1 {offsets = [0, 63], sizes = [5, 320], strides = [1, 1]} : vector<5x512xf32> to vector<5x320xf32>
    %cst_59 = arith.constant dense<0.000000e+00> : vector<16x320xf32>
    %96 = tpu.matmul %94, %95, %cst_59 {dimension_numbers = #tpu.dot_dimension_numbers<[1], [0], [0], [1], [0, 0, 1, 1], [], []>} : vector<16x5xf32>, vector<5x320xf32>, vector<16x320xf32> -> vector<16x320xf32>
    %97 = arith.addf %92, %96 : vector<16x320xf32>
    %c19 = arith.constant 19 : index
    %c0_60 = arith.constant 0 : index
    %c0_61 = arith.constant 0 : index
    %98 = vector.load %arg2[%c19, %c0_60, %c0_61] : memref<25x16x5xf32, #tpu.memory_space<vmem>>, vector<1x16x5xf32>
    %99 = vector.shape_cast %98 : vector<1x16x5xf32> to vector<16x5xf32>
    %100 = vector.extract_strided_slice %1 {offsets = [0, 64], sizes = [5, 320], strides = [1, 1]} : vector<5x512xf32> to vector<5x320xf32>
    %cst_62 = arith.constant dense<0.000000e+00> : vector<16x320xf32>
    %101 = tpu.matmul %99, %100, %cst_62 {dimension_numbers = #tpu.dot_dimension_numbers<[1], [0], [0], [1], [0, 0, 1, 1], [], []>} : vector<16x5xf32>, vector<5x320xf32>, vector<16x320xf32> -> vector<16x320xf32>
    %102 = arith.addf %97, %101 : vector<16x320xf32>
    %c20 = arith.constant 20 : index
    %c0_63 = arith.constant 0 : index
    %c0_64 = arith.constant 0 : index
    %103 = vector.load %arg2[%c20, %c0_63, %c0_64] : memref<25x16x5xf32, #tpu.memory_space<vmem>>, vector<1x16x5xf32>
    %104 = vector.shape_cast %103 : vector<1x16x5xf32> to vector<16x5xf32>
    %105 = vector.extract_strided_slice %1 {offsets = [0, 80], sizes = [5, 320], strides = [1, 1]} : vector<5x512xf32> to vector<5x320xf32>
    %cst_65 = arith.constant dense<0.000000e+00> : vector<16x320xf32>
    %106 = tpu.matmul %104, %105, %cst_65 {dimension_numbers = #tpu.dot_dimension_numbers<[1], [0], [0], [1], [0, 0, 1, 1], [], []>} : vector<16x5xf32>, vector<5x320xf32>, vector<16x320xf32> -> vector<16x320xf32>
    %107 = arith.addf %102, %106 : vector<16x320xf32>
    %c21 = arith.constant 21 : index
    %c0_66 = arith.constant 0 : index
    %c0_67 = arith.constant 0 : index
    %108 = vector.load %arg2[%c21, %c0_66, %c0_67] : memref<25x16x5xf32, #tpu.memory_space<vmem>>, vector<1x16x5xf32>
    %109 = vector.shape_cast %108 : vector<1x16x5xf32> to vector<16x5xf32>
    %110 = vector.extract_strided_slice %1 {offsets = [0, 81], sizes = [5, 320], strides = [1, 1]} : vector<5x512xf32> to vector<5x320xf32>
    %cst_68 = arith.constant dense<0.000000e+00> : vector<16x320xf32>
    %111 = tpu.matmul %109, %110, %cst_68 {dimension_numbers = #tpu.dot_dimension_numbers<[1], [0], [0], [1], [0, 0, 1, 1], [], []>} : vector<16x5xf32>, vector<5x320xf32>, vector<16x320xf32> -> vector<16x320xf32>
    %112 = arith.addf %107, %111 : vector<16x320xf32>
    %c22 = arith.constant 22 : index
    %c0_69 = arith.constant 0 : index
    %c0_70 = arith.constant 0 : index
    %113 = vector.load %arg2[%c22, %c0_69, %c0_70] : memref<25x16x5xf32, #tpu.memory_space<vmem>>, vector<1x16x5xf32>
    %114 = vector.shape_cast %113 : vector<1x16x5xf32> to vector<16x5xf32>
    %115 = vector.extract_strided_slice %1 {offsets = [0, 82], sizes = [5, 320], strides = [1, 1]} : vector<5x512xf32> to vector<5x320xf32>
    %cst_71 = arith.constant dense<0.000000e+00> : vector<16x320xf32>
    %116 = tpu.matmul %114, %115, %cst_71 {dimension_numbers = #tpu.dot_dimension_numbers<[1], [0], [0], [1], [0, 0, 1, 1], [], []>} : vector<16x5xf32>, vector<5x320xf32>, vector<16x320xf32> -> vector<16x320xf32>
    %117 = arith.addf %112, %116 : vector<16x320xf32>
    %c23 = arith.constant 23 : index
    %c0_72 = arith.constant 0 : index
    %c0_73 = arith.constant 0 : index
    %118 = vector.load %arg2[%c23, %c0_72, %c0_73] : memref<25x16x5xf32, #tpu.memory_space<vmem>>, vector<1x16x5xf32>
    %119 = vector.shape_cast %118 : vector<1x16x5xf32> to vector<16x5xf32>
    %120 = vector.extract_strided_slice %1 {offsets = [0, 83], sizes = [5, 320], strides = [1, 1]} : vector<5x512xf32> to vector<5x320xf32>
    %cst_74 = arith.constant dense<0.000000e+00> : vector<16x320xf32>
    %121 = tpu.matmul %119, %120, %cst_74 {dimension_numbers = #tpu.dot_dimension_numbers<[1], [0], [0], [1], [0, 0, 1, 1], [], []>} : vector<16x5xf32>, vector<5x320xf32>, vector<16x320xf32> -> vector<16x320xf32>
    %122 = arith.addf %117, %121 : vector<16x320xf32>
    %c24 = arith.constant 24 : index
    %c0_75 = arith.constant 0 : index
    %c0_76 = arith.constant 0 : index
    %123 = vector.load %arg2[%c24, %c0_75, %c0_76] : memref<25x16x5xf32, #tpu.memory_space<vmem>>, vector<1x16x5xf32>
    %124 = vector.shape_cast %123 : vector<1x16x5xf32> to vector<16x5xf32>
    %125 = vector.extract_strided_slice %1 {offsets = [0, 84], sizes = [5, 320], strides = [1, 1]} : vector<5x512xf32> to vector<5x320xf32>
    %cst_77 = arith.constant dense<0.000000e+00> : vector<16x320xf32>
    %126 = tpu.matmul %124, %125, %cst_77 {dimension_numbers = #tpu.dot_dimension_numbers<[1], [0], [0], [1], [0, 0, 1, 1], [], []>} : vector<16x5xf32>, vector<5x320xf32>, vector<16x320xf32> -> vector<16x320xf32>
    %127 = arith.addf %122, %126 : vector<16x320xf32>
    %c0_78 = arith.constant 0 : index
    %c0_79 = arith.constant 0 : index
    %128 = vector.load %arg3[%c0_78, %c0_79] : memref<16x1xf32, #tpu.memory_space<vmem>>, vector<16x1xf32>
    %129 = vector.broadcast %128 : vector<16x1xf32> to vector<16x320xf32>
    %130 = arith.addf %127, %129 : vector<16x320xf32>
    %cst_80 = arith.constant 0.000000e+00 : f32
    %131 = vector.broadcast %cst_80 : f32 to vector<16x320xf32>
    %132 = arith.maximumf %130, %131 : vector<16x320xf32>
    %c0_81 = arith.constant 0 : index
    %c0_82 = arith.constant 0 : index
    %133 = vector.load %arg4[%c0_81, %c0_82] : memref<320x384xf32, #tpu.memory_space<vmem>>, vector<320x384xf32>
    %cst_83 = arith.constant dense<0.000000e+00> : vector<16x384xf32>
    %134 = tpu.matmul %132, %133, %cst_83 {dimension_numbers = #tpu.dot_dimension_numbers<[1], [0], [0], [1], [0, 0, 1, 1], [], []>} : vector<16x320xf32>, vector<320x384xf32>, vector<16x384xf32> -> vector<16x384xf32>
    %cst_84 = arith.constant 0.000000e+00 : f32
    %135 = vector.broadcast %cst_84 : f32 to vector<32x288xf32>
    %c0_85 = arith.constant 0 : index
    %c0_86 = arith.constant 0 : index
    %c0_87 = arith.constant 0 : index
    %136 = vector.load %arg5[%c0_85, %c0_86, %c0_87] : memref<9x32x16xf32, #tpu.memory_space<vmem>>, vector<1x32x16xf32>
    %137 = vector.shape_cast %136 : vector<1x32x16xf32> to vector<32x16xf32>
    %138 = vector.extract_strided_slice %134 {offsets = [0, 0], sizes = [16, 288], strides = [1, 1]} : vector<16x384xf32> to vector<16x288xf32>
    %cst_88 = arith.constant dense<0.000000e+00> : vector<32x288xf32>
    %139 = tpu.matmul %137, %138, %cst_88 {dimension_numbers = #tpu.dot_dimension_numbers<[1], [0], [0], [1], [0, 0, 1, 1], [], []>} : vector<32x16xf32>, vector<16x288xf32>, vector<32x288xf32> -> vector<32x288xf32>
    %140 = arith.addf %135, %139 : vector<32x288xf32>
    %c1_89 = arith.constant 1 : index
    %c0_90 = arith.constant 0 : index
    %c0_91 = arith.constant 0 : index
    %141 = vector.load %arg5[%c1_89, %c0_90, %c0_91] : memref<9x32x16xf32, #tpu.memory_space<vmem>>, vector<1x32x16xf32>
    %142 = vector.shape_cast %141 : vector<1x32x16xf32> to vector<32x16xf32>
    %143 = vector.extract_strided_slice %134 {offsets = [0, 1], sizes = [16, 288], strides = [1, 1]} : vector<16x384xf32> to vector<16x288xf32>
    %cst_92 = arith.constant dense<0.000000e+00> : vector<32x288xf32>
    %144 = tpu.matmul %142, %143, %cst_92 {dimension_numbers = #tpu.dot_dimension_numbers<[1], [0], [0], [1], [0, 0, 1, 1], [], []>} : vector<32x16xf32>, vector<16x288xf32>, vector<32x288xf32> -> vector<32x288xf32>
    %145 = arith.addf %140, %144 : vector<32x288xf32>
    %c2_93 = arith.constant 2 : index
    %c0_94 = arith.constant 0 : index
    %c0_95 = arith.constant 0 : index
    %146 = vector.load %arg5[%c2_93, %c0_94, %c0_95] : memref<9x32x16xf32, #tpu.memory_space<vmem>>, vector<1x32x16xf32>
    %147 = vector.shape_cast %146 : vector<1x32x16xf32> to vector<32x16xf32>
    %148 = vector.extract_strided_slice %134 {offsets = [0, 2], sizes = [16, 288], strides = [1, 1]} : vector<16x384xf32> to vector<16x288xf32>
    %cst_96 = arith.constant dense<0.000000e+00> : vector<32x288xf32>
    %149 = tpu.matmul %147, %148, %cst_96 {dimension_numbers = #tpu.dot_dimension_numbers<[1], [0], [0], [1], [0, 0, 1, 1], [], []>} : vector<32x16xf32>, vector<16x288xf32>, vector<32x288xf32> -> vector<32x288xf32>
    %150 = arith.addf %145, %149 : vector<32x288xf32>
    %c3_97 = arith.constant 3 : index
    %c0_98 = arith.constant 0 : index
    %c0_99 = arith.constant 0 : index
    %151 = vector.load %arg5[%c3_97, %c0_98, %c0_99] : memref<9x32x16xf32, #tpu.memory_space<vmem>>, vector<1x32x16xf32>
    %152 = vector.shape_cast %151 : vector<1x32x16xf32> to vector<32x16xf32>
    %153 = vector.extract_strided_slice %134 {offsets = [0, 18], sizes = [16, 288], strides = [1, 1]} : vector<16x384xf32> to vector<16x288xf32>
    %cst_100 = arith.constant dense<0.000000e+00> : vector<32x288xf32>
    %154 = tpu.matmul %152, %153, %cst_100 {dimension_numbers = #tpu.dot_dimension_numbers<[1], [0], [0], [1], [0, 0, 1, 1], [], []>} : vector<32x16xf32>, vector<16x288xf32>, vector<32x288xf32> -> vector<32x288xf32>
    %155 = arith.addf %150, %154 : vector<32x288xf32>
    %c4_101 = arith.constant 4 : index
    %c0_102 = arith.constant 0 : index
    %c0_103 = arith.constant 0 : index
    %156 = vector.load %arg5[%c4_101, %c0_102, %c0_103] : memref<9x32x16xf32, #tpu.memory_space<vmem>>, vector<1x32x16xf32>
    %157 = vector.shape_cast %156 : vector<1x32x16xf32> to vector<32x16xf32>
    %158 = vector.extract_strided_slice %134 {offsets = [0, 19], sizes = [16, 288], strides = [1, 1]} : vector<16x384xf32> to vector<16x288xf32>
    %cst_104 = arith.constant dense<0.000000e+00> : vector<32x288xf32>
    %159 = tpu.matmul %157, %158, %cst_104 {dimension_numbers = #tpu.dot_dimension_numbers<[1], [0], [0], [1], [0, 0, 1, 1], [], []>} : vector<32x16xf32>, vector<16x288xf32>, vector<32x288xf32> -> vector<32x288xf32>
    %160 = arith.addf %155, %159 : vector<32x288xf32>
    %c5_105 = arith.constant 5 : index
    %c0_106 = arith.constant 0 : index
    %c0_107 = arith.constant 0 : index
    %161 = vector.load %arg5[%c5_105, %c0_106, %c0_107] : memref<9x32x16xf32, #tpu.memory_space<vmem>>, vector<1x32x16xf32>
    %162 = vector.shape_cast %161 : vector<1x32x16xf32> to vector<32x16xf32>
    %163 = vector.extract_strided_slice %134 {offsets = [0, 20], sizes = [16, 288], strides = [1, 1]} : vector<16x384xf32> to vector<16x288xf32>
    %cst_108 = arith.constant dense<0.000000e+00> : vector<32x288xf32>
    %164 = tpu.matmul %162, %163, %cst_108 {dimension_numbers = #tpu.dot_dimension_numbers<[1], [0], [0], [1], [0, 0, 1, 1], [], []>} : vector<32x16xf32>, vector<16x288xf32>, vector<32x288xf32> -> vector<32x288xf32>
    %165 = arith.addf %160, %164 : vector<32x288xf32>
    %c6_109 = arith.constant 6 : index
    %c0_110 = arith.constant 0 : index
    %c0_111 = arith.constant 0 : index
    %166 = vector.load %arg5[%c6_109, %c0_110, %c0_111] : memref<9x32x16xf32, #tpu.memory_space<vmem>>, vector<1x32x16xf32>
    %167 = vector.shape_cast %166 : vector<1x32x16xf32> to vector<32x16xf32>
    %168 = vector.extract_strided_slice %134 {offsets = [0, 36], sizes = [16, 288], strides = [1, 1]} : vector<16x384xf32> to vector<16x288xf32>
    %cst_112 = arith.constant dense<0.000000e+00> : vector<32x288xf32>
    %169 = tpu.matmul %167, %168, %cst_112 {dimension_numbers = #tpu.dot_dimension_numbers<[1], [0], [0], [1], [0, 0, 1, 1], [], []>} : vector<32x16xf32>, vector<16x288xf32>, vector<32x288xf32> -> vector<32x288xf32>
    %170 = arith.addf %165, %169 : vector<32x288xf32>
    %c7_113 = arith.constant 7 : index
    %c0_114 = arith.constant 0 : index
    %c0_115 = arith.constant 0 : index
    %171 = vector.load %arg5[%c7_113, %c0_114, %c0_115] : memref<9x32x16xf32, #tpu.memory_space<vmem>>, vector<1x32x16xf32>
    %172 = vector.shape_cast %171 : vector<1x32x16xf32> to vector<32x16xf32>
    %173 = vector.extract_strided_slice %134 {offsets = [0, 37], sizes = [16, 288], strides = [1, 1]} : vector<16x384xf32> to vector<16x288xf32>
    %cst_116 = arith.constant dense<0.000000e+00> : vector<32x288xf32>
    %174 = tpu.matmul %172, %173, %cst_116 {dimension_numbers = #tpu.dot_dimension_numbers<[1], [0], [0], [1], [0, 0, 1, 1], [], []>} : vector<32x16xf32>, vector<16x288xf32>, vector<32x288xf32> -> vector<32x288xf32>
    %175 = arith.addf %170, %174 : vector<32x288xf32>
    %c8_117 = arith.constant 8 : index
    %c0_118 = arith.constant 0 : index
    %c0_119 = arith.constant 0 : index
    %176 = vector.load %arg5[%c8_117, %c0_118, %c0_119] : memref<9x32x16xf32, #tpu.memory_space<vmem>>, vector<1x32x16xf32>
    %177 = vector.shape_cast %176 : vector<1x32x16xf32> to vector<32x16xf32>
    %178 = vector.extract_strided_slice %134 {offsets = [0, 38], sizes = [16, 288], strides = [1, 1]} : vector<16x384xf32> to vector<16x288xf32>
    %cst_120 = arith.constant dense<0.000000e+00> : vector<32x288xf32>
    %179 = tpu.matmul %177, %178, %cst_120 {dimension_numbers = #tpu.dot_dimension_numbers<[1], [0], [0], [1], [0, 0, 1, 1], [], []>} : vector<32x16xf32>, vector<16x288xf32>, vector<32x288xf32> -> vector<32x288xf32>
    %180 = arith.addf %175, %179 : vector<32x288xf32>
    %c0_121 = arith.constant 0 : index
    %c0_122 = arith.constant 0 : index
    %181 = vector.load %arg6[%c0_121, %c0_122] : memref<32x1xf32, #tpu.memory_space<vmem>>, vector<32x1xf32>
    %182 = vector.broadcast %181 : vector<32x1xf32> to vector<32x288xf32>
    %183 = arith.addf %180, %182 : vector<32x288xf32>
    %cst_123 = arith.constant 0.000000e+00 : f32
    %184 = vector.broadcast %cst_123 : f32 to vector<32x288xf32>
    %185 = arith.maximumf %183, %184 : vector<32x288xf32>
    %c0_124 = arith.constant 0 : index
    %c0_125 = arith.constant 0 : index
    %186 = vector.load %arg7[%c0_124, %c0_125] : memref<1x288xf32, #tpu.memory_space<vmem>>, vector<1x288xf32>
    %187 = vector.broadcast %186 : vector<1x288xf32> to vector<32x288xf32>
    %188 = arith.addf %185, %187 : vector<32x288xf32>
    %cst_126 = arith.constant dense<0xFF800000> : vector<32xf32>
    %189 = vector.multi_reduction <maximumf>, %188, %cst_126 [1] : vector<32x288xf32> to vector<32xf32>
    %190 = vector.shape_cast %189 : vector<32xf32> to vector<32x1xf32>
    %191 = vector.broadcast %190 : vector<32x1xf32> to vector<32x288xf32>
    %192 = arith.subf %188, %191 : vector<32x288xf32>
    %193 = math.exp %192 : vector<32x288xf32>
    %cst_127 = arith.constant dense<0.000000e+00> : vector<32xf32>
    %194 = vector.multi_reduction <add>, %193, %cst_127 [1] : vector<32x288xf32> to vector<32xf32>
    %195 = vector.shape_cast %194 : vector<32xf32> to vector<32x1xf32>
    %c0_128 = arith.constant 0 : index
    %c0_129 = arith.constant 0 : index
    %196 = vector.load %arg8[%c0_128, %c0_129] : memref<288x2xf32, #tpu.memory_space<vmem>>, vector<288x2xf32>
    %cst_130 = arith.constant dense<0.000000e+00> : vector<32x2xf32>
    %197 = tpu.matmul %193, %196, %cst_130 {dimension_numbers = #tpu.dot_dimension_numbers<[1], [0], [0], [1], [0, 0, 1, 1], [], []>} : vector<32x288xf32>, vector<288x2xf32>, vector<32x2xf32> -> vector<32x2xf32>
    %198 = tpu.reciprocal %195 : vector<32x1xf32> -> vector<32x1xf32>
    %199 = vector.broadcast %198 : vector<32x1xf32> to vector<32x2xf32>
    %200 = arith.mulf %197, %199 : vector<32x2xf32>
    %201 = vector.extract_strided_slice %200 {offsets = [0, 0], sizes = [32, 1], strides = [1, 1]} : vector<32x2xf32> to vector<32x1xf32>
    %c0_131 = arith.constant 0 : index
    %c0_132 = arith.constant 0 : index
    %202 = vector.load %arg10[%c0_131, %c0_132] : memref<32x128xf32, #tpu.memory_space<vmem>>, vector<32x128xf32>
    %203 = vector.broadcast %201 : vector<32x1xf32> to vector<32x128xf32>
    %204 = arith.mulf %203, %202 : vector<32x128xf32>
    %205 = vector.extract_strided_slice %200 {offsets = [0, 1], sizes = [32, 1], strides = [1, 1]} : vector<32x2xf32> to vector<32x1xf32>
    %c0_133 = arith.constant 0 : index
    %c0_134 = arith.constant 0 : index
    %206 = vector.load %arg11[%c0_133, %c0_134] : memref<32x128xf32, #tpu.memory_space<vmem>>, vector<32x128xf32>
    %207 = vector.broadcast %205 : vector<32x1xf32> to vector<32x128xf32>
    %208 = arith.mulf %207, %206 : vector<32x128xf32>
    %209 = arith.addf %204, %208 : vector<32x128xf32>
    %cst_135 = arith.constant dense<0.000000e+00> : vector<128xf32>
    %210 = vector.multi_reduction <add>, %209, %cst_135 [0] : vector<32x128xf32> to vector<128xf32>
    %211 = vector.shape_cast %210 : vector<128xf32> to vector<1x128xf32>
    %c0_136 = arith.constant 0 : index
    %c0_137 = arith.constant 0 : index
    %c0_138 = arith.constant 0 : index
    %212 = vector.load %arg9[%c0_136, %c0_137, %c0_138] : memref<1x1x4xf32, #tpu.memory_space<vmem>>, vector<1x1x4xf32>
    %213 = vector.shape_cast %212 : vector<1x1x4xf32> to vector<1x4xf32>
    %c0_139 = arith.constant 0 : index
    %c0_140 = arith.constant 0 : index
    %214 = vector.load %arg12[%c0_139, %c0_140] : memref<4x128xf32, #tpu.memory_space<vmem>>, vector<4x128xf32>
    %cst_141 = arith.constant dense<0.000000e+00> : vector<1x128xf32>
    %215 = tpu.matmul %213, %214, %cst_141 {dimension_numbers = #tpu.dot_dimension_numbers<[1], [0], [0], [1], [0, 0, 1, 1], [], []>} : vector<1x4xf32>, vector<4x128xf32>, vector<1x128xf32> -> vector<1x128xf32>
    %216 = arith.addf %211, %215 : vector<1x128xf32>
    %c0_142 = arith.constant 0 : index
    %c0_143 = arith.constant 0 : index
    %217 = vector.load %arg13[%c0_142, %c0_143] : memref<1x128xf32, #tpu.memory_space<vmem>>, vector<1x128xf32>
    %218 = arith.addf %216, %217 : vector<1x128xf32>
    %cst_144 = arith.constant 0.000000e+00 : f32
    %219 = vector.broadcast %cst_144 : f32 to vector<1x128xf32>
    %220 = arith.maximumf %218, %219 : vector<1x128xf32>
    %c0_145 = arith.constant 0 : index
    %c0_146 = arith.constant 0 : index
    %221 = vector.load %arg14[%c0_145, %c0_146] : memref<128x128xf32, #tpu.memory_space<vmem>>, vector<128x128xf32>
    %cst_147 = arith.constant dense<0.000000e+00> : vector<1x128xf32>
    %222 = tpu.matmul %220, %221, %cst_147 {dimension_numbers = #tpu.dot_dimension_numbers<[1], [0], [0], [1], [0, 0, 1, 1], [], []>} : vector<1x128xf32>, vector<128x128xf32>, vector<1x128xf32> -> vector<1x128xf32>
    %c0_148 = arith.constant 0 : index
    %c0_149 = arith.constant 0 : index
    %223 = vector.load %arg15[%c0_148, %c0_149] : memref<1x128xf32, #tpu.memory_space<vmem>>, vector<1x128xf32>
    %224 = arith.addf %222, %223 : vector<1x128xf32>
    %cst_150 = arith.constant 0.000000e+00 : f32
    %225 = vector.broadcast %cst_150 : f32 to vector<1x128xf32>
    %226 = arith.maximumf %224, %225 : vector<1x128xf32>
    %c0_151 = arith.constant 0 : index
    %c0_152 = arith.constant 0 : index
    %227 = vector.load %arg16[%c0_151, %c0_152] : memref<128x128xf32, #tpu.memory_space<vmem>>, vector<128x128xf32>
    %cst_153 = arith.constant dense<0.000000e+00> : vector<1x128xf32>
    %228 = tpu.matmul %226, %227, %cst_153 {dimension_numbers = #tpu.dot_dimension_numbers<[1], [0], [0], [1], [0, 0, 1, 1], [], []>} : vector<1x128xf32>, vector<128x128xf32>, vector<1x128xf32> -> vector<1x128xf32>
    %c0_154 = arith.constant 0 : index
    %c0_155 = arith.constant 0 : index
    %229 = vector.load %arg17[%c0_154, %c0_155] : memref<1x128xf32, #tpu.memory_space<vmem>>, vector<1x128xf32>
    %230 = arith.addf %228, %229 : vector<1x128xf32>
    %cst_156 = arith.constant 0.000000e+00 : f32
    %231 = vector.broadcast %cst_156 : f32 to vector<1x128xf32>
    %232 = arith.maximumf %230, %231 : vector<1x128xf32>
    %c0_157 = arith.constant 0 : index
    %c0_158 = arith.constant 0 : index
    %233 = vector.load %arg18[%c0_157, %c0_158] : memref<128x5xf32, #tpu.memory_space<vmem>>, vector<128x5xf32>
    %cst_159 = arith.constant dense<0.000000e+00> : vector<1x5xf32>
    %234 = tpu.matmul %232, %233, %cst_159 {dimension_numbers = #tpu.dot_dimension_numbers<[1], [0], [0], [1], [0, 0, 1, 1], [], []>} : vector<1x128xf32>, vector<128x5xf32>, vector<1x5xf32> -> vector<1x5xf32>
    %c0_160 = arith.constant 0 : index
    %c0_161 = arith.constant 0 : index
    %235 = vector.load %arg19[%c0_160, %c0_161] : memref<1x5xf32, #tpu.memory_space<vmem>>, vector<1x5xf32>
    %236 = arith.addf %234, %235 : vector<1x5xf32>
    %c0_162 = arith.constant 0 : index
    %c0_163 = arith.constant 0 : index
    %c0_164 = arith.constant 0 : index
    %237 = vector.load %arg20[%c0_162, %c0_163, %c0_164] : memref<1x1x5xf32, #tpu.memory_space<vmem>>, vector<1x1x5xf32>
    %238 = vector.shape_cast %237 : vector<1x1x5xf32> to vector<1x5xf32>
    %239 = vector.shape_cast %236 : vector<1x5xf32> to vector<1x1x5xf32>
    tpu.vector_store %arg20[%c0_162, %c0_163, %c0_164], %239 {strides = array<i32>} : memref<1x1x5xf32, #tpu.memory_space<vmem>>, vector<1x1x5xf32>,
    return
  }
  func.func @transform_0(%arg0: i32) -> (i32, i32, i32) {
    %c0_i32 = arith.constant 0 : i32
    %c0_i32_0 = arith.constant 0 : i32
    %c0_i32_1 = arith.constant 0 : i32
    return %arg0, %c0_i32, %c0_i32_0 : i32, i32, i32
  }
  func.func @transform_1(%arg0: i32) -> (i32, i32, i32) {
    %c0_i32 = arith.constant 0 : i32
    %c0_i32_0 = arith.constant 0 : i32
    %c0_i32_1 = arith.constant 0 : i32
    %c0_i32_2 = arith.constant 0 : i32
    return %c0_i32, %c0_i32_0, %c0_i32_1 : i32, i32, i32
  }
  func.func @transform_2(%arg0: i32) -> (i32, i32) {
    %c0_i32 = arith.constant 0 : i32
    %c0_i32_0 = arith.constant 0 : i32
    %c0_i32_1 = arith.constant 0 : i32
    return %c0_i32, %c0_i32_0 : i32, i32
  }
  func.func @transform_3(%arg0: i32) -> (i32, i32) {
    %c0_i32 = arith.constant 0 : i32
    %c0_i32_0 = arith.constant 0 : i32
    %c0_i32_1 = arith.constant 0 : i32
    return %c0_i32, %c0_i32_0 : i32, i32
  }
  func.func @transform_4(%arg0: i32) -> (i32, i32, i32) {
    %c0_i32 = arith.constant 0 : i32
    %c0_i32_0 = arith.constant 0 : i32
    %c0_i32_1 = arith.constant 0 : i32
    %c0_i32_2 = arith.constant 0 : i32
    return %c0_i32, %c0_i32_0, %c0_i32_1 : i32, i32, i32
  }
  func.func @transform_5(%arg0: i32) -> (i32, i32) {
    %c0_i32 = arith.constant 0 : i32
    %c0_i32_0 = arith.constant 0 : i32
    %c0_i32_1 = arith.constant 0 : i32
    return %c0_i32, %c0_i32_0 : i32, i32
  }
  func.func @transform_6(%arg0: i32) -> (i32, i32) {
    %c0_i32 = arith.constant 0 : i32
    %c0_i32_0 = arith.constant 0 : i32
    %c0_i32_1 = arith.constant 0 : i32
    return %c0_i32, %c0_i32_0 : i32, i32
  }
  func.func @transform_7(%arg0: i32) -> (i32, i32) {
    %c0_i32 = arith.constant 0 : i32
    %c0_i32_0 = arith.constant 0 : i32
    %c0_i32_1 = arith.constant 0 : i32
    return %c0_i32, %c0_i32_0 : i32, i32
  }
  func.func @transform_8(%arg0: i32) -> (i32, i32, i32) {
    %c0_i32 = arith.constant 0 : i32
    %c0_i32_0 = arith.constant 0 : i32
    %c0_i32_1 = arith.constant 0 : i32
    return %arg0, %c0_i32, %c0_i32_0 : i32, i32, i32
  }
  func.func @transform_9(%arg0: i32) -> (i32, i32) {
    %c0_i32 = arith.constant 0 : i32
    %c0_i32_0 = arith.constant 0 : i32
    %c0_i32_1 = arith.constant 0 : i32
    return %c0_i32, %c0_i32_0 : i32, i32
  }
  func.func @transform_10(%arg0: i32) -> (i32, i32) {
    %c0_i32 = arith.constant 0 : i32
    %c0_i32_0 = arith.constant 0 : i32
    %c0_i32_1 = arith.constant 0 : i32
    return %c0_i32, %c0_i32_0 : i32, i32
  }
  func.func @transform_11(%arg0: i32) -> (i32, i32) {
    %c0_i32 = arith.constant 0 : i32
    %c0_i32_0 = arith.constant 0 : i32
    %c0_i32_1 = arith.constant 0 : i32
    return %c0_i32, %c0_i32_0 : i32, i32
  }
  func.func @transform_12(%arg0: i32) -> (i32, i32) {
    %c0_i32 = arith.constant 0 : i32
    %c0_i32_0 = arith.constant 0 : i32
    %c0_i32_1 = arith.constant 0 : i32
    return %c0_i32, %c0_i32_0 : i32, i32
  }
  func.func @transform_13(%arg0: i32) -> (i32, i32) {
    %c0_i32 = arith.constant 0 : i32
    %c0_i32_0 = arith.constant 0 : i32
    %c0_i32_1 = arith.constant 0 : i32
    return %c0_i32, %c0_i32_0 : i32, i32
  }
  func.func @transform_14(%arg0: i32) -> (i32, i32) {
    %c0_i32 = arith.constant 0 : i32
    %c0_i32_0 = arith.constant 0 : i32
    %c0_i32_1 = arith.constant 0 : i32
    return %c0_i32, %c0_i32_0 : i32, i32
  }
  func.func @transform_15(%arg0: i32) -> (i32, i32) {
    %c0_i32 = arith.constant 0 : i32
    %c0_i32_0 = arith.constant 0 : i32
    %c0_i32_1 = arith.constant 0 : i32
    return %c0_i32, %c0_i32_0 : i32, i32
  }
  func.func @transform_16(%arg0: i32) -> (i32, i32) {
    %c0_i32 = arith.constant 0 : i32
    %c0_i32_0 = arith.constant 0 : i32
    %c0_i32_1 = arith.constant 0 : i32
    return %c0_i32, %c0_i32_0 : i32, i32
  }
  func.func @transform_17(%arg0: i32) -> (i32, i32) {
    %c0_i32 = arith.constant 0 : i32
    %c0_i32_0 = arith.constant 0 : i32
    %c0_i32_1 = arith.constant 0 : i32
    return %c0_i32, %c0_i32_0 : i32, i32
  }
  func.func @transform_18(%arg0: i32) -> (i32, i32) {
    %c0_i32 = arith.constant 0 : i32
    %c0_i32_0 = arith.constant 0 : i32
    %c0_i32_1 = arith.constant 0 : i32
    return %c0_i32, %c0_i32_0 : i32, i32
  }
  func.func @transform_19(%arg0: i32) -> (i32, i32, i32) {
    %c0_i32 = arith.constant 0 : i32
    %c0_i32_0 = arith.constant 0 : i32
    %c0_i32_1 = arith.constant 0 : i32
    return %arg0, %c0_i32, %c0_i32_0 : i32, i32, i32
  }
}

</mosaic_0001>

<llo_original>
// kernel: policy_net_forward.1
$region0: #{policy_net_forward.1}
  #allocation0 [shape = 'u32[]', space=smem, size = 0x4, offset = 0x4, fixed_abs, tag = 'smem constant byte address 0x4 - core index']
  #allocation1 [shape = 'u32[144,128]{1,0:T(1,128)}', space=vmem, size = 0x12000, scoped, tag = 'internal scratch']
  %s0 = inlined_call_operand.vmem [shape: f32[2,5,512], index: 0, kind: input, shape index: {}]
  %s1 = inlined_call_operand.vmem [shape: f32[25,16,5], index: 1, kind: input, shape index: {}]
  %s2 = inlined_call_operand.vmem [shape: f32[16,1], index: 2, kind: input, shape index: {}]
  %s3 = inlined_call_operand.vmem [shape: f32[320,384], index: 3, kind: input, shape index: {}]
  %s4 = inlined_call_operand.vmem [shape: f32[9,32,16], index: 4, kind: input, shape index: {}]
  %s5 = inlined_call_operand.vmem [shape: f32[32,1], index: 5, kind: input, shape index: {}]
  %s6 = inlined_call_operand.vmem [shape: f32[1,288], index: 6, kind: input, shape index: {}]
  %s7 = inlined_call_operand.vmem [shape: f32[288,2], index: 7, kind: input, shape index: {}]
  %s8 = inlined_call_operand.vmem [shape: f32[2,1,4], index: 8, kind: input, shape index: {}]
  %s9 = inlined_call_operand.vmem [shape: f32[32,128], index: 9, kind: input, shape index: {}]
  %s10 = inlined_call_operand.vmem [shape: f32[32,128], index: 10, kind: input, shape index: {}]
  %s11 = inlined_call_operand.vmem [shape: f32[4,128], index: 11, kind: input, shape index: {}]
  %s12 = inlined_call_operand.vmem [shape: f32[1,128], index: 12, kind: input, shape index: {}]
  %s13 = inlined_call_operand.vmem [shape: f32[128,128], index: 13, kind: input, shape index: {}]
  %s14 = inlined_call_operand.vmem [shape: f32[1,128], index: 14, kind: input, shape index: {}]
  %s15 = inlined_call_operand.vmem [shape: f32[128,128], index: 15, kind: input, shape index: {}]
  %s16 = inlined_call_operand.vmem [shape: f32[1,128], index: 16, kind: input, shape index: {}]
  %s17 = inlined_call_operand.vmem [shape: f32[128,5], index: 17, kind: input, shape index: {}]
  %s18 = inlined_call_operand.vmem [shape: f32[1,5], index: 18, kind: input, shape index: {}]
  %s19 = inlined_call_operand.hbm [shape: f32[2,1,5], index: 19, kind: output, shape index: {}]
  %s20 = sld [smem:[#allocation0]]
  $region109: #{policy_net_forward.1} parent=0
    _
  %s22 = ssub.s32 1, %s20
  %s23 = scalar_select 0, %s22, %s20
  $region1: #{policy_net_forward.1} parent=0
    #allocation2 [shape = 'u8[1024]{0}', space=vmem, size = 0x400, scoped, tag = 'output window, operand 0']
    #allocation3 [shape = 's32[2]{0}', space=sflag, size = 0x8, scoped, tag = 'scoped memory for policy_net_forward.1']
    %24 = vsyncpa [#allocation3], 0
    %s25 = scalar_lea.sflag [#allocation3], 1
    %26 = vsyncpa %s25, 0
    loop: start=0, step=1, limit=4
    $region2: #{policy_net_forward.1} parent=1 // loop_pre_header
      _
    $region3: #{policy_net_forward.1} parent=1 // loop_header
      %s28 = sphi 0, %s32
      %p29 = scmp.ge.s32.totalorder %s28, 4
      %s38 = sphi 0, %s40
      %s41 = sphi 0, %s38
      %s42 = sphi 0, %s41
      %s58 = sphi 0, %s42
      %s62 = sphi 0, %s62
      %s64 = sphi 0, %s62
      %s65 = sphi 0, %s64
      %s79 = sphi 0, %s65
      %s83 = sphi 0, %s83
      %s85 = sphi 0, %s83
      %s86 = sphi 0, %s85
      %s100 = sphi 0, %s86
      %s104 = sphi 0, %s104
      %s106 = sphi 0, %s104
      %s107 = sphi 0, %s106
      %s121 = sphi 0, %s107
      %s125 = sphi 0, %s125
      %s127 = sphi 0, %s125
      %s128 = sphi 0, %s127
      %s142 = sphi 0, %s128
      %s146 = sphi 0, %s146
      %s148 = sphi 0, %s146
      %s149 = sphi 0, %s148
      %s163 = sphi 0, %s149
      %s167 = sphi 0, %s167
      %s169 = sphi 0, %s167
      %s170 = sphi 0, %s169
      %s184 = sphi 0, %s170
      %s188 = sphi 0, %s188
      %s190 = sphi 0, %s188
      %s191 = sphi 0, %s190
      %s205 = sphi 0, %s191
      %s211 = sphi 0, %s213
      %s214 = sphi 0, %s211
      %s215 = sphi 0, %s214
      %s231 = sphi 0, %s215
      %s235 = sphi 0, %s235
      %s237 = sphi 0, %s235
      %s238 = sphi 0, %s237
      %s252 = sphi 0, %s238
      %s256 = sphi 0, %s256
      %s258 = sphi 0, %s256
      %s259 = sphi 0, %s258
      %s273 = sphi 0, %s259
      %s277 = sphi 0, %s277
      %s279 = sphi 0, %s277
      %s280 = sphi 0, %s279
      %s294 = sphi 0, %s280
      %s298 = sphi 0, %s298
      %s300 = sphi 0, %s298
      %s301 = sphi 0, %s300
      %s315 = sphi 0, %s301
      %s319 = sphi 0, %s319
      %s321 = sphi 0, %s319
      %s322 = sphi 0, %s321
      %s336 = sphi 0, %s322
      %s340 = sphi 0, %s340
      %s342 = sphi 0, %s340
      %s343 = sphi 0, %s342
      %s357 = sphi 0, %s343
      %s361 = sphi 0, %s361
      %s363 = sphi 0, %s361
      %s364 = sphi 0, %s363
      %s378 = sphi 0, %s364
      %s382 = sphi 0, %s382
      %s384 = sphi 0, %s382
      %s385 = sphi 0, %s384
      %s399 = sphi 0, %s385
      %s403 = sphi 0, %s403
      %s405 = sphi 0, %s403
      %s406 = sphi 0, %s405
      %s420 = sphi 0, %s406
      %s424 = sphi 0, %s424
      %s426 = sphi 0, %s424
      %s427 = sphi 0, %s426
      %s441 = sphi 0, %s427
      %s447 = sphi 0, %s449
      %s450 = sphi 0, %s447
      %s451 = sphi 0, %s450
      %s467 = sphi 0, %s451
    $region4: #{policy_net_forward.1} parent=1 // loop_header_branch
      %31 = sbr.rel (%p29) target = $region8
    $region5: #{policy_net_forward.1} parent=1 // loop_body
      %s33 = ssub.s32 %s28, 1
      %s34 = ssub.s32 %s28, 2
      %s35 = sadd.s32 %s28, 1
      %s36 = ssub.s32 %s28, %s35
      %p37 = scmp.eq.s32.totalorder %s36, 0
      %s39 = sadd.s32 %s38, 1
      %s40 = scalar_select %p37, %s38, %s39
      %p43 = pneg %p37
      %p44 = scmp.eq.s32.totalorder %s28, 1
      %p45 = por %p43, %p44
      %p46 = scmp.ne.s32.totalorder %s38, %s41
      %p47 = scmp.eq.s32.totalorder %s28, 0
      %p48 = por %p46, %p47
      %p49 = scmp.ne.s32.totalorder %s38, %s41
      %p50 = scmp.eq.s32.totalorder %s33, 1
      %p51 = por %p49, %p50
      %p52 = scmp.ne.s32.totalorder %s41, %s42
      %p53 = scmp.eq.s32.totalorder %s33, 0
      %p54 = por %p52, %p53
      %p55 = scmp.ne.s32.totalorder %s41, %s42
      %p56 = scmp.eq.s32.totalorder %s34, 1
      %p57 = por %p55, %p56
      %p59 = scmp.ne.s32.totalorder %s42, %s58
      %p60 = scmp.eq.s32.totalorder %s34, 0
      %p61 = por %p59, %p60
      %s63 = sadd.s32 %s62, 1
      %p66 = scmp.eq.s32.totalorder %s28, 1
      %p67 = scmp.ne.s32.totalorder %s62, %s64
      %p68 = scmp.eq.s32.totalorder %s28, 0
      %p69 = por %p67, %p68
      %p70 = scmp.ne.s32.totalorder %s62, %s64
      %p71 = scmp.eq.s32.totalorder %s33, 1
      %p72 = por %p70, %p71
      %p73 = scmp.ne.s32.totalorder %s64, %s65
      %p74 = scmp.eq.s32.totalorder %s33, 0
      %p75 = por %p73, %p74
      %p76 = scmp.ne.s32.totalorder %s64, %s65
      %p77 = scmp.eq.s32.totalorder %s34, 1
      %p78 = por %p76, %p77
      %p80 = scmp.ne.s32.totalorder %s65, %s79
      %p81 = scmp.eq.s32.totalorder %s34, 0
      %p82 = por %p80, %p81
      %s84 = sadd.s32 %s83, 1
      %p87 = scmp.eq.s32.totalorder %s28, 1
      %p88 = scmp.ne.s32.totalorder %s83, %s85
      %p89 = scmp.eq.s32.totalorder %s28, 0
      %p90 = por %p88, %p89
      %p91 = scmp.ne.s32.totalorder %s83, %s85
      %p92 = scmp.eq.s32.totalorder %s33, 1
      %p93 = por %p91, %p92
      %p94 = scmp.ne.s32.totalorder %s85, %s86
      %p95 = scmp.eq.s32.totalorder %s33, 0
      %p96 = por %p94, %p95
      %p97 = scmp.ne.s32.totalorder %s85, %s86
      %p98 = scmp.eq.s32.totalorder %s34, 1
      %p99 = por %p97, %p98
      %p101 = scmp.ne.s32.totalorder %s86, %s100
      %p102 = scmp.eq.s32.totalorder %s34, 0
      %p103 = por %p101, %p102
      %s105 = sadd.s32 %s104, 1
      %p108 = scmp.eq.s32.totalorder %s28, 1
      %p109 = scmp.ne.s32.totalorder %s104, %s106
      %p110 = scmp.eq.s32.totalorder %s28, 0
      %p111 = por %p109, %p110
      %p112 = scmp.ne.s32.totalorder %s104, %s106
      %p113 = scmp.eq.s32.totalorder %s33, 1
      %p114 = por %p112, %p113
      %p115 = scmp.ne.s32.totalorder %s106, %s107
      %p116 = scmp.eq.s32.totalorder %s33, 0
      %p117 = por %p115, %p116
      %p118 = scmp.ne.s32.totalorder %s106, %s107
      %p119 = scmp.eq.s32.totalorder %s34, 1
      %p120 = por %p118, %p119
      %p122 = scmp.ne.s32.totalorder %s107, %s121
      %p123 = scmp.eq.s32.totalorder %s34, 0
      %p124 = por %p122, %p123
      %s126 = sadd.s32 %s125, 1
      %p129 = scmp.eq.s32.totalorder %s28, 1
      %p130 = scmp.ne.s32.totalorder %s125, %s127
      %p131 = scmp.eq.s32.totalorder %s28, 0
      %p132 = por %p130, %p131
      %p133 = scmp.ne.s32.totalorder %s125, %s127
      %p134 = scmp.eq.s32.totalorder %s33, 1
      %p135 = por %p133, %p134
      %p136 = scmp.ne.s32.totalorder %s127, %s128
      %p137 = scmp.eq.s32.totalorder %s33, 0
      %p138 = por %p136, %p137
      %p139 = scmp.ne.s32.totalorder %s127, %s128
      %p140 = scmp.eq.s32.totalorder %s34, 1
      %p141 = por %p139, %p140
      %p143 = scmp.ne.s32.totalorder %s128, %s142
      %p144 = scmp.eq.s32.totalorder %s34, 0
      %p145 = por %p143, %p144
      %s147 = sadd.s32 %s146, 1
      %p150 = scmp.eq.s32.totalorder %s28, 1
      %p151 = scmp.ne.s32.totalorder %s146, %s148
      %p152 = scmp.eq.s32.totalorder %s28, 0
      %p153 = por %p151, %p152
      %p154 = scmp.ne.s32.totalorder %s146, %s148
      %p155 = scmp.eq.s32.totalorder %s33, 1
      %p156 = por %p154, %p155
      %p157 = scmp.ne.s32.totalorder %s148, %s149
      %p158 = scmp.eq.s32.totalorder %s33, 0
      %p159 = por %p157, %p158
      %p160 = scmp.ne.s32.totalorder %s148, %s149
      %p161 = scmp.eq.s32.totalorder %s34, 1
      %p162 = por %p160, %p161
      %p164 = scmp.ne.s32.totalorder %s149, %s163
      %p165 = scmp.eq.s32.totalorder %s34, 0
      %p166 = por %p164, %p165
      %s168 = sadd.s32 %s167, 1
      %p171 = scmp.eq.s32.totalorder %s28, 1
      %p172 = scmp.ne.s32.totalorder %s167, %s169
      %p173 = scmp.eq.s32.totalorder %s28, 0
      %p174 = por %p172, %p173
      %p175 = scmp.ne.s32.totalorder %s167, %s169
      %p176 = scmp.eq.s32.totalorder %s33, 1
      %p177 = por %p175, %p176
      %p178 = scmp.ne.s32.totalorder %s169, %s170
      %p179 = scmp.eq.s32.totalorder %s33, 0
      %p180 = por %p178, %p179
      %p181 = scmp.ne.s32.totalorder %s169, %s170
      %p182 = scmp.eq.s32.totalorder %s34, 1
      %p183 = por %p181, %p182
      %p185 = scmp.ne.s32.totalorder %s170, %s184
      %p186 = scmp.eq.s32.totalorder %s34, 0
      %p187 = por %p185, %p186
      %s189 = sadd.s32 %s188, 1
      %p192 = scmp.eq.s32.totalorder %s28, 1
      %p193 = scmp.ne.s32.totalorder %s188, %s190
      %p194 = scmp.eq.s32.totalorder %s28, 0
      %p195 = por %p193, %p194
      %p196 = scmp.ne.s32.totalorder %s188, %s190
      %p197 = scmp.eq.s32.totalorder %s33, 1
      %p198 = por %p196, %p197
      %p199 = scmp.ne.s32.totalorder %s190, %s191
      %p200 = scmp.eq.s32.totalorder %s33, 0
      %p201 = por %p199, %p200
      %p202 = scmp.ne.s32.totalorder %s190, %s191
      %p203 = scmp.eq.s32.totalorder %s34, 1
      %p204 = por %p202, %p203
      %p206 = scmp.ne.s32.totalorder %s191, %s205
      %p207 = scmp.eq.s32.totalorder %s34, 0
      %p208 = por %p206, %p207
      %s209 = ssub.s32 %s28, %s35
      %p210 = scmp.eq.s32.totalorder %s209, 0
      %s212 = sadd.s32 %s211, 1
      %s213 = scalar_select %p210, %s211, %s212
      %p216 = pneg %p210
      %p217 = scmp.eq.s32.totalorder %s28, 1
      %p218 = por %p216, %p217
      %p219 = scmp.ne.s32.totalorder %s211, %s214
      %p220 = scmp.eq.s32.totalorder %s28, 0
      %p221 = por %p219, %p220
      %p222 = scmp.ne.s32.totalorder %s211, %s214
      %p223 = scmp.eq.s32.totalorder %s33, 1
      %p224 = por %p222, %p223
      %p225 = scmp.ne.s32.totalorder %s214, %s215
      %p226 = scmp.eq.s32.totalorder %s33, 0
      %p227 = por %p225, %p226
      %p228 = scmp.ne.s32.totalorder %s214, %s215
      %p229 = scmp.eq.s32.totalorder %s34, 1
      %p230 = por %p228, %p229
      %p232 = scmp.ne.s32.totalorder %s215, %s231
      %p233 = scmp.eq.s32.totalorder %s34, 0
      %p234 = por %p232, %p233
      %s236 = sadd.s32 %s235, 1
      %p239 = scmp.eq.s32.totalorder %s28, 1
      %p240 = scmp.ne.s32.totalorder %s235, %s237
      %p241 = scmp.eq.s32.totalorder %s28, 0
      %p242 = por %p240, %p241
      %p243 = scmp.ne.s32.totalorder %s235, %s237
      %p244 = scmp.eq.s32.totalorder %s33, 1
      %p245 = por %p243, %p244
      %p246 = scmp.ne.s32.totalorder %s237, %s238
      %p247 = scmp.eq.s32.totalorder %s33, 0
      %p248 = por %p246, %p247
      %p249 = scmp.ne.s32.totalorder %s237, %s238
      %p250 = scmp.eq.s32.totalorder %s34, 1
      %p251 = por %p249, %p250
      %p253 = scmp.ne.s32.totalorder %s238, %s252
      %p254 = scmp.eq.s32.totalorder %s34, 0
      %p255 = por %p253, %p254
      %s257 = sadd.s32 %s256, 1
      %p260 = scmp.eq.s32.totalorder %s28, 1
      %p261 = scmp.ne.s32.totalorder %s256, %s258
      %p262 = scmp.eq.s32.totalorder %s28, 0
      %p263 = por %p261, %p262
      %p264 = scmp.ne.s32.totalorder %s256, %s258
      %p265 = scmp.eq.s32.totalorder %s33, 1
      %p266 = por %p264, %p265
      %p267 = scmp.ne.s32.totalorder %s258, %s259
      %p268 = scmp.eq.s32.totalorder %s33, 0
      %p269 = por %p267, %p268
      %p270 = scmp.ne.s32.totalorder %s258, %s259
      %p271 = scmp.eq.s32.totalorder %s34, 1
      %p272 = por %p270, %p271
      %p274 = scmp.ne.s32.totalorder %s259, %s273
      %p275 = scmp.eq.s32.totalorder %s34, 0
      %p276 = por %p274, %p275
      %s278 = sadd.s32 %s277, 1
      %p281 = scmp.eq.s32.totalorder %s28, 1
      %p282 = scmp.ne.s32.totalorder %s277, %s279
      %p283 = scmp.eq.s32.totalorder %s28, 0
      %p284 = por %p282, %p283
      %p285 = scmp.ne.s32.totalorder %s277, %s279
      %p286 = scmp.eq.s32.totalorder %s33, 1
      %p287 = por %p285, %p286
      %p288 = scmp.ne.s32.totalorder %s279, %s280
      %p289 = scmp.eq.s32.totalorder %s33, 0
      %p290 = por %p288, %p289
      %p291 = scmp.ne.s32.totalorder %s279, %s280
      %p292 = scmp.eq.s32.totalorder %s34, 1
      %p293 = por %p291, %p292
      %p295 = scmp.ne.s32.totalorder %s280, %s294
      %p296 = scmp.eq.s32.totalorder %s34, 0
      %p297 = por %p295, %p296
      %s299 = sadd.s32 %s298, 1
      %p302 = scmp.eq.s32.totalorder %s28, 1
      %p303 = scmp.ne.s32.totalorder %s298, %s300
      %p304 = scmp.eq.s32.totalorder %s28, 0
      %p305 = por %p303, %p304
      %p306 = scmp.ne.s32.totalorder %s298, %s300
      %p307 = scmp.eq.s32.totalorder %s33, 1
      %p308 = por %p306, %p307
      %p309 = scmp.ne.s32.totalorder %s300, %s301
      %p310 = scmp.eq.s32.totalorder %s33, 0
      %p311 = por %p309, %p310
      %p312 = scmp.ne.s32.totalorder %s300, %s301
      %p313 = scmp.eq.s32.totalorder %s34, 1
      %p314 = por %p312, %p313
      %p316 = scmp.ne.s32.totalorder %s301, %s315
      %p317 = scmp.eq.s32.totalorder %s34, 0
      %p318 = por %p316, %p317
      %s320 = sadd.s32 %s319, 1
      %p323 = scmp.eq.s32.totalorder %s28, 1
      %p324 = scmp.ne.s32.totalorder %s319, %s321
      %p325 = scmp.eq.s32.totalorder %s28, 0
      %p326 = por %p324, %p325
      %p327 = scmp.ne.s32.totalorder %s319, %s321
      %p328 = scmp.eq.s32.totalorder %s33, 1
      %p329 = por %p327, %p328
      %p330 = scmp.ne.s32.totalorder %s321, %s322
      %p331 = scmp.eq.s32.totalorder %s33, 0
      %p332 = por %p330, %p331
      %p333 = scmp.ne.s32.totalorder %s321, %s322
      %p334 = scmp.eq.s32.totalorder %s34, 1
      %p335 = por %p333, %p334
      %p337 = scmp.ne.s32.totalorder %s322, %s336
      %p338 = scmp.eq.s32.totalorder %s34, 0
      %p339 = por %p337, %p338
      %s341 = sadd.s32 %s340, 1
      %p344 = scmp.eq.s32.totalorder %s28, 1
      %p345 = scmp.ne.s32.totalorder %s340, %s342
      %p346 = scmp.eq.s32.totalorder %s28, 0
      %p347 = por %p345, %p346
      %p348 = scmp.ne.s32.totalorder %s340, %s342
      %p349 = scmp.eq.s32.totalorder %s33, 1
      %p350 = por %p348, %p349
      %p351 = scmp.ne.s32.totalorder %s342, %s343
      %p352 = scmp.eq.s32.totalorder %s33, 0
      %p353 = por %p351, %p352
      %p354 = scmp.ne.s32.totalorder %s342, %s343
      %p355 = scmp.eq.s32.totalorder %s34, 1
      %p356 = por %p354, %p355
      %p358 = scmp.ne.s32.totalorder %s343, %s357
      %p359 = scmp.eq.s32.totalorder %s34, 0
      %p360 = por %p358, %p359
      %s362 = sadd.s32 %s361, 1
      %p365 = scmp.eq.s32.totalorder %s28, 1
      %p366 = scmp.ne.s32.totalorder %s361, %s363
      %p367 = scmp.eq.s32.totalorder %s28, 0
      %p368 = por %p366, %p367
      %p369 = scmp.ne.s32.totalorder %s361, %s363
      %p370 = scmp.eq.s32.totalorder %s33, 1
      %p371 = por %p369, %p370
      %p372 = scmp.ne.s32.totalorder %s363, %s364
      %p373 = scmp.eq.s32.totalorder %s33, 0
      %p374 = por %p372, %p373
      %p375 = scmp.ne.s32.totalorder %s363, %s364
      %p376 = scmp.eq.s32.totalorder %s34, 1
      %p377 = por %p375, %p376
      %p379 = scmp.ne.s32.totalorder %s364, %s378
      %p380 = scmp.eq.s32.totalorder %s34, 0
      %p381 = por %p379, %p380
      %s383 = sadd.s32 %s382, 1
      %p386 = scmp.eq.s32.totalorder %s28, 1
      %p387 = scmp.ne.s32.totalorder %s382, %s384
      %p388 = scmp.eq.s32.totalorder %s28, 0
      %p389 = por %p387, %p388
      %p390 = scmp.ne.s32.totalorder %s382, %s384
      %p391 = scmp.eq.s32.totalorder %s33, 1
      %p392 = por %p390, %p391
      %p393 = scmp.ne.s32.totalorder %s384, %s385
      %p394 = scmp.eq.s32.totalorder %s33, 0
      %p395 = por %p393, %p394
      %p396 = scmp.ne.s32.totalorder %s384, %s385
      %p397 = scmp.eq.s32.totalorder %s34, 1
      %p398 = por %p396, %p397
      %p400 = scmp.ne.s32.totalorder %s385, %s399
      %p401 = scmp.eq.s32.totalorder %s34, 0
      %p402 = por %p400, %p401
      %s404 = sadd.s32 %s403, 1
      %p407 = scmp.eq.s32.totalorder %s28, 1
      %p408 = scmp.ne.s32.totalorder %s403, %s405
      %p409 = scmp.eq.s32.totalorder %s28, 0
      %p410 = por %p408, %p409
      %p411 = scmp.ne.s32.totalorder %s403, %s405
      %p412 = scmp.eq.s32.totalorder %s33, 1
      %p413 = por %p411, %p412
      %p414 = scmp.ne.s32.totalorder %s405, %s406
      %p415 = scmp.eq.s32.totalorder %s33, 0
      %p416 = por %p414, %p415
      %p417 = scmp.ne.s32.totalorder %s405, %s406
      %p418 = scmp.eq.s32.totalorder %s34, 1
      %p419 = por %p417, %p418
      %p421 = scmp.ne.s32.totalorder %s406, %s420
      %p422 = scmp.eq.s32.totalorder %s34, 0
      %p423 = por %p421, %p422
      %s425 = sadd.s32 %s424, 1
      %p428 = scmp.eq.s32.totalorder %s28, 1
      %p429 = scmp.ne.s32.totalorder %s424, %s426
      %p430 = scmp.eq.s32.totalorder %s28, 0
      %p431 = por %p429, %p430
      %p432 = scmp.ne.s32.totalorder %s424, %s426
      %p433 = scmp.eq.s32.totalorder %s33, 1
      %p434 = por %p432, %p433
      %p435 = scmp.ne.s32.totalorder %s426, %s427
      %p436 = scmp.eq.s32.totalorder %s33, 0
      %p437 = por %p435, %p436
      %p438 = scmp.ne.s32.totalorder %s426, %s427
      %p439 = scmp.eq.s32.totalorder %s34, 1
      %p440 = por %p438, %p439
      %p442 = scmp.ne.s32.totalorder %s427, %s441
      %p443 = scmp.eq.s32.totalorder %s34, 0
      %p444 = por %p442, %p443
      %s445 = ssub.s32 %s28, %s35
      %p446 = scmp.eq.s32.totalorder %s445, 0
      %s448 = sadd.s32 %s447, 1
      %s449 = scalar_select %p446, %s447, %s448
      %p452 = pneg %p446
      %p453 = scmp.eq.s32.totalorder %s28, 1
      %p454 = por %p452, %p453
      %p455 = scmp.ne.s32.totalorder %s447, %s450
      %p456 = scmp.eq.s32.totalorder %s28, 0
      %p457 = por %p455, %p456
      %p458 = scmp.ne.s32.totalorder %s447, %s450
      %p459 = scmp.eq.s32.totalorder %s33, 1
      %p460 = por %p458, %p459
      %p461 = scmp.ne.s32.totalorder %s450, %s451
      %p462 = scmp.eq.s32.totalorder %s33, 0
      %p463 = por %p461, %p462
      %p464 = scmp.ne.s32.totalorder %s450, %s451
      %p465 = scmp.eq.s32.totalorder %s34, 1
      %p466 = por %p464, %p465
      %p468 = scmp.ne.s32.totalorder %s451, %s467
      %p469 = scmp.eq.s32.totalorder %s34, 0
      %p470 = por %p468, %p469
      %p471 = scmp.le.s32.totalorder 1, %s28
      %p472 = scmp.lt.s32.totalorder %s28, 3
      %p473 = pnand %p471, %p472
      %p474 = pneg %p473
      // Predicated region
      $region9: #{policy_net_forward.1} parent=5 // pred_check
        _
      $region10: #{policy_net_forward.1} parent=5 // pred_check_branch
        %476 = sbr.rel (%p473) target = $region12
      $region11: #{policy_net_forward.1} parent=5 // pred_region
        %s477 = ssub.s32 %s28, 1
        // Predicated region
        $region13: #{policy_net_forward.1} parent=11 // pred_check
          %p478 = pneg %p75
        $region14: #{policy_net_forward.1} parent=11 // pred_check_branch
          %480 = sbr.rel (%p478) target = $region16
        $region15: #{policy_net_forward.1} parent=11 // pred_region
          _
        $region16: #{policy_net_forward.1} parent=11 // pred_fallthru
          _
        // Predicated region
        $region17: #{policy_net_forward.1} parent=11 // pred_check
          %p481 = pneg %p96
        $region18: #{policy_net_forward.1} parent=11 // pred_check_branch
          %483 = sbr.rel (%p481) target = $region20
        $region19: #{policy_net_forward.1} parent=11 // pred_region
          _
        $region20: #{policy_net_forward.1} parent=11 // pred_fallthru
          _
        // Predicated region
        $region21: #{policy_net_forward.1} parent=11 // pred_check
          %p484 = pneg %p117
        $region22: #{policy_net_forward.1} parent=11 // pred_check_branch
          %486 = sbr.rel (%p484) target = $region24
        $region23: #{policy_net_forward.1} parent=11 // pred_region
          _
        $region24: #{policy_net_forward.1} parent=11 // pred_fallthru
          _
        // Predicated region
        $region25: #{policy_net_forward.1} parent=11 // pred_check
          %p487 = pneg %p138
        $region26: #{policy_net_forward.1} parent=11 // pred_check_branch
          %489 = sbr.rel (%p487) target = $region28
        $region27: #{policy_net_forward.1} parent=11 // pred_region
          _
        $region28: #{policy_net_forward.1} parent=11 // pred_fallthru
          _
        // Predicated region
        $region29: #{policy_net_forward.1} parent=11 // pred_check
          %p490 = pneg %p159
        $region30: #{policy_net_forward.1} parent=11 // pred_check_branch
          %492 = sbr.rel (%p490) target = $region32
        $region31: #{policy_net_forward.1} parent=11 // pred_region
          _
        $region32: #{policy_net_forward.1} parent=11 // pred_fallthru
          _
        // Predicated region
        $region33: #{policy_net_forward.1} parent=11 // pred_check
          %p493 = pneg %p180
        $region34: #{policy_net_forward.1} parent=11 // pred_check_branch
          %495 = sbr.rel (%p493) target = $region36
        $region35: #{policy_net_forward.1} parent=11 // pred_region
          _
        $region36: #{policy_net_forward.1} parent=11 // pred_fallthru
          _
        // Predicated region
        $region37: #{policy_net_forward.1} parent=11 // pred_check
          %p496 = pneg %p201
        $region38: #{policy_net_forward.1} parent=11 // pred_check_branch
          %498 = sbr.rel (%p496) target = $region40
        $region39: #{policy_net_forward.1} parent=11 // pred_region
          _
        $region40: #{policy_net_forward.1} parent=11 // pred_fallthru
          _
        // Predicated region
        $region41: #{policy_net_forward.1} parent=11 // pred_check
          %p499 = pneg %p248
        $region42: #{policy_net_forward.1} parent=11 // pred_check_branch
          %501 = sbr.rel (%p499) target = $region44
        $region43: #{policy_net_forward.1} parent=11 // pred_region
          _
        $region44: #{policy_net_forward.1} parent=11 // pred_fallthru
          _
        // Predicated region
        $region45: #{policy_net_forward.1} parent=11 // pred_check
          %p502 = pneg %p269
        $region46: #{policy_net_forward.1} parent=11 // pred_check_branch
          %504 = sbr.rel (%p502) target = $region48
        $region47: #{policy_net_forward.1} parent=11 // pred_region
          _
        $region48: #{policy_net_forward.1} parent=11 // pred_fallthru
          _
        // Predicated region
        $region49: #{policy_net_forward.1} parent=11 // pred_check
          %p505 = pneg %p290
        $region50: #{policy_net_forward.1} parent=11 // pred_check_branch
          %507 = sbr.rel (%p505) target = $region52
        $region51: #{policy_net_forward.1} parent=11 // pred_region
          _
        $region52: #{policy_net_forward.1} parent=11 // pred_fallthru
          _
        // Predicated region
        $region53: #{policy_net_forward.1} parent=11 // pred_check
          %p508 = pneg %p311
        $region54: #{policy_net_forward.1} parent=11 // pred_check_branch
          %510 = sbr.rel (%p508) target = $region56
        $region55: #{policy_net_forward.1} parent=11 // pred_region
          _
        $region56: #{policy_net_forward.1} parent=11 // pred_fallthru
          _
        // Predicated region
        $region57: #{policy_net_forward.1} parent=11 // pred_check
          %p511 = pneg %p332
        $region58: #{policy_net_forward.1} parent=11 // pred_check_branch
          %513 = sbr.rel (%p511) target = $region60
        $region59: #{policy_net_forward.1} parent=11 // pred_region
          _
        $region60: #{policy_net_forward.1} parent=11 // pred_fallthru
          _
        // Predicated region
        $region61: #{policy_net_forward.1} parent=11 // pred_check
          %p514 = pneg %p353
        $region62: #{policy_net_forward.1} parent=11 // pred_check_branch
          %516 = sbr.rel (%p514) target = $region64
        $region63: #{policy_net_forward.1} parent=11 // pred_region
          _
        $region64: #{policy_net_forward.1} parent=11 // pred_fallthru
          _
        // Predicated region
        $region65: #{policy_net_forward.1} parent=11 // pred_check
          %p517 = pneg %p374
        $region66: #{policy_net_forward.1} parent=11 // pred_check_branch
          %519 = sbr.rel (%p517) target = $region68
        $region67: #{policy_net_forward.1} parent=11 // pred_region
          _
        $region68: #{policy_net_forward.1} parent=11 // pred_fallthru
          _
        // Predicated region
        $region69: #{policy_net_forward.1} parent=11 // pred_check
          %p520 = pneg %p395
        $region70: #{policy_net_forward.1} parent=11 // pred_check_branch
          %522 = sbr.rel (%p520) target = $region72
        $region71: #{policy_net_forward.1} parent=11 // pred_region
          _
        $region72: #{policy_net_forward.1} parent=11 // pred_fallthru
          _
        // Predicated region
        $region73: #{policy_net_forward.1} parent=11 // pred_check
          %p523 = pneg %p416
        $region74: #{policy_net_forward.1} parent=11 // pred_check_branch
          %525 = sbr.rel (%p523) target = $region76
        $region75: #{policy_net_forward.1} parent=11 // pred_region
          _
        $region76: #{policy_net_forward.1} parent=11 // pred_fallthru
          _
        // Predicated region
        $region77: #{policy_net_forward.1} parent=11 // pred_check
          %p526 = pneg %p437
        $region78: #{policy_net_forward.1} parent=11 // pred_check_branch
          %528 = sbr.rel (%p526) target = $region80
        $region79: #{policy_net_forward.1} parent=11 // pred_region
          _
        $region80: #{policy_net_forward.1} parent=11 // pred_fallthru
          _
      $region12: #{policy_net_forward.1} parent=5 // pred_fallthru
        _
      %p529 = scmp.lt.s32.totalorder %s28, 2
      // Predicated region
      $region81: #{policy_net_forward.1} parent=5 // pred_check
        %p530 = pneg %p529
      $region82: #{policy_net_forward.1} parent=5 // pred_check_branch
        %532 = sbr.rel (%p530) target = $region84
      $region83: #{policy_net_forward.1} parent=5 // pred_region
        // Predicated region
        $region85: #{policy_net_forward.1} parent=83 // pred_check
          %p533 = pneg %p48
        $region86: #{policy_net_forward.1} parent=83 // pred_check_branch
          %535 = sbr.rel (%p533) target = $region88
        $region87: #{policy_net_forward.1} parent=83 // pred_region
          %p536 = scmp.lt.s32.totalorder %s28, 1
          %s537 = scalar_select %p536, %s28, 1
          %s538 = smul.addr %s537, 4
          %s539 = smul.addr %s538, 8
          %s540 = scalar_lea.vmem %s0, %s539
        $region88: #{policy_net_forward.1} parent=83 // pred_fallthru
          _
        // Predicated region
        $region89: #{policy_net_forward.1} parent=83 // pred_check
          %p541 = pneg %p221
        $region90: #{policy_net_forward.1} parent=83 // pred_check_branch
          %543 = sbr.rel (%p541) target = $region92
        $region91: #{policy_net_forward.1} parent=83 // pred_region
          %p544 = scmp.lt.s32.totalorder %s28, 1
          %s545 = scalar_select %p544, %s28, 1
          %s546 = scalar_lea.vmem %s8, %s545
        $region92: #{policy_net_forward.1} parent=83 // pred_fallthru
          _
      $region84: #{policy_net_forward.1} parent=5 // pred_fallthru
        _
      %p547 = scmp.le.s32.totalorder 1, %s28
      %p548 = scmp.lt.s32.totalorder %s28, 3
      %p549 = pnand %p547, %p548
      %p550 = pneg %p549
      // Predicated region
      $region93: #{policy_net_forward.1} parent=5 // pred_check
        _
      $region94: #{policy_net_forward.1} parent=5 // pred_check_branch
        %552 = sbr.rel (%p549) target = $region96
      $region95: #{policy_net_forward.1} parent=5 // pred_region
        %s553 = ssub.s32 %s28, 1
        %p554 = scmp.lt.s32.totalorder %s33, 1
        %s555 = scalar_select %p554, %s33, 1
        %s556 = smul.addr %s555, 4
        %s557 = smul.addr %s556, 8
        %s558 = scalar_lea.vmem %s0, %s557
        %p559 = pneg %p54
        %p560 = pneg %p51
        %p561 = pneg %p75
        %p562 = pneg %p72
        %p563 = pneg %p96
        %p564 = pneg %p93
        %p565 = pneg %p117
        %p566 = pneg %p114
        %p567 = pneg %p138
        %p568 = pneg %p135
        %p569 = pneg %p159
        %p570 = pneg %p156
        %p571 = pneg %p180
        %p572 = pneg %p177
        %p573 = pneg %p201
        %p574 = pneg %p198
        %p575 = scmp.lt.s32.totalorder %s33, 1
        %s576 = scalar_select %p575, %s33, 1
        %s577 = scalar_lea.vmem %s8, %s576
        %p578 = pneg %p227
        %p579 = pneg %p224
        %p580 = pneg %p248
        %p581 = pneg %p245
        %p582 = pneg %p269
        %p583 = pneg %p266
        %p584 = pneg %p290
        %p585 = pneg %p287
        %p586 = pneg %p311
        %p587 = pneg %p308
        %p588 = pneg %p332
        %p589 = pneg %p329
        %p590 = pneg %p353
        %p591 = pneg %p350
        %p592 = pneg %p374
        %p593 = pneg %p371
        %p594 = pneg %p395
        %p595 = pneg %p392
        %p596 = pneg %p416
        %p597 = pneg %p413
        %p598 = pneg %p437
        %p599 = pneg %p434
        %p600 = pneg %p463
        %p601 = pneg %p460
        %s602 = sand.u32 %s450, 1
        %s603 = scalar_lea.sflag [#allocation3], %s602
        %s604 = sand.u32 %s450, 1
        %s605 = scalar_lea.vmem [#allocation2], %s604
        %p606 = scmp.lt.s32.totalorder %s33, 1
        %s607 = scalar_select %p606, %s33, 1
        %s608 = smul.addr %s607, 4
        %s609 = smul.addr %s608, 8
        %s610 = scalar_lea.vmem %s0, %s609
        %p611 = scmp.lt.s32.totalorder %s33, 1
        %s612 = scalar_select %p611, %s33, 1
        %s613 = scalar_lea.vmem %s8, %s612
        %v614 = vld [vmem:[%s610] sm:$0x1f]
        %v615 = vld [vmem:[%s610 + $0x8] sm:$0x1f]
        %v616 = vld [vmem:[%s610 + $0x10] sm:$0x1f]
        %v617 = vld [vmem:[%s610 + $0x18] sm:$0x1f]
        %v618 = vld [vmem:[%s1] sm:$0xff]
        %v619 = vld [vmem:[%s1 + $0x8] sm:$0xff]
        %s620 = scalar_lea.vmem %s1, 16
        %v621 = vld [vmem:[%s620] sm:$0xff]
        %v622 = vld [vmem:[%s620 + $0x8] sm:$0xff]
        %626 = vrot.lane.b32.xlu0 %v614, 127
        %v627 = vpop.permute.xlu0 %626
        %628 = vrot.lane.b32.xlu0 %v615, 127
        %v629 = vpop.permute.xlu0 %628
        %630 = vrot.lane.b32.xlu0 %v616, 127
        %v631 = vpop.permute.xlu0 %630
        %vm632 = vcmask 1039360
        %v633 = vsel %vm632, %v627, %v629
        %v634 = vsel %vm632, %v629, %v631
        %vm635 = vcmask 39936
        %v637 = vsel %vm635, %v621, 0
        %v640 = vsel %vm635, %v622, 0
        %vm642 = vcmask 1044480
        %v643 = vsel %vm642, %v633, 0
        %v645 = vsel %vm642, %v634, 0
        %v647 = vsel %vm642, %v631, 0
        %649 = vmatprep.subr.mxu0 %v645
        %650 = vmatpush1.msra.mxu0 %v643
        %651 = vmatprep.subr.mxu0 0.0
        %652 = vmatpush1.msra.mxu0 0.0
        %653 = vmatprep.subr.mxu0 0.0
        %654 = vmatpush1.msra.mxu0 0.0
        %655 = vmatprep.subr.mxu0 0.0
        %656 = vmatpush1.msra.mxu0 0.0
        %657 = vmatprep.subr.mxu0 0.0
        %658 = vmatpush1.msra.mxu0 0.0
        %659 = vmatprep.subr.mxu0 0.0
        %660 = vmatpush1.msra.mxu0 0.0
        %661 = vmatprep.subr.mxu0 0.0
        %662 = vmatpush1.msra.mxu0 0.0
        %663 = vmatprep.subr.mxu0 0.0
        %664 = vmatpush1.msra.mxu0 0.0
        %665 = vmatprep.subr.mxu0 0.0
        %666 = vmatpush1.msra.mxu0 0.0
        %667 = vmatprep.subr.mxu0 0.0
        %668 = vmatpush1.msra.mxu0 0.0
        %669 = vmatprep.subr.mxu0 0.0
        %670 = vmatpush1.msra.mxu0 0.0
        %671 = vmatprep.subr.mxu0 0.0
        %672 = vmatpush1.msra.mxu0 0.0
        %673 = vmatprep.subr.mxu0 0.0
        %674 = vmatpush1.msra.mxu0 0.0
        %675 = vmatprep.subr.mxu0 0.0
        %676 = vmatpush1.msra.mxu0 0.0
        %677 = vmatprep.subr.mxu0 0.0
        %678 = vmatpush1.msra.mxu0 0.0
        %679 = vmatprep.subr.mxu0 0.0
        %680 = vmatpush1.msra.mxu0 0.0
        %681 = vmatprep.subr.mxu0 0.0
        %682 = vmatpush1.msra.mxu0 0.0
        %683 = vmatprep.subr.mxu0 0.0
        %684 = vmatpush1.msra.mxu0 0.0
        %685 = vmatprep.subr.mxu0 0.0
        %686 = vmatpush1.msra.mxu0 0.0
        %687 = vmatprep.subr.mxu0 0.0
        %688 = vmatpush1.msra.mxu0 0.0
        %689 = vmatprep.subr.mxu0 0.0
        %690 = vmatpush1.msra.mxu0 0.0
        %691 = vmatprep.subr.mxu0 0.0
        %692 = vmatpush1.msra.mxu0 0.0
        %693 = vmatprep.subr.mxu0 0.0
        %694 = vmatpush1.msra.mxu0 0.0
        %695 = vmatprep.subr.mxu0 0.0
        %696 = vmatpush1.msra.mxu0 0.0
        %697 = vmatprep.subr.mxu0 0.0
        %698 = vmatpush1.msra.mxu0 0.0
        %699 = vmatprep.subr.mxu0 0.0
        %700 = vmatpush1.msra.mxu0 0.0
        %701 = vmatprep.subr.mxu0 0.0
        %702 = vmatpush1.msra.mxu0 0.0
        %703 = vmatprep.subr.mxu0 0.0
        %704 = vmatpush1.msra.mxu0 0.0
        %705 = vmatprep.subr.mxu0 0.0
        %706 = vmatpush1.msra.mxu0 0.0
        %707 = vmatprep.subr.mxu0 0.0
        %708 = vmatpush1.msra.mxu0 0.0
        %709 = vmatprep.subr.mxu0 0.0
        %710 = vmatpush1.msra.mxu0 0.0
        %711 = vmatprep.subr.mxu0 0.0
        %712 = vmatpush1.msra.mxu0 0.0
        %713 = vmatprep.mubr.f32.mxu0 0.0
        %714 = vmatmul.mubr.f32.gmra.mrb[0].mxu0 %v637
        %v715 = vpop.f32.mrb[0].mxu0
        %v716 = vadd.f32 0.0, %v715
        %v717 = vpop.f32.mrb[0].mxu0
        %v718 = vadd.f32 0.0, %v717
        %719 = vmatprep.mubr.f32.mxu0 0.0
        %720 = vmatmul.mubr.f32.gmra.mrb[0].mxu0 %v640
        %v721 = vpop.f32.mrb[0].mxu0
        %v722 = vadd.f32 0.0, %v721
        %v723 = vpop.f32.mrb[0].mxu0
        %v724 = vadd.f32 0.0, %v723
        %725 = vdwg.mxu0
        %726 = vmatprep.subr.mxu0 0.0
        %727 = vmatpush1.msra.mxu0 %v647
        %728 = vmatprep.subr.mxu0 0.0
        %729 = vmatpush1.msra.mxu0 0.0
        %730 = vmatprep.subr.mxu0 0.0
        %731 = vmatpush1.msra.mxu0 0.0
        %732 = vmatprep.subr.mxu0 0.0
        %733 = vmatpush1.msra.mxu0 0.0
        %734 = vmatprep.subr.mxu0 0.0
        %735 = vmatpush1.msra.mxu0 0.0
        %736 = vmatprep.subr.mxu0 0.0
        %737 = vmatpush1.msra.mxu0 0.0
        %738 = vmatprep.subr.mxu0 0.0
        %739 = vmatpush1.msra.mxu0 0.0
        %740 = vmatprep.subr.mxu0 0.0
        %741 = vmatpush1.msra.mxu0 0.0
        %742 = vmatprep.subr.mxu0 0.0
        %743 = vmatpush1.msra.mxu0 0.0
        %744 = vmatprep.subr.mxu0 0.0
        %745 = vmatpush1.msra.mxu0 0.0
        %746 = vmatprep.subr.mxu0 0.0
        %747 = vmatpush1.msra.mxu0 0.0
        %748 = vmatprep.subr.mxu0 0.0
        %749 = vmatpush1.msra.mxu0 0.0
        %750 = vmatprep.subr.mxu0 0.0
        %751 = vmatpush1.msra.mxu0 0.0
        %752 = vmatprep.subr.mxu0 0.0
        %753 = vmatpush1.msra.mxu0 0.0
        %754 = vmatprep.subr.mxu0 0.0
        %755 = vmatpush1.msra.mxu0 0.0
        %756 = vmatprep.subr.mxu0 0.0
        %757 = vmatpush1.msra.mxu0 0.0
        %758 = vmatprep.subr.mxu0 0.0
        %759 = vmatpush1.msra.mxu0 0.0
        %760 = vmatprep.subr.mxu0 0.0
        %761 = vmatpush1.msra.mxu0 0.0
        %762 = vmatprep.subr.mxu0 0.0
        %763 = vmatpush1.msra.mxu0 0.0
        %764 = vmatprep.subr.mxu0 0.0
        %765 = vmatpush1.msra.mxu0 0.0
        %766 = vmatprep.subr.mxu0 0.0
        %767 = vmatpush1.msra.mxu0 0.0
        %768 = vmatprep.subr.mxu0 0.0
        %769 = vmatpush1.msra.mxu0 0.0
        %770 = vmatprep.subr.mxu0 0.0
        %771 = vmatpush1.msra.mxu0 0.0
        %772 = vmatprep.subr.mxu0 0.0
        %773 = vmatpush1.msra.mxu0 0.0
        %774 = vmatprep.subr.mxu0 0.0
        %775 = vmatpush1.msra.mxu0 0.0
        %776 = vmatprep.subr.mxu0 0.0
        %777 = vmatpush1.msra.mxu0 0.0
        %778 = vmatprep.subr.mxu0 0.0
        %779 = vmatpush1.msra.mxu0 0.0
        %780 = vmatprep.subr.mxu0 0.0
        %781 = vmatpush1.msra.mxu0 0.0
        %782 = vmatprep.subr.mxu0 0.0
        %783 = vmatpush1.msra.mxu0 0.0
        %784 = vmatprep.subr.mxu0 0.0
        %785 = vmatpush1.msra.mxu0 0.0
        %786 = vmatprep.subr.mxu0 0.0
        %787 = vmatpush1.msra.mxu0 0.0
        %788 = vmatprep.subr.mxu0 0.0
        %789 = vmatpush1.msra.mxu0 0.0
        %790 = vmatprep.mubr.f32.mxu0 0.0
        %791 = vmatmul.mubr.f32.gmra.mrb[0].mxu0 %v637
        %v792 = vpop.f32.mrb[0].mxu0
        %v793 = vadd.f32 0.0, %v792
        %v794 = vpop.f32.mrb[0].mxu0
        %795 = vmatprep.mubr.f32.mxu0 0.0
        %796 = vmatmul.mubr.f32.gmra.mrb[0].mxu0 %v640
        %v797 = vpop.f32.mrb[0].mxu0
        %v798 = vadd.f32 0.0, %v797
        %v799 = vpop.f32.mrb[0].mxu0
        %800 = vdwg.mxu0
        %v802 = vsel %vm635, %v618, 0
        %v805 = vsel %vm635, %v619, 0
        %v807 = vsel %vm642, %v614, 0
        %v809 = vsel %vm642, %v615, 0
        %v811 = vsel %vm642, %v616, 0
        %813 = vmatprep.subr.mxu0 %v809
        %814 = vmatpush1.msra.mxu0 %v807
        %815 = vmatprep.subr.mxu0 0.0
        %816 = vmatpush1.msra.mxu0 0.0
        %817 = vmatprep.subr.mxu0 0.0
        %818 = vmatpush1.msra.mxu0 0.0
        %819 = vmatprep.subr.mxu0 0.0
        %820 = vmatpush1.msra.mxu0 0.0
        %821 = vmatprep.subr.mxu0 0.0
        %822 = vmatpush1.msra.mxu0 0.0
        %823 = vmatprep.subr.mxu0 0.0
        %824 = vmatpush1.msra.mxu0 0.0
        %825 = vmatprep.subr.mxu0 0.0
        %826 = vmatpush1.msra.mxu0 0.0
        %827 = vmatprep.subr.mxu0 0.0
        %828 = vmatpush1.msra.mxu0 0.0
        %829 = vmatprep.subr.mxu0 0.0
        %830 = vmatpush1.msra.mxu0 0.0
        %831 = vmatprep.subr.mxu0 0.0
        %832 = vmatpush1.msra.mxu0 0.0
        %833 = vmatprep.subr.mxu0 0.0
        %834 = vmatpush1.msra.mxu0 0.0
        %835 = vmatprep.subr.mxu0 0.0
        %836 = vmatpush1.msra.mxu0 0.0
        %837 = vmatprep.subr.mxu0 0.0
        %838 = vmatpush1.msra.mxu0 0.0
        %839 = vmatprep.subr.mxu0 0.0
        %840 = vmatpush1.msra.mxu0 0.0
        %841 = vmatprep.subr.mxu0 0.0
        %842 = vmatpush1.msra.mxu0 0.0
        %843 = vmatprep.subr.mxu0 0.0
        %844 = vmatpush1.msra.mxu0 0.0
        %845 = vmatprep.subr.mxu0 0.0
        %846 = vmatpush1.msra.mxu0 0.0
        %847 = vmatprep.subr.mxu0 0.0
        %848 = vmatpush1.msra.mxu0 0.0
        %849 = vmatprep.subr.mxu0 0.0
        %850 = vmatpush1.msra.mxu0 0.0
        %851 = vmatprep.subr.mxu0 0.0
        %852 = vmatpush1.msra.mxu0 0.0
        %853 = vmatprep.subr.mxu0 0.0
        %854 = vmatpush1.msra.mxu0 0.0
        %855 = vmatprep.subr.mxu0 0.0
        %856 = vmatpush1.msra.mxu0 0.0
        %857 = vmatprep.subr.mxu0 0.0
        %858 = vmatpush1.msra.mxu0 0.0
        %859 = vmatprep.subr.mxu0 0.0
        %860 = vmatpush1.msra.mxu0 0.0
        %861 = vmatprep.subr.mxu0 0.0
        %862 = vmatpush1.msra.mxu0 0.0
        %863 = vmatprep.subr.mxu0 0.0
        %864 = vmatpush1.msra.mxu0 0.0
        %865 = vmatprep.subr.mxu0 0.0
        %866 = vmatpush1.msra.mxu0 0.0
        %867 = vmatprep.subr.mxu0 0.0
        %868 = vmatpush1.msra.mxu0 0.0
        %869 = vmatprep.subr.mxu0 0.0
        %870 = vmatpush1.msra.mxu0 0.0
        %871 = vmatprep.subr.mxu0 0.0
        %872 = vmatpush1.msra.mxu0 0.0
        %873 = vmatprep.subr.mxu0 0.0
        %874 = vmatpush1.msra.mxu0 0.0
        %875 = vmatprep.subr.mxu0 0.0
        %876 = vmatpush1.msra.mxu0 0.0
        %877 = vmatprep.mubr.f32.mxu0 0.0
        %878 = vmatmul.mubr.f32.gmra.mrb[0].mxu0 %v802
        %v879 = vpop.f32.mrb[0].mxu0
        %v880 = vadd.f32 %v716, %v879
        %v881 = vpop.f32.mrb[0].mxu0
        %v882 = vadd.f32 %v718, %v881
        %883 = vmatprep.mubr.f32.mxu0 0.0
        %884 = vmatmul.mubr.f32.gmra.mrb[0].mxu0 %v805
        %v885 = vpop.f32.mrb[0].mxu0
        %v886 = vadd.f32 %v722, %v885
        %v887 = vpop.f32.mrb[0].mxu0
        %v888 = vadd.f32 %v724, %v887
        %889 = vdwg.mxu0
        %890 = vmatprep.subr.mxu0 0.0
        %891 = vmatpush1.msra.mxu0 %v811
        %892 = vmatprep.subr.mxu0 0.0
        %893 = vmatpush1.msra.mxu0 0.0
        %894 = vmatprep.subr.mxu0 0.0
        %895 = vmatpush1.msra.mxu0 0.0
        %896 = vmatprep.subr.mxu0 0.0
        %897 = vmatpush1.msra.mxu0 0.0
        %898 = vmatprep.subr.mxu0 0.0
        %899 = vmatpush1.msra.mxu0 0.0
        %900 = vmatprep.subr.mxu0 0.0
        %901 = vmatpush1.msra.mxu0 0.0
        %902 = vmatprep.subr.mxu0 0.0
        %903 = vmatpush1.msra.mxu0 0.0
        %904 = vmatprep.subr.mxu0 0.0
        %905 = vmatpush1.msra.mxu0 0.0
        %906 = vmatprep.subr.mxu0 0.0
        %907 = vmatpush1.msra.mxu0 0.0
        %908 = vmatprep.subr.mxu0 0.0
        %909 = vmatpush1.msra.mxu0 0.0
        %910 = vmatprep.subr.mxu0 0.0
        %911 = vmatpush1.msra.mxu0 0.0
        %912 = vmatprep.subr.mxu0 0.0
        %913 = vmatpush1.msra.mxu0 0.0
        %914 = vmatprep.subr.mxu0 0.0
        %915 = vmatpush1.msra.mxu0 0.0
        %916 = vmatprep.subr.mxu0 0.0
        %917 = vmatpush1.msra.mxu0 0.0
        %918 = vmatprep.subr.mxu0 0.0
        %919 = vmatpush1.msra.mxu0 0.0
        %920 = vmatprep.subr.mxu0 0.0
        %921 = vmatpush1.msra.mxu0 0.0
        %922 = vmatprep.subr.mxu0 0.0
        %923 = vmatpush1.msra.mxu0 0.0
        %924 = vmatprep.subr.mxu0 0.0
        %925 = vmatpush1.msra.mxu0 0.0
        %926 = vmatprep.subr.mxu0 0.0
        %927 = vmatpush1.msra.mxu0 0.0
        %928 = vmatprep.subr.mxu0 0.0
        %929 = vmatpush1.msra.mxu0 0.0
        %930 = vmatprep.subr.mxu0 0.0
        %931 = vmatpush1.msra.mxu0 0.0
        %932 = vmatprep.subr.mxu0 0.0
        %933 = vmatpush1.msra.mxu0 0.0
        %934 = vmatprep.subr.mxu0 0.0
        %935 = vmatpush1.msra.mxu0 0.0
        %936 = vmatprep.subr.mxu0 0.0
        %937 = vmatpush1.msra.mxu0 0.0
        %938 = vmatprep.subr.mxu0 0.0
        %939 = vmatpush1.msra.mxu0 0.0
        %940 = vmatprep.subr.mxu0 0.0
        %941 = vmatpush1.msra.mxu0 0.0
        %942 = vmatprep.subr.mxu0 0.0
        %943 = vmatpush1.msra.mxu0 0.0
        %944 = vmatprep.subr.mxu0 0.0
        %945 = vmatpush1.msra.mxu0 0.0
        %946 = vmatprep.subr.mxu0 0.0
        %947 = vmatpush1.msra.mxu0 0.0
        %948 = vmatprep.subr.mxu0 0.0
        %949 = vmatpush1.msra.mxu0 0.0
        %950 = vmatprep.subr.mxu0 0.0
        %951 = vmatpush1.msra.mxu0 0.0
        %952 = vmatprep.subr.mxu0 0.0
        %953 = vmatpush1.msra.mxu0 0.0
        %954 = vmatprep.mubr.f32.mxu0 0.0
        %955 = vmatmul.mubr.f32.gmra.mrb[0].mxu0 %v802
        %v956 = vpop.f32.mrb[0].mxu0
        %v957 = vadd.f32 %v793, %v956
        %v958 = vpop.f32.mrb[0].mxu0
        %959 = vmatprep.mubr.f32.mxu0 0.0
        %960 = vmatmul.mubr.f32.gmra.mrb[0].mxu0 %v805
        %v961 = vpop.f32.mrb[0].mxu0
        %v962 = vadd.f32 %v798, %v961
        %v963 = vpop.f32.mrb[0].mxu0
        %964 = vdwg.mxu0
        %s965 = scalar_lea.vmem %s1, 32
        %v966 = vld [vmem:[%s965] sm:$0xff]
        %v967 = vld [vmem:[%s965 + $0x8] sm:$0xff]
        %968 = vrot.lane.b32.xlu0 %v614, 126
        %v969 = vpop.permute.xlu0 %968
        %970 = vrot.lane.b32.xlu0 %v615, 126
        %v971 = vpop.permute.xlu0 %970
        %972 = vrot.lane.b32.xlu0 %v616, 126
        %v973 = vpop.permute.xlu0 %972
        %vm974 = vcmask 1031168
        %v975 = vsel %vm974, %v969, %v971
        %v976 = vsel %vm974, %v971, %v973
        %v978 = vsel %vm635, %v966, 0
        %v981 = vsel %vm635, %v967, 0
        %v983 = vsel %vm642, %v975, 0
        %v985 = vsel %vm642, %v976, 0
        %v987 = vsel %vm642, %v973, 0
        %989 = vmatprep.subr.mxu0 %v985
        %990 = vmatpush1.msra.mxu0 %v983
        %991 = vmatprep.subr.mxu0 0.0
        %992 = vmatpush1.msra.mxu0 0.0
        %993 = vmatprep.subr.mxu0 0.0
        %994 = vmatpush1.msra.mxu0 0.0
        %995 = vmatprep.subr.mxu0 0.0
        %996 = vmatpush1.msra.mxu0 0.0
        %997 = vmatprep.subr.mxu0 0.0
        %998 = vmatpush1.msra.mxu0 0.0
        %999 = vmatprep.subr.mxu0 0.0
        %1000 = vmatpush1.msra.mxu0 0.0
        %1001 = vmatprep.subr.mxu0 0.0
        %1002 = vmatpush1.msra.mxu0 0.0
        %1003 = vmatprep.subr.mxu0 0.0
        %1004 = vmatpush1.msra.mxu0 0.0
        %1005 = vmatprep.subr.mxu0 0.0
        %1006 = vmatpush1.msra.mxu0 0.0
        %1007 = vmatprep.subr.mxu0 0.0
        %1008 = vmatpush1.msra.mxu0 0.0
        %1009 = vmatprep.subr.mxu0 0.0
        %1010 = vmatpush1.msra.mxu0 0.0
        %1011 = vmatprep.subr.mxu0 0.0
        %1012 = vmatpush1.msra.mxu0 0.0
        %1013 = vmatprep.subr.mxu0 0.0
        %1014 = vmatpush1.msra.mxu0 0.0
        %1015 = vmatprep.subr.mxu0 0.0
        %1016 = vmatpush1.msra.mxu0 0.0
        %1017 = vmatprep.subr.mxu0 0.0
        %1018 = vmatpush1.msra.mxu0 0.0
        %1019 = vmatprep.subr.mxu0 0.0
        %1020 = vmatpush1.msra.mxu0 0.0
        %1021 = vmatprep.subr.mxu0 0.0
        %1022 = vmatpush1.msra.mxu0 0.0
        %1023 = vmatprep.subr.mxu0 0.0
        %1024 = vmatpush1.msra.mxu0 0.0
        %1025 = vmatprep.subr.mxu0 0.0
        %1026 = vmatpush1.msra.mxu0 0.0
        %1027 = vmatprep.subr.mxu0 0.0
        %1028 = vmatpush1.msra.mxu0 0.0
        %1029 = vmatprep.subr.mxu0 0.0
        %1030 = vmatpush1.msra.mxu0 0.0
        %1031 = vmatprep.subr.mxu0 0.0
        %1032 = vmatpush1.msra.mxu0 0.0
        %1033 = vmatprep.subr.mxu0 0.0
        %1034 = vmatpush1.msra.mxu0 0.0
        %1035 = vmatprep.subr.mxu0 0.0
        %1036 = vmatpush1.msra.mxu0 0.0
        %1037 = vmatprep.subr.mxu0 0.0
        %1038 = vmatpush1.msra.mxu0 0.0
        %1039 = vmatprep.subr.mxu0 0.0
        %1040 = vmatpush1.msra.mxu0 0.0
        %1041 = vmatprep.subr.mxu0 0.0
        %1042 = vmatpush1.msra.mxu0 0.0
        %1043 = vmatprep.subr.mxu0 0.0
        %1044 = vmatpush1.msra.mxu0 0.0
        %1045 = vmatprep.subr.mxu0 0.0
        %1046 = vmatpush1.msra.mxu0 0.0
        %1047 = vmatprep.subr.mxu0 0.0
        %1048 = vmatpush1.msra.mxu0 0.0
        %1049 = vmatprep.subr.mxu0 0.0
        %1050 = vmatpush1.msra.mxu0 0.0
        %1051 = vmatprep.subr.mxu0 0.0
        %1052 = vmatpush1.msra.mxu0 0.0
        %1053 = vmatprep.mubr.f32.mxu0 0.0
        %1054 = vmatmul.mubr.f32.gmra.mrb[0].mxu0 %v978
        %v1055 = vpop.f32.mrb[0].mxu0
        %v1056 = vadd.f32 0.0, %v1055
        %v1057 = vpop.f32.mrb[0].mxu0
        %v1058 = vadd.f32 0.0, %v1057
        %1059 = vmatprep.mubr.f32.mxu0 0.0
        %1060 = vmatmul.mubr.f32.gmra.mrb[0].mxu0 %v981
        %v1061 = vpop.f32.mrb[0].mxu0
        %v1062 = vadd.f32 0.0, %v1061
        %v1063 = vpop.f32.mrb[0].mxu0
        %v1064 = vadd.f32 0.0, %v1063
        %1065 = vdwg.mxu0
        %1066 = vmatprep.subr.mxu0 0.0
        %1067 = vmatpush1.msra.mxu0 %v987
        %1068 = vmatprep.subr.mxu0 0.0
        %1069 = vmatpush1.msra.mxu0 0.0
        %1070 = vmatprep.subr.mxu0 0.0
        %1071 = vmatpush1.msra.mxu0 0.0
        %1072 = vmatprep.subr.mxu0 0.0
        %1073 = vmatpush1.msra.mxu0 0.0
        %1074 = vmatprep.subr.mxu0 0.0
        %1075 = vmatpush1.msra.mxu0 0.0
        %1076 = vmatprep.subr.mxu0 0.0
        %1077 = vmatpush1.msra.mxu0 0.0
        %1078 = vmatprep.subr.mxu0 0.0
        %1079 = vmatpush1.msra.mxu0 0.0
        %1080 = vmatprep.subr.mxu0 0.0
        %1081 = vmatpush1.msra.mxu0 0.0
        %1082 = vmatprep.subr.mxu0 0.0
        %1083 = vmatpush1.msra.mxu0 0.0
        %1084 = vmatprep.subr.mxu0 0.0
        %1085 = vmatpush1.msra.mxu0 0.0
        %1086 = vmatprep.subr.mxu0 0.0
        %1087 = vmatpush1.msra.mxu0 0.0
        %1088 = vmatprep.subr.mxu0 0.0
        %1089 = vmatpush1.msra.mxu0 0.0
        %1090 = vmatprep.subr.mxu0 0.0
        %1091 = vmatpush1.msra.mxu0 0.0
        %1092 = vmatprep.subr.mxu0 0.0
        %1093 = vmatpush1.msra.mxu0 0.0
        %1094 = vmatprep.subr.mxu0 0.0
        %1095 = vmatpush1.msra.mxu0 0.0
        %1096 = vmatprep.subr.mxu0 0.0
        %1097 = vmatpush1.msra.mxu0 0.0
        %1098 = vmatprep.subr.mxu0 0.0
        %1099 = vmatpush1.msra.mxu0 0.0
        %1100 = vmatprep.subr.mxu0 0.0
        %1101 = vmatpush1.msra.mxu0 0.0
        %1102 = vmatprep.subr.mxu0 0.0
        %1103 = vmatpush1.msra.mxu0 0.0
        %1104 = vmatprep.subr.mxu0 0.0
        %1105 = vmatpush1.msra.mxu0 0.0
        %1106 = vmatprep.subr.mxu0 0.0
        %1107 = vmatpush1.msra.mxu0 0.0
        %1108 = vmatprep.subr.mxu0 0.0
        %1109 = vmatpush1.msra.mxu0 0.0
        %1110 = vmatprep.subr.mxu0 0.0
        %1111 = vmatpush1.msra.mxu0 0.0
        %1112 = vmatprep.subr.mxu0 0.0
        %1113 = vmatpush1.msra.mxu0 0.0
        %1114 = vmatprep.subr.mxu0 0.0
        %1115 = vmatpush1.msra.mxu0 0.0
        %1116 = vmatprep.subr.mxu0 0.0
        %1117 = vmatpush1.msra.mxu0 0.0
        %1118 = vmatprep.subr.mxu0 0.0
        %1119 = vmatpush1.msra.mxu0 0.0
        %1120 = vmatprep.subr.mxu0 0.0
        %1121 = vmatpush1.msra.mxu0 0.0
        %1122 = vmatprep.subr.mxu0 0.0
        %1123 = vmatpush1.msra.mxu0 0.0
        %1124 = vmatprep.subr.mxu0 0.0
        %1125 = vmatpush1.msra.mxu0 0.0
        %1126 = vmatprep.subr.mxu0 0.0
        %1127 = vmatpush1.msra.mxu0 0.0
        %1128 = vmatprep.subr.mxu0 0.0
        %1129 = vmatpush1.msra.mxu0 0.0
        %1130 = vmatprep.mubr.f32.mxu0 0.0
        %1131 = vmatmul.mubr.f32.gmra.mrb[0].mxu0 %v978
        %v1132 = vpop.f32.mrb[0].mxu0
        %v1133 = vadd.f32 0.0, %v1132
        %v1134 = vpop.f32.mrb[0].mxu0
        %1135 = vmatprep.mubr.f32.mxu0 0.0
        %1136 = vmatmul.mubr.f32.gmra.mrb[0].mxu0 %v981
        %v1137 = vpop.f32.mrb[0].mxu0
        %v1138 = vadd.f32 0.0, %v1137
        %v1139 = vpop.f32.mrb[0].mxu0
        %1140 = vdwg.mxu0
        %v1141 = vadd.f32 %v880, %v1056
        %v1142 = vadd.f32 %v882, %v1058
        %v1143 = vadd.f32 %v957, %v1133
        %v1144 = vadd.f32 %v886, %v1062
        %v1145 = vadd.f32 %v888, %v1064
        %v1146 = vadd.f32 %v962, %v1138
        %s1147 = scalar_lea.vmem %s1, 48
        %v1148 = vld [vmem:[%s1147] sm:$0xff]
        %v1149 = vld [vmem:[%s1147 + $0x8] sm:$0xff]
        %1150 = vrot.lane.b32.xlu0 %v614, 125
        %v1151 = vpop.permute.xlu0 %1150
        %1152 = vrot.lane.b32.xlu0 %v615, 125
        %v1153 = vpop.permute.xlu0 %1152
        %1154 = vrot.lane.b32.xlu0 %v616, 125
        %v1155 = vpop.permute.xlu0 %1154
        %vm1156 = vcmask 1022976
        %v1157 = vsel %vm1156, %v1151, %v1153
        %v1158 = vsel %vm1156, %v1153, %v1155
        %v1160 = vsel %vm635, %v1148, 0
        %v1163 = vsel %vm635, %v1149, 0
        %v1165 = vsel %vm642, %v1157, 0
        %v1167 = vsel %vm642, %v1158, 0
        %v1169 = vsel %vm642, %v1155, 0
        %1171 = vmatprep.subr.mxu0 %v1167
        %1172 = vmatpush1.msra.mxu0 %v1165
        %1173 = vmatprep.subr.mxu0 0.0
        %1174 = vmatpush1.msra.mxu0 0.0
        %1175 = vmatprep.subr.mxu0 0.0
        %1176 = vmatpush1.msra.mxu0 0.0
        %1177 = vmatprep.subr.mxu0 0.0
        %1178 = vmatpush1.msra.mxu0 0.0
        %1179 = vmatprep.subr.mxu0 0.0
        %1180 = vmatpush1.msra.mxu0 0.0
        %1181 = vmatprep.subr.mxu0 0.0
        %1182 = vmatpush1.msra.mxu0 0.0
        %1183 = vmatprep.subr.mxu0 0.0
        %1184 = vmatpush1.msra.mxu0 0.0
        %1185 = vmatprep.subr.mxu0 0.0
        %1186 = vmatpush1.msra.mxu0 0.0
        %1187 = vmatprep.subr.mxu0 0.0
        %1188 = vmatpush1.msra.mxu0 0.0
        %1189 = vmatprep.subr.mxu0 0.0
        %1190 = vmatpush1.msra.mxu0 0.0
        %1191 = vmatprep.subr.mxu0 0.0
        %1192 = vmatpush1.msra.mxu0 0.0
        %1193 = vmatprep.subr.mxu0 0.0
        %1194 = vmatpush1.msra.mxu0 0.0
        %1195 = vmatprep.subr.mxu0 0.0
        %1196 = vmatpush1.msra.mxu0 0.0
        %1197 = vmatprep.subr.mxu0 0.0
        %1198 = vmatpush1.msra.mxu0 0.0
        %1199 = vmatprep.subr.mxu0 0.0
        %1200 = vmatpush1.msra.mxu0 0.0
        %1201 = vmatprep.subr.mxu0 0.0
        %1202 = vmatpush1.msra.mxu0 0.0
        %1203 = vmatprep.subr.mxu0 0.0
        %1204 = vmatpush1.msra.mxu0 0.0
        %1205 = vmatprep.subr.mxu0 0.0
        %1206 = vmatpush1.msra.mxu0 0.0
        %1207 = vmatprep.subr.mxu0 0.0
        %1208 = vmatpush1.msra.mxu0 0.0
        %1209 = vmatprep.subr.mxu0 0.0
        %1210 = vmatpush1.msra.mxu0 0.0
        %1211 = vmatprep.subr.mxu0 0.0
        %1212 = vmatpush1.msra.mxu0 0.0
        %1213 = vmatprep.subr.mxu0 0.0
        %1214 = vmatpush1.msra.mxu0 0.0
        %1215 = vmatprep.subr.mxu0 0.0
        %1216 = vmatpush1.msra.mxu0 0.0
        %1217 = vmatprep.subr.mxu0 0.0
        %1218 = vmatpush1.msra.mxu0 0.0
        %1219 = vmatprep.subr.mxu0 0.0
        %1220 = vmatpush1.msra.mxu0 0.0
        %1221 = vmatprep.subr.mxu0 0.0
        %1222 = vmatpush1.msra.mxu0 0.0
        %1223 = vmatprep.subr.mxu0 0.0
        %1224 = vmatpush1.msra.mxu0 0.0
        %1225 = vmatprep.subr.mxu0 0.0
        %1226 = vmatpush1.msra.mxu0 0.0
        %1227 = vmatprep.subr.mxu0 0.0
        %1228 = vmatpush1.msra.mxu0 0.0
        %1229 = vmatprep.subr.mxu0 0.0
        %1230 = vmatpush1.msra.mxu0 0.0
        %1231 = vmatprep.subr.mxu0 0.0
        %1232 = vmatpush1.msra.mxu0 0.0
        %1233 = vmatprep.subr.mxu0 0.0
        %1234 = vmatpush1.msra.mxu0 0.0
        %1235 = vmatprep.mubr.f32.mxu0 0.0
        %1236 = vmatmul.mubr.f32.gmra.mrb[0].mxu0 %v1160
        %v1237 = vpop.f32.mrb[0].mxu0
        %v1238 = vadd.f32 0.0, %v1237
        %v1239 = vpop.f32.mrb[0].mxu0
        %v1240 = vadd.f32 0.0, %v1239
        %1241 = vmatprep.mubr.f32.mxu0 0.0
        %1242 = vmatmul.mubr.f32.gmra.mrb[0].mxu0 %v1163
        %v1243 = vpop.f32.mrb[0].mxu0
        %v1244 = vadd.f32 0.0, %v1243
        %v1245 = vpop.f32.mrb[0].mxu0
        %v1246 = vadd.f32 0.0, %v1245
        %1247 = vdwg.mxu0
        %1248 = vmatprep.subr.mxu0 0.0
        %1249 = vmatpush1.msra.mxu0 %v1169
        %1250 = vmatprep.subr.mxu0 0.0
        %1251 = vmatpush1.msra.mxu0 0.0
        %1252 = vmatprep.subr.mxu0 0.0
        %1253 = vmatpush1.msra.mxu0 0.0
        %1254 = vmatprep.subr.mxu0 0.0
        %1255 = vmatpush1.msra.mxu0 0.0
        %1256 = vmatprep.subr.mxu0 0.0
        %1257 = vmatpush1.msra.mxu0 0.0
        %1258 = vmatprep.subr.mxu0 0.0
        %1259 = vmatpush1.msra.mxu0 0.0
        %1260 = vmatprep.subr.mxu0 0.0
        %1261 = vmatpush1.msra.mxu0 0.0
        %1262 = vmatprep.subr.mxu0 0.0
        %1263 = vmatpush1.msra.mxu0 0.0
        %1264 = vmatprep.subr.mxu0 0.0
        %1265 = vmatpush1.msra.mxu0 0.0
        %1266 = vmatprep.subr.mxu0 0.0
        %1267 = vmatpush1.msra.mxu0 0.0
        %1268 = vmatprep.subr.mxu0 0.0
        %1269 = vmatpush1.msra.mxu0 0.0
        %1270 = vmatprep.subr.mxu0 0.0
        %1271 = vmatpush1.msra.mxu0 0.0
        %1272 = vmatprep.subr.mxu0 0.0
        %1273 = vmatpush1.msra.mxu0 0.0
        %1274 = vmatprep.subr.mxu0 0.0
        %1275 = vmatpush1.msra.mxu0 0.0
        %1276 = vmatprep.subr.mxu0 0.0
        %1277 = vmatpush1.msra.mxu0 0.0
        %1278 = vmatprep.subr.mxu0 0.0
        %1279 = vmatpush1.msra.mxu0 0.0
        %1280 = vmatprep.subr.mxu0 0.0
        %1281 = vmatpush1.msra.mxu0 0.0
        %1282 = vmatprep.subr.mxu0 0.0
        %1283 = vmatpush1.msra.mxu0 0.0
        %1284 = vmatprep.subr.mxu0 0.0
        %1285 = vmatpush1.msra.mxu0 0.0
        %1286 = vmatprep.subr.mxu0 0.0
        %1287 = vmatpush1.msra.mxu0 0.0
        %1288 = vmatprep.subr.mxu0 0.0
        %1289 = vmatpush1.msra.mxu0 0.0
        %1290 = vmatprep.subr.mxu0 0.0
        %1291 = vmatpush1.msra.mxu0 0.0
        %1292 = vmatprep.subr.mxu0 0.0
        %1293 = vmatpush1.msra.mxu0 0.0
        %1294 = vmatprep.subr.mxu0 0.0
        %1295 = vmatpush1.msra.mxu0 0.0
        %1296 = vmatprep.subr.mxu0 0.0
        %1297 = vmatpush1.msra.mxu0 0.0
        %1298 = vmatprep.subr.mxu0 0.0
        %1299 = vmatpush1.msra.mxu0 0.0
        %1300 = vmatprep.subr.mxu0 0.0
        %1301 = vmatpush1.msra.mxu0 0.0
        %1302 = vmatprep.subr.mxu0 0.0
        %1303 = vmatpush1.msra.mxu0 0.0
        %1304 = vmatprep.subr.mxu0 0.0
        %1305 = vmatpush1.msra.mxu0 0.0
        %1306 = vmatprep.subr.mxu0 0.0
        %1307 = vmatpush1.msra.mxu0 0.0
        %1308 = vmatprep.subr.mxu0 0.0
        %1309 = vmatpush1.msra.mxu0 0.0
        %1310 = vmatprep.subr.mxu0 0.0
        %1311 = vmatpush1.msra.mxu0 0.0
        %1312 = vmatprep.mubr.f32.mxu0 0.0
        %1313 = vmatmul.mubr.f32.gmra.mrb[0].mxu0 %v1160
        %v1314 = vpop.f32.mrb[0].mxu0
        %v1315 = vadd.f32 0.0, %v1314
        %v1316 = vpop.f32.mrb[0].mxu0
        %1317 = vmatprep.mubr.f32.mxu0 0.0
        %1318 = vmatmul.mubr.f32.gmra.mrb[0].mxu0 %v1163
        %v1319 = vpop.f32.mrb[0].mxu0
        %v1320 = vadd.f32 0.0, %v1319
        %v1321 = vpop.f32.mrb[0].mxu0
        %1322 = vdwg.mxu0
        %v1323 = vadd.f32 %v1141, %v1238
        %v1324 = vadd.f32 %v1142, %v1240
        %v1325 = vadd.f32 %v1143, %v1315
        %v1326 = vadd.f32 %v1144, %v1244
        %v1327 = vadd.f32 %v1145, %v1246
        %v1328 = vadd.f32 %v1146, %v1320
        %s1329 = scalar_lea.vmem %s1, 64
        %v1330 = vld [vmem:[%s1329] sm:$0xff]
        %v1331 = vld [vmem:[%s1329 + $0x8] sm:$0xff]
        %1332 = vrot.lane.b32.xlu0 %v614, 124
        %v1333 = vpop.permute.xlu0 %1332
        %1334 = vrot.lane.b32.xlu0 %v615, 124
        %v1335 = vpop.permute.xlu0 %1334
        %1336 = vrot.lane.b32.xlu0 %v616, 124
        %v1337 = vpop.permute.xlu0 %1336
        %vm1338 = vcmask 1014784
        %v1339 = vsel %vm1338, %v1333, %v1335
        %v1340 = vsel %vm1338, %v1335, %v1337
        %v1342 = vsel %vm635, %v1330, 0
        %v1345 = vsel %vm635, %v1331, 0
        %v1347 = vsel %vm642, %v1339, 0
        %v1349 = vsel %vm642, %v1340, 0
        %v1351 = vsel %vm642, %v1337, 0
        %1353 = vmatprep.subr.mxu0 %v1349
        %1354 = vmatpush1.msra.mxu0 %v1347
        %1355 = vmatprep.subr.mxu0 0.0
        %1356 = vmatpush1.msra.mxu0 0.0
        %1357 = vmatprep.subr.mxu0 0.0
        %1358 = vmatpush1.msra.mxu0 0.0
        %1359 = vmatprep.subr.mxu0 0.0
        %1360 = vmatpush1.msra.mxu0 0.0
        %1361 = vmatprep.subr.mxu0 0.0
        %1362 = vmatpush1.msra.mxu0 0.0
        %1363 = vmatprep.subr.mxu0 0.0
        %1364 = vmatpush1.msra.mxu0 0.0
        %1365 = vmatprep.subr.mxu0 0.0
        %1366 = vmatpush1.msra.mxu0 0.0
        %1367 = vmatprep.subr.mxu0 0.0
        %1368 = vmatpush1.msra.mxu0 0.0
        %1369 = vmatprep.subr.mxu0 0.0
        %1370 = vmatpush1.msra.mxu0 0.0
        %1371 = vmatprep.subr.mxu0 0.0
        %1372 = vmatpush1.msra.mxu0 0.0
        %1373 = vmatprep.subr.mxu0 0.0
        %1374 = vmatpush1.msra.mxu0 0.0
        %1375 = vmatprep.subr.mxu0 0.0
        %1376 = vmatpush1.msra.mxu0 0.0
        %1377 = vmatprep.subr.mxu0 0.0
        %1378 = vmatpush1.msra.mxu0 0.0
        %1379 = vmatprep.subr.mxu0 0.0
        %1380 = vmatpush1.msra.mxu0 0.0
        %1381 = vmatprep.subr.mxu0 0.0
        %1382 = vmatpush1.msra.mxu0 0.0
        %1383 = vmatprep.subr.mxu0 0.0
        %1384 = vmatpush1.msra.mxu0 0.0
        %1385 = vmatprep.subr.mxu0 0.0
        %1386 = vmatpush1.msra.mxu0 0.0
        %1387 = vmatprep.subr.mxu0 0.0
        %1388 = vmatpush1.msra.mxu0 0.0
        %1389 = vmatprep.subr.mxu0 0.0
        %1390 = vmatpush1.msra.mxu0 0.0
        %1391 = vmatprep.subr.mxu0 0.0
        %1392 = vmatpush1.msra.mxu0 0.0
        %1393 = vmatprep.subr.mxu0 0.0
        %1394 = vmatpush1.msra.mxu0 0.0
        %1395 = vmatprep.subr.mxu0 0.0
        %1396 = vmatpush1.msra.mxu0 0.0
        %1397 = vmatprep.subr.mxu0 0.0
        %1398 = vmatpush1.msra.mxu0 0.0
        %1399 = vmatprep.subr.mxu0 0.0
        %1400 = vmatpush1.msra.mxu0 0.0
        %1401 = vmatprep.subr.mxu0 0.0
        %1402 = vmatpush1.msra.mxu0 0.0
        %1403 = vmatprep.subr.mxu0 0.0
        %1404 = vmatpush1.msra.mxu0 0.0
        %1405 = vmatprep.subr.mxu0 0.0
        %1406 = vmatpush1.msra.mxu0 0.0
        %1407 = vmatprep.subr.mxu0 0.0
        %1408 = vmatpush1.msra.mxu0 0.0
        %1409 = vmatprep.subr.mxu0 0.0
        %1410 = vmatpush1.msra.mxu0 0.0
        %1411 = vmatprep.subr.mxu0 0.0
        %1412 = vmatpush1.msra.mxu0 0.0
        %1413 = vmatprep.subr.mxu0 0.0
        %1414 = vmatpush1.msra.mxu0 0.0
        %1415 = vmatprep.subr.mxu0 0.0
        %1416 = vmatpush1.msra.mxu0 0.0
        %1417 = vmatprep.mubr.f32.mxu0 0.0
        %1418 = vmatmul.mubr.f32.gmra.mrb[0].mxu0 %v1342
        %v1419 = vpop.f32.mrb[0].mxu0
        %v1420 = vadd.f32 0.0, %v1419
        %v1421 = vpop.f32.mrb[0].mxu0
        %v1422 = vadd.f32 0.0, %v1421
        %1423 = vmatprep.mubr.f32.mxu0 0.0
        %1424 = vmatmul.mubr.f32.gmra.mrb[0].mxu0 %v1345
        %v1425 = vpop.f32.mrb[0].mxu0
        %v1426 = vadd.f32 0.0, %v1425
        %v1427 = vpop.f32.mrb[0].mxu0
        %v1428 = vadd.f32 0.0, %v1427
        %1429 = vdwg.mxu0
        %1430 = vmatprep.subr.mxu0 0.0
        %1431 = vmatpush1.msra.mxu0 %v1351
        %1432 = vmatprep.subr.mxu0 0.0
        %1433 = vmatpush1.msra.mxu0 0.0
        %1434 = vmatprep.subr.mxu0 0.0
        %1435 = vmatpush1.msra.mxu0 0.0
        %1436 = vmatprep.subr.mxu0 0.0
        %1437 = vmatpush1.msra.mxu0 0.0
        %1438 = vmatprep.subr.mxu0 0.0
        %1439 = vmatpush1.msra.mxu0 0.0
        %1440 = vmatprep.subr.mxu0 0.0
        %1441 = vmatpush1.msra.mxu0 0.0
        %1442 = vmatprep.subr.mxu0 0.0
        %1443 = vmatpush1.msra.mxu0 0.0
        %1444 = vmatprep.subr.mxu0 0.0
        %1445 = vmatpush1.msra.mxu0 0.0
        %1446 = vmatprep.subr.mxu0 0.0
        %1447 = vmatpush1.msra.mxu0 0.0
        %1448 = vmatprep.subr.mxu0 0.0
        %1449 = vmatpush1.msra.mxu0 0.0
        %1450 = vmatprep.subr.mxu0 0.0
        %1451 = vmatpush1.msra.mxu0 0.0
        %1452 = vmatprep.subr.mxu0 0.0
        %1453 = vmatpush1.msra.mxu0 0.0
        %1454 = vmatprep.subr.mxu0 0.0
        %1455 = vmatpush1.msra.mxu0 0.0
        %1456 = vmatprep.subr.mxu0 0.0
        %1457 = vmatpush1.msra.mxu0 0.0
        %1458 = vmatprep.subr.mxu0 0.0
        %1459 = vmatpush1.msra.mxu0 0.0
        %1460 = vmatprep.subr.mxu0 0.0
        %1461 = vmatpush1.msra.mxu0 0.0
        %1462 = vmatprep.subr.mxu0 0.0
        %1463 = vmatpush1.msra.mxu0 0.0
        %1464 = vmatprep.subr.mxu0 0.0
        %1465 = vmatpush1.msra.mxu0 0.0
        %1466 = vmatprep.subr.mxu0 0.0
        %1467 = vmatpush1.msra.mxu0 0.0
        %1468 = vmatprep.subr.mxu0 0.0
        %1469 = vmatpush1.msra.mxu0 0.0
        %1470 = vmatprep.subr.mxu0 0.0
        %1471 = vmatpush1.msra.mxu0 0.0
        %1472 = vmatprep.subr.mxu0 0.0
        %1473 = vmatpush1.msra.mxu0 0.0
        %1474 = vmatprep.subr.mxu0 0.0
        %1475 = vmatpush1.msra.mxu0 0.0
        %1476 = vmatprep.subr.mxu0 0.0
        %1477 = vmatpush1.msra.mxu0 0.0
        %1478 = vmatprep.subr.mxu0 0.0
        %1479 = vmatpush1.msra.mxu0 0.0
        %1480 = vmatprep.subr.mxu0 0.0
        %1481 = vmatpush1.msra.mxu0 0.0
        %1482 = vmatprep.subr.mxu0 0.0
        %1483 = vmatpush1.msra.mxu0 0.0
        %1484 = vmatprep.subr.mxu0 0.0
        %1485 = vmatpush1.msra.mxu0 0.0
        %1486 = vmatprep.subr.mxu0 0.0
        %1487 = vmatpush1.msra.mxu0 0.0
        %1488 = vmatprep.subr.mxu0 0.0
        %1489 = vmatpush1.msra.mxu0 0.0
        %1490 = vmatprep.subr.mxu0 0.0
        %1491 = vmatpush1.msra.mxu0 0.0
        %1492 = vmatprep.subr.mxu0 0.0
        %1493 = vmatpush1.msra.mxu0 0.0
        %1494 = vmatprep.mubr.f32.mxu0 0.0
        %1495 = vmatmul.mubr.f32.gmra.mrb[0].mxu0 %v1342
        %v1496 = vpop.f32.mrb[0].mxu0
        %v1497 = vadd.f32 0.0, %v1496
        %v1498 = vpop.f32.mrb[0].mxu0
        %1499 = vmatprep.mubr.f32.mxu0 0.0
        %1500 = vmatmul.mubr.f32.gmra.mrb[0].mxu0 %v1345
        %v1501 = vpop.f32.mrb[0].mxu0
        %v1502 = vadd.f32 0.0, %v1501
        %v1503 = vpop.f32.mrb[0].mxu0
        %1504 = vdwg.mxu0
        %v1505 = vadd.f32 %v1323, %v1420
        %v1506 = vadd.f32 %v1324, %v1422
        %v1507 = vadd.f32 %v1325, %v1497
        %v1508 = vadd.f32 %v1326, %v1426
        %v1509 = vadd.f32 %v1327, %v1428
        %v1510 = vadd.f32 %v1328, %v1502
        %s1511 = scalar_lea.vmem %s1, 80
        %v1512 = vld [vmem:[%s1511] sm:$0xff]
        %v1513 = vld [vmem:[%s1511 + $0x8] sm:$0xff]
        %1514 = vrot.lane.b32.xlu0 %v614, 108
        %v1515 = vpop.permute.xlu0 %1514
        %1516 = vrot.lane.b32.xlu0 %v615, 108
        %v1517 = vpop.permute.xlu0 %1516
        %1518 = vrot.lane.b32.xlu0 %v616, 108
        %v1519 = vpop.permute.xlu0 %1518
        %vm1520 = vcmask 883712
        %v1521 = vsel %vm1520, %v1515, %v1517
        %v1522 = vsel %vm1520, %v1517, %v1519
        %v1524 = vsel %vm635, %v1512, 0
        %v1527 = vsel %vm635, %v1513, 0
        %v1529 = vsel %vm642, %v1521, 0
        %v1531 = vsel %vm642, %v1522, 0
        %v1533 = vsel %vm642, %v1519, 0
        %1535 = vmatprep.subr.mxu0 %v1531
        %1536 = vmatpush1.msra.mxu0 %v1529
        %1537 = vmatprep.subr.mxu0 0.0
        %1538 = vmatpush1.msra.mxu0 0.0
        %1539 = vmatprep.subr.mxu0 0.0
        %1540 = vmatpush1.msra.mxu0 0.0
        %1541 = vmatprep.subr.mxu0 0.0
        %1542 = vmatpush1.msra.mxu0 0.0
        %1543 = vmatprep.subr.mxu0 0.0
        %1544 = vmatpush1.msra.mxu0 0.0
        %1545 = vmatprep.subr.mxu0 0.0
        %1546 = vmatpush1.msra.mxu0 0.0
        %1547 = vmatprep.subr.mxu0 0.0
        %1548 = vmatpush1.msra.mxu0 0.0
        %1549 = vmatprep.subr.mxu0 0.0
        %1550 = vmatpush1.msra.mxu0 0.0
        %1551 = vmatprep.subr.mxu0 0.0
        %1552 = vmatpush1.msra.mxu0 0.0
        %1553 = vmatprep.subr.mxu0 0.0
        %1554 = vmatpush1.msra.mxu0 0.0
        %1555 = vmatprep.subr.mxu0 0.0
        %1556 = vmatpush1.msra.mxu0 0.0
        %1557 = vmatprep.subr.mxu0 0.0
        %1558 = vmatpush1.msra.mxu0 0.0
        %1559 = vmatprep.subr.mxu0 0.0
        %1560 = vmatpush1.msra.mxu0 0.0
        %1561 = vmatprep.subr.mxu0 0.0
        %1562 = vmatpush1.msra.mxu0 0.0
        %1563 = vmatprep.subr.mxu0 0.0
        %1564 = vmatpush1.msra.mxu0 0.0
        %1565 = vmatprep.subr.mxu0 0.0
        %1566 = vmatpush1.msra.mxu0 0.0
        %1567 = vmatprep.subr.mxu0 0.0
        %1568 = vmatpush1.msra.mxu0 0.0
        %1569 = vmatprep.subr.mxu0 0.0
        %1570 = vmatpush1.msra.mxu0 0.0
        %1571 = vmatprep.subr.mxu0 0.0
        %1572 = vmatpush1.msra.mxu0 0.0
        %1573 = vmatprep.subr.mxu0 0.0
        %1574 = vmatpush1.msra.mxu0 0.0
        %1575 = vmatprep.subr.mxu0 0.0
        %1576 = vmatpush1.msra.mxu0 0.0
        %1577 = vmatprep.subr.mxu0 0.0
        %1578 = vmatpush1.msra.mxu0 0.0
        %1579 = vmatprep.subr.mxu0 0.0
        %1580 = vmatpush1.msra.mxu0 0.0
        %1581 = vmatprep.subr.mxu0 0.0
        %1582 = vmatpush1.msra.mxu0 0.0
        %1583 = vmatprep.subr.mxu0 0.0
        %1584 = vmatpush1.msra.mxu0 0.0
        %1585 = vmatprep.subr.mxu0 0.0
        %1586 = vmatpush1.msra.mxu0 0.0
        %1587 = vmatprep.subr.mxu0 0.0
        %1588 = vmatpush1.msra.mxu0 0.0
        %1589 = vmatprep.subr.mxu0 0.0
        %1590 = vmatpush1.msra.mxu0 0.0
        %1591 = vmatprep.subr.mxu0 0.0
        %1592 = vmatpush1.msra.mxu0 0.0
        %1593 = vmatprep.subr.mxu0 0.0
        %1594 = vmatpush1.msra.mxu0 0.0
        %1595 = vmatprep.subr.mxu0 0.0
        %1596 = vmatpush1.msra.mxu0 0.0
        %1597 = vmatprep.subr.mxu0 0.0
        %1598 = vmatpush1.msra.mxu0 0.0
        %1599 = vmatprep.mubr.f32.mxu0 0.0
        %1600 = vmatmul.mubr.f32.gmra.mrb[0].mxu0 %v1524
        %v1601 = vpop.f32.mrb[0].mxu0
        %v1602 = vadd.f32 0.0, %v1601
        %v1603 = vpop.f32.mrb[0].mxu0
        %v1604 = vadd.f32 0.0, %v1603
        %1605 = vmatprep.mubr.f32.mxu0 0.0
        %1606 = vmatmul.mubr.f32.gmra.mrb[0].mxu0 %v1527
        %v1607 = vpop.f32.mrb[0].mxu0
        %v1608 = vadd.f32 0.0, %v1607
        %v1609 = vpop.f32.mrb[0].mxu0
        %v1610 = vadd.f32 0.0, %v1609
        %1611 = vdwg.mxu0
        %1612 = vmatprep.subr.mxu0 0.0
        %1613 = vmatpush1.msra.mxu0 %v1533
        %1614 = vmatprep.subr.mxu0 0.0
        %1615 = vmatpush1.msra.mxu0 0.0
        %1616 = vmatprep.subr.mxu0 0.0
        %1617 = vmatpush1.msra.mxu0 0.0
        %1618 = vmatprep.subr.mxu0 0.0
        %1619 = vmatpush1.msra.mxu0 0.0
        %1620 = vmatprep.subr.mxu0 0.0
        %1621 = vmatpush1.msra.mxu0 0.0
        %1622 = vmatprep.subr.mxu0 0.0
        %1623 = vmatpush1.msra.mxu0 0.0
        %1624 = vmatprep.subr.mxu0 0.0
        %1625 = vmatpush1.msra.mxu0 0.0
        %1626 = vmatprep.subr.mxu0 0.0
        %1627 = vmatpush1.msra.mxu0 0.0
        %1628 = vmatprep.subr.mxu0 0.0
        %1629 = vmatpush1.msra.mxu0 0.0
        %1630 = vmatprep.subr.mxu0 0.0
        %1631 = vmatpush1.msra.mxu0 0.0
        %1632 = vmatprep.subr.mxu0 0.0
        %1633 = vmatpush1.msra.mxu0 0.0
        %1634 = vmatprep.subr.mxu0 0.0
        %1635 = vmatpush1.msra.mxu0 0.0
        %1636 = vmatprep.subr.mxu0 0.0
        %1637 = vmatpush1.msra.mxu0 0.0
        %1638 = vmatprep.subr.mxu0 0.0
        %1639 = vmatpush1.msra.mxu0 0.0
        %1640 = vmatprep.subr.mxu0 0.0
        %1641 = vmatpush1.msra.mxu0 0.0
        %1642 = vmatprep.subr.mxu0 0.0
        %1643 = vmatpush1.msra.mxu0 0.0
        %1644 = vmatprep.subr.mxu0 0.0
        %1645 = vmatpush1.msra.mxu0 0.0
        %1646 = vmatprep.subr.mxu0 0.0
        %1647 = vmatpush1.msra.mxu0 0.0
        %1648 = vmatprep.subr.mxu0 0.0
        %1649 = vmatpush1.msra.mxu0 0.0
        %1650 = vmatprep.subr.mxu0 0.0
        %1651 = vmatpush1.msra.mxu0 0.0
        %1652 = vmatprep.subr.mxu0 0.0
        %1653 = vmatpush1.msra.mxu0 0.0
        %1654 = vmatprep.subr.mxu0 0.0
        %1655 = vmatpush1.msra.mxu0 0.0
        %1656 = vmatprep.subr.mxu0 0.0
        %1657 = vmatpush1.msra.mxu0 0.0
        %1658 = vmatprep.subr.mxu0 0.0
        %1659 = vmatpush1.msra.mxu0 0.0
        %1660 = vmatprep.subr.mxu0 0.0
        %1661 = vmatpush1.msra.mxu0 0.0
        %1662 = vmatprep.subr.mxu0 0.0
        %1663 = vmatpush1.msra.mxu0 0.0
        %1664 = vmatprep.subr.mxu0 0.0
        %1665 = vmatpush1.msra.mxu0 0.0
        %1666 = vmatprep.subr.mxu0 0.0
        %1667 = vmatpush1.msra.mxu0 0.0
        %1668 = vmatprep.subr.mxu0 0.0
        %1669 = vmatpush1.msra.mxu0 0.0
        %1670 = vmatprep.subr.mxu0 0.0
        %1671 = vmatpush1.msra.mxu0 0.0
        %1672 = vmatprep.subr.mxu0 0.0
        %1673 = vmatpush1.msra.mxu0 0.0
        %1674 = vmatprep.subr.mxu0 0.0
        %1675 = vmatpush1.msra.mxu0 0.0
        %1676 = vmatprep.mubr.f32.mxu0 0.0
        %1677 = vmatmul.mubr.f32.gmra.mrb[0].mxu0 %v1524
        %v1678 = vpop.f32.mrb[0].mxu0
        %v1679 = vadd.f32 0.0, %v1678
        %v1680 = vpop.f32.mrb[0].mxu0
        %1681 = vmatprep.mubr.f32.mxu0 0.0
        %1682 = vmatmul.mubr.f32.gmra.mrb[0].mxu0 %v1527
        %v1683 = vpop.f32.mrb[0].mxu0
        %v1684 = vadd.f32 0.0, %v1683
        %v1685 = vpop.f32.mrb[0].mxu0
        %1686 = vdwg.mxu0
        %v1687 = vadd.f32 %v1505, %v1602
        %v1688 = vadd.f32 %v1506, %v1604
        %v1689 = vadd.f32 %v1507, %v1679
        %v1690 = vadd.f32 %v1508, %v1608
        %v1691 = vadd.f32 %v1509, %v1610
        %v1692 = vadd.f32 %v1510, %v1684
        %s1693 = scalar_lea.vmem %s1, 96
        %v1694 = vld [vmem:[%s1693] sm:$0xff]
        %v1695 = vld [vmem:[%s1693 + $0x8] sm:$0xff]
        %1696 = vrot.lane.b32.xlu0 %v614, 107
        %v1697 = vpop.permute.xlu0 %1696
        %1698 = vrot.lane.b32.xlu0 %v615, 107
        %v1699 = vpop.permute.xlu0 %1698
        %1700 = vrot.lane.b32.xlu0 %v616, 107
        %v1701 = vpop.permute.xlu0 %1700
        %vm1702 = vcmask 875520
        %v1703 = vsel %vm1702, %v1697, %v1699
        %v1704 = vsel %vm1702, %v1699, %v1701
        %v1706 = vsel %vm635, %v1694, 0
        %v1709 = vsel %vm635, %v1695, 0
        %v1711 = vsel %vm642, %v1703, 0
        %v1713 = vsel %vm642, %v1704, 0
        %v1715 = vsel %vm642, %v1701, 0
        %1717 = vmatprep.subr.mxu0 %v1713
        %1718 = vmatpush1.msra.mxu0 %v1711
        %1719 = vmatprep.subr.mxu0 0.0
        %1720 = vmatpush1.msra.mxu0 0.0
        %1721 = vmatprep.subr.mxu0 0.0
        %1722 = vmatpush1.msra.mxu0 0.0
        %1723 = vmatprep.subr.mxu0 0.0
        %1724 = vmatpush1.msra.mxu0 0.0
        %1725 = vmatprep.subr.mxu0 0.0
        %1726 = vmatpush1.msra.mxu0 0.0
        %1727 = vmatprep.subr.mxu0 0.0
        %1728 = vmatpush1.msra.mxu0 0.0
        %1729 = vmatprep.subr.mxu0 0.0
        %1730 = vmatpush1.msra.mxu0 0.0
        %1731 = vmatprep.subr.mxu0 0.0
        %1732 = vmatpush1.msra.mxu0 0.0
        %1733 = vmatprep.subr.mxu0 0.0
        %1734 = vmatpush1.msra.mxu0 0.0
        %1735 = vmatprep.subr.mxu0 0.0
        %1736 = vmatpush1.msra.mxu0 0.0
        %1737 = vmatprep.subr.mxu0 0.0
        %1738 = vmatpush1.msra.mxu0 0.0
        %1739 = vmatprep.subr.mxu0 0.0
        %1740 = vmatpush1.msra.mxu0 0.0
        %1741 = vmatprep.subr.mxu0 0.0
        %1742 = vmatpush1.msra.mxu0 0.0
        %1743 = vmatprep.subr.mxu0 0.0
        %1744 = vmatpush1.msra.mxu0 0.0
        %1745 = vmatprep.subr.mxu0 0.0
        %1746 = vmatpush1.msra.mxu0 0.0
        %1747 = vmatprep.subr.mxu0 0.0
        %1748 = vmatpush1.msra.mxu0 0.0
        %1749 = vmatprep.subr.mxu0 0.0
        %1750 = vmatpush1.msra.mxu0 0.0
        %1751 = vmatprep.subr.mxu0 0.0
        %1752 = vmatpush1.msra.mxu0 0.0
        %1753 = vmatprep.subr.mxu0 0.0
        %1754 = vmatpush1.msra.mxu0 0.0
        %1755 = vmatprep.subr.mxu0 0.0
        %1756 = vmatpush1.msra.mxu0 0.0
        %1757 = vmatprep.subr.mxu0 0.0
        %1758 = vmatpush1.msra.mxu0 0.0
        %1759 = vmatprep.subr.mxu0 0.0
        %1760 = vmatpush1.msra.mxu0 0.0
        %1761 = vmatprep.subr.mxu0 0.0
        %1762 = vmatpush1.msra.mxu0 0.0
        %1763 = vmatprep.subr.mxu0 0.0
        %1764 = vmatpush1.msra.mxu0 0.0
        %1765 = vmatprep.subr.mxu0 0.0
        %1766 = vmatpush1.msra.mxu0 0.0
        %1767 = vmatprep.subr.mxu0 0.0
        %1768 = vmatpush1.msra.mxu0 0.0
        %1769 = vmatprep.subr.mxu0 0.0
        %1770 = vmatpush1.msra.mxu0 0.0
        %1771 = vmatprep.subr.mxu0 0.0
        %1772 = vmatpush1.msra.mxu0 0.0
        %1773 = vmatprep.subr.mxu0 0.0
        %1774 = vmatpush1.msra.mxu0 0.0
        %1775 = vmatprep.subr.mxu0 0.0
        %1776 = vmatpush1.msra.mxu0 0.0
        %1777 = vmatprep.subr.mxu0 0.0
        %1778 = vmatpush1.msra.mxu0 0.0
        %1779 = vmatprep.subr.mxu0 0.0
        %1780 = vmatpush1.msra.mxu0 0.0
        %1781 = vmatprep.mubr.f32.mxu0 0.0
        %1782 = vmatmul.mubr.f32.gmra.mrb[0].mxu0 %v1706
        %v1783 = vpop.f32.mrb[0].mxu0
        %v1784 = vadd.f32 0.0, %v1783
        %v1785 = vpop.f32.mrb[0].mxu0
        %v1786 = vadd.f32 0.0, %v1785
        %1787 = vmatprep.mubr.f32.mxu0 0.0
        %1788 = vmatmul.mubr.f32.gmra.mrb[0].mxu0 %v1709
        %v1789 = vpop.f32.mrb[0].mxu0
        %v1790 = vadd.f32 0.0, %v1789
        %v1791 = vpop.f32.mrb[0].mxu0
        %v1792 = vadd.f32 0.0, %v1791
        %1793 = vdwg.mxu0
        %1794 = vmatprep.subr.mxu0 0.0
        %1795 = vmatpush1.msra.mxu0 %v1715
        %1796 = vmatprep.subr.mxu0 0.0
        %1797 = vmatpush1.msra.mxu0 0.0
        %1798 = vmatprep.subr.mxu0 0.0
        %1799 = vmatpush1.msra.mxu0 0.0
        %1800 = vmatprep.subr.mxu0 0.0
        %1801 = vmatpush1.msra.mxu0 0.0
        %1802 = vmatprep.subr.mxu0 0.0
        %1803 = vmatpush1.msra.mxu0 0.0
        %1804 = vmatprep.subr.mxu0 0.0
        %1805 = vmatpush1.msra.mxu0 0.0
        %1806 = vmatprep.subr.mxu0 0.0
        %1807 = vmatpush1.msra.mxu0 0.0
        %1808 = vmatprep.subr.mxu0 0.0
        %1809 = vmatpush1.msra.mxu0 0.0
        %1810 = vmatprep.subr.mxu0 0.0
        %1811 = vmatpush1.msra.mxu0 0.0
        %1812 = vmatprep.subr.mxu0 0.0
        %1813 = vmatpush1.msra.mxu0 0.0
        %1814 = vmatprep.subr.mxu0 0.0
        %1815 = vmatpush1.msra.mxu0 0.0
        %1816 = vmatprep.subr.mxu0 0.0
        %1817 = vmatpush1.msra.mxu0 0.0
        %1818 = vmatprep.subr.mxu0 0.0
        %1819 = vmatpush1.msra.mxu0 0.0
        %1820 = vmatprep.subr.mxu0 0.0
        %1821 = vmatpush1.msra.mxu0 0.0
        %1822 = vmatprep.subr.mxu0 0.0
        %1823 = vmatpush1.msra.mxu0 0.0
        %1824 = vmatprep.subr.mxu0 0.0
        %1825 = vmatpush1.msra.mxu0 0.0
        %1826 = vmatprep.subr.mxu0 0.0
        %1827 = vmatpush1.msra.mxu0 0.0
        %1828 = vmatprep.subr.mxu0 0.0
        %1829 = vmatpush1.msra.mxu0 0.0
        %1830 = vmatprep.subr.mxu0 0.0
        %1831 = vmatpush1.msra.mxu0 0.0
        %1832 = vmatprep.subr.mxu0 0.0
        %1833 = vmatpush1.msra.mxu0 0.0
        %1834 = vmatprep.subr.mxu0 0.0
        %1835 = vmatpush1.msra.mxu0 0.0
        %1836 = vmatprep.subr.mxu0 0.0
        %1837 = vmatpush1.msra.mxu0 0.0
        %1838 = vmatprep.subr.mxu0 0.0
        %1839 = vmatpush1.msra.mxu0 0.0
        %1840 = vmatprep.subr.mxu0 0.0
        %1841 = vmatpush1.msra.mxu0 0.0
        %1842 = vmatprep.subr.mxu0 0.0
        %1843 = vmatpush1.msra.mxu0 0.0
        %1844 = vmatprep.subr.mxu0 0.0
        %1845 = vmatpush1.msra.mxu0 0.0
        %1846 = vmatprep.subr.mxu0 0.0
        %1847 = vmatpush1.msra.mxu0 0.0
        %1848 = vmatprep.subr.mxu0 0.0
        %1849 = vmatpush1.msra.mxu0 0.0
        %1850 = vmatprep.subr.mxu0 0.0
        %1851 = vmatpush1.msra.mxu0 0.0
        %1852 = vmatprep.subr.mxu0 0.0
        %1853 = vmatpush1.msra.mxu0 0.0
        %1854 = vmatprep.subr.mxu0 0.0
        %1855 = vmatpush1.msra.mxu0 0.0
        %1856 = vmatprep.subr.mxu0 0.0
        %1857 = vmatpush1.msra.mxu0 0.0
        %1858 = vmatprep.mubr.f32.mxu0 0.0
        %1859 = vmatmul.mubr.f32.gmra.mrb[0].mxu0 %v1706
        %v1860 = vpop.f32.mrb[0].mxu0
        %v1861 = vadd.f32 0.0, %v1860
        %v1862 = vpop.f32.mrb[0].mxu0
        %1863 = vmatprep.mubr.f32.mxu0 0.0
        %1864 = vmatmul.mubr.f32.gmra.mrb[0].mxu0 %v1709
        %v1865 = vpop.f32.mrb[0].mxu0
        %v1866 = vadd.f32 0.0, %v1865
        %v1867 = vpop.f32.mrb[0].mxu0
        %1868 = vdwg.mxu0
        %v1869 = vadd.f32 %v1687, %v1784
        %v1870 = vadd.f32 %v1688, %v1786
        %v1871 = vadd.f32 %v1689, %v1861
        %v1872 = vadd.f32 %v1690, %v1790
        %v1873 = vadd.f32 %v1691, %v1792
        %v1874 = vadd.f32 %v1692, %v1866
        %s1875 = scalar_lea.vmem %s1, 112
        %v1876 = vld [vmem:[%s1875] sm:$0xff]
        %v1877 = vld [vmem:[%s1875 + $0x8] sm:$0xff]
        %1878 = vrot.lane.b32.xlu0 %v614, 106
        %v1879 = vpop.permute.xlu0 %1878
        %1880 = vrot.lane.b32.xlu0 %v615, 106
        %v1881 = vpop.permute.xlu0 %1880
        %1882 = vrot.lane.b32.xlu0 %v616, 106
        %v1883 = vpop.permute.xlu0 %1882
        %vm1884 = vcmask 867328
        %v1885 = vsel %vm1884, %v1879, %v1881
        %v1886 = vsel %vm1884, %v1881, %v1883
        %v1888 = vsel %vm635, %v1876, 0
        %v1891 = vsel %vm635, %v1877, 0
        %v1893 = vsel %vm642, %v1885, 0
        %v1895 = vsel %vm642, %v1886, 0
        %v1897 = vsel %vm642, %v1883, 0
        %1899 = vmatprep.subr.mxu0 %v1895
        %1900 = vmatpush1.msra.mxu0 %v1893
        %1901 = vmatprep.subr.mxu0 0.0
        %1902 = vmatpush1.msra.mxu0 0.0
        %1903 = vmatprep.subr.mxu0 0.0
        %1904 = vmatpush1.msra.mxu0 0.0
        %1905 = vmatprep.subr.mxu0 0.0
        %1906 = vmatpush1.msra.mxu0 0.0
        %1907 = vmatprep.subr.mxu0 0.0
        %1908 = vmatpush1.msra.mxu0 0.0
        %1909 = vmatprep.subr.mxu0 0.0
        %1910 = vmatpush1.msra.mxu0 0.0
        %1911 = vmatprep.subr.mxu0 0.0
        %1912 = vmatpush1.msra.mxu0 0.0
        %1913 = vmatprep.subr.mxu0 0.0
        %1914 = vmatpush1.msra.mxu0 0.0
        %1915 = vmatprep.subr.mxu0 0.0
        %1916 = vmatpush1.msra.mxu0 0.0
        %1917 = vmatprep.subr.mxu0 0.0
        %1918 = vmatpush1.msra.mxu0 0.0
        %1919 = vmatprep.subr.mxu0 0.0
        %1920 = vmatpush1.msra.mxu0 0.0
        %1921 = vmatprep.subr.mxu0 0.0
        %1922 = vmatpush1.msra.mxu0 0.0
        %1923 = vmatprep.subr.mxu0 0.0
        %1924 = vmatpush1.msra.mxu0 0.0
        %1925 = vmatprep.subr.mxu0 0.0
        %1926 = vmatpush1.msra.mxu0 0.0
        %1927 = vmatprep.subr.mxu0 0.0
        %1928 = vmatpush1.msra.mxu0 0.0
        %1929 = vmatprep.subr.mxu0 0.0
        %1930 = vmatpush1.msra.mxu0 0.0
        %1931 = vmatprep.subr.mxu0 0.0
        %1932 = vmatpush1.msra.mxu0 0.0
        %1933 = vmatprep.subr.mxu0 0.0
        %1934 = vmatpush1.msra.mxu0 0.0
        %1935 = vmatprep.subr.mxu0 0.0
        %1936 = vmatpush1.msra.mxu0 0.0
        %1937 = vmatprep.subr.mxu0 0.0
        %1938 = vmatpush1.msra.mxu0 0.0
        %1939 = vmatprep.subr.mxu0 0.0
        %1940 = vmatpush1.msra.mxu0 0.0
        %1941 = vmatprep.subr.mxu0 0.0
        %1942 = vmatpush1.msra.mxu0 0.0
        %1943 = vmatprep.subr.mxu0 0.0
        %1944 = vmatpush1.msra.mxu0 0.0
        %1945 = vmatprep.subr.mxu0 0.0
        %1946 = vmatpush1.msra.mxu0 0.0
        %1947 = vmatprep.subr.mxu0 0.0
        %1948 = vmatpush1.msra.mxu0 0.0
        %1949 = vmatprep.subr.mxu0 0.0
        %1950 = vmatpush1.msra.mxu0 0.0
        %1951 = vmatprep.subr.mxu0 0.0
        %1952 = vmatpush1.msra.mxu0 0.0
        %1953 = vmatprep.subr.mxu0 0.0
        %1954 = vmatpush1.msra.mxu0 0.0
        %1955 = vmatprep.subr.mxu0 0.0
        %1956 = vmatpush1.msra.mxu0 0.0
        %1957 = vmatprep.subr.mxu0 0.0
        %1958 = vmatpush1.msra.mxu0 0.0
        %1959 = vmatprep.subr.mxu0 0.0
        %1960 = vmatpush1.msra.mxu0 0.0
        %1961 = vmatprep.subr.mxu0 0.0
        %1962 = vmatpush1.msra.mxu0 0.0
        %1963 = vmatprep.mubr.f32.mxu0 0.0
        %1964 = vmatmul.mubr.f32.gmra.mrb[0].mxu0 %v1888
        %v1965 = vpop.f32.mrb[0].mxu0
        %v1966 = vadd.f32 0.0, %v1965
        %v1967 = vpop.f32.mrb[0].mxu0
        %v1968 = vadd.f32 0.0, %v1967
        %1969 = vmatprep.mubr.f32.mxu0 0.0
        %1970 = vmatmul.mubr.f32.gmra.mrb[0].mxu0 %v1891
        %v1971 = vpop.f32.mrb[0].mxu0
        %v1972 = vadd.f32 0.0, %v1971
        %v1973 = vpop.f32.mrb[0].mxu0
        %v1974 = vadd.f32 0.0, %v1973
        %1975 = vdwg.mxu0
        %1976 = vmatprep.subr.mxu0 0.0
        %1977 = vmatpush1.msra.mxu0 %v1897
        %1978 = vmatprep.subr.mxu0 0.0
        %1979 = vmatpush1.msra.mxu0 0.0
        %1980 = vmatprep.subr.mxu0 0.0
        %1981 = vmatpush1.msra.mxu0 0.0
        %1982 = vmatprep.subr.mxu0 0.0
        %1983 = vmatpush1.msra.mxu0 0.0
        %1984 = vmatprep.subr.mxu0 0.0
        %1985 = vmatpush1.msra.mxu0 0.0
        %1986 = vmatprep.subr.mxu0 0.0
        %1987 = vmatpush1.msra.mxu0 0.0
        %1988 = vmatprep.subr.mxu0 0.0
        %1989 = vmatpush1.msra.mxu0 0.0
        %1990 = vmatprep.subr.mxu0 0.0
        %1991 = vmatpush1.msra.mxu0 0.0
        %1992 = vmatprep.subr.mxu0 0.0
        %1993 = vmatpush1.msra.mxu0 0.0
        %1994 = vmatprep.subr.mxu0 0.0
        %1995 = vmatpush1.msra.mxu0 0.0
        %1996 = vmatprep.subr.mxu0 0.0
        %1997 = vmatpush1.msra.mxu0 0.0
        %1998 = vmatprep.subr.mxu0 0.0
        %1999 = vmatpush1.msra.mxu0 0.0
        %2000 = vmatprep.subr.mxu0 0.0
        %2001 = vmatpush1.msra.mxu0 0.0
        %2002 = vmatprep.subr.mxu0 0.0
        %2003 = vmatpush1.msra.mxu0 0.0
        %2004 = vmatprep.subr.mxu0 0.0
        %2005 = vmatpush1.msra.mxu0 0.0
        %2006 = vmatprep.subr.mxu0 0.0
        %2007 = vmatpush1.msra.mxu0 0.0
        %2008 = vmatprep.subr.mxu0 0.0
        %2009 = vmatpush1.msra.mxu0 0.0
        %2010 = vmatprep.subr.mxu0 0.0
        %2011 = vmatpush1.msra.mxu0 0.0
        %2012 = vmatprep.subr.mxu0 0.0
        %2013 = vmatpush1.msra.mxu0 0.0
        %2014 = vmatprep.subr.mxu0 0.0
        %2015 = vmatpush1.msra.mxu0 0.0
        %2016 = vmatprep.subr.mxu0 0.0
        %2017 = vmatpush1.msra.mxu0 0.0
        %2018 = vmatprep.subr.mxu0 0.0
        %2019 = vmatpush1.msra.mxu0 0.0
        %2020 = vmatprep.subr.mxu0 0.0
        %2021 = vmatpush1.msra.mxu0 0.0
        %2022 = vmatprep.subr.mxu0 0.0
        %2023 = vmatpush1.msra.mxu0 0.0
        %2024 = vmatprep.subr.mxu0 0.0
        %2025 = vmatpush1.msra.mxu0 0.0
        %2026 = vmatprep.subr.mxu0 0.0
        %2027 = vmatpush1.msra.mxu0 0.0
        %2028 = vmatprep.subr.mxu0 0.0
        %2029 = vmatpush1.msra.mxu0 0.0
        %2030 = vmatprep.subr.mxu0 0.0
        %2031 = vmatpush1.msra.mxu0 0.0
        %2032 = vmatprep.subr.mxu0 0.0
        %2033 = vmatpush1.msra.mxu0 0.0
        %2034 = vmatprep.subr.mxu0 0.0
        %2035 = vmatpush1.msra.mxu0 0.0
        %2036 = vmatprep.subr.mxu0 0.0
        %2037 = vmatpush1.msra.mxu0 0.0
        %2038 = vmatprep.subr.mxu0 0.0
        %2039 = vmatpush1.msra.mxu0 0.0
        %2040 = vmatprep.mubr.f32.mxu0 0.0
        %2041 = vmatmul.mubr.f32.gmra.mrb[0].mxu0 %v1888
        %v2042 = vpop.f32.mrb[0].mxu0
        %v2043 = vadd.f32 0.0, %v2042
        %v2044 = vpop.f32.mrb[0].mxu0
        %2045 = vmatprep.mubr.f32.mxu0 0.0
        %2046 = vmatmul.mubr.f32.gmra.mrb[0].mxu0 %v1891
        %v2047 = vpop.f32.mrb[0].mxu0
        %v2048 = vadd.f32 0.0, %v2047
        %v2049 = vpop.f32.mrb[0].mxu0
        %2050 = vdwg.mxu0
        %v2051 = vadd.f32 %v1869, %v1966
        %v2052 = vadd.f32 %v1870, %v1968
        %v2053 = vadd.f32 %v1871, %v2043
        %v2054 = vadd.f32 %v1872, %v1972
        %v2055 = vadd.f32 %v1873, %v1974
        %v2056 = vadd.f32 %v1874, %v2048
        %s2057 = scalar_lea.vmem %s1, 128
        %v2058 = vld [vmem:[%s2057] sm:$0xff]
        %v2059 = vld [vmem:[%s2057 + $0x8] sm:$0xff]
        %2060 = vrot.lane.b32.xlu0 %v614, 105
        %v2061 = vpop.permute.xlu0 %2060
        %2062 = vrot.lane.b32.xlu0 %v615, 105
        %v2063 = vpop.permute.xlu0 %2062
        %2064 = vrot.lane.b32.xlu0 %v616, 105
        %v2065 = vpop.permute.xlu0 %2064
        %vm2066 = vcmask 859136
        %v2067 = vsel %vm2066, %v2061, %v2063
        %v2068 = vsel %vm2066, %v2063, %v2065
        %v2070 = vsel %vm635, %v2058, 0
        %v2073 = vsel %vm635, %v2059, 0
        %v2075 = vsel %vm642, %v2067, 0
        %v2077 = vsel %vm642, %v2068, 0
        %v2079 = vsel %vm642, %v2065, 0
        %2081 = vmatprep.subr.mxu0 %v2077
        %2082 = vmatpush1.msra.mxu0 %v2075
        %2083 = vmatprep.subr.mxu0 0.0
        %2084 = vmatpush1.msra.mxu0 0.0
        %2085 = vmatprep.subr.mxu0 0.0
        %2086 = vmatpush1.msra.mxu0 0.0
        %2087 = vmatprep.subr.mxu0 0.0
        %2088 = vmatpush1.msra.mxu0 0.0
        %2089 = vmatprep.subr.mxu0 0.0
        %2090 = vmatpush1.msra.mxu0 0.0
        %2091 = vmatprep.subr.mxu0 0.0
        %2092 = vmatpush1.msra.mxu0 0.0
        %2093 = vmatprep.subr.mxu0 0.0
        %2094 = vmatpush1.msra.mxu0 0.0
        %2095 = vmatprep.subr.mxu0 0.0
        %2096 = vmatpush1.msra.mxu0 0.0
        %2097 = vmatprep.subr.mxu0 0.0
        %2098 = vmatpush1.msra.mxu0 0.0
        %2099 = vmatprep.subr.mxu0 0.0
        %2100 = vmatpush1.msra.mxu0 0.0
        %2101 = vmatprep.subr.mxu0 0.0
        %2102 = vmatpush1.msra.mxu0 0.0
        %2103 = vmatprep.subr.mxu0 0.0
        %2104 = vmatpush1.msra.mxu0 0.0
        %2105 = vmatprep.subr.mxu0 0.0
        %2106 = vmatpush1.msra.mxu0 0.0
        %2107 = vmatprep.subr.mxu0 0.0
        %2108 = vmatpush1.msra.mxu0 0.0
        %2109 = vmatprep.subr.mxu0 0.0
        %2110 = vmatpush1.msra.mxu0 0.0
        %2111 = vmatprep.subr.mxu0 0.0
        %2112 = vmatpush1.msra.mxu0 0.0
        %2113 = vmatprep.subr.mxu0 0.0
        %2114 = vmatpush1.msra.mxu0 0.0
        %2115 = vmatprep.subr.mxu0 0.0
        %2116 = vmatpush1.msra.mxu0 0.0
        %2117 = vmatprep.subr.mxu0 0.0
        %2118 = vmatpush1.msra.mxu0 0.0
        %2119 = vmatprep.subr.mxu0 0.0
        %2120 = vmatpush1.msra.mxu0 0.0
        %2121 = vmatprep.subr.mxu0 0.0
        %2122 = vmatpush1.msra.mxu0 0.0
        %2123 = vmatprep.subr.mxu0 0.0
        %2124 = vmatpush1.msra.mxu0 0.0
        %2125 = vmatprep.subr.mxu0 0.0
        %2126 = vmatpush1.msra.mxu0 0.0
        %2127 = vmatprep.subr.mxu0 0.0
        %2128 = vmatpush1.msra.mxu0 0.0
        %2129 = vmatprep.subr.mxu0 0.0
        %2130 = vmatpush1.msra.mxu0 0.0
        %2131 = vmatprep.subr.mxu0 0.0
        %2132 = vmatpush1.msra.mxu0 0.0
        %2133 = vmatprep.subr.mxu0 0.0
        %2134 = vmatpush1.msra.mxu0 0.0
        %2135 = vmatprep.subr.mxu0 0.0
        %2136 = vmatpush1.msra.mxu0 0.0
        %2137 = vmatprep.subr.mxu0 0.0
        %2138 = vmatpush1.msra.mxu0 0.0
        %2139 = vmatprep.subr.mxu0 0.0
        %2140 = vmatpush1.msra.mxu0 0.0
        %2141 = vmatprep.subr.mxu0 0.0
        %2142 = vmatpush1.msra.mxu0 0.0
        %2143 = vmatprep.subr.mxu0 0.0
        %2144 = vmatpush1.msra.mxu0 0.0
        %2145 = vmatprep.mubr.f32.mxu0 0.0
        %2146 = vmatmul.mubr.f32.gmra.mrb[0].mxu0 %v2070
        %v2147 = vpop.f32.mrb[0].mxu0
        %v2148 = vadd.f32 0.0, %v2147
        %v2149 = vpop.f32.mrb[0].mxu0
        %v2150 = vadd.f32 0.0, %v2149
        %2151 = vmatprep.mubr.f32.mxu0 0.0
        %2152 = vmatmul.mubr.f32.gmra.mrb[0].mxu0 %v2073
        %v2153 = vpop.f32.mrb[0].mxu0
        %v2154 = vadd.f32 0.0, %v2153
        %v2155 = vpop.f32.mrb[0].mxu0
        %v2156 = vadd.f32 0.0, %v2155
        %2157 = vdwg.mxu0
        %2158 = vmatprep.subr.mxu0 0.0
        %2159 = vmatpush1.msra.mxu0 %v2079
        %2160 = vmatprep.subr.mxu0 0.0
        %2161 = vmatpush1.msra.mxu0 0.0
        %2162 = vmatprep.subr.mxu0 0.0
        %2163 = vmatpush1.msra.mxu0 0.0
        %2164 = vmatprep.subr.mxu0 0.0
        %2165 = vmatpush1.msra.mxu0 0.0
        %2166 = vmatprep.subr.mxu0 0.0
        %2167 = vmatpush1.msra.mxu0 0.0
        %2168 = vmatprep.subr.mxu0 0.0
        %2169 = vmatpush1.msra.mxu0 0.0
        %2170 = vmatprep.subr.mxu0 0.0
        %2171 = vmatpush1.msra.mxu0 0.0
        %2172 = vmatprep.subr.mxu0 0.0
        %2173 = vmatpush1.msra.mxu0 0.0
        %2174 = vmatprep.subr.mxu0 0.0
        %2175 = vmatpush1.msra.mxu0 0.0
        %2176 = vmatprep.subr.mxu0 0.0
        %2177 = vmatpush1.msra.mxu0 0.0
        %2178 = vmatprep.subr.mxu0 0.0
        %2179 = vmatpush1.msra.mxu0 0.0
        %2180 = vmatprep.subr.mxu0 0.0
        %2181 = vmatpush1.msra.mxu0 0.0
        %2182 = vmatprep.subr.mxu0 0.0
        %2183 = vmatpush1.msra.mxu0 0.0
        %2184 = vmatprep.subr.mxu0 0.0
        %2185 = vmatpush1.msra.mxu0 0.0
        %2186 = vmatprep.subr.mxu0 0.0
        %2187 = vmatpush1.msra.mxu0 0.0
        %2188 = vmatprep.subr.mxu0 0.0
        %2189 = vmatpush1.msra.mxu0 0.0
        %2190 = vmatprep.subr.mxu0 0.0
        %2191 = vmatpush1.msra.mxu0 0.0
        %2192 = vmatprep.subr.mxu0 0.0
        %2193 = vmatpush1.msra.mxu0 0.0
        %2194 = vmatprep.subr.mxu0 0.0
        %2195 = vmatpush1.msra.mxu0 0.0
        %2196 = vmatprep.subr.mxu0 0.0
        %2197 = vmatpush1.msra.mxu0 0.0
        %2198 = vmatprep.subr.mxu0 0.0
        %2199 = vmatpush1.msra.mxu0 0.0
        %2200 = vmatprep.subr.mxu0 0.0
        %2201 = vmatpush1.msra.mxu0 0.0
        %2202 = vmatprep.subr.mxu0 0.0
        %2203 = vmatpush1.msra.mxu0 0.0
        %2204 = vmatprep.subr.mxu0 0.0
        %2205 = vmatpush1.msra.mxu0 0.0
        %2206 = vmatprep.subr.mxu0 0.0
        %2207 = vmatpush1.msra.mxu0 0.0
        %2208 = vmatprep.subr.mxu0 0.0
        %2209 = vmatpush1.msra.mxu0 0.0
        %2210 = vmatprep.subr.mxu0 0.0
        %2211 = vmatpush1.msra.mxu0 0.0
        %2212 = vmatprep.subr.mxu0 0.0
        %2213 = vmatpush1.msra.mxu0 0.0
        %2214 = vmatprep.subr.mxu0 0.0
        %2215 = vmatpush1.msra.mxu0 0.0
        %2216 = vmatprep.subr.mxu0 0.0
        %2217 = vmatpush1.msra.mxu0 0.0
        %2218 = vmatprep.subr.mxu0 0.0
        %2219 = vmatpush1.msra.mxu0 0.0
        %2220 = vmatprep.subr.mxu0 0.0
        %2221 = vmatpush1.msra.mxu0 0.0
        %2222 = vmatprep.mubr.f32.mxu0 0.0
        %2223 = vmatmul.mubr.f32.gmra.mrb[0].mxu0 %v2070
        %v2224 = vpop.f32.mrb[0].mxu0
        %v2225 = vadd.f32 0.0, %v2224
        %v2226 = vpop.f32.mrb[0].mxu0
        %2227 = vmatprep.mubr.f32.mxu0 0.0
        %2228 = vmatmul.mubr.f32.gmra.mrb[0].mxu0 %v2073
        %v2229 = vpop.f32.mrb[0].mxu0
        %v2230 = vadd.f32 0.0, %v2229
        %v2231 = vpop.f32.mrb[0].mxu0
        %2232 = vdwg.mxu0
        %v2233 = vadd.f32 %v2051, %v2148
        %v2234 = vadd.f32 %v2052, %v2150
        %v2235 = vadd.f32 %v2053, %v2225
        %v2236 = vadd.f32 %v2054, %v2154
        %v2237 = vadd.f32 %v2055, %v2156
        %v2238 = vadd.f32 %v2056, %v2230
        %s2239 = scalar_lea.vmem %s1, 144
        %v2240 = vld [vmem:[%s2239] sm:$0xff]
        %v2241 = vld [vmem:[%s2239 + $0x8] sm:$0xff]
        %2242 = vrot.lane.b32.xlu0 %v614, 104
        %v2243 = vpop.permute.xlu0 %2242
        %2244 = vrot.lane.b32.xlu0 %v615, 104
        %v2245 = vpop.permute.xlu0 %2244
        %2246 = vrot.lane.b32.xlu0 %v616, 104
        %v2247 = vpop.permute.xlu0 %2246
        %vm2248 = vcmask 850944
        %v2249 = vsel %vm2248, %v2243, %v2245
        %v2250 = vsel %vm2248, %v2245, %v2247
        %v2252 = vsel %vm635, %v2240, 0
        %v2255 = vsel %vm635, %v2241, 0
        %v2257 = vsel %vm642, %v2249, 0
        %v2259 = vsel %vm642, %v2250, 0
        %v2261 = vsel %vm642, %v2247, 0
        %2263 = vmatprep.subr.mxu0 %v2259
        %2264 = vmatpush1.msra.mxu0 %v2257
        %2265 = vmatprep.subr.mxu0 0.0
        %2266 = vmatpush1.msra.mxu0 0.0
        %2267 = vmatprep.subr.mxu0 0.0
        %2268 = vmatpush1.msra.mxu0 0.0
        %2269 = vmatprep.subr.mxu0 0.0
        %2270 = vmatpush1.msra.mxu0 0.0
        %2271 = vmatprep.subr.mxu0 0.0
        %2272 = vmatpush1.msra.mxu0 0.0
        %2273 = vmatprep.subr.mxu0 0.0
        %2274 = vmatpush1.msra.mxu0 0.0
        %2275 = vmatprep.subr.mxu0 0.0
        %2276 = vmatpush1.msra.mxu0 0.0
        %2277 = vmatprep.subr.mxu0 0.0
        %2278 = vmatpush1.msra.mxu0 0.0
        %2279 = vmatprep.subr.mxu0 0.0
        %2280 = vmatpush1.msra.mxu0 0.0
        %2281 = vmatprep.subr.mxu0 0.0
        %2282 = vmatpush1.msra.mxu0 0.0
        %2283 = vmatprep.subr.mxu0 0.0
        %2284 = vmatpush1.msra.mxu0 0.0
        %2285 = vmatprep.subr.mxu0 0.0
        %2286 = vmatpush1.msra.mxu0 0.0
        %2287 = vmatprep.subr.mxu0 0.0
        %2288 = vmatpush1.msra.mxu0 0.0
        %2289 = vmatprep.subr.mxu0 0.0
        %2290 = vmatpush1.msra.mxu0 0.0
        %2291 = vmatprep.subr.mxu0 0.0
        %2292 = vmatpush1.msra.mxu0 0.0
        %2293 = vmatprep.subr.mxu0 0.0
        %2294 = vmatpush1.msra.mxu0 0.0
        %2295 = vmatprep.subr.mxu0 0.0
        %2296 = vmatpush1.msra.mxu0 0.0
        %2297 = vmatprep.subr.mxu0 0.0
        %2298 = vmatpush1.msra.mxu0 0.0
        %2299 = vmatprep.subr.mxu0 0.0
        %2300 = vmatpush1.msra.mxu0 0.0
        %2301 = vmatprep.subr.mxu0 0.0
        %2302 = vmatpush1.msra.mxu0 0.0
        %2303 = vmatprep.subr.mxu0 0.0
        %2304 = vmatpush1.msra.mxu0 0.0
        %2305 = vmatprep.subr.mxu0 0.0
        %2306 = vmatpush1.msra.mxu0 0.0
        %2307 = vmatprep.subr.mxu0 0.0
        %2308 = vmatpush1.msra.mxu0 0.0
        %2309 = vmatprep.subr.mxu0 0.0
        %2310 = vmatpush1.msra.mxu0 0.0
        %2311 = vmatprep.subr.mxu0 0.0
        %2312 = vmatpush1.msra.mxu0 0.0
        %2313 = vmatprep.subr.mxu0 0.0
        %2314 = vmatpush1.msra.mxu0 0.0
        %2315 = vmatprep.subr.mxu0 0.0
        %2316 = vmatpush1.msra.mxu0 0.0
        %2317 = vmatprep.subr.mxu0 0.0
        %2318 = vmatpush1.msra.mxu0 0.0
        %2319 = vmatprep.subr.mxu0 0.0
        %2320 = vmatpush1.msra.mxu0 0.0
        %2321 = vmatprep.subr.mxu0 0.0
        %2322 = vmatpush1.msra.mxu0 0.0
        %2323 = vmatprep.subr.mxu0 0.0
        %2324 = vmatpush1.msra.mxu0 0.0
        %2325 = vmatprep.subr.mxu0 0.0
        %2326 = vmatpush1.msra.mxu0 0.0
        %2327 = vmatprep.mubr.f32.mxu0 0.0
        %2328 = vmatmul.mubr.f32.gmra.mrb[0].mxu0 %v2252
        %v2329 = vpop.f32.mrb[0].mxu0
        %v2330 = vadd.f32 0.0, %v2329
        %v2331 = vpop.f32.mrb[0].mxu0
        %v2332 = vadd.f32 0.0, %v2331
        %2333 = vmatprep.mubr.f32.mxu0 0.0
        %2334 = vmatmul.mubr.f32.gmra.mrb[0].mxu0 %v2255
        %v2335 = vpop.f32.mrb[0].mxu0
        %v2336 = vadd.f32 0.0, %v2335
        %v2337 = vpop.f32.mrb[0].mxu0
        %v2338 = vadd.f32 0.0, %v2337
        %2339 = vdwg.mxu0
        %2340 = vmatprep.subr.mxu0 0.0
        %2341 = vmatpush1.msra.mxu0 %v2261
        %2342 = vmatprep.subr.mxu0 0.0
        %2343 = vmatpush1.msra.mxu0 0.0
        %2344 = vmatprep.subr.mxu0 0.0
        %2345 = vmatpush1.msra.mxu0 0.0
        %2346 = vmatprep.subr.mxu0 0.0
        %2347 = vmatpush1.msra.mxu0 0.0
        %2348 = vmatprep.subr.mxu0 0.0
        %2349 = vmatpush1.msra.mxu0 0.0
        %2350 = vmatprep.subr.mxu0 0.0
        %2351 = vmatpush1.msra.mxu0 0.0
        %2352 = vmatprep.subr.mxu0 0.0
        %2353 = vmatpush1.msra.mxu0 0.0
        %2354 = vmatprep.subr.mxu0 0.0
        %2355 = vmatpush1.msra.mxu0 0.0
        %2356 = vmatprep.subr.mxu0 0.0
        %2357 = vmatpush1.msra.mxu0 0.0
        %2358 = vmatprep.subr.mxu0 0.0
        %2359 = vmatpush1.msra.mxu0 0.0
        %2360 = vmatprep.subr.mxu0 0.0
        %2361 = vmatpush1.msra.mxu0 0.0
        %2362 = vmatprep.subr.mxu0 0.0
        %2363 = vmatpush1.msra.mxu0 0.0
        %2364 = vmatprep.subr.mxu0 0.0
        %2365 = vmatpush1.msra.mxu0 0.0
        %2366 = vmatprep.subr.mxu0 0.0
        %2367 = vmatpush1.msra.mxu0 0.0
        %2368 = vmatprep.subr.mxu0 0.0
        %2369 = vmatpush1.msra.mxu0 0.0
        %2370 = vmatprep.subr.mxu0 0.0
        %2371 = vmatpush1.msra.mxu0 0.0
        %2372 = vmatprep.subr.mxu0 0.0
        %2373 = vmatpush1.msra.mxu0 0.0
        %2374 = vmatprep.subr.mxu0 0.0
        %2375 = vmatpush1.msra.mxu0 0.0
        %2376 = vmatprep.subr.mxu0 0.0
        %2377 = vmatpush1.msra.mxu0 0.0
        %2378 = vmatprep.subr.mxu0 0.0
        %2379 = vmatpush1.msra.mxu0 0.0
        %2380 = vmatprep.subr.mxu0 0.0
        %2381 = vmatpush1.msra.mxu0 0.0
        %2382 = vmatprep.subr.mxu0 0.0
        %2383 = vmatpush1.msra.mxu0 0.0
        %2384 = vmatprep.subr.mxu0 0.0
        %2385 = vmatpush1.msra.mxu0 0.0
        %2386 = vmatprep.subr.mxu0 0.0
        %2387 = vmatpush1.msra.mxu0 0.0
        %2388 = vmatprep.subr.mxu0 0.0
        %2389 = vmatpush1.msra.mxu0 0.0
        %2390 = vmatprep.subr.mxu0 0.0
        %2391 = vmatpush1.msra.mxu0 0.0
        %2392 = vmatprep.subr.mxu0 0.0
        %2393 = vmatpush1.msra.mxu0 0.0
        %2394 = vmatprep.subr.mxu0 0.0
        %2395 = vmatpush1.msra.mxu0 0.0
        %2396 = vmatprep.subr.mxu0 0.0
        %2397 = vmatpush1.msra.mxu0 0.0
        %2398 = vmatprep.subr.mxu0 0.0
        %2399 = vmatpush1.msra.mxu0 0.0
        %2400 = vmatprep.subr.mxu0 0.0
        %2401 = vmatpush1.msra.mxu0 0.0
        %2402 = vmatprep.subr.mxu0 0.0
        %2403 = vmatpush1.msra.mxu0 0.0
        %2404 = vmatprep.mubr.f32.mxu0 0.0
        %2405 = vmatmul.mubr.f32.gmra.mrb[0].mxu0 %v2252
        %v2406 = vpop.f32.mrb[0].mxu0
        %v2407 = vadd.f32 0.0, %v2406
        %v2408 = vpop.f32.mrb[0].mxu0
        %2409 = vmatprep.mubr.f32.mxu0 0.0
        %2410 = vmatmul.mubr.f32.gmra.mrb[0].mxu0 %v2255
        %v2411 = vpop.f32.mrb[0].mxu0
        %v2412 = vadd.f32 0.0, %v2411
        %v2413 = vpop.f32.mrb[0].mxu0
        %2414 = vdwg.mxu0
        %v2415 = vadd.f32 %v2233, %v2330
        %v2416 = vadd.f32 %v2234, %v2332
        %v2417 = vadd.f32 %v2235, %v2407
        %v2418 = vadd.f32 %v2236, %v2336
        %v2419 = vadd.f32 %v2237, %v2338
        %v2420 = vadd.f32 %v2238, %v2412
        %s2421 = scalar_lea.vmem %s1, 160
        %v2422 = vld [vmem:[%s2421] sm:$0xff]
        %v2423 = vld [vmem:[%s2421 + $0x8] sm:$0xff]
        %2424 = vrot.lane.b32.xlu0 %v614, 88
        %v2425 = vpop.permute.xlu0 %2424
        %2426 = vrot.lane.b32.xlu0 %v615, 88
        %v2427 = vpop.permute.xlu0 %2426
        %2428 = vrot.lane.b32.xlu0 %v616, 88
        %v2429 = vpop.permute.xlu0 %2428
        %vm2430 = vcmask 719872
        %v2431 = vsel %vm2430, %v2425, %v2427
        %v2432 = vsel %vm2430, %v2427, %v2429
        %v2434 = vsel %vm635, %v2422, 0
        %v2437 = vsel %vm635, %v2423, 0
        %v2439 = vsel %vm642, %v2431, 0
        %v2441 = vsel %vm642, %v2432, 0
        %v2443 = vsel %vm642, %v2429, 0
        %2445 = vmatprep.subr.mxu0 %v2441
        %2446 = vmatpush1.msra.mxu0 %v2439
        %2447 = vmatprep.subr.mxu0 0.0
        %2448 = vmatpush1.msra.mxu0 0.0
        %2449 = vmatprep.subr.mxu0 0.0
        %2450 = vmatpush1.msra.mxu0 0.0
        %2451 = vmatprep.subr.mxu0 0.0
        %2452 = vmatpush1.msra.mxu0 0.0
        %2453 = vmatprep.subr.mxu0 0.0
        %2454 = vmatpush1.msra.mxu0 0.0
        %2455 = vmatprep.subr.mxu0 0.0
        %2456 = vmatpush1.msra.mxu0 0.0
        %2457 = vmatprep.subr.mxu0 0.0
        %2458 = vmatpush1.msra.mxu0 0.0
        %2459 = vmatprep.subr.mxu0 0.0
        %2460 = vmatpush1.msra.mxu0 0.0
        %2461 = vmatprep.subr.mxu0 0.0
        %2462 = vmatpush1.msra.mxu0 0.0
        %2463 = vmatprep.subr.mxu0 0.0
        %2464 = vmatpush1.msra.mxu0 0.0
        %2465 = vmatprep.subr.mxu0 0.0
        %2466 = vmatpush1.msra.mxu0 0.0
        %2467 = vmatprep.subr.mxu0 0.0
        %2468 = vmatpush1.msra.mxu0 0.0
        %2469 = vmatprep.subr.mxu0 0.0
        %2470 = vmatpush1.msra.mxu0 0.0
        %2471 = vmatprep.subr.mxu0 0.0
        %2472 = vmatpush1.msra.mxu0 0.0
        %2473 = vmatprep.subr.mxu0 0.0
        %2474 = vmatpush1.msra.mxu0 0.0
        %2475 = vmatprep.subr.mxu0 0.0
        %2476 = vmatpush1.msra.mxu0 0.0
        %2477 = vmatprep.subr.mxu0 0.0
        %2478 = vmatpush1.msra.mxu0 0.0
        %2479 = vmatprep.subr.mxu0 0.0
        %2480 = vmatpush1.msra.mxu0 0.0
        %2481 = vmatprep.subr.mxu0 0.0
        %2482 = vmatpush1.msra.mxu0 0.0
        %2483 = vmatprep.subr.mxu0 0.0
        %2484 = vmatpush1.msra.mxu0 0.0
        %2485 = vmatprep.subr.mxu0 0.0
        %2486 = vmatpush1.msra.mxu0 0.0
        %2487 = vmatprep.subr.mxu0 0.0
        %2488 = vmatpush1.msra.mxu0 0.0
        %2489 = vmatprep.subr.mxu0 0.0
        %2490 = vmatpush1.msra.mxu0 0.0
        %2491 = vmatprep.subr.mxu0 0.0
        %2492 = vmatpush1.msra.mxu0 0.0
        %2493 = vmatprep.subr.mxu0 0.0
        %2494 = vmatpush1.msra.mxu0 0.0
        %2495 = vmatprep.subr.mxu0 0.0
        %2496 = vmatpush1.msra.mxu0 0.0
        %2497 = vmatprep.subr.mxu0 0.0
        %2498 = vmatpush1.msra.mxu0 0.0
        %2499 = vmatprep.subr.mxu0 0.0
        %2500 = vmatpush1.msra.mxu0 0.0
        %2501 = vmatprep.subr.mxu0 0.0
        %2502 = vmatpush1.msra.mxu0 0.0
        %2503 = vmatprep.subr.mxu0 0.0
        %2504 = vmatpush1.msra.mxu0 0.0
        %2505 = vmatprep.subr.mxu0 0.0
        %2506 = vmatpush1.msra.mxu0 0.0
        %2507 = vmatprep.subr.mxu0 0.0
        %2508 = vmatpush1.msra.mxu0 0.0
        %2509 = vmatprep.mubr.f32.mxu0 0.0
        %2510 = vmatmul.mubr.f32.gmra.mrb[0].mxu0 %v2434
        %v2511 = vpop.f32.mrb[0].mxu0
        %v2512 = vadd.f32 0.0, %v2511
        %v2513 = vpop.f32.mrb[0].mxu0
        %v2514 = vadd.f32 0.0, %v2513
        %2515 = vmatprep.mubr.f32.mxu0 0.0
        %2516 = vmatmul.mubr.f32.gmra.mrb[0].mxu0 %v2437
        %v2517 = vpop.f32.mrb[0].mxu0
        %v2518 = vadd.f32 0.0, %v2517
        %v2519 = vpop.f32.mrb[0].mxu0
        %v2520 = vadd.f32 0.0, %v2519
        %2521 = vdwg.mxu0
        %2522 = vmatprep.subr.mxu0 0.0
        %2523 = vmatpush1.msra.mxu0 %v2443
        %2524 = vmatprep.subr.mxu0 0.0
        %2525 = vmatpush1.msra.mxu0 0.0
        %2526 = vmatprep.subr.mxu0 0.0
        %2527 = vmatpush1.msra.mxu0 0.0
        %2528 = vmatprep.subr.mxu0 0.0
        %2529 = vmatpush1.msra.mxu0 0.0
        %2530 = vmatprep.subr.mxu0 0.0
        %2531 = vmatpush1.msra.mxu0 0.0
        %2532 = vmatprep.subr.mxu0 0.0
        %2533 = vmatpush1.msra.mxu0 0.0
        %2534 = vmatprep.subr.mxu0 0.0
        %2535 = vmatpush1.msra.mxu0 0.0
        %2536 = vmatprep.subr.mxu0 0.0
        %2537 = vmatpush1.msra.mxu0 0.0
        %2538 = vmatprep.subr.mxu0 0.0
        %2539 = vmatpush1.msra.mxu0 0.0
        %2540 = vmatprep.subr.mxu0 0.0
        %2541 = vmatpush1.msra.mxu0 0.0
        %2542 = vmatprep.subr.mxu0 0.0
        %2543 = vmatpush1.msra.mxu0 0.0
        %2544 = vmatprep.subr.mxu0 0.0
        %2545 = vmatpush1.msra.mxu0 0.0
        %2546 = vmatprep.subr.mxu0 0.0
        %2547 = vmatpush1.msra.mxu0 0.0
        %2548 = vmatprep.subr.mxu0 0.0
        %2549 = vmatpush1.msra.mxu0 0.0
        %2550 = vmatprep.subr.mxu0 0.0
        %2551 = vmatpush1.msra.mxu0 0.0
        %2552 = vmatprep.subr.mxu0 0.0
        %2553 = vmatpush1.msra.mxu0 0.0
        %2554 = vmatprep.subr.mxu0 0.0
        %2555 = vmatpush1.msra.mxu0 0.0
        %2556 = vmatprep.subr.mxu0 0.0
        %2557 = vmatpush1.msra.mxu0 0.0
        %2558 = vmatprep.subr.mxu0 0.0
        %2559 = vmatpush1.msra.mxu0 0.0
        %2560 = vmatprep.subr.mxu0 0.0
        %2561 = vmatpush1.msra.mxu0 0.0
        %2562 = vmatprep.subr.mxu0 0.0
        %2563 = vmatpush1.msra.mxu0 0.0
        %2564 = vmatprep.subr.mxu0 0.0
        %2565 = vmatpush1.msra.mxu0 0.0
        %2566 = vmatprep.subr.mxu0 0.0
        %2567 = vmatpush1.msra.mxu0 0.0
        %2568 = vmatprep.subr.mxu0 0.0
        %2569 = vmatpush1.msra.mxu0 0.0
        %2570 = vmatprep.subr.mxu0 0.0
        %2571 = vmatpush1.msra.mxu0 0.0
        %2572 = vmatprep.subr.mxu0 0.0
        %2573 = vmatpush1.msra.mxu0 0.0
        %2574 = vmatprep.subr.mxu0 0.0
        %2575 = vmatpush1.msra.mxu0 0.0
        %2576 = vmatprep.subr.mxu0 0.0
        %2577 = vmatpush1.msra.mxu0 0.0
        %2578 = vmatprep.subr.mxu0 0.0
        %2579 = vmatpush1.msra.mxu0 0.0
        %2580 = vmatprep.subr.mxu0 0.0
        %2581 = vmatpush1.msra.mxu0 0.0
        %2582 = vmatprep.subr.mxu0 0.0
        %2583 = vmatpush1.msra.mxu0 0.0
        %2584 = vmatprep.subr.mxu0 0.0
        %2585 = vmatpush1.msra.mxu0 0.0
        %2586 = vmatprep.mubr.f32.mxu0 0.0
        %2587 = vmatmul.mubr.f32.gmra.mrb[0].mxu0 %v2434
        %v2588 = vpop.f32.mrb[0].mxu0
        %v2589 = vadd.f32 0.0, %v2588
        %v2590 = vpop.f32.mrb[0].mxu0
        %2591 = vmatprep.mubr.f32.mxu0 0.0
        %2592 = vmatmul.mubr.f32.gmra.mrb[0].mxu0 %v2437
        %v2593 = vpop.f32.mrb[0].mxu0
        %v2594 = vadd.f32 0.0, %v2593
        %v2595 = vpop.f32.mrb[0].mxu0
        %2596 = vdwg.mxu0
        %v2597 = vadd.f32 %v2415, %v2512
        %v2598 = vadd.f32 %v2416, %v2514
        %v2599 = vadd.f32 %v2417, %v2589
        %v2600 = vadd.f32 %v2418, %v2518
        %v2601 = vadd.f32 %v2419, %v2520
        %v2602 = vadd.f32 %v2420, %v2594
        %s2603 = scalar_lea.vmem %s1, 176
        %v2604 = vld [vmem:[%s2603] sm:$0xff]
        %v2605 = vld [vmem:[%s2603 + $0x8] sm:$0xff]
        %2606 = vrot.lane.b32.xlu0 %v614, 87
        %v2607 = vpop.permute.xlu0 %2606
        %2608 = vrot.lane.b32.xlu0 %v615, 87
        %v2609 = vpop.permute.xlu0 %2608
        %2610 = vrot.lane.b32.xlu0 %v616, 87
        %v2611 = vpop.permute.xlu0 %2610
        %vm2612 = vcmask 711680
        %v2613 = vsel %vm2612, %v2607, %v2609
        %v2614 = vsel %vm2612, %v2609, %v2611
        %v2616 = vsel %vm635, %v2604, 0
        %v2619 = vsel %vm635, %v2605, 0
        %v2621 = vsel %vm642, %v2613, 0
        %v2623 = vsel %vm642, %v2614, 0
        %v2625 = vsel %vm642, %v2611, 0
        %2627 = vmatprep.subr.mxu0 %v2623
        %2628 = vmatpush1.msra.mxu0 %v2621
        %2629 = vmatprep.subr.mxu0 0.0
        %2630 = vmatpush1.msra.mxu0 0.0
        %2631 = vmatprep.subr.mxu0 0.0
        %2632 = vmatpush1.msra.mxu0 0.0
        %2633 = vmatprep.subr.mxu0 0.0
        %2634 = vmatpush1.msra.mxu0 0.0
        %2635 = vmatprep.subr.mxu0 0.0
        %2636 = vmatpush1.msra.mxu0 0.0
        %2637 = vmatprep.subr.mxu0 0.0
        %2638 = vmatpush1.msra.mxu0 0.0
        %2639 = vmatprep.subr.mxu0 0.0
        %2640 = vmatpush1.msra.mxu0 0.0
        %2641 = vmatprep.subr.mxu0 0.0
        %2642 = vmatpush1.msra.mxu0 0.0
        %2643 = vmatprep.subr.mxu0 0.0
        %2644 = vmatpush1.msra.mxu0 0.0
        %2645 = vmatprep.subr.mxu0 0.0
        %2646 = vmatpush1.msra.mxu0 0.0
        %2647 = vmatprep.subr.mxu0 0.0
        %2648 = vmatpush1.msra.mxu0 0.0
        %2649 = vmatprep.subr.mxu0 0.0
        %2650 = vmatpush1.msra.mxu0 0.0
        %2651 = vmatprep.subr.mxu0 0.0
        %2652 = vmatpush1.msra.mxu0 0.0
        %2653 = vmatprep.subr.mxu0 0.0
        %2654 = vmatpush1.msra.mxu0 0.0
        %2655 = vmatprep.subr.mxu0 0.0
        %2656 = vmatpush1.msra.mxu0 0.0
        %2657 = vmatprep.subr.mxu0 0.0
        %2658 = vmatpush1.msra.mxu0 0.0
        %2659 = vmatprep.subr.mxu0 0.0
        %2660 = vmatpush1.msra.mxu0 0.0
        %2661 = vmatprep.subr.mxu0 0.0
        %2662 = vmatpush1.msra.mxu0 0.0
        %2663 = vmatprep.subr.mxu0 0.0
        %2664 = vmatpush1.msra.mxu0 0.0
        %2665 = vmatprep.subr.mxu0 0.0
        %2666 = vmatpush1.msra.mxu0 0.0
        %2667 = vmatprep.subr.mxu0 0.0
        %2668 = vmatpush1.msra.mxu0 0.0
        %2669 = vmatprep.subr.mxu0 0.0
        %2670 = vmatpush1.msra.mxu0 0.0
        %2671 = vmatprep.subr.mxu0 0.0
        %2672 = vmatpush1.msra.mxu0 0.0
        %2673 = vmatprep.subr.mxu0 0.0
        %2674 = vmatpush1.msra.mxu0 0.0
        %2675 = vmatprep.subr.mxu0 0.0
        %2676 = vmatpush1.msra.mxu0 0.0
        %2677 = vmatprep.subr.mxu0 0.0
        %2678 = vmatpush1.msra.mxu0 0.0
        %2679 = vmatprep.subr.mxu0 0.0
        %2680 = vmatpush1.msra.mxu0 0.0
        %2681 = vmatprep.subr.mxu0 0.0
        %2682 = vmatpush1.msra.mxu0 0.0
        %2683 = vmatprep.subr.mxu0 0.0
        %2684 = vmatpush1.msra.mxu0 0.0
        %2685 = vmatprep.subr.mxu0 0.0
        %2686 = vmatpush1.msra.mxu0 0.0
        %2687 = vmatprep.subr.mxu0 0.0
        %2688 = vmatpush1.msra.mxu0 0.0
        %2689 = vmatprep.subr.mxu0 0.0
        %2690 = vmatpush1.msra.mxu0 0.0
        %2691 = vmatprep.mubr.f32.mxu0 0.0
        %2692 = vmatmul.mubr.f32.gmra.mrb[0].mxu0 %v2616
        %v2693 = vpop.f32.mrb[0].mxu0
        %v2694 = vadd.f32 0.0, %v2693
        %v2695 = vpop.f32.mrb[0].mxu0
        %v2696 = vadd.f32 0.0, %v2695
        %2697 = vmatprep.mubr.f32.mxu0 0.0
        %2698 = vmatmul.mubr.f32.gmra.mrb[0].mxu0 %v2619
        %v2699 = vpop.f32.mrb[0].mxu0
        %v2700 = vadd.f32 0.0, %v2699
        %v2701 = vpop.f32.mrb[0].mxu0
        %v2702 = vadd.f32 0.0, %v2701
        %2703 = vdwg.mxu0
        %2704 = vmatprep.subr.mxu0 0.0
        %2705 = vmatpush1.msra.mxu0 %v2625
        %2706 = vmatprep.subr.mxu0 0.0
        %2707 = vmatpush1.msra.mxu0 0.0
        %2708 = vmatprep.subr.mxu0 0.0
        %2709 = vmatpush1.msra.mxu0 0.0
        %2710 = vmatprep.subr.mxu0 0.0
        %2711 = vmatpush1.msra.mxu0 0.0
        %2712 = vmatprep.subr.mxu0 0.0
        %2713 = vmatpush1.msra.mxu0 0.0
        %2714 = vmatprep.subr.mxu0 0.0
        %2715 = vmatpush1.msra.mxu0 0.0
        %2716 = vmatprep.subr.mxu0 0.0
        %2717 = vmatpush1.msra.mxu0 0.0
        %2718 = vmatprep.subr.mxu0 0.0
        %2719 = vmatpush1.msra.mxu0 0.0
        %2720 = vmatprep.subr.mxu0 0.0
        %2721 = vmatpush1.msra.mxu0 0.0
        %2722 = vmatprep.subr.mxu0 0.0
        %2723 = vmatpush1.msra.mxu0 0.0
        %2724 = vmatprep.subr.mxu0 0.0
        %2725 = vmatpush1.msra.mxu0 0.0
        %2726 = vmatprep.subr.mxu0 0.0
        %2727 = vmatpush1.msra.mxu0 0.0
        %2728 = vmatprep.subr.mxu0 0.0
        %2729 = vmatpush1.msra.mxu0 0.0
        %2730 = vmatprep.subr.mxu0 0.0
        %2731 = vmatpush1.msra.mxu0 0.0
        %2732 = vmatprep.subr.mxu0 0.0
        %2733 = vmatpush1.msra.mxu0 0.0
        %2734 = vmatprep.subr.mxu0 0.0
        %2735 = vmatpush1.msra.mxu0 0.0
        %2736 = vmatprep.subr.mxu0 0.0
        %2737 = vmatpush1.msra.mxu0 0.0
        %2738 = vmatprep.subr.mxu0 0.0
        %2739 = vmatpush1.msra.mxu0 0.0
        %2740 = vmatprep.subr.mxu0 0.0
        %2741 = vmatpush1.msra.mxu0 0.0
        %2742 = vmatprep.subr.mxu0 0.0
        %2743 = vmatpush1.msra.mxu0 0.0
        %2744 = vmatprep.subr.mxu0 0.0
        %2745 = vmatpush1.msra.mxu0 0.0
        %2746 = vmatprep.subr.mxu0 0.0
        %2747 = vmatpush1.msra.mxu0 0.0
        %2748 = vmatprep.subr.mxu0 0.0
        %2749 = vmatpush1.msra.mxu0 0.0
        %2750 = vmatprep.subr.mxu0 0.0
        %2751 = vmatpush1.msra.mxu0 0.0
        %2752 = vmatprep.subr.mxu0 0.0
        %2753 = vmatpush1.msra.mxu0 0.0
        %2754 = vmatprep.subr.mxu0 0.0
        %2755 = vmatpush1.msra.mxu0 0.0
        %2756 = vmatprep.subr.mxu0 0.0
        %2757 = vmatpush1.msra.mxu0 0.0
        %2758 = vmatprep.subr.mxu0 0.0
        %2759 = vmatpush1.msra.mxu0 0.0
        %2760 = vmatprep.subr.mxu0 0.0
        %2761 = vmatpush1.msra.mxu0 0.0
        %2762 = vmatprep.subr.mxu0 0.0
        %2763 = vmatpush1.msra.mxu0 0.0
        %2764 = vmatprep.subr.mxu0 0.0
        %2765 = vmatpush1.msra.mxu0 0.0
        %2766 = vmatprep.subr.mxu0 0.0
        %2767 = vmatpush1.msra.mxu0 0.0
        %2768 = vmatprep.mubr.f32.mxu0 0.0
        %2769 = vmatmul.mubr.f32.gmra.mrb[0].mxu0 %v2616
        %v2770 = vpop.f32.mrb[0].mxu0
        %v2771 = vadd.f32 0.0, %v2770
        %v2772 = vpop.f32.mrb[0].mxu0
        %2773 = vmatprep.mubr.f32.mxu0 0.0
        %2774 = vmatmul.mubr.f32.gmra.mrb[0].mxu0 %v2619
        %v2775 = vpop.f32.mrb[0].mxu0
        %v2776 = vadd.f32 0.0, %v2775
        %v2777 = vpop.f32.mrb[0].mxu0
        %2778 = vdwg.mxu0
        %v2779 = vadd.f32 %v2597, %v2694
        %v2780 = vadd.f32 %v2598, %v2696
        %v2781 = vadd.f32 %v2599, %v2771
        %v2782 = vadd.f32 %v2600, %v2700
        %v2783 = vadd.f32 %v2601, %v2702
        %v2784 = vadd.f32 %v2602, %v2776
        %s2785 = scalar_lea.vmem %s1, 192
        %v2786 = vld [vmem:[%s2785] sm:$0xff]
        %v2787 = vld [vmem:[%s2785 + $0x8] sm:$0xff]
        %2788 = vrot.lane.b32.xlu0 %v614, 86
        %v2789 = vpop.permute.xlu0 %2788
        %2790 = vrot.lane.b32.xlu0 %v615, 86
        %v2791 = vpop.permute.xlu0 %2790
        %2792 = vrot.lane.b32.xlu0 %v616, 86
        %v2793 = vpop.permute.xlu0 %2792
        %vm2794 = vcmask 703488
        %v2795 = vsel %vm2794, %v2789, %v2791
        %v2796 = vsel %vm2794, %v2791, %v2793
        %v2798 = vsel %vm635, %v2786, 0
        %v2801 = vsel %vm635, %v2787, 0
        %v2803 = vsel %vm642, %v2795, 0
        %v2805 = vsel %vm642, %v2796, 0
        %v2807 = vsel %vm642, %v2793, 0
        %2809 = vmatprep.subr.mxu0 %v2805
        %2810 = vmatpush1.msra.mxu0 %v2803
        %2811 = vmatprep.subr.mxu0 0.0
        %2812 = vmatpush1.msra.mxu0 0.0
        %2813 = vmatprep.subr.mxu0 0.0
        %2814 = vmatpush1.msra.mxu0 0.0
        %2815 = vmatprep.subr.mxu0 0.0
        %2816 = vmatpush1.msra.mxu0 0.0
        %2817 = vmatprep.subr.mxu0 0.0
        %2818 = vmatpush1.msra.mxu0 0.0
        %2819 = vmatprep.subr.mxu0 0.0
        %2820 = vmatpush1.msra.mxu0 0.0
        %2821 = vmatprep.subr.mxu0 0.0
        %2822 = vmatpush1.msra.mxu0 0.0
        %2823 = vmatprep.subr.mxu0 0.0
        %2824 = vmatpush1.msra.mxu0 0.0
        %2825 = vmatprep.subr.mxu0 0.0
        %2826 = vmatpush1.msra.mxu0 0.0
        %2827 = vmatprep.subr.mxu0 0.0
        %2828 = vmatpush1.msra.mxu0 0.0
        %2829 = vmatprep.subr.mxu0 0.0
        %2830 = vmatpush1.msra.mxu0 0.0
        %2831 = vmatprep.subr.mxu0 0.0
        %2832 = vmatpush1.msra.mxu0 0.0
        %2833 = vmatprep.subr.mxu0 0.0
        %2834 = vmatpush1.msra.mxu0 0.0
        %2835 = vmatprep.subr.mxu0 0.0
        %2836 = vmatpush1.msra.mxu0 0.0
        %2837 = vmatprep.subr.mxu0 0.0
        %2838 = vmatpush1.msra.mxu0 0.0
        %2839 = vmatprep.subr.mxu0 0.0
        %2840 = vmatpush1.msra.mxu0 0.0
        %2841 = vmatprep.subr.mxu0 0.0
        %2842 = vmatpush1.msra.mxu0 0.0
        %2843 = vmatprep.subr.mxu0 0.0
        %2844 = vmatpush1.msra.mxu0 0.0
        %2845 = vmatprep.subr.mxu0 0.0
        %2846 = vmatpush1.msra.mxu0 0.0
        %2847 = vmatprep.subr.mxu0 0.0
        %2848 = vmatpush1.msra.mxu0 0.0
        %2849 = vmatprep.subr.mxu0 0.0
        %2850 = vmatpush1.msra.mxu0 0.0
        %2851 = vmatprep.subr.mxu0 0.0
        %2852 = vmatpush1.msra.mxu0 0.0
        %2853 = vmatprep.subr.mxu0 0.0
        %2854 = vmatpush1.msra.mxu0 0.0
        %2855 = vmatprep.subr.mxu0 0.0
        %2856 = vmatpush1.msra.mxu0 0.0
        %2857 = vmatprep.subr.mxu0 0.0
        %2858 = vmatpush1.msra.mxu0 0.0
        %2859 = vmatprep.subr.mxu0 0.0
        %2860 = vmatpush1.msra.mxu0 0.0
        %2861 = vmatprep.subr.mxu0 0.0
        %2862 = vmatpush1.msra.mxu0 0.0
        %2863 = vmatprep.subr.mxu0 0.0
        %2864 = vmatpush1.msra.mxu0 0.0
        %2865 = vmatprep.subr.mxu0 0.0
        %2866 = vmatpush1.msra.mxu0 0.0
        %2867 = vmatprep.subr.mxu0 0.0
        %2868 = vmatpush1.msra.mxu0 0.0
        %2869 = vmatprep.subr.mxu0 0.0
        %2870 = vmatpush1.msra.mxu0 0.0
        %2871 = vmatprep.subr.mxu0 0.0
        %2872 = vmatpush1.msra.mxu0 0.0
        %2873 = vmatprep.mubr.f32.mxu0 0.0
        %2874 = vmatmul.mubr.f32.gmra.mrb[0].mxu0 %v2798
        %v2875 = vpop.f32.mrb[0].mxu0
        %v2876 = vadd.f32 0.0, %v2875
        %v2877 = vpop.f32.mrb[0].mxu0
        %v2878 = vadd.f32 0.0, %v2877
        %2879 = vmatprep.mubr.f32.mxu0 0.0
        %2880 = vmatmul.mubr.f32.gmra.mrb[0].mxu0 %v2801
        %v2881 = vpop.f32.mrb[0].mxu0
        %v2882 = vadd.f32 0.0, %v2881
        %v2883 = vpop.f32.mrb[0].mxu0
        %v2884 = vadd.f32 0.0, %v2883
        %2885 = vdwg.mxu0
        %2886 = vmatprep.subr.mxu0 0.0
        %2887 = vmatpush1.msra.mxu0 %v2807
        %2888 = vmatprep.subr.mxu0 0.0
        %2889 = vmatpush1.msra.mxu0 0.0
        %2890 = vmatprep.subr.mxu0 0.0
        %2891 = vmatpush1.msra.mxu0 0.0
        %2892 = vmatprep.subr.mxu0 0.0
        %2893 = vmatpush1.msra.mxu0 0.0
        %2894 = vmatprep.subr.mxu0 0.0
        %2895 = vmatpush1.msra.mxu0 0.0
        %2896 = vmatprep.subr.mxu0 0.0
        %2897 = vmatpush1.msra.mxu0 0.0
        %2898 = vmatprep.subr.mxu0 0.0
        %2899 = vmatpush1.msra.mxu0 0.0
        %2900 = vmatprep.subr.mxu0 0.0
        %2901 = vmatpush1.msra.mxu0 0.0
        %2902 = vmatprep.subr.mxu0 0.0
        %2903 = vmatpush1.msra.mxu0 0.0
        %2904 = vmatprep.subr.mxu0 0.0
        %2905 = vmatpush1.msra.mxu0 0.0
        %2906 = vmatprep.subr.mxu0 0.0
        %2907 = vmatpush1.msra.mxu0 0.0
        %2908 = vmatprep.subr.mxu0 0.0
        %2909 = vmatpush1.msra.mxu0 0.0
        %2910 = vmatprep.subr.mxu0 0.0
        %2911 = vmatpush1.msra.mxu0 0.0
        %2912 = vmatprep.subr.mxu0 0.0
        %2913 = vmatpush1.msra.mxu0 0.0
        %2914 = vmatprep.subr.mxu0 0.0
        %2915 = vmatpush1.msra.mxu0 0.0
        %2916 = vmatprep.subr.mxu0 0.0
        %2917 = vmatpush1.msra.mxu0 0.0
        %2918 = vmatprep.subr.mxu0 0.0
        %2919 = vmatpush1.msra.mxu0 0.0
        %2920 = vmatprep.subr.mxu0 0.0
        %2921 = vmatpush1.msra.mxu0 0.0
        %2922 = vmatprep.subr.mxu0 0.0
        %2923 = vmatpush1.msra.mxu0 0.0
        %2924 = vmatprep.subr.mxu0 0.0
        %2925 = vmatpush1.msra.mxu0 0.0
        %2926 = vmatprep.subr.mxu0 0.0
        %2927 = vmatpush1.msra.mxu0 0.0
        %2928 = vmatprep.subr.mxu0 0.0
        %2929 = vmatpush1.msra.mxu0 0.0
        %2930 = vmatprep.subr.mxu0 0.0
        %2931 = vmatpush1.msra.mxu0 0.0
        %2932 = vmatprep.subr.mxu0 0.0
        %2933 = vmatpush1.msra.mxu0 0.0
        %2934 = vmatprep.subr.mxu0 0.0
        %2935 = vmatpush1.msra.mxu0 0.0
        %2936 = vmatprep.subr.mxu0 0.0
        %2937 = vmatpush1.msra.mxu0 0.0
        %2938 = vmatprep.subr.mxu0 0.0
        %2939 = vmatpush1.msra.mxu0 0.0
        %2940 = vmatprep.subr.mxu0 0.0
        %2941 = vmatpush1.msra.mxu0 0.0
        %2942 = vmatprep.subr.mxu0 0.0
        %2943 = vmatpush1.msra.mxu0 0.0
        %2944 = vmatprep.subr.mxu0 0.0
        %2945 = vmatpush1.msra.mxu0 0.0
        %2946 = vmatprep.subr.mxu0 0.0
        %2947 = vmatpush1.msra.mxu0 0.0
        %2948 = vmatprep.subr.mxu0 0.0
        %2949 = vmatpush1.msra.mxu0 0.0
        %2950 = vmatprep.mubr.f32.mxu0 0.0
        %2951 = vmatmul.mubr.f32.gmra.mrb[0].mxu0 %v2798
        %v2952 = vpop.f32.mrb[0].mxu0
        %v2953 = vadd.f32 0.0, %v2952
        %v2954 = vpop.f32.mrb[0].mxu0
        %2955 = vmatprep.mubr.f32.mxu0 0.0
        %2956 = vmatmul.mubr.f32.gmra.mrb[0].mxu0 %v2801
        %v2957 = vpop.f32.mrb[0].mxu0
        %v2958 = vadd.f32 0.0, %v2957
        %v2959 = vpop.f32.mrb[0].mxu0
        %2960 = vdwg.mxu0
        %v2961 = vadd.f32 %v2779, %v2876
        %v2962 = vadd.f32 %v2780, %v2878
        %v2963 = vadd.f32 %v2781, %v2953
        %v2964 = vadd.f32 %v2782, %v2882
        %v2965 = vadd.f32 %v2783, %v2884
        %v2966 = vadd.f32 %v2784, %v2958
        %s2967 = scalar_lea.vmem %s1, 208
        %v2968 = vld [vmem:[%s2967] sm:$0xff]
        %v2969 = vld [vmem:[%s2967 + $0x8] sm:$0xff]
        %2970 = vrot.lane.b32.xlu0 %v614, 85
        %v2971 = vpop.permute.xlu0 %2970
        %2972 = vrot.lane.b32.xlu0 %v615, 85
        %v2973 = vpop.permute.xlu0 %2972
        %2974 = vrot.lane.b32.xlu0 %v616, 85
        %v2975 = vpop.permute.xlu0 %2974
        %vm2976 = vcmask 695296
        %v2977 = vsel %vm2976, %v2971, %v2973
        %v2978 = vsel %vm2976, %v2973, %v2975
        %v2980 = vsel %vm635, %v2968, 0
        %v2983 = vsel %vm635, %v2969, 0
        %v2985 = vsel %vm642, %v2977, 0
        %v2987 = vsel %vm642, %v2978, 0
        %v2989 = vsel %vm642, %v2975, 0
        %2991 = vmatprep.subr.mxu0 %v2987
        %2992 = vmatpush1.msra.mxu0 %v2985
        %2993 = vmatprep.subr.mxu0 0.0
        %2994 = vmatpush1.msra.mxu0 0.0
        %2995 = vmatprep.subr.mxu0 0.0
        %2996 = vmatpush1.msra.mxu0 0.0
        %2997 = vmatprep.subr.mxu0 0.0
        %2998 = vmatpush1.msra.mxu0 0.0
        %2999 = vmatprep.subr.mxu0 0.0
        %3000 = vmatpush1.msra.mxu0 0.0
        %3001 = vmatprep.subr.mxu0 0.0
        %3002 = vmatpush1.msra.mxu0 0.0
        %3003 = vmatprep.subr.mxu0 0.0
        %3004 = vmatpush1.msra.mxu0 0.0
        %3005 = vmatprep.subr.mxu0 0.0
        %3006 = vmatpush1.msra.mxu0 0.0
        %3007 = vmatprep.subr.mxu0 0.0
        %3008 = vmatpush1.msra.mxu0 0.0
        %3009 = vmatprep.subr.mxu0 0.0
        %3010 = vmatpush1.msra.mxu0 0.0
        %3011 = vmatprep.subr.mxu0 0.0
        %3012 = vmatpush1.msra.mxu0 0.0
        %3013 = vmatprep.subr.mxu0 0.0
        %3014 = vmatpush1.msra.mxu0 0.0
        %3015 = vmatprep.subr.mxu0 0.0
        %3016 = vmatpush1.msra.mxu0 0.0
        %3017 = vmatprep.subr.mxu0 0.0
        %3018 = vmatpush1.msra.mxu0 0.0
        %3019 = vmatprep.subr.mxu0 0.0
        %3020 = vmatpush1.msra.mxu0 0.0
        %3021 = vmatprep.subr.mxu0 0.0
        %3022 = vmatpush1.msra.mxu0 0.0
        %3023 = vmatprep.subr.mxu0 0.0
        %3024 = vmatpush1.msra.mxu0 0.0
        %3025 = vmatprep.subr.mxu0 0.0
        %3026 = vmatpush1.msra.mxu0 0.0
        %3027 = vmatprep.subr.mxu0 0.0
        %3028 = vmatpush1.msra.mxu0 0.0
        %3029 = vmatprep.subr.mxu0 0.0
        %3030 = vmatpush1.msra.mxu0 0.0
        %3031 = vmatprep.subr.mxu0 0.0
        %3032 = vmatpush1.msra.mxu0 0.0
        %3033 = vmatprep.subr.mxu0 0.0
        %3034 = vmatpush1.msra.mxu0 0.0
        %3035 = vmatprep.subr.mxu0 0.0
        %3036 = vmatpush1.msra.mxu0 0.0
        %3037 = vmatprep.subr.mxu0 0.0
        %3038 = vmatpush1.msra.mxu0 0.0
        %3039 = vmatprep.subr.mxu0 0.0
        %3040 = vmatpush1.msra.mxu0 0.0
        %3041 = vmatprep.subr.mxu0 0.0
        %3042 = vmatpush1.msra.mxu0 0.0
        %3043 = vmatprep.subr.mxu0 0.0
        %3044 = vmatpush1.msra.mxu0 0.0
        %3045 = vmatprep.subr.mxu0 0.0
        %3046 = vmatpush1.msra.mxu0 0.0
        %3047 = vmatprep.subr.mxu0 0.0
        %3048 = vmatpush1.msra.mxu0 0.0
        %3049 = vmatprep.subr.mxu0 0.0
        %3050 = vmatpush1.msra.mxu0 0.0
        %3051 = vmatprep.subr.mxu0 0.0
        %3052 = vmatpush1.msra.mxu0 0.0
        %3053 = vmatprep.subr.mxu0 0.0
        %3054 = vmatpush1.msra.mxu0 0.0
        %3055 = vmatprep.mubr.f32.mxu0 0.0
        %3056 = vmatmul.mubr.f32.gmra.mrb[0].mxu0 %v2980
        %v3057 = vpop.f32.mrb[0].mxu0
        %v3058 = vadd.f32 0.0, %v3057
        %v3059 = vpop.f32.mrb[0].mxu0
        %v3060 = vadd.f32 0.0, %v3059
        %3061 = vmatprep.mubr.f32.mxu0 0.0
        %3062 = vmatmul.mubr.f32.gmra.mrb[0].mxu0 %v2983
        %v3063 = vpop.f32.mrb[0].mxu0
        %v3064 = vadd.f32 0.0, %v3063
        %v3065 = vpop.f32.mrb[0].mxu0
        %v3066 = vadd.f32 0.0, %v3065
        %3067 = vdwg.mxu0
        %3068 = vmatprep.subr.mxu0 0.0
        %3069 = vmatpush1.msra.mxu0 %v2989
        %3070 = vmatprep.subr.mxu0 0.0
        %3071 = vmatpush1.msra.mxu0 0.0
        %3072 = vmatprep.subr.mxu0 0.0
        %3073 = vmatpush1.msra.mxu0 0.0
        %3074 = vmatprep.subr.mxu0 0.0
        %3075 = vmatpush1.msra.mxu0 0.0
        %3076 = vmatprep.subr.mxu0 0.0
        %3077 = vmatpush1.msra.mxu0 0.0
        %3078 = vmatprep.subr.mxu0 0.0
        %3079 = vmatpush1.msra.mxu0 0.0
        %3080 = vmatprep.subr.mxu0 0.0
        %3081 = vmatpush1.msra.mxu0 0.0
        %3082 = vmatprep.subr.mxu0 0.0
        %3083 = vmatpush1.msra.mxu0 0.0
        %3084 = vmatprep.subr.mxu0 0.0
        %3085 = vmatpush1.msra.mxu0 0.0
        %3086 = vmatprep.subr.mxu0 0.0
        %3087 = vmatpush1.msra.mxu0 0.0
        %3088 = vmatprep.subr.mxu0 0.0
        %3089 = vmatpush1.msra.mxu0 0.0
        %3090 = vmatprep.subr.mxu0 0.0
        %3091 = vmatpush1.msra.mxu0 0.0
        %3092 = vmatprep.subr.mxu0 0.0
        %3093 = vmatpush1.msra.mxu0 0.0
        %3094 = vmatprep.subr.mxu0 0.0
        %3095 = vmatpush1.msra.mxu0 0.0
        %3096 = vmatprep.subr.mxu0 0.0
        %3097 = vmatpush1.msra.mxu0 0.0
        %3098 = vmatprep.subr.mxu0 0.0
        %3099 = vmatpush1.msra.mxu0 0.0
        %3100 = vmatprep.subr.mxu0 0.0
        %3101 = vmatpush1.msra.mxu0 0.0
        %3102 = vmatprep.subr.mxu0 0.0
        %3103 = vmatpush1.msra.mxu0 0.0
        %3104 = vmatprep.subr.mxu0 0.0
        %3105 = vmatpush1.msra.mxu0 0.0
        %3106 = vmatprep.subr.mxu0 0.0
        %3107 = vmatpush1.msra.mxu0 0.0
        %3108 = vmatprep.subr.mxu0 0.0
        %3109 = vmatpush1.msra.mxu0 0.0
        %3110 = vmatprep.subr.mxu0 0.0
        %3111 = vmatpush1.msra.mxu0 0.0
        %3112 = vmatprep.subr.mxu0 0.0
        %3113 = vmatpush1.msra.mxu0 0.0
        %3114 = vmatprep.subr.mxu0 0.0
        %3115 = vmatpush1.msra.mxu0 0.0
        %3116 = vmatprep.subr.mxu0 0.0
        %3117 = vmatpush1.msra.mxu0 0.0
        %3118 = vmatprep.subr.mxu0 0.0
        %3119 = vmatpush1.msra.mxu0 0.0
        %3120 = vmatprep.subr.mxu0 0.0
        %3121 = vmatpush1.msra.mxu0 0.0
        %3122 = vmatprep.subr.mxu0 0.0
        %3123 = vmatpush1.msra.mxu0 0.0
        %3124 = vmatprep.subr.mxu0 0.0
        %3125 = vmatpush1.msra.mxu0 0.0
        %3126 = vmatprep.subr.mxu0 0.0
        %3127 = vmatpush1.msra.mxu0 0.0
        %3128 = vmatprep.subr.mxu0 0.0
        %3129 = vmatpush1.msra.mxu0 0.0
        %3130 = vmatprep.subr.mxu0 0.0
        %3131 = vmatpush1.msra.mxu0 0.0
        %3132 = vmatprep.mubr.f32.mxu0 0.0
        %3133 = vmatmul.mubr.f32.gmra.mrb[0].mxu0 %v2980
        %v3134 = vpop.f32.mrb[0].mxu0
        %v3135 = vadd.f32 0.0, %v3134
        %v3136 = vpop.f32.mrb[0].mxu0
        %3137 = vmatprep.mubr.f32.mxu0 0.0
        %3138 = vmatmul.mubr.f32.gmra.mrb[0].mxu0 %v2983
        %v3139 = vpop.f32.mrb[0].mxu0
        %v3140 = vadd.f32 0.0, %v3139
        %v3141 = vpop.f32.mrb[0].mxu0
        %3142 = vdwg.mxu0
        %v3143 = vadd.f32 %v2961, %v3058
        %v3144 = vadd.f32 %v2962, %v3060
        %v3145 = vadd.f32 %v2963, %v3135
        %v3146 = vadd.f32 %v2964, %v3064
        %v3147 = vadd.f32 %v2965, %v3066
        %v3148 = vadd.f32 %v2966, %v3140
        %s3149 = scalar_lea.vmem %s1, 224
        %v3150 = vld [vmem:[%s3149] sm:$0xff]
        %v3151 = vld [vmem:[%s3149 + $0x8] sm:$0xff]
        %3152 = vrot.lane.b32.xlu0 %v614, 84
        %v3153 = vpop.permute.xlu0 %3152
        %3154 = vrot.lane.b32.xlu0 %v615, 84
        %v3155 = vpop.permute.xlu0 %3154
        %3156 = vrot.lane.b32.xlu0 %v616, 84
        %v3157 = vpop.permute.xlu0 %3156
        %vm3158 = vcmask 687104
        %v3159 = vsel %vm3158, %v3153, %v3155
        %v3160 = vsel %vm3158, %v3155, %v3157
        %v3162 = vsel %vm635, %v3150, 0
        %v3165 = vsel %vm635, %v3151, 0
        %v3167 = vsel %vm642, %v3159, 0
        %v3169 = vsel %vm642, %v3160, 0
        %v3171 = vsel %vm642, %v3157, 0
        %3173 = vmatprep.subr.mxu0 %v3169
        %3174 = vmatpush1.msra.mxu0 %v3167
        %3175 = vmatprep.subr.mxu0 0.0
        %3176 = vmatpush1.msra.mxu0 0.0
        %3177 = vmatprep.subr.mxu0 0.0
        %3178 = vmatpush1.msra.mxu0 0.0
        %3179 = vmatprep.subr.mxu0 0.0
        %3180 = vmatpush1.msra.mxu0 0.0
        %3181 = vmatprep.subr.mxu0 0.0
        %3182 = vmatpush1.msra.mxu0 0.0
        %3183 = vmatprep.subr.mxu0 0.0
        %3184 = vmatpush1.msra.mxu0 0.0
        %3185 = vmatprep.subr.mxu0 0.0
        %3186 = vmatpush1.msra.mxu0 0.0
        %3187 = vmatprep.subr.mxu0 0.0
        %3188 = vmatpush1.msra.mxu0 0.0
        %3189 = vmatprep.subr.mxu0 0.0
        %3190 = vmatpush1.msra.mxu0 0.0
        %3191 = vmatprep.subr.mxu0 0.0
        %3192 = vmatpush1.msra.mxu0 0.0
        %3193 = vmatprep.subr.mxu0 0.0
        %3194 = vmatpush1.msra.mxu0 0.0
        %3195 = vmatprep.subr.mxu0 0.0
        %3196 = vmatpush1.msra.mxu0 0.0
        %3197 = vmatprep.subr.mxu0 0.0
        %3198 = vmatpush1.msra.mxu0 0.0
        %3199 = vmatprep.subr.mxu0 0.0
        %3200 = vmatpush1.msra.mxu0 0.0
        %3201 = vmatprep.subr.mxu0 0.0
        %3202 = vmatpush1.msra.mxu0 0.0
        %3203 = vmatprep.subr.mxu0 0.0
        %3204 = vmatpush1.msra.mxu0 0.0
        %3205 = vmatprep.subr.mxu0 0.0
        %3206 = vmatpush1.msra.mxu0 0.0
        %3207 = vmatprep.subr.mxu0 0.0
        %3208 = vmatpush1.msra.mxu0 0.0
        %3209 = vmatprep.subr.mxu0 0.0
        %3210 = vmatpush1.msra.mxu0 0.0
        %3211 = vmatprep.subr.mxu0 0.0
        %3212 = vmatpush1.msra.mxu0 0.0
        %3213 = vmatprep.subr.mxu0 0.0
        %3214 = vmatpush1.msra.mxu0 0.0
        %3215 = vmatprep.subr.mxu0 0.0
        %3216 = vmatpush1.msra.mxu0 0.0
        %3217 = vmatprep.subr.mxu0 0.0
        %3218 = vmatpush1.msra.mxu0 0.0
        %3219 = vmatprep.subr.mxu0 0.0
        %3220 = vmatpush1.msra.mxu0 0.0
        %3221 = vmatprep.subr.mxu0 0.0
        %3222 = vmatpush1.msra.mxu0 0.0
        %3223 = vmatprep.subr.mxu0 0.0
        %3224 = vmatpush1.msra.mxu0 0.0
        %3225 = vmatprep.subr.mxu0 0.0
        %3226 = vmatpush1.msra.mxu0 0.0
        %3227 = vmatprep.subr.mxu0 0.0
        %3228 = vmatpush1.msra.mxu0 0.0
        %3229 = vmatprep.subr.mxu0 0.0
        %3230 = vmatpush1.msra.mxu0 0.0
        %3231 = vmatprep.subr.mxu0 0.0
        %3232 = vmatpush1.msra.mxu0 0.0
        %3233 = vmatprep.subr.mxu0 0.0
        %3234 = vmatpush1.msra.mxu0 0.0
        %3235 = vmatprep.subr.mxu0 0.0
        %3236 = vmatpush1.msra.mxu0 0.0
        %3237 = vmatprep.mubr.f32.mxu0 0.0
        %3238 = vmatmul.mubr.f32.gmra.mrb[0].mxu0 %v3162
        %v3239 = vpop.f32.mrb[0].mxu0
        %v3240 = vadd.f32 0.0, %v3239
        %v3241 = vpop.f32.mrb[0].mxu0
        %v3242 = vadd.f32 0.0, %v3241
        %3243 = vmatprep.mubr.f32.mxu0 0.0
        %3244 = vmatmul.mubr.f32.gmra.mrb[0].mxu0 %v3165
        %v3245 = vpop.f32.mrb[0].mxu0
        %v3246 = vadd.f32 0.0, %v3245
        %v3247 = vpop.f32.mrb[0].mxu0
        %v3248 = vadd.f32 0.0, %v3247
        %3249 = vdwg.mxu0
        %3250 = vmatprep.subr.mxu0 0.0
        %3251 = vmatpush1.msra.mxu0 %v3171
        %3252 = vmatprep.subr.mxu0 0.0
        %3253 = vmatpush1.msra.mxu0 0.0
        %3254 = vmatprep.subr.mxu0 0.0
        %3255 = vmatpush1.msra.mxu0 0.0
        %3256 = vmatprep.subr.mxu0 0.0
        %3257 = vmatpush1.msra.mxu0 0.0
        %3258 = vmatprep.subr.mxu0 0.0
        %3259 = vmatpush1.msra.mxu0 0.0
        %3260 = vmatprep.subr.mxu0 0.0
        %3261 = vmatpush1.msra.mxu0 0.0
        %3262 = vmatprep.subr.mxu0 0.0
        %3263 = vmatpush1.msra.mxu0 0.0
        %3264 = vmatprep.subr.mxu0 0.0
        %3265 = vmatpush1.msra.mxu0 0.0
        %3266 = vmatprep.subr.mxu0 0.0
        %3267 = vmatpush1.msra.mxu0 0.0
        %3268 = vmatprep.subr.mxu0 0.0
        %3269 = vmatpush1.msra.mxu0 0.0
        %3270 = vmatprep.subr.mxu0 0.0
        %3271 = vmatpush1.msra.mxu0 0.0
        %3272 = vmatprep.subr.mxu0 0.0
        %3273 = vmatpush1.msra.mxu0 0.0
        %3274 = vmatprep.subr.mxu0 0.0
        %3275 = vmatpush1.msra.mxu0 0.0
        %3276 = vmatprep.subr.mxu0 0.0
        %3277 = vmatpush1.msra.mxu0 0.0
        %3278 = vmatprep.subr.mxu0 0.0
        %3279 = vmatpush1.msra.mxu0 0.0
        %3280 = vmatprep.subr.mxu0 0.0
        %3281 = vmatpush1.msra.mxu0 0.0
        %3282 = vmatprep.subr.mxu0 0.0
        %3283 = vmatpush1.msra.mxu0 0.0
        %3284 = vmatprep.subr.mxu0 0.0
        %3285 = vmatpush1.msra.mxu0 0.0
        %3286 = vmatprep.subr.mxu0 0.0
        %3287 = vmatpush1.msra.mxu0 0.0
        %3288 = vmatprep.subr.mxu0 0.0
        %3289 = vmatpush1.msra.mxu0 0.0
        %3290 = vmatprep.subr.mxu0 0.0
        %3291 = vmatpush1.msra.mxu0 0.0
        %3292 = vmatprep.subr.mxu0 0.0
        %3293 = vmatpush1.msra.mxu0 0.0
        %3294 = vmatprep.subr.mxu0 0.0
        %3295 = vmatpush1.msra.mxu0 0.0
        %3296 = vmatprep.subr.mxu0 0.0
        %3297 = vmatpush1.msra.mxu0 0.0
        %3298 = vmatprep.subr.mxu0 0.0
        %3299 = vmatpush1.msra.mxu0 0.0
        %3300 = vmatprep.subr.mxu0 0.0
        %3301 = vmatpush1.msra.mxu0 0.0
        %3302 = vmatprep.subr.mxu0 0.0
        %3303 = vmatpush1.msra.mxu0 0.0
        %3304 = vmatprep.subr.mxu0 0.0
        %3305 = vmatpush1.msra.mxu0 0.0
        %3306 = vmatprep.subr.mxu0 0.0
        %3307 = vmatpush1.msra.mxu0 0.0
        %3308 = vmatprep.subr.mxu0 0.0
        %3309 = vmatpush1.msra.mxu0 0.0
        %3310 = vmatprep.subr.mxu0 0.0
        %3311 = vmatpush1.msra.mxu0 0.0
        %3312 = vmatprep.subr.mxu0 0.0
        %3313 = vmatpush1.msra.mxu0 0.0
        %3314 = vmatprep.mubr.f32.mxu0 0.0
        %3315 = vmatmul.mubr.f32.gmra.mrb[0].mxu0 %v3162
        %v3316 = vpop.f32.mrb[0].mxu0
        %v3317 = vadd.f32 0.0, %v3316
        %v3318 = vpop.f32.mrb[0].mxu0
        %3319 = vmatprep.mubr.f32.mxu0 0.0
        %3320 = vmatmul.mubr.f32.gmra.mrb[0].mxu0 %v3165
        %v3321 = vpop.f32.mrb[0].mxu0
        %v3322 = vadd.f32 0.0, %v3321
        %v3323 = vpop.f32.mrb[0].mxu0
        %3324 = vdwg.mxu0
        %v3325 = vadd.f32 %v3143, %v3240
        %v3326 = vadd.f32 %v3144, %v3242
        %v3327 = vadd.f32 %v3145, %v3317
        %v3328 = vadd.f32 %v3146, %v3246
        %v3329 = vadd.f32 %v3147, %v3248
        %v3330 = vadd.f32 %v3148, %v3322
        %s3331 = scalar_lea.vmem %s1, 240
        %v3332 = vld [vmem:[%s3331] sm:$0xff]
        %v3333 = vld [vmem:[%s3331 + $0x8] sm:$0xff]
        %3334 = vrot.lane.b32.xlu0 %v614, 68
        %v3335 = vpop.permute.xlu0 %3334
        %3336 = vrot.lane.b32.xlu0 %v615, 68
        %v3337 = vpop.permute.xlu0 %3336
        %3338 = vrot.lane.b32.xlu0 %v616, 68
        %v3339 = vpop.permute.xlu0 %3338
        %vm3340 = vcmask 556032
        %v3341 = vsel %vm3340, %v3335, %v3337
        %v3342 = vsel %vm3340, %v3337, %v3339
        %v3344 = vsel %vm635, %v3332, 0
        %v3347 = vsel %vm635, %v3333, 0
        %v3349 = vsel %vm642, %v3341, 0
        %v3351 = vsel %vm642, %v3342, 0
        %v3353 = vsel %vm642, %v3339, 0
        %3355 = vmatprep.subr.mxu0 %v3351
        %3356 = vmatpush1.msra.mxu0 %v3349
        %3357 = vmatprep.subr.mxu0 0.0
        %3358 = vmatpush1.msra.mxu0 0.0
        %3359 = vmatprep.subr.mxu0 0.0
        %3360 = vmatpush1.msra.mxu0 0.0
        %3361 = vmatprep.subr.mxu0 0.0
        %3362 = vmatpush1.msra.mxu0 0.0
        %3363 = vmatprep.subr.mxu0 0.0
        %3364 = vmatpush1.msra.mxu0 0.0
        %3365 = vmatprep.subr.mxu0 0.0
        %3366 = vmatpush1.msra.mxu0 0.0
        %3367 = vmatprep.subr.mxu0 0.0
        %3368 = vmatpush1.msra.mxu0 0.0
        %3369 = vmatprep.subr.mxu0 0.0
        %3370 = vmatpush1.msra.mxu0 0.0
        %3371 = vmatprep.subr.mxu0 0.0
        %3372 = vmatpush1.msra.mxu0 0.0
        %3373 = vmatprep.subr.mxu0 0.0
        %3374 = vmatpush1.msra.mxu0 0.0
        %3375 = vmatprep.subr.mxu0 0.0
        %3376 = vmatpush1.msra.mxu0 0.0
        %3377 = vmatprep.subr.mxu0 0.0
        %3378 = vmatpush1.msra.mxu0 0.0
        %3379 = vmatprep.subr.mxu0 0.0
        %3380 = vmatpush1.msra.mxu0 0.0
        %3381 = vmatprep.subr.mxu0 0.0
        %3382 = vmatpush1.msra.mxu0 0.0
        %3383 = vmatprep.subr.mxu0 0.0
        %3384 = vmatpush1.msra.mxu0 0.0
        %3385 = vmatprep.subr.mxu0 0.0
        %3386 = vmatpush1.msra.mxu0 0.0
        %3387 = vmatprep.subr.mxu0 0.0
        %3388 = vmatpush1.msra.mxu0 0.0
        %3389 = vmatprep.subr.mxu0 0.0
        %3390 = vmatpush1.msra.mxu0 0.0
        %3391 = vmatprep.subr.mxu0 0.0
        %3392 = vmatpush1.msra.mxu0 0.0
        %3393 = vmatprep.subr.mxu0 0.0
        %3394 = vmatpush1.msra.mxu0 0.0
        %3395 = vmatprep.subr.mxu0 0.0
        %3396 = vmatpush1.msra.mxu0 0.0
        %3397 = vmatprep.subr.mxu0 0.0
        %3398 = vmatpush1.msra.mxu0 0.0
        %3399 = vmatprep.subr.mxu0 0.0
        %3400 = vmatpush1.msra.mxu0 0.0
        %3401 = vmatprep.subr.mxu0 0.0
        %3402 = vmatpush1.msra.mxu0 0.0
        %3403 = vmatprep.subr.mxu0 0.0
        %3404 = vmatpush1.msra.mxu0 0.0
        %3405 = vmatprep.subr.mxu0 0.0
        %3406 = vmatpush1.msra.mxu0 0.0
        %3407 = vmatprep.subr.mxu0 0.0
        %3408 = vmatpush1.msra.mxu0 0.0
        %3409 = vmatprep.subr.mxu0 0.0
        %3410 = vmatpush1.msra.mxu0 0.0
        %3411 = vmatprep.subr.mxu0 0.0
        %3412 = vmatpush1.msra.mxu0 0.0
        %3413 = vmatprep.subr.mxu0 0.0
        %3414 = vmatpush1.msra.mxu0 0.0
        %3415 = vmatprep.subr.mxu0 0.0
        %3416 = vmatpush1.msra.mxu0 0.0
        %3417 = vmatprep.subr.mxu0 0.0
        %3418 = vmatpush1.msra.mxu0 0.0
        %3419 = vmatprep.mubr.f32.mxu0 0.0
        %3420 = vmatmul.mubr.f32.gmra.mrb[0].mxu0 %v3344
        %v3421 = vpop.f32.mrb[0].mxu0
        %v3422 = vadd.f32 0.0, %v3421
        %v3423 = vpop.f32.mrb[0].mxu0
        %v3424 = vadd.f32 0.0, %v3423
        %3425 = vmatprep.mubr.f32.mxu0 0.0
        %3426 = vmatmul.mubr.f32.gmra.mrb[0].mxu0 %v3347
        %v3427 = vpop.f32.mrb[0].mxu0
        %v3428 = vadd.f32 0.0, %v3427
        %v3429 = vpop.f32.mrb[0].mxu0
        %v3430 = vadd.f32 0.0, %v3429
        %3431 = vdwg.mxu0
        %3432 = vmatprep.subr.mxu0 0.0
        %3433 = vmatpush1.msra.mxu0 %v3353
        %3434 = vmatprep.subr.mxu0 0.0
        %3435 = vmatpush1.msra.mxu0 0.0
        %3436 = vmatprep.subr.mxu0 0.0
        %3437 = vmatpush1.msra.mxu0 0.0
        %3438 = vmatprep.subr.mxu0 0.0
        %3439 = vmatpush1.msra.mxu0 0.0
        %3440 = vmatprep.subr.mxu0 0.0
        %3441 = vmatpush1.msra.mxu0 0.0
        %3442 = vmatprep.subr.mxu0 0.0
        %3443 = vmatpush1.msra.mxu0 0.0
        %3444 = vmatprep.subr.mxu0 0.0
        %3445 = vmatpush1.msra.mxu0 0.0
        %3446 = vmatprep.subr.mxu0 0.0
        %3447 = vmatpush1.msra.mxu0 0.0
        %3448 = vmatprep.subr.mxu0 0.0
        %3449 = vmatpush1.msra.mxu0 0.0
        %3450 = vmatprep.subr.mxu0 0.0
        %3451 = vmatpush1.msra.mxu0 0.0
        %3452 = vmatprep.subr.mxu0 0.0
        %3453 = vmatpush1.msra.mxu0 0.0
        %3454 = vmatprep.subr.mxu0 0.0
        %3455 = vmatpush1.msra.mxu0 0.0
        %3456 = vmatprep.subr.mxu0 0.0
        %3457 = vmatpush1.msra.mxu0 0.0
        %3458 = vmatprep.subr.mxu0 0.0
        %3459 = vmatpush1.msra.mxu0 0.0
        %3460 = vmatprep.subr.mxu0 0.0
        %3461 = vmatpush1.msra.mxu0 0.0
        %3462 = vmatprep.subr.mxu0 0.0
        %3463 = vmatpush1.msra.mxu0 0.0
        %3464 = vmatprep.subr.mxu0 0.0
        %3465 = vmatpush1.msra.mxu0 0.0
        %3466 = vmatprep.subr.mxu0 0.0
        %3467 = vmatpush1.msra.mxu0 0.0
        %3468 = vmatprep.subr.mxu0 0.0
        %3469 = vmatpush1.msra.mxu0 0.0
        %3470 = vmatprep.subr.mxu0 0.0
        %3471 = vmatpush1.msra.mxu0 0.0
        %3472 = vmatprep.subr.mxu0 0.0
        %3473 = vmatpush1.msra.mxu0 0.0
        %3474 = vmatprep.subr.mxu0 0.0
        %3475 = vmatpush1.msra.mxu0 0.0
        %3476 = vmatprep.subr.mxu0 0.0
        %3477 = vmatpush1.msra.mxu0 0.0
        %3478 = vmatprep.subr.mxu0 0.0
        %3479 = vmatpush1.msra.mxu0 0.0
        %3480 = vmatprep.subr.mxu0 0.0
        %3481 = vmatpush1.msra.mxu0 0.0
        %3482 = vmatprep.subr.mxu0 0.0
        %3483 = vmatpush1.msra.mxu0 0.0
        %3484 = vmatprep.subr.mxu0 0.0
        %3485 = vmatpush1.msra.mxu0 0.0
        %3486 = vmatprep.subr.mxu0 0.0
        %3487 = vmatpush1.msra.mxu0 0.0
        %3488 = vmatprep.subr.mxu0 0.0
        %3489 = vmatpush1.msra.mxu0 0.0
        %3490 = vmatprep.subr.mxu0 0.0
        %3491 = vmatpush1.msra.mxu0 0.0
        %3492 = vmatprep.subr.mxu0 0.0
        %3493 = vmatpush1.msra.mxu0 0.0
        %3494 = vmatprep.subr.mxu0 0.0
        %3495 = vmatpush1.msra.mxu0 0.0
        %3496 = vmatprep.mubr.f32.mxu0 0.0
        %3497 = vmatmul.mubr.f32.gmra.mrb[0].mxu0 %v3344
        %v3498 = vpop.f32.mrb[0].mxu0
        %v3499 = vadd.f32 0.0, %v3498
        %v3500 = vpop.f32.mrb[0].mxu0
        %3501 = vmatprep.mubr.f32.mxu0 0.0
        %3502 = vmatmul.mubr.f32.gmra.mrb[0].mxu0 %v3347
        %v3503 = vpop.f32.mrb[0].mxu0
        %v3504 = vadd.f32 0.0, %v3503
        %v3505 = vpop.f32.mrb[0].mxu0
        %3506 = vdwg.mxu0
        %v3507 = vadd.f32 %v3325, %v3422
        %v3508 = vadd.f32 %v3326, %v3424
        %v3509 = vadd.f32 %v3327, %v3499
        %v3510 = vadd.f32 %v3328, %v3428
        %v3511 = vadd.f32 %v3329, %v3430
        %v3512 = vadd.f32 %v3330, %v3504
        %s3513 = scalar_lea.vmem %s1, 256
        %v3514 = vld [vmem:[%s3513] sm:$0xff]
        %v3515 = vld [vmem:[%s3513 + $0x8] sm:$0xff]
        %3516 = vrot.lane.b32.xlu0 %v614, 67
        %v3517 = vpop.permute.xlu0 %3516
        %3518 = vrot.lane.b32.xlu0 %v615, 67
        %v3519 = vpop.permute.xlu0 %3518
        %3520 = vrot.lane.b32.xlu0 %v616, 67
        %v3521 = vpop.permute.xlu0 %3520
        %vm3522 = vcmask 547840
        %v3523 = vsel %vm3522, %v3517, %v3519
        %v3524 = vsel %vm3522, %v3519, %v3521
        %v3526 = vsel %vm635, %v3514, 0
        %v3529 = vsel %vm635, %v3515, 0
        %v3531 = vsel %vm642, %v3523, 0
        %v3533 = vsel %vm642, %v3524, 0
        %v3535 = vsel %vm642, %v3521, 0
        %3537 = vmatprep.subr.mxu0 %v3533
        %3538 = vmatpush1.msra.mxu0 %v3531
        %3539 = vmatprep.subr.mxu0 0.0
        %3540 = vmatpush1.msra.mxu0 0.0
        %3541 = vmatprep.subr.mxu0 0.0
        %3542 = vmatpush1.msra.mxu0 0.0
        %3543 = vmatprep.subr.mxu0 0.0
        %3544 = vmatpush1.msra.mxu0 0.0
        %3545 = vmatprep.subr.mxu0 0.0
        %3546 = vmatpush1.msra.mxu0 0.0
        %3547 = vmatprep.subr.mxu0 0.0
        %3548 = vmatpush1.msra.mxu0 0.0
        %3549 = vmatprep.subr.mxu0 0.0
        %3550 = vmatpush1.msra.mxu0 0.0
        %3551 = vmatprep.subr.mxu0 0.0
        %3552 = vmatpush1.msra.mxu0 0.0
        %3553 = vmatprep.subr.mxu0 0.0
        %3554 = vmatpush1.msra.mxu0 0.0
        %3555 = vmatprep.subr.mxu0 0.0
        %3556 = vmatpush1.msra.mxu0 0.0
        %3557 = vmatprep.subr.mxu0 0.0
        %3558 = vmatpush1.msra.mxu0 0.0
        %3559 = vmatprep.subr.mxu0 0.0
        %3560 = vmatpush1.msra.mxu0 0.0
        %3561 = vmatprep.subr.mxu0 0.0
        %3562 = vmatpush1.msra.mxu0 0.0
        %3563 = vmatprep.subr.mxu0 0.0
        %3564 = vmatpush1.msra.mxu0 0.0
        %3565 = vmatprep.subr.mxu0 0.0
        %3566 = vmatpush1.msra.mxu0 0.0
        %3567 = vmatprep.subr.mxu0 0.0
        %3568 = vmatpush1.msra.mxu0 0.0
        %3569 = vmatprep.subr.mxu0 0.0
        %3570 = vmatpush1.msra.mxu0 0.0
        %3571 = vmatprep.subr.mxu0 0.0
        %3572 = vmatpush1.msra.mxu0 0.0
        %3573 = vmatprep.subr.mxu0 0.0
        %3574 = vmatpush1.msra.mxu0 0.0
        %3575 = vmatprep.subr.mxu0 0.0
        %3576 = vmatpush1.msra.mxu0 0.0
        %3577 = vmatprep.subr.mxu0 0.0
        %3578 = vmatpush1.msra.mxu0 0.0
        %3579 = vmatprep.subr.mxu0 0.0
        %3580 = vmatpush1.msra.mxu0 0.0
        %3581 = vmatprep.subr.mxu0 0.0
        %3582 = vmatpush1.msra.mxu0 0.0
        %3583 = vmatprep.subr.mxu0 0.0
        %3584 = vmatpush1.msra.mxu0 0.0
        %3585 = vmatprep.subr.mxu0 0.0
        %3586 = vmatpush1.msra.mxu0 0.0
        %3587 = vmatprep.subr.mxu0 0.0
        %3588 = vmatpush1.msra.mxu0 0.0
        %3589 = vmatprep.subr.mxu0 0.0
        %3590 = vmatpush1.msra.mxu0 0.0
        %3591 = vmatprep.subr.mxu0 0.0
        %3592 = vmatpush1.msra.mxu0 0.0
        %3593 = vmatprep.subr.mxu0 0.0
        %3594 = vmatpush1.msra.mxu0 0.0
        %3595 = vmatprep.subr.mxu0 0.0
        %3596 = vmatpush1.msra.mxu0 0.0
        %3597 = vmatprep.subr.mxu0 0.0
        %3598 = vmatpush1.msra.mxu0 0.0
        %3599 = vmatprep.subr.mxu0 0.0
        %3600 = vmatpush1.msra.mxu0 0.0
        %3601 = vmatprep.mubr.f32.mxu0 0.0
        %3602 = vmatmul.mubr.f32.gmra.mrb[0].mxu0 %v3526
        %v3603 = vpop.f32.mrb[0].mxu0
        %v3604 = vadd.f32 0.0, %v3603
        %v3605 = vpop.f32.mrb[0].mxu0
        %v3606 = vadd.f32 0.0, %v3605
        %3607 = vmatprep.mubr.f32.mxu0 0.0
        %3608 = vmatmul.mubr.f32.gmra.mrb[0].mxu0 %v3529
        %v3609 = vpop.f32.mrb[0].mxu0
        %v3610 = vadd.f32 0.0, %v3609
        %v3611 = vpop.f32.mrb[0].mxu0
        %v3612 = vadd.f32 0.0, %v3611
        %3613 = vdwg.mxu0
        %3614 = vmatprep.subr.mxu0 0.0
        %3615 = vmatpush1.msra.mxu0 %v3535
        %3616 = vmatprep.subr.mxu0 0.0
        %3617 = vmatpush1.msra.mxu0 0.0
        %3618 = vmatprep.subr.mxu0 0.0
        %3619 = vmatpush1.msra.mxu0 0.0
        %3620 = vmatprep.subr.mxu0 0.0
        %3621 = vmatpush1.msra.mxu0 0.0
        %3622 = vmatprep.subr.mxu0 0.0
        %3623 = vmatpush1.msra.mxu0 0.0
        %3624 = vmatprep.subr.mxu0 0.0
        %3625 = vmatpush1.msra.mxu0 0.0
        %3626 = vmatprep.subr.mxu0 0.0
        %3627 = vmatpush1.msra.mxu0 0.0
        %3628 = vmatprep.subr.mxu0 0.0
        %3629 = vmatpush1.msra.mxu0 0.0
        %3630 = vmatprep.subr.mxu0 0.0
        %3631 = vmatpush1.msra.mxu0 0.0
        %3632 = vmatprep.subr.mxu0 0.0
        %3633 = vmatpush1.msra.mxu0 0.0
        %3634 = vmatprep.subr.mxu0 0.0
        %3635 = vmatpush1.msra.mxu0 0.0
        %3636 = vmatprep.subr.mxu0 0.0
        %3637 = vmatpush1.msra.mxu0 0.0
        %3638 = vmatprep.subr.mxu0 0.0
        %3639 = vmatpush1.msra.mxu0 0.0
        %3640 = vmatprep.subr.mxu0 0.0
        %3641 = vmatpush1.msra.mxu0 0.0
        %3642 = vmatprep.subr.mxu0 0.0
        %3643 = vmatpush1.msra.mxu0 0.0
        %3644 = vmatprep.subr.mxu0 0.0
        %3645 = vmatpush1.msra.mxu0 0.0
        %3646 = vmatprep.subr.mxu0 0.0
        %3647 = vmatpush1.msra.mxu0 0.0
        %3648 = vmatprep.subr.mxu0 0.0
        %3649 = vmatpush1.msra.mxu0 0.0
        %3650 = vmatprep.subr.mxu0 0.0
        %3651 = vmatpush1.msra.mxu0 0.0
        %3652 = vmatprep.subr.mxu0 0.0
        %3653 = vmatpush1.msra.mxu0 0.0
        %3654 = vmatprep.subr.mxu0 0.0
        %3655 = vmatpush1.msra.mxu0 0.0
        %3656 = vmatprep.subr.mxu0 0.0
        %3657 = vmatpush1.msra.mxu0 0.0
        %3658 = vmatprep.subr.mxu0 0.0
        %3659 = vmatpush1.msra.mxu0 0.0
        %3660 = vmatprep.subr.mxu0 0.0
        %3661 = vmatpush1.msra.mxu0 0.0
        %3662 = vmatprep.subr.mxu0 0.0
        %3663 = vmatpush1.msra.mxu0 0.0
        %3664 = vmatprep.subr.mxu0 0.0
        %3665 = vmatpush1.msra.mxu0 0.0
        %3666 = vmatprep.subr.mxu0 0.0
        %3667 = vmatpush1.msra.mxu0 0.0
        %3668 = vmatprep.subr.mxu0 0.0
        %3669 = vmatpush1.msra.mxu0 0.0
        %3670 = vmatprep.subr.mxu0 0.0
        %3671 = vmatpush1.msra.mxu0 0.0
        %3672 = vmatprep.subr.mxu0 0.0
        %3673 = vmatpush1.msra.mxu0 0.0
        %3674 = vmatprep.subr.mxu0 0.0
        %3675 = vmatpush1.msra.mxu0 0.0
        %3676 = vmatprep.subr.mxu0 0.0
        %3677 = vmatpush1.msra.mxu0 0.0
        %3678 = vmatprep.mubr.f32.mxu0 0.0
        %3679 = vmatmul.mubr.f32.gmra.mrb[0].mxu0 %v3526
        %v3680 = vpop.f32.mrb[0].mxu0
        %v3681 = vadd.f32 0.0, %v3680
        %v3682 = vpop.f32.mrb[0].mxu0
        %3683 = vmatprep.mubr.f32.mxu0 0.0
        %3684 = vmatmul.mubr.f32.gmra.mrb[0].mxu0 %v3529
        %v3685 = vpop.f32.mrb[0].mxu0
        %v3686 = vadd.f32 0.0, %v3685
        %v3687 = vpop.f32.mrb[0].mxu0
        %3688 = vdwg.mxu0
        %v3689 = vadd.f32 %v3507, %v3604
        %v3690 = vadd.f32 %v3508, %v3606
        %v3691 = vadd.f32 %v3509, %v3681
        %v3692 = vadd.f32 %v3510, %v3610
        %v3693 = vadd.f32 %v3511, %v3612
        %v3694 = vadd.f32 %v3512, %v3686
        %s3695 = scalar_lea.vmem %s1, 272
        %v3696 = vld [vmem:[%s3695] sm:$0xff]
        %v3697 = vld [vmem:[%s3695 + $0x8] sm:$0xff]
        %3698 = vrot.lane.b32.xlu0 %v614, 66
        %v3699 = vpop.permute.xlu0 %3698
        %3700 = vrot.lane.b32.xlu0 %v615, 66
        %v3701 = vpop.permute.xlu0 %3700
        %3702 = vrot.lane.b32.xlu0 %v616, 66
        %v3703 = vpop.permute.xlu0 %3702
        %vm3704 = vcmask 539648
        %v3705 = vsel %vm3704, %v3699, %v3701
        %v3706 = vsel %vm3704, %v3701, %v3703
        %v3708 = vsel %vm635, %v3696, 0
        %v3711 = vsel %vm635, %v3697, 0
        %v3713 = vsel %vm642, %v3705, 0
        %v3715 = vsel %vm642, %v3706, 0
        %v3717 = vsel %vm642, %v3703, 0
        %3719 = vmatprep.subr.mxu0 %v3715
        %3720 = vmatpush1.msra.mxu0 %v3713
        %3721 = vmatprep.subr.mxu0 0.0
        %3722 = vmatpush1.msra.mxu0 0.0
        %3723 = vmatprep.subr.mxu0 0.0
        %3724 = vmatpush1.msra.mxu0 0.0
        %3725 = vmatprep.subr.mxu0 0.0
        %3726 = vmatpush1.msra.mxu0 0.0
        %3727 = vmatprep.subr.mxu0 0.0
        %3728 = vmatpush1.msra.mxu0 0.0
        %3729 = vmatprep.subr.mxu0 0.0
        %3730 = vmatpush1.msra.mxu0 0.0
        %3731 = vmatprep.subr.mxu0 0.0
        %3732 = vmatpush1.msra.mxu0 0.0
        %3733 = vmatprep.subr.mxu0 0.0
        %3734 = vmatpush1.msra.mxu0 0.0
        %3735 = vmatprep.subr.mxu0 0.0
        %3736 = vmatpush1.msra.mxu0 0.0
        %3737 = vmatprep.subr.mxu0 0.0
        %3738 = vmatpush1.msra.mxu0 0.0
        %3739 = vmatprep.subr.mxu0 0.0
        %3740 = vmatpush1.msra.mxu0 0.0
        %3741 = vmatprep.subr.mxu0 0.0
        %3742 = vmatpush1.msra.mxu0 0.0
        %3743 = vmatprep.subr.mxu0 0.0
        %3744 = vmatpush1.msra.mxu0 0.0
        %3745 = vmatprep.subr.mxu0 0.0
        %3746 = vmatpush1.msra.mxu0 0.0
        %3747 = vmatprep.subr.mxu0 0.0
        %3748 = vmatpush1.msra.mxu0 0.0
        %3749 = vmatprep.subr.mxu0 0.0
        %3750 = vmatpush1.msra.mxu0 0.0
        %3751 = vmatprep.subr.mxu0 0.0
        %3752 = vmatpush1.msra.mxu0 0.0
        %3753 = vmatprep.subr.mxu0 0.0
        %3754 = vmatpush1.msra.mxu0 0.0
        %3755 = vmatprep.subr.mxu0 0.0
        %3756 = vmatpush1.msra.mxu0 0.0
        %3757 = vmatprep.subr.mxu0 0.0
        %3758 = vmatpush1.msra.mxu0 0.0
        %3759 = vmatprep.subr.mxu0 0.0
        %3760 = vmatpush1.msra.mxu0 0.0
        %3761 = vmatprep.subr.mxu0 0.0
        %3762 = vmatpush1.msra.mxu0 0.0
        %3763 = vmatprep.subr.mxu0 0.0
        %3764 = vmatpush1.msra.mxu0 0.0
        %3765 = vmatprep.subr.mxu0 0.0
        %3766 = vmatpush1.msra.mxu0 0.0
        %3767 = vmatprep.subr.mxu0 0.0
        %3768 = vmatpush1.msra.mxu0 0.0
        %3769 = vmatprep.subr.mxu0 0.0
        %3770 = vmatpush1.msra.mxu0 0.0
        %3771 = vmatprep.subr.mxu0 0.0
        %3772 = vmatpush1.msra.mxu0 0.0
        %3773 = vmatprep.subr.mxu0 0.0
        %3774 = vmatpush1.msra.mxu0 0.0
        %3775 = vmatprep.subr.mxu0 0.0
        %3776 = vmatpush1.msra.mxu0 0.0
        %3777 = vmatprep.subr.mxu0 0.0
        %3778 = vmatpush1.msra.mxu0 0.0
        %3779 = vmatprep.subr.mxu0 0.0
        %3780 = vmatpush1.msra.mxu0 0.0
        %3781 = vmatprep.subr.mxu0 0.0
        %3782 = vmatpush1.msra.mxu0 0.0
        %3783 = vmatprep.mubr.f32.mxu0 0.0
        %3784 = vmatmul.mubr.f32.gmra.mrb[0].mxu0 %v3708
        %v3785 = vpop.f32.mrb[0].mxu0
        %v3786 = vadd.f32 0.0, %v3785
        %v3787 = vpop.f32.mrb[0].mxu0
        %v3788 = vadd.f32 0.0, %v3787
        %3789 = vmatprep.mubr.f32.mxu0 0.0
        %3790 = vmatmul.mubr.f32.gmra.mrb[0].mxu0 %v3711
        %v3791 = vpop.f32.mrb[0].mxu0
        %v3792 = vadd.f32 0.0, %v3791
        %v3793 = vpop.f32.mrb[0].mxu0
        %v3794 = vadd.f32 0.0, %v3793
        %3795 = vdwg.mxu0
        %3796 = vmatprep.subr.mxu0 0.0
        %3797 = vmatpush1.msra.mxu0 %v3717
        %3798 = vmatprep.subr.mxu0 0.0
        %3799 = vmatpush1.msra.mxu0 0.0
        %3800 = vmatprep.subr.mxu0 0.0
        %3801 = vmatpush1.msra.mxu0 0.0
        %3802 = vmatprep.subr.mxu0 0.0
        %3803 = vmatpush1.msra.mxu0 0.0
        %3804 = vmatprep.subr.mxu0 0.0
        %3805 = vmatpush1.msra.mxu0 0.0
        %3806 = vmatprep.subr.mxu0 0.0
        %3807 = vmatpush1.msra.mxu0 0.0
        %3808 = vmatprep.subr.mxu0 0.0
        %3809 = vmatpush1.msra.mxu0 0.0
        %3810 = vmatprep.subr.mxu0 0.0
        %3811 = vmatpush1.msra.mxu0 0.0
        %3812 = vmatprep.subr.mxu0 0.0
        %3813 = vmatpush1.msra.mxu0 0.0
        %3814 = vmatprep.subr.mxu0 0.0
        %3815 = vmatpush1.msra.mxu0 0.0
        %3816 = vmatprep.subr.mxu0 0.0
        %3817 = vmatpush1.msra.mxu0 0.0
        %3818 = vmatprep.subr.mxu0 0.0
        %3819 = vmatpush1.msra.mxu0 0.0
        %3820 = vmatprep.subr.mxu0 0.0
        %3821 = vmatpush1.msra.mxu0 0.0
        %3822 = vmatprep.subr.mxu0 0.0
        %3823 = vmatpush1.msra.mxu0 0.0
        %3824 = vmatprep.subr.mxu0 0.0
        %3825 = vmatpush1.msra.mxu0 0.0
        %3826 = vmatprep.subr.mxu0 0.0
        %3827 = vmatpush1.msra.mxu0 0.0
        %3828 = vmatprep.subr.mxu0 0.0
        %3829 = vmatpush1.msra.mxu0 0.0
        %3830 = vmatprep.subr.mxu0 0.0
        %3831 = vmatpush1.msra.mxu0 0.0
        %3832 = vmatprep.subr.mxu0 0.0
        %3833 = vmatpush1.msra.mxu0 0.0
        %3834 = vmatprep.subr.mxu0 0.0
        %3835 = vmatpush1.msra.mxu0 0.0
        %3836 = vmatprep.subr.mxu0 0.0
        %3837 = vmatpush1.msra.mxu0 0.0
        %3838 = vmatprep.subr.mxu0 0.0
        %3839 = vmatpush1.msra.mxu0 0.0
        %3840 = vmatprep.subr.mxu0 0.0
        %3841 = vmatpush1.msra.mxu0 0.0
        %3842 = vmatprep.subr.mxu0 0.0
        %3843 = vmatpush1.msra.mxu0 0.0
        %3844 = vmatprep.subr.mxu0 0.0
        %3845 = vmatpush1.msra.mxu0 0.0
        %3846 = vmatprep.subr.mxu0 0.0
        %3847 = vmatpush1.msra.mxu0 0.0
        %3848 = vmatprep.subr.mxu0 0.0
        %3849 = vmatpush1.msra.mxu0 0.0
        %3850 = vmatprep.subr.mxu0 0.0
        %3851 = vmatpush1.msra.mxu0 0.0
        %3852 = vmatprep.subr.mxu0 0.0
        %3853 = vmatpush1.msra.mxu0 0.0
        %3854 = vmatprep.subr.mxu0 0.0
        %3855 = vmatpush1.msra.mxu0 0.0
        %3856 = vmatprep.subr.mxu0 0.0
        %3857 = vmatpush1.msra.mxu0 0.0
        %3858 = vmatprep.subr.mxu0 0.0
        %3859 = vmatpush1.msra.mxu0 0.0
        %3860 = vmatprep.mubr.f32.mxu0 0.0
        %3861 = vmatmul.mubr.f32.gmra.mrb[0].mxu0 %v3708
        %v3862 = vpop.f32.mrb[0].mxu0
        %v3863 = vadd.f32 0.0, %v3862
        %v3864 = vpop.f32.mrb[0].mxu0
        %3865 = vmatprep.mubr.f32.mxu0 0.0
        %3866 = vmatmul.mubr.f32.gmra.mrb[0].mxu0 %v3711
        %v3867 = vpop.f32.mrb[0].mxu0
        %v3868 = vadd.f32 0.0, %v3867
        %v3869 = vpop.f32.mrb[0].mxu0
        %3870 = vdwg.mxu0
        %v3871 = vadd.f32 %v3689, %v3786
        %v3872 = vadd.f32 %v3690, %v3788
        %v3873 = vadd.f32 %v3691, %v3863
        %v3874 = vadd.f32 %v3692, %v3792
        %v3875 = vadd.f32 %v3693, %v3794
        %v3876 = vadd.f32 %v3694, %v3868
        %s3877 = scalar_lea.vmem %s1, 288
        %v3878 = vld [vmem:[%s3877] sm:$0xff]
        %v3879 = vld [vmem:[%s3877 + $0x8] sm:$0xff]
        %3880 = vrot.lane.b32.xlu0 %v614, 65
        %v3881 = vpop.permute.xlu0 %3880
        %3882 = vrot.lane.b32.xlu0 %v615, 65
        %v3883 = vpop.permute.xlu0 %3882
        %3884 = vrot.lane.b32.xlu0 %v616, 65
        %v3885 = vpop.permute.xlu0 %3884
        %vm3886 = vcmask 531456
        %v3887 = vsel %vm3886, %v3881, %v3883
        %v3888 = vsel %vm3886, %v3883, %v3885
        %v3890 = vsel %vm635, %v3878, 0
        %v3893 = vsel %vm635, %v3879, 0
        %v3895 = vsel %vm642, %v3887, 0
        %v3897 = vsel %vm642, %v3888, 0
        %v3899 = vsel %vm642, %v3885, 0
        %3901 = vmatprep.subr.mxu0 %v3897
        %3902 = vmatpush1.msra.mxu0 %v3895
        %3903 = vmatprep.subr.mxu0 0.0
        %3904 = vmatpush1.msra.mxu0 0.0
        %3905 = vmatprep.subr.mxu0 0.0
        %3906 = vmatpush1.msra.mxu0 0.0
        %3907 = vmatprep.subr.mxu0 0.0
        %3908 = vmatpush1.msra.mxu0 0.0
        %3909 = vmatprep.subr.mxu0 0.0
        %3910 = vmatpush1.msra.mxu0 0.0
        %3911 = vmatprep.subr.mxu0 0.0
        %3912 = vmatpush1.msra.mxu0 0.0
        %3913 = vmatprep.subr.mxu0 0.0
        %3914 = vmatpush1.msra.mxu0 0.0
        %3915 = vmatprep.subr.mxu0 0.0
        %3916 = vmatpush1.msra.mxu0 0.0
        %3917 = vmatprep.subr.mxu0 0.0
        %3918 = vmatpush1.msra.mxu0 0.0
        %3919 = vmatprep.subr.mxu0 0.0
        %3920 = vmatpush1.msra.mxu0 0.0
        %3921 = vmatprep.subr.mxu0 0.0
        %3922 = vmatpush1.msra.mxu0 0.0
        %3923 = vmatprep.subr.mxu0 0.0
        %3924 = vmatpush1.msra.mxu0 0.0
        %3925 = vmatprep.subr.mxu0 0.0
        %3926 = vmatpush1.msra.mxu0 0.0
        %3927 = vmatprep.subr.mxu0 0.0
        %3928 = vmatpush1.msra.mxu0 0.0
        %3929 = vmatprep.subr.mxu0 0.0
        %3930 = vmatpush1.msra.mxu0 0.0
        %3931 = vmatprep.subr.mxu0 0.0
        %3932 = vmatpush1.msra.mxu0 0.0
        %3933 = vmatprep.subr.mxu0 0.0
        %3934 = vmatpush1.msra.mxu0 0.0
        %3935 = vmatprep.subr.mxu0 0.0
        %3936 = vmatpush1.msra.mxu0 0.0
        %3937 = vmatprep.subr.mxu0 0.0
        %3938 = vmatpush1.msra.mxu0 0.0
        %3939 = vmatprep.subr.mxu0 0.0
        %3940 = vmatpush1.msra.mxu0 0.0
        %3941 = vmatprep.subr.mxu0 0.0
        %3942 = vmatpush1.msra.mxu0 0.0
        %3943 = vmatprep.subr.mxu0 0.0
        %3944 = vmatpush1.msra.mxu0 0.0
        %3945 = vmatprep.subr.mxu0 0.0
        %3946 = vmatpush1.msra.mxu0 0.0
        %3947 = vmatprep.subr.mxu0 0.0
        %3948 = vmatpush1.msra.mxu0 0.0
        %3949 = vmatprep.subr.mxu0 0.0
        %3950 = vmatpush1.msra.mxu0 0.0
        %3951 = vmatprep.subr.mxu0 0.0
        %3952 = vmatpush1.msra.mxu0 0.0
        %3953 = vmatprep.subr.mxu0 0.0
        %3954 = vmatpush1.msra.mxu0 0.0
        %3955 = vmatprep.subr.mxu0 0.0
        %3956 = vmatpush1.msra.mxu0 0.0
        %3957 = vmatprep.subr.mxu0 0.0
        %3958 = vmatpush1.msra.mxu0 0.0
        %3959 = vmatprep.subr.mxu0 0.0
        %3960 = vmatpush1.msra.mxu0 0.0
        %3961 = vmatprep.subr.mxu0 0.0
        %3962 = vmatpush1.msra.mxu0 0.0
        %3963 = vmatprep.subr.mxu0 0.0
        %3964 = vmatpush1.msra.mxu0 0.0
        %3965 = vmatprep.mubr.f32.mxu0 0.0
        %3966 = vmatmul.mubr.f32.gmra.mrb[0].mxu0 %v3890
        %v3967 = vpop.f32.mrb[0].mxu0
        %v3968 = vadd.f32 0.0, %v3967
        %v3969 = vpop.f32.mrb[0].mxu0
        %v3970 = vadd.f32 0.0, %v3969
        %3971 = vmatprep.mubr.f32.mxu0 0.0
        %3972 = vmatmul.mubr.f32.gmra.mrb[0].mxu0 %v3893
        %v3973 = vpop.f32.mrb[0].mxu0
        %v3974 = vadd.f32 0.0, %v3973
        %v3975 = vpop.f32.mrb[0].mxu0
        %v3976 = vadd.f32 0.0, %v3975
        %3977 = vdwg.mxu0
        %3978 = vmatprep.subr.mxu0 0.0
        %3979 = vmatpush1.msra.mxu0 %v3899
        %3980 = vmatprep.subr.mxu0 0.0
        %3981 = vmatpush1.msra.mxu0 0.0
        %3982 = vmatprep.subr.mxu0 0.0
        %3983 = vmatpush1.msra.mxu0 0.0
        %3984 = vmatprep.subr.mxu0 0.0
        %3985 = vmatpush1.msra.mxu0 0.0
        %3986 = vmatprep.subr.mxu0 0.0
        %3987 = vmatpush1.msra.mxu0 0.0
        %3988 = vmatprep.subr.mxu0 0.0
        %3989 = vmatpush1.msra.mxu0 0.0
        %3990 = vmatprep.subr.mxu0 0.0
        %3991 = vmatpush1.msra.mxu0 0.0
        %3992 = vmatprep.subr.mxu0 0.0
        %3993 = vmatpush1.msra.mxu0 0.0
        %3994 = vmatprep.subr.mxu0 0.0
        %3995 = vmatpush1.msra.mxu0 0.0
        %3996 = vmatprep.subr.mxu0 0.0
        %3997 = vmatpush1.msra.mxu0 0.0
        %3998 = vmatprep.subr.mxu0 0.0
        %3999 = vmatpush1.msra.mxu0 0.0
        %4000 = vmatprep.subr.mxu0 0.0
        %4001 = vmatpush1.msra.mxu0 0.0
        %4002 = vmatprep.subr.mxu0 0.0
        %4003 = vmatpush1.msra.mxu0 0.0
        %4004 = vmatprep.subr.mxu0 0.0
        %4005 = vmatpush1.msra.mxu0 0.0
        %4006 = vmatprep.subr.mxu0 0.0
        %4007 = vmatpush1.msra.mxu0 0.0
        %4008 = vmatprep.subr.mxu0 0.0
        %4009 = vmatpush1.msra.mxu0 0.0
        %4010 = vmatprep.subr.mxu0 0.0
        %4011 = vmatpush1.msra.mxu0 0.0
        %4012 = vmatprep.subr.mxu0 0.0
        %4013 = vmatpush1.msra.mxu0 0.0
        %4014 = vmatprep.subr.mxu0 0.0
        %4015 = vmatpush1.msra.mxu0 0.0
        %4016 = vmatprep.subr.mxu0 0.0
        %4017 = vmatpush1.msra.mxu0 0.0
        %4018 = vmatprep.subr.mxu0 0.0
        %4019 = vmatpush1.msra.mxu0 0.0
        %4020 = vmatprep.subr.mxu0 0.0
        %4021 = vmatpush1.msra.mxu0 0.0
        %4022 = vmatprep.subr.mxu0 0.0
        %4023 = vmatpush1.msra.mxu0 0.0
        %4024 = vmatprep.subr.mxu0 0.0
        %4025 = vmatpush1.msra.mxu0 0.0
        %4026 = vmatprep.subr.mxu0 0.0
        %4027 = vmatpush1.msra.mxu0 0.0
        %4028 = vmatprep.subr.mxu0 0.0
        %4029 = vmatpush1.msra.mxu0 0.0
        %4030 = vmatprep.subr.mxu0 0.0
        %4031 = vmatpush1.msra.mxu0 0.0
        %4032 = vmatprep.subr.mxu0 0.0
        %4033 = vmatpush1.msra.mxu0 0.0
        %4034 = vmatprep.subr.mxu0 0.0
        %4035 = vmatpush1.msra.mxu0 0.0
        %4036 = vmatprep.subr.mxu0 0.0
        %4037 = vmatpush1.msra.mxu0 0.0
        %4038 = vmatprep.subr.mxu0 0.0
        %4039 = vmatpush1.msra.mxu0 0.0
        %4040 = vmatprep.subr.mxu0 0.0
        %4041 = vmatpush1.msra.mxu0 0.0
        %4042 = vmatprep.mubr.f32.mxu0 0.0
        %4043 = vmatmul.mubr.f32.gmra.mrb[0].mxu0 %v3890
        %v4044 = vpop.f32.mrb[0].mxu0
        %v4045 = vadd.f32 0.0, %v4044
        %v4046 = vpop.f32.mrb[0].mxu0
        %4047 = vmatprep.mubr.f32.mxu0 0.0
        %4048 = vmatmul.mubr.f32.gmra.mrb[0].mxu0 %v3893
        %v4049 = vpop.f32.mrb[0].mxu0
        %v4050 = vadd.f32 0.0, %v4049
        %v4051 = vpop.f32.mrb[0].mxu0
        %4052 = vdwg.mxu0
        %v4053 = vadd.f32 %v3871, %v3968
        %v4054 = vadd.f32 %v3872, %v3970
        %v4055 = vadd.f32 %v3873, %v4045
        %v4056 = vadd.f32 %v3874, %v3974
        %v4057 = vadd.f32 %v3875, %v3976
        %v4058 = vadd.f32 %v3876, %v4050
        %s4059 = scalar_lea.vmem %s1, 304
        %v4060 = vld [vmem:[%s4059] sm:$0xff]
        %v4061 = vld [vmem:[%s4059 + $0x8] sm:$0xff]
        %4062 = vrot.lane.b32.xlu0 %v614, 64
        %v4063 = vpop.permute.xlu0 %4062
        %4064 = vrot.lane.b32.xlu0 %v615, 64
        %v4065 = vpop.permute.xlu0 %4064
        %4066 = vrot.lane.b32.xlu0 %v616, 64
        %v4067 = vpop.permute.xlu0 %4066
        %vm4068 = vcmask 523264
        %v4069 = vsel %vm4068, %v4063, %v4065
        %v4070 = vsel %vm4068, %v4065, %v4067
        %v4072 = vsel %vm635, %v4060, 0
        %v4075 = vsel %vm635, %v4061, 0
        %v4077 = vsel %vm642, %v4069, 0
        %v4079 = vsel %vm642, %v4070, 0
        %v4081 = vsel %vm642, %v4067, 0
        %4083 = vmatprep.subr.mxu0 %v4079
        %4084 = vmatpush1.msra.mxu0 %v4077
        %4085 = vmatprep.subr.mxu0 0.0
        %4086 = vmatpush1.msra.mxu0 0.0
        %4087 = vmatprep.subr.mxu0 0.0
        %4088 = vmatpush1.msra.mxu0 0.0
        %4089 = vmatprep.subr.mxu0 0.0
        %4090 = vmatpush1.msra.mxu0 0.0
        %4091 = vmatprep.subr.mxu0 0.0
        %4092 = vmatpush1.msra.mxu0 0.0
        %4093 = vmatprep.subr.mxu0 0.0
        %4094 = vmatpush1.msra.mxu0 0.0
        %4095 = vmatprep.subr.mxu0 0.0
        %4096 = vmatpush1.msra.mxu0 0.0
        %4097 = vmatprep.subr.mxu0 0.0
        %4098 = vmatpush1.msra.mxu0 0.0
        %4099 = vmatprep.subr.mxu0 0.0
        %4100 = vmatpush1.msra.mxu0 0.0
        %4101 = vmatprep.subr.mxu0 0.0
        %4102 = vmatpush1.msra.mxu0 0.0
        %4103 = vmatprep.subr.mxu0 0.0
        %4104 = vmatpush1.msra.mxu0 0.0
        %4105 = vmatprep.subr.mxu0 0.0
        %4106 = vmatpush1.msra.mxu0 0.0
        %4107 = vmatprep.subr.mxu0 0.0
        %4108 = vmatpush1.msra.mxu0 0.0
        %4109 = vmatprep.subr.mxu0 0.0
        %4110 = vmatpush1.msra.mxu0 0.0
        %4111 = vmatprep.subr.mxu0 0.0
        %4112 = vmatpush1.msra.mxu0 0.0
        %4113 = vmatprep.subr.mxu0 0.0
        %4114 = vmatpush1.msra.mxu0 0.0
        %4115 = vmatprep.subr.mxu0 0.0
        %4116 = vmatpush1.msra.mxu0 0.0
        %4117 = vmatprep.subr.mxu0 0.0
        %4118 = vmatpush1.msra.mxu0 0.0
        %4119 = vmatprep.subr.mxu0 0.0
        %4120 = vmatpush1.msra.mxu0 0.0
        %4121 = vmatprep.subr.mxu0 0.0
        %4122 = vmatpush1.msra.mxu0 0.0
        %4123 = vmatprep.subr.mxu0 0.0
        %4124 = vmatpush1.msra.mxu0 0.0
        %4125 = vmatprep.subr.mxu0 0.0
        %4126 = vmatpush1.msra.mxu0 0.0
        %4127 = vmatprep.subr.mxu0 0.0
        %4128 = vmatpush1.msra.mxu0 0.0
        %4129 = vmatprep.subr.mxu0 0.0
        %4130 = vmatpush1.msra.mxu0 0.0
        %4131 = vmatprep.subr.mxu0 0.0
        %4132 = vmatpush1.msra.mxu0 0.0
        %4133 = vmatprep.subr.mxu0 0.0
        %4134 = vmatpush1.msra.mxu0 0.0
        %4135 = vmatprep.subr.mxu0 0.0
        %4136 = vmatpush1.msra.mxu0 0.0
        %4137 = vmatprep.subr.mxu0 0.0
        %4138 = vmatpush1.msra.mxu0 0.0
        %4139 = vmatprep.subr.mxu0 0.0
        %4140 = vmatpush1.msra.mxu0 0.0
        %4141 = vmatprep.subr.mxu0 0.0
        %4142 = vmatpush1.msra.mxu0 0.0
        %4143 = vmatprep.subr.mxu0 0.0
        %4144 = vmatpush1.msra.mxu0 0.0
        %4145 = vmatprep.subr.mxu0 0.0
        %4146 = vmatpush1.msra.mxu0 0.0
        %4147 = vmatprep.mubr.f32.mxu0 0.0
        %4148 = vmatmul.mubr.f32.gmra.mrb[0].mxu0 %v4072
        %v4149 = vpop.f32.mrb[0].mxu0
        %v4150 = vadd.f32 0.0, %v4149
        %v4151 = vpop.f32.mrb[0].mxu0
        %v4152 = vadd.f32 0.0, %v4151
        %4153 = vmatprep.mubr.f32.mxu0 0.0
        %4154 = vmatmul.mubr.f32.gmra.mrb[0].mxu0 %v4075
        %v4155 = vpop.f32.mrb[0].mxu0
        %v4156 = vadd.f32 0.0, %v4155
        %v4157 = vpop.f32.mrb[0].mxu0
        %v4158 = vadd.f32 0.0, %v4157
        %4159 = vdwg.mxu0
        %4160 = vmatprep.subr.mxu0 0.0
        %4161 = vmatpush1.msra.mxu0 %v4081
        %4162 = vmatprep.subr.mxu0 0.0
        %4163 = vmatpush1.msra.mxu0 0.0
        %4164 = vmatprep.subr.mxu0 0.0
        %4165 = vmatpush1.msra.mxu0 0.0
        %4166 = vmatprep.subr.mxu0 0.0
        %4167 = vmatpush1.msra.mxu0 0.0
        %4168 = vmatprep.subr.mxu0 0.0
        %4169 = vmatpush1.msra.mxu0 0.0
        %4170 = vmatprep.subr.mxu0 0.0
        %4171 = vmatpush1.msra.mxu0 0.0
        %4172 = vmatprep.subr.mxu0 0.0
        %4173 = vmatpush1.msra.mxu0 0.0
        %4174 = vmatprep.subr.mxu0 0.0
        %4175 = vmatpush1.msra.mxu0 0.0
        %4176 = vmatprep.subr.mxu0 0.0
        %4177 = vmatpush1.msra.mxu0 0.0
        %4178 = vmatprep.subr.mxu0 0.0
        %4179 = vmatpush1.msra.mxu0 0.0
        %4180 = vmatprep.subr.mxu0 0.0
        %4181 = vmatpush1.msra.mxu0 0.0
        %4182 = vmatprep.subr.mxu0 0.0
        %4183 = vmatpush1.msra.mxu0 0.0
        %4184 = vmatprep.subr.mxu0 0.0
        %4185 = vmatpush1.msra.mxu0 0.0
        %4186 = vmatprep.subr.mxu0 0.0
        %4187 = vmatpush1.msra.mxu0 0.0
        %4188 = vmatprep.subr.mxu0 0.0
        %4189 = vmatpush1.msra.mxu0 0.0
        %4190 = vmatprep.subr.mxu0 0.0
        %4191 = vmatpush1.msra.mxu0 0.0
        %4192 = vmatprep.subr.mxu0 0.0
        %4193 = vmatpush1.msra.mxu0 0.0
        %4194 = vmatprep.subr.mxu0 0.0
        %4195 = vmatpush1.msra.mxu0 0.0
        %4196 = vmatprep.subr.mxu0 0.0
        %4197 = vmatpush1.msra.mxu0 0.0
        %4198 = vmatprep.subr.mxu0 0.0
        %4199 = vmatpush1.msra.mxu0 0.0
        %4200 = vmatprep.subr.mxu0 0.0
        %4201 = vmatpush1.msra.mxu0 0.0
        %4202 = vmatprep.subr.mxu0 0.0
        %4203 = vmatpush1.msra.mxu0 0.0
        %4204 = vmatprep.subr.mxu0 0.0
        %4205 = vmatpush1.msra.mxu0 0.0
        %4206 = vmatprep.subr.mxu0 0.0
        %4207 = vmatpush1.msra.mxu0 0.0
        %4208 = vmatprep.subr.mxu0 0.0
        %4209 = vmatpush1.msra.mxu0 0.0
        %4210 = vmatprep.subr.mxu0 0.0
        %4211 = vmatpush1.msra.mxu0 0.0
        %4212 = vmatprep.subr.mxu0 0.0
        %4213 = vmatpush1.msra.mxu0 0.0
        %4214 = vmatprep.subr.mxu0 0.0
        %4215 = vmatpush1.msra.mxu0 0.0
        %4216 = vmatprep.subr.mxu0 0.0
        %4217 = vmatpush1.msra.mxu0 0.0
        %4218 = vmatprep.subr.mxu0 0.0
        %4219 = vmatpush1.msra.mxu0 0.0
        %4220 = vmatprep.subr.mxu0 0.0
        %4221 = vmatpush1.msra.mxu0 0.0
        %4222 = vmatprep.subr.mxu0 0.0
        %4223 = vmatpush1.msra.mxu0 0.0
        %4224 = vmatprep.mubr.f32.mxu0 0.0
        %4225 = vmatmul.mubr.f32.gmra.mrb[0].mxu0 %v4072
        %v4226 = vpop.f32.mrb[0].mxu0
        %v4227 = vadd.f32 0.0, %v4226
        %v4228 = vpop.f32.mrb[0].mxu0
        %4229 = vmatprep.mubr.f32.mxu0 0.0
        %4230 = vmatmul.mubr.f32.gmra.mrb[0].mxu0 %v4075
        %v4231 = vpop.f32.mrb[0].mxu0
        %v4232 = vadd.f32 0.0, %v4231
        %v4233 = vpop.f32.mrb[0].mxu0
        %4234 = vdwg.mxu0
        %v4235 = vadd.f32 %v4053, %v4150
        %v4236 = vadd.f32 %v4054, %v4152
        %v4237 = vadd.f32 %v4055, %v4227
        %v4238 = vadd.f32 %v4056, %v4156
        %v4239 = vadd.f32 %v4057, %v4158
        %v4240 = vadd.f32 %v4058, %v4232
        %s4241 = scalar_lea.vmem %s1, 320
        %v4242 = vld [vmem:[%s4241] sm:$0xff]
        %v4243 = vld [vmem:[%s4241 + $0x8] sm:$0xff]
        %4245 = vrot.lane.b32.xlu0 %v614, 48
        %v4246 = vpop.permute.xlu0 %4245
        %4247 = vrot.lane.b32.xlu0 %v615, 48
        %v4248 = vpop.permute.xlu0 %4247
        %4249 = vrot.lane.b32.xlu0 %v616, 48
        %v4250 = vpop.permute.xlu0 %4249
        %4251 = vrot.lane.b32.xlu0 %v617, 48
        %v4252 = vpop.permute.xlu0 %4251
        %vm4253 = vcmask 392192
        %v4254 = vsel %vm4253, %v4246, %v4248
        %v4255 = vsel %vm4253, %v4248, %v4250
        %v4256 = vsel %vm4253, %v4250, %v4252
        %v4258 = vsel %vm635, %v4242, 0
        %v4261 = vsel %vm635, %v4243, 0
        %v4263 = vsel %vm642, %v4254, 0
        %v4265 = vsel %vm642, %v4255, 0
        %v4267 = vsel %vm642, %v4256, 0
        %4269 = vmatprep.subr.mxu0 %v4265
        %4270 = vmatpush1.msra.mxu0 %v4263
        %4271 = vmatprep.subr.mxu0 0.0
        %4272 = vmatpush1.msra.mxu0 0.0
        %4273 = vmatprep.subr.mxu0 0.0
        %4274 = vmatpush1.msra.mxu0 0.0
        %4275 = vmatprep.subr.mxu0 0.0
        %4276 = vmatpush1.msra.mxu0 0.0
        %4277 = vmatprep.subr.mxu0 0.0
        %4278 = vmatpush1.msra.mxu0 0.0
        %4279 = vmatprep.subr.mxu0 0.0
        %4280 = vmatpush1.msra.mxu0 0.0
        %4281 = vmatprep.subr.mxu0 0.0
        %4282 = vmatpush1.msra.mxu0 0.0
        %4283 = vmatprep.subr.mxu0 0.0
        %4284 = vmatpush1.msra.mxu0 0.0
        %4285 = vmatprep.subr.mxu0 0.0
        %4286 = vmatpush1.msra.mxu0 0.0
        %4287 = vmatprep.subr.mxu0 0.0
        %4288 = vmatpush1.msra.mxu0 0.0
        %4289 = vmatprep.subr.mxu0 0.0
        %4290 = vmatpush1.msra.mxu0 0.0
        %4291 = vmatprep.subr.mxu0 0.0
        %4292 = vmatpush1.msra.mxu0 0.0
        %4293 = vmatprep.subr.mxu0 0.0
        %4294 = vmatpush1.msra.mxu0 0.0
        %4295 = vmatprep.subr.mxu0 0.0
        %4296 = vmatpush1.msra.mxu0 0.0
        %4297 = vmatprep.subr.mxu0 0.0
        %4298 = vmatpush1.msra.mxu0 0.0
        %4299 = vmatprep.subr.mxu0 0.0
        %4300 = vmatpush1.msra.mxu0 0.0
        %4301 = vmatprep.subr.mxu0 0.0
        %4302 = vmatpush1.msra.mxu0 0.0
        %4303 = vmatprep.subr.mxu0 0.0
        %4304 = vmatpush1.msra.mxu0 0.0
        %4305 = vmatprep.subr.mxu0 0.0
        %4306 = vmatpush1.msra.mxu0 0.0
        %4307 = vmatprep.subr.mxu0 0.0
        %4308 = vmatpush1.msra.mxu0 0.0
        %4309 = vmatprep.subr.mxu0 0.0
        %4310 = vmatpush1.msra.mxu0 0.0
        %4311 = vmatprep.subr.mxu0 0.0
        %4312 = vmatpush1.msra.mxu0 0.0
        %4313 = vmatprep.subr.mxu0 0.0
        %4314 = vmatpush1.msra.mxu0 0.0
        %4315 = vmatprep.subr.mxu0 0.0
        %4316 = vmatpush1.msra.mxu0 0.0
        %4317 = vmatprep.subr.mxu0 0.0
        %4318 = vmatpush1.msra.mxu0 0.0
        %4319 = vmatprep.subr.mxu0 0.0
        %4320 = vmatpush1.msra.mxu0 0.0
        %4321 = vmatprep.subr.mxu0 0.0
        %4322 = vmatpush1.msra.mxu0 0.0
        %4323 = vmatprep.subr.mxu0 0.0
        %4324 = vmatpush1.msra.mxu0 0.0
        %4325 = vmatprep.subr.mxu0 0.0
        %4326 = vmatpush1.msra.mxu0 0.0
        %4327 = vmatprep.subr.mxu0 0.0
        %4328 = vmatpush1.msra.mxu0 0.0
        %4329 = vmatprep.subr.mxu0 0.0
        %4330 = vmatpush1.msra.mxu0 0.0
        %4331 = vmatprep.subr.mxu0 0.0
        %4332 = vmatpush1.msra.mxu0 0.0
        %4333 = vmatprep.mubr.f32.mxu0 0.0
        %4334 = vmatmul.mubr.f32.gmra.mrb[0].mxu0 %v4258
        %v4335 = vpop.f32.mrb[0].mxu0
        %v4336 = vadd.f32 0.0, %v4335
        %v4337 = vpop.f32.mrb[0].mxu0
        %v4338 = vadd.f32 0.0, %v4337
        %4339 = vmatprep.mubr.f32.mxu0 0.0
        %4340 = vmatmul.mubr.f32.gmra.mrb[0].mxu0 %v4261
        %v4341 = vpop.f32.mrb[0].mxu0
        %v4342 = vadd.f32 0.0, %v4341
        %v4343 = vpop.f32.mrb[0].mxu0
        %v4344 = vadd.f32 0.0, %v4343
        %4345 = vdwg.mxu0
        %4346 = vmatprep.subr.mxu0 0.0
        %4347 = vmatpush1.msra.mxu0 %v4267
        %4348 = vmatprep.subr.mxu0 0.0
        %4349 = vmatpush1.msra.mxu0 0.0
        %4350 = vmatprep.subr.mxu0 0.0
        %4351 = vmatpush1.msra.mxu0 0.0
        %4352 = vmatprep.subr.mxu0 0.0
        %4353 = vmatpush1.msra.mxu0 0.0
        %4354 = vmatprep.subr.mxu0 0.0
        %4355 = vmatpush1.msra.mxu0 0.0
        %4356 = vmatprep.subr.mxu0 0.0
        %4357 = vmatpush1.msra.mxu0 0.0
        %4358 = vmatprep.subr.mxu0 0.0
        %4359 = vmatpush1.msra.mxu0 0.0
        %4360 = vmatprep.subr.mxu0 0.0
        %4361 = vmatpush1.msra.mxu0 0.0
        %4362 = vmatprep.subr.mxu0 0.0
        %4363 = vmatpush1.msra.mxu0 0.0
        %4364 = vmatprep.subr.mxu0 0.0
        %4365 = vmatpush1.msra.mxu0 0.0
        %4366 = vmatprep.subr.mxu0 0.0
        %4367 = vmatpush1.msra.mxu0 0.0
        %4368 = vmatprep.subr.mxu0 0.0
        %4369 = vmatpush1.msra.mxu0 0.0
        %4370 = vmatprep.subr.mxu0 0.0
        %4371 = vmatpush1.msra.mxu0 0.0
        %4372 = vmatprep.subr.mxu0 0.0
        %4373 = vmatpush1.msra.mxu0 0.0
        %4374 = vmatprep.subr.mxu0 0.0
        %4375 = vmatpush1.msra.mxu0 0.0
        %4376 = vmatprep.subr.mxu0 0.0
        %4377 = vmatpush1.msra.mxu0 0.0
        %4378 = vmatprep.subr.mxu0 0.0
        %4379 = vmatpush1.msra.mxu0 0.0
        %4380 = vmatprep.subr.mxu0 0.0
        %4381 = vmatpush1.msra.mxu0 0.0
        %4382 = vmatprep.subr.mxu0 0.0
        %4383 = vmatpush1.msra.mxu0 0.0
        %4384 = vmatprep.subr.mxu0 0.0
        %4385 = vmatpush1.msra.mxu0 0.0
        %4386 = vmatprep.subr.mxu0 0.0
        %4387 = vmatpush1.msra.mxu0 0.0
        %4388 = vmatprep.subr.mxu0 0.0
        %4389 = vmatpush1.msra.mxu0 0.0
        %4390 = vmatprep.subr.mxu0 0.0
        %4391 = vmatpush1.msra.mxu0 0.0
        %4392 = vmatprep.subr.mxu0 0.0
        %4393 = vmatpush1.msra.mxu0 0.0
        %4394 = vmatprep.subr.mxu0 0.0
        %4395 = vmatpush1.msra.mxu0 0.0
        %4396 = vmatprep.subr.mxu0 0.0
        %4397 = vmatpush1.msra.mxu0 0.0
        %4398 = vmatprep.subr.mxu0 0.0
        %4399 = vmatpush1.msra.mxu0 0.0
        %4400 = vmatprep.subr.mxu0 0.0
        %4401 = vmatpush1.msra.mxu0 0.0
        %4402 = vmatprep.subr.mxu0 0.0
        %4403 = vmatpush1.msra.mxu0 0.0
        %4404 = vmatprep.subr.mxu0 0.0
        %4405 = vmatpush1.msra.mxu0 0.0
        %4406 = vmatprep.subr.mxu0 0.0
        %4407 = vmatpush1.msra.mxu0 0.0
        %4408 = vmatprep.subr.mxu0 0.0
        %4409 = vmatpush1.msra.mxu0 0.0
        %4410 = vmatprep.mubr.f32.mxu0 0.0
        %4411 = vmatmul.mubr.f32.gmra.mrb[0].mxu0 %v4258
        %v4412 = vpop.f32.mrb[0].mxu0
        %v4413 = vadd.f32 0.0, %v4412
        %v4414 = vpop.f32.mrb[0].mxu0
        %4415 = vmatprep.mubr.f32.mxu0 0.0
        %4416 = vmatmul.mubr.f32.gmra.mrb[0].mxu0 %v4261
        %v4417 = vpop.f32.mrb[0].mxu0
        %v4418 = vadd.f32 0.0, %v4417
        %v4419 = vpop.f32.mrb[0].mxu0
        %4420 = vdwg.mxu0
        %v4421 = vadd.f32 %v4235, %v4336
        %v4422 = vadd.f32 %v4236, %v4338
        %v4423 = vadd.f32 %v4237, %v4413
        %v4424 = vadd.f32 %v4238, %v4342
        %v4425 = vadd.f32 %v4239, %v4344
        %v4426 = vadd.f32 %v4240, %v4418
        %s4427 = scalar_lea.vmem %s1, 336
        %v4428 = vld [vmem:[%s4427] sm:$0xff]
        %v4429 = vld [vmem:[%s4427 + $0x8] sm:$0xff]
        %4430 = vrot.lane.b32.xlu0 %v614, 47
        %v4431 = vpop.permute.xlu0 %4430
        %4432 = vrot.lane.b32.xlu0 %v615, 47
        %v4433 = vpop.permute.xlu0 %4432
        %4434 = vrot.lane.b32.xlu0 %v616, 47
        %v4435 = vpop.permute.xlu0 %4434
        %4436 = vrot.lane.b32.xlu0 %v617, 47
        %v4437 = vpop.permute.xlu0 %4436
        %vm4438 = vcmask 384000
        %v4439 = vsel %vm4438, %v4431, %v4433
        %v4440 = vsel %vm4438, %v4433, %v4435
        %v4441 = vsel %vm4438, %v4435, %v4437
        %v4443 = vsel %vm635, %v4428, 0
        %v4446 = vsel %vm635, %v4429, 0
        %v4448 = vsel %vm642, %v4439, 0
        %v4450 = vsel %vm642, %v4440, 0
        %v4452 = vsel %vm642, %v4441, 0
        %4454 = vmatprep.subr.mxu0 %v4450
        %4455 = vmatpush1.msra.mxu0 %v4448
        %4456 = vmatprep.subr.mxu0 0.0
        %4457 = vmatpush1.msra.mxu0 0.0
        %4458 = vmatprep.subr.mxu0 0.0
        %4459 = vmatpush1.msra.mxu0 0.0
        %4460 = vmatprep.subr.mxu0 0.0
        %4461 = vmatpush1.msra.mxu0 0.0
        %4462 = vmatprep.subr.mxu0 0.0
        %4463 = vmatpush1.msra.mxu0 0.0
        %4464 = vmatprep.subr.mxu0 0.0
        %4465 = vmatpush1.msra.mxu0 0.0
        %4466 = vmatprep.subr.mxu0 0.0
        %4467 = vmatpush1.msra.mxu0 0.0
        %4468 = vmatprep.subr.mxu0 0.0
        %4469 = vmatpush1.msra.mxu0 0.0
        %4470 = vmatprep.subr.mxu0 0.0
        %4471 = vmatpush1.msra.mxu0 0.0
        %4472 = vmatprep.subr.mxu0 0.0
        %4473 = vmatpush1.msra.mxu0 0.0
        %4474 = vmatprep.subr.mxu0 0.0
        %4475 = vmatpush1.msra.mxu0 0.0
        %4476 = vmatprep.subr.mxu0 0.0
        %4477 = vmatpush1.msra.mxu0 0.0
        %4478 = vmatprep.subr.mxu0 0.0
        %4479 = vmatpush1.msra.mxu0 0.0
        %4480 = vmatprep.subr.mxu0 0.0
        %4481 = vmatpush1.msra.mxu0 0.0
        %4482 = vmatprep.subr.mxu0 0.0
        %4483 = vmatpush1.msra.mxu0 0.0
        %4484 = vmatprep.subr.mxu0 0.0
        %4485 = vmatpush1.msra.mxu0 0.0
        %4486 = vmatprep.subr.mxu0 0.0
        %4487 = vmatpush1.msra.mxu0 0.0
        %4488 = vmatprep.subr.mxu0 0.0
        %4489 = vmatpush1.msra.mxu0 0.0
        %4490 = vmatprep.subr.mxu0 0.0
        %4491 = vmatpush1.msra.mxu0 0.0
        %4492 = vmatprep.subr.mxu0 0.0
        %4493 = vmatpush1.msra.mxu0 0.0
        %4494 = vmatprep.subr.mxu0 0.0
        %4495 = vmatpush1.msra.mxu0 0.0
        %4496 = vmatprep.subr.mxu0 0.0
        %4497 = vmatpush1.msra.mxu0 0.0
        %4498 = vmatprep.subr.mxu0 0.0
        %4499 = vmatpush1.msra.mxu0 0.0
        %4500 = vmatprep.subr.mxu0 0.0
        %4501 = vmatpush1.msra.mxu0 0.0
        %4502 = vmatprep.subr.mxu0 0.0
        %4503 = vmatpush1.msra.mxu0 0.0
        %4504 = vmatprep.subr.mxu0 0.0
        %4505 = vmatpush1.msra.mxu0 0.0
        %4506 = vmatprep.subr.mxu0 0.0
        %4507 = vmatpush1.msra.mxu0 0.0
        %4508 = vmatprep.subr.mxu0 0.0
        %4509 = vmatpush1.msra.mxu0 0.0
        %4510 = vmatprep.subr.mxu0 0.0
        %4511 = vmatpush1.msra.mxu0 0.0
        %4512 = vmatprep.subr.mxu0 0.0
        %4513 = vmatpush1.msra.mxu0 0.0
        %4514 = vmatprep.subr.mxu0 0.0
        %4515 = vmatpush1.msra.mxu0 0.0
        %4516 = vmatprep.subr.mxu0 0.0
        %4517 = vmatpush1.msra.mxu0 0.0
        %4518 = vmatprep.mubr.f32.mxu0 0.0
        %4519 = vmatmul.mubr.f32.gmra.mrb[0].mxu0 %v4443
        %v4520 = vpop.f32.mrb[0].mxu0
        %v4521 = vadd.f32 0.0, %v4520
        %v4522 = vpop.f32.mrb[0].mxu0
        %v4523 = vadd.f32 0.0, %v4522
        %4524 = vmatprep.mubr.f32.mxu0 0.0
        %4525 = vmatmul.mubr.f32.gmra.mrb[0].mxu0 %v4446
        %v4526 = vpop.f32.mrb[0].mxu0
        %v4527 = vadd.f32 0.0, %v4526
        %v4528 = vpop.f32.mrb[0].mxu0
        %v4529 = vadd.f32 0.0, %v4528
        %4530 = vdwg.mxu0
        %4531 = vmatprep.subr.mxu0 0.0
        %4532 = vmatpush1.msra.mxu0 %v4452
        %4533 = vmatprep.subr.mxu0 0.0
        %4534 = vmatpush1.msra.mxu0 0.0
        %4535 = vmatprep.subr.mxu0 0.0
        %4536 = vmatpush1.msra.mxu0 0.0
        %4537 = vmatprep.subr.mxu0 0.0
        %4538 = vmatpush1.msra.mxu0 0.0
        %4539 = vmatprep.subr.mxu0 0.0
        %4540 = vmatpush1.msra.mxu0 0.0
        %4541 = vmatprep.subr.mxu0 0.0
        %4542 = vmatpush1.msra.mxu0 0.0
        %4543 = vmatprep.subr.mxu0 0.0
        %4544 = vmatpush1.msra.mxu0 0.0
        %4545 = vmatprep.subr.mxu0 0.0
        %4546 = vmatpush1.msra.mxu0 0.0
        %4547 = vmatprep.subr.mxu0 0.0
        %4548 = vmatpush1.msra.mxu0 0.0
        %4549 = vmatprep.subr.mxu0 0.0
        %4550 = vmatpush1.msra.mxu0 0.0
        %4551 = vmatprep.subr.mxu0 0.0
        %4552 = vmatpush1.msra.mxu0 0.0
        %4553 = vmatprep.subr.mxu0 0.0
        %4554 = vmatpush1.msra.mxu0 0.0
        %4555 = vmatprep.subr.mxu0 0.0
        %4556 = vmatpush1.msra.mxu0 0.0
        %4557 = vmatprep.subr.mxu0 0.0
        %4558 = vmatpush1.msra.mxu0 0.0
        %4559 = vmatprep.subr.mxu0 0.0
        %4560 = vmatpush1.msra.mxu0 0.0
        %4561 = vmatprep.subr.mxu0 0.0
        %4562 = vmatpush1.msra.mxu0 0.0
        %4563 = vmatprep.subr.mxu0 0.0
        %4564 = vmatpush1.msra.mxu0 0.0
        %4565 = vmatprep.subr.mxu0 0.0
        %4566 = vmatpush1.msra.mxu0 0.0
        %4567 = vmatprep.subr.mxu0 0.0
        %4568 = vmatpush1.msra.mxu0 0.0
        %4569 = vmatprep.subr.mxu0 0.0
        %4570 = vmatpush1.msra.mxu0 0.0
        %4571 = vmatprep.subr.mxu0 0.0
        %4572 = vmatpush1.msra.mxu0 0.0
        %4573 = vmatprep.subr.mxu0 0.0
        %4574 = vmatpush1.msra.mxu0 0.0
        %4575 = vmatprep.subr.mxu0 0.0
        %4576 = vmatpush1.msra.mxu0 0.0
        %4577 = vmatprep.subr.mxu0 0.0
        %4578 = vmatpush1.msra.mxu0 0.0
        %4579 = vmatprep.subr.mxu0 0.0
        %4580 = vmatpush1.msra.mxu0 0.0
        %4581 = vmatprep.subr.mxu0 0.0
        %4582 = vmatpush1.msra.mxu0 0.0
        %4583 = vmatprep.subr.mxu0 0.0
        %4584 = vmatpush1.msra.mxu0 0.0
        %4585 = vmatprep.subr.mxu0 0.0
        %4586 = vmatpush1.msra.mxu0 0.0
        %4587 = vmatprep.subr.mxu0 0.0
        %4588 = vmatpush1.msra.mxu0 0.0
        %4589 = vmatprep.subr.mxu0 0.0
        %4590 = vmatpush1.msra.mxu0 0.0
        %4591 = vmatprep.subr.mxu0 0.0
        %4592 = vmatpush1.msra.mxu0 0.0
        %4593 = vmatprep.subr.mxu0 0.0
        %4594 = vmatpush1.msra.mxu0 0.0
        %4595 = vmatprep.mubr.f32.mxu0 0.0
        %4596 = vmatmul.mubr.f32.gmra.mrb[0].mxu0 %v4443
        %v4597 = vpop.f32.mrb[0].mxu0
        %v4598 = vadd.f32 0.0, %v4597
        %v4599 = vpop.f32.mrb[0].mxu0
        %4600 = vmatprep.mubr.f32.mxu0 0.0
        %4601 = vmatmul.mubr.f32.gmra.mrb[0].mxu0 %v4446
        %v4602 = vpop.f32.mrb[0].mxu0
        %v4603 = vadd.f32 0.0, %v4602
        %v4604 = vpop.f32.mrb[0].mxu0
        %4605 = vdwg.mxu0
        %v4606 = vadd.f32 %v4421, %v4521
        %v4607 = vadd.f32 %v4422, %v4523
        %v4608 = vadd.f32 %v4423, %v4598
        %v4609 = vadd.f32 %v4424, %v4527
        %v4610 = vadd.f32 %v4425, %v4529
        %v4611 = vadd.f32 %v4426, %v4603
        %s4612 = scalar_lea.vmem %s1, 352
        %v4613 = vld [vmem:[%s4612] sm:$0xff]
        %v4614 = vld [vmem:[%s4612 + $0x8] sm:$0xff]
        %4615 = vrot.lane.b32.xlu0 %v614, 46
        %v4616 = vpop.permute.xlu0 %4615
        %4617 = vrot.lane.b32.xlu0 %v615, 46
        %v4618 = vpop.permute.xlu0 %4617
        %4619 = vrot.lane.b32.xlu0 %v616, 46
        %v4620 = vpop.permute.xlu0 %4619
        %4621 = vrot.lane.b32.xlu0 %v617, 46
        %v4622 = vpop.permute.xlu0 %4621
        %vm4623 = vcmask 375808
        %v4624 = vsel %vm4623, %v4616, %v4618
        %v4625 = vsel %vm4623, %v4618, %v4620
        %v4626 = vsel %vm4623, %v4620, %v4622
        %v4628 = vsel %vm635, %v4613, 0
        %v4631 = vsel %vm635, %v4614, 0
        %v4633 = vsel %vm642, %v4624, 0
        %v4635 = vsel %vm642, %v4625, 0
        %v4637 = vsel %vm642, %v4626, 0
        %4639 = vmatprep.subr.mxu0 %v4635
        %4640 = vmatpush1.msra.mxu0 %v4633
        %4641 = vmatprep.subr.mxu0 0.0
        %4642 = vmatpush1.msra.mxu0 0.0
        %4643 = vmatprep.subr.mxu0 0.0
        %4644 = vmatpush1.msra.mxu0 0.0
        %4645 = vmatprep.subr.mxu0 0.0
        %4646 = vmatpush1.msra.mxu0 0.0
        %4647 = vmatprep.subr.mxu0 0.0
        %4648 = vmatpush1.msra.mxu0 0.0
        %4649 = vmatprep.subr.mxu0 0.0
        %4650 = vmatpush1.msra.mxu0 0.0
        %4651 = vmatprep.subr.mxu0 0.0
        %4652 = vmatpush1.msra.mxu0 0.0
        %4653 = vmatprep.subr.mxu0 0.0
        %4654 = vmatpush1.msra.mxu0 0.0
        %4655 = vmatprep.subr.mxu0 0.0
        %4656 = vmatpush1.msra.mxu0 0.0
        %4657 = vmatprep.subr.mxu0 0.0
        %4658 = vmatpush1.msra.mxu0 0.0
        %4659 = vmatprep.subr.mxu0 0.0
        %4660 = vmatpush1.msra.mxu0 0.0
        %4661 = vmatprep.subr.mxu0 0.0
        %4662 = vmatpush1.msra.mxu0 0.0
        %4663 = vmatprep.subr.mxu0 0.0
        %4664 = vmatpush1.msra.mxu0 0.0
        %4665 = vmatprep.subr.mxu0 0.0
        %4666 = vmatpush1.msra.mxu0 0.0
        %4667 = vmatprep.subr.mxu0 0.0
        %4668 = vmatpush1.msra.mxu0 0.0
        %4669 = vmatprep.subr.mxu0 0.0
        %4670 = vmatpush1.msra.mxu0 0.0
        %4671 = vmatprep.subr.mxu0 0.0
        %4672 = vmatpush1.msra.mxu0 0.0
        %4673 = vmatprep.subr.mxu0 0.0
        %4674 = vmatpush1.msra.mxu0 0.0
        %4675 = vmatprep.subr.mxu0 0.0
        %4676 = vmatpush1.msra.mxu0 0.0
        %4677 = vmatprep.subr.mxu0 0.0
        %4678 = vmatpush1.msra.mxu0 0.0
        %4679 = vmatprep.subr.mxu0 0.0
        %4680 = vmatpush1.msra.mxu0 0.0
        %4681 = vmatprep.subr.mxu0 0.0
        %4682 = vmatpush1.msra.mxu0 0.0
        %4683 = vmatprep.subr.mxu0 0.0
        %4684 = vmatpush1.msra.mxu0 0.0
        %4685 = vmatprep.subr.mxu0 0.0
        %4686 = vmatpush1.msra.mxu0 0.0
        %4687 = vmatprep.subr.mxu0 0.0
        %4688 = vmatpush1.msra.mxu0 0.0
        %4689 = vmatprep.subr.mxu0 0.0
        %4690 = vmatpush1.msra.mxu0 0.0
        %4691 = vmatprep.subr.mxu0 0.0
        %4692 = vmatpush1.msra.mxu0 0.0
        %4693 = vmatprep.subr.mxu0 0.0
        %4694 = vmatpush1.msra.mxu0 0.0
        %4695 = vmatprep.subr.mxu0 0.0
        %4696 = vmatpush1.msra.mxu0 0.0
        %4697 = vmatprep.subr.mxu0 0.0
        %4698 = vmatpush1.msra.mxu0 0.0
        %4699 = vmatprep.subr.mxu0 0.0
        %4700 = vmatpush1.msra.mxu0 0.0
        %4701 = vmatprep.subr.mxu0 0.0
        %4702 = vmatpush1.msra.mxu0 0.0
        %4703 = vmatprep.mubr.f32.mxu0 0.0
        %4704 = vmatmul.mubr.f32.gmra.mrb[0].mxu0 %v4628
        %v4705 = vpop.f32.mrb[0].mxu0
        %v4706 = vadd.f32 0.0, %v4705
        %v4707 = vpop.f32.mrb[0].mxu0
        %v4708 = vadd.f32 0.0, %v4707
        %4709 = vmatprep.mubr.f32.mxu0 0.0
        %4710 = vmatmul.mubr.f32.gmra.mrb[0].mxu0 %v4631
        %v4711 = vpop.f32.mrb[0].mxu0
        %v4712 = vadd.f32 0.0, %v4711
        %v4713 = vpop.f32.mrb[0].mxu0
        %v4714 = vadd.f32 0.0, %v4713
        %4715 = vdwg.mxu0
        %4716 = vmatprep.subr.mxu0 0.0
        %4717 = vmatpush1.msra.mxu0 %v4637
        %4718 = vmatprep.subr.mxu0 0.0
        %4719 = vmatpush1.msra.mxu0 0.0
        %4720 = vmatprep.subr.mxu0 0.0
        %4721 = vmatpush1.msra.mxu0 0.0
        %4722 = vmatprep.subr.mxu0 0.0
        %4723 = vmatpush1.msra.mxu0 0.0
        %4724 = vmatprep.subr.mxu0 0.0
        %4725 = vmatpush1.msra.mxu0 0.0
        %4726 = vmatprep.subr.mxu0 0.0
        %4727 = vmatpush1.msra.mxu0 0.0
        %4728 = vmatprep.subr.mxu0 0.0
        %4729 = vmatpush1.msra.mxu0 0.0
        %4730 = vmatprep.subr.mxu0 0.0
        %4731 = vmatpush1.msra.mxu0 0.0
        %4732 = vmatprep.subr.mxu0 0.0
        %4733 = vmatpush1.msra.mxu0 0.0
        %4734 = vmatprep.subr.mxu0 0.0
        %4735 = vmatpush1.msra.mxu0 0.0
        %4736 = vmatprep.subr.mxu0 0.0
        %4737 = vmatpush1.msra.mxu0 0.0
        %4738 = vmatprep.subr.mxu0 0.0
        %4739 = vmatpush1.msra.mxu0 0.0
        %4740 = vmatprep.subr.mxu0 0.0
        %4741 = vmatpush1.msra.mxu0 0.0
        %4742 = vmatprep.subr.mxu0 0.0
        %4743 = vmatpush1.msra.mxu0 0.0
        %4744 = vmatprep.subr.mxu0 0.0
        %4745 = vmatpush1.msra.mxu0 0.0
        %4746 = vmatprep.subr.mxu0 0.0
        %4747 = vmatpush1.msra.mxu0 0.0
        %4748 = vmatprep.subr.mxu0 0.0
        %4749 = vmatpush1.msra.mxu0 0.0
        %4750 = vmatprep.subr.mxu0 0.0
        %4751 = vmatpush1.msra.mxu0 0.0
        %4752 = vmatprep.subr.mxu0 0.0
        %4753 = vmatpush1.msra.mxu0 0.0
        %4754 = vmatprep.subr.mxu0 0.0
        %4755 = vmatpush1.msra.mxu0 0.0
        %4756 = vmatprep.subr.mxu0 0.0
        %4757 = vmatpush1.msra.mxu0 0.0
        %4758 = vmatprep.subr.mxu0 0.0
        %4759 = vmatpush1.msra.mxu0 0.0
        %4760 = vmatprep.subr.mxu0 0.0
        %4761 = vmatpush1.msra.mxu0 0.0
        %4762 = vmatprep.subr.mxu0 0.0
        %4763 = vmatpush1.msra.mxu0 0.0
        %4764 = vmatprep.subr.mxu0 0.0
        %4765 = vmatpush1.msra.mxu0 0.0
        %4766 = vmatprep.subr.mxu0 0.0
        %4767 = vmatpush1.msra.mxu0 0.0
        %4768 = vmatprep.subr.mxu0 0.0
        %4769 = vmatpush1.msra.mxu0 0.0
        %4770 = vmatprep.subr.mxu0 0.0
        %4771 = vmatpush1.msra.mxu0 0.0
        %4772 = vmatprep.subr.mxu0 0.0
        %4773 = vmatpush1.msra.mxu0 0.0
        %4774 = vmatprep.subr.mxu0 0.0
        %4775 = vmatpush1.msra.mxu0 0.0
        %4776 = vmatprep.subr.mxu0 0.0
        %4777 = vmatpush1.msra.mxu0 0.0
        %4778 = vmatprep.subr.mxu0 0.0
        %4779 = vmatpush1.msra.mxu0 0.0
        %4780 = vmatprep.mubr.f32.mxu0 0.0
        %4781 = vmatmul.mubr.f32.gmra.mrb[0].mxu0 %v4628
        %v4782 = vpop.f32.mrb[0].mxu0
        %v4783 = vadd.f32 0.0, %v4782
        %v4784 = vpop.f32.mrb[0].mxu0
        %4785 = vmatprep.mubr.f32.mxu0 0.0
        %4786 = vmatmul.mubr.f32.gmra.mrb[0].mxu0 %v4631
        %v4787 = vpop.f32.mrb[0].mxu0
        %v4788 = vadd.f32 0.0, %v4787
        %v4789 = vpop.f32.mrb[0].mxu0
        %4790 = vdwg.mxu0
        %v4791 = vadd.f32 %v4606, %v4706
        %v4792 = vadd.f32 %v4607, %v4708
        %v4793 = vadd.f32 %v4608, %v4783
        %v4794 = vadd.f32 %v4609, %v4712
        %v4795 = vadd.f32 %v4610, %v4714
        %v4796 = vadd.f32 %v4611, %v4788
        %s4797 = scalar_lea.vmem %s1, 368
        %v4798 = vld [vmem:[%s4797] sm:$0xff]
        %v4799 = vld [vmem:[%s4797 + $0x8] sm:$0xff]
        %4800 = vrot.lane.b32.xlu0 %v614, 45
        %v4801 = vpop.permute.xlu0 %4800
        %4802 = vrot.lane.b32.xlu0 %v615, 45
        %v4803 = vpop.permute.xlu0 %4802
        %4804 = vrot.lane.b32.xlu0 %v616, 45
        %v4805 = vpop.permute.xlu0 %4804
        %4806 = vrot.lane.b32.xlu0 %v617, 45
        %v4807 = vpop.permute.xlu0 %4806
        %vm4808 = vcmask 367616
        %v4809 = vsel %vm4808, %v4801, %v4803
        %v4810 = vsel %vm4808, %v4803, %v4805
        %v4811 = vsel %vm4808, %v4805, %v4807
        %v4813 = vsel %vm635, %v4798, 0
        %v4816 = vsel %vm635, %v4799, 0
        %v4818 = vsel %vm642, %v4809, 0
        %v4820 = vsel %vm642, %v4810, 0
        %v4822 = vsel %vm642, %v4811, 0
        %4824 = vmatprep.subr.mxu0 %v4820
        %4825 = vmatpush1.msra.mxu0 %v4818
        %4826 = vmatprep.subr.mxu0 0.0
        %4827 = vmatpush1.msra.mxu0 0.0
        %4828 = vmatprep.subr.mxu0 0.0
        %4829 = vmatpush1.msra.mxu0 0.0
        %4830 = vmatprep.subr.mxu0 0.0
        %4831 = vmatpush1.msra.mxu0 0.0
        %4832 = vmatprep.subr.mxu0 0.0
        %4833 = vmatpush1.msra.mxu0 0.0
        %4834 = vmatprep.subr.mxu0 0.0
        %4835 = vmatpush1.msra.mxu0 0.0
        %4836 = vmatprep.subr.mxu0 0.0
        %4837 = vmatpush1.msra.mxu0 0.0
        %4838 = vmatprep.subr.mxu0 0.0
        %4839 = vmatpush1.msra.mxu0 0.0
        %4840 = vmatprep.subr.mxu0 0.0
        %4841 = vmatpush1.msra.mxu0 0.0
        %4842 = vmatprep.subr.mxu0 0.0
        %4843 = vmatpush1.msra.mxu0 0.0
        %4844 = vmatprep.subr.mxu0 0.0
        %4845 = vmatpush1.msra.mxu0 0.0
        %4846 = vmatprep.subr.mxu0 0.0
        %4847 = vmatpush1.msra.mxu0 0.0
        %4848 = vmatprep.subr.mxu0 0.0
        %4849 = vmatpush1.msra.mxu0 0.0
        %4850 = vmatprep.subr.mxu0 0.0
        %4851 = vmatpush1.msra.mxu0 0.0
        %4852 = vmatprep.subr.mxu0 0.0
        %4853 = vmatpush1.msra.mxu0 0.0
        %4854 = vmatprep.subr.mxu0 0.0
        %4855 = vmatpush1.msra.mxu0 0.0
        %4856 = vmatprep.subr.mxu0 0.0
        %4857 = vmatpush1.msra.mxu0 0.0
        %4858 = vmatprep.subr.mxu0 0.0
        %4859 = vmatpush1.msra.mxu0 0.0
        %4860 = vmatprep.subr.mxu0 0.0
        %4861 = vmatpush1.msra.mxu0 0.0
        %4862 = vmatprep.subr.mxu0 0.0
        %4863 = vmatpush1.msra.mxu0 0.0
        %4864 = vmatprep.subr.mxu0 0.0
        %4865 = vmatpush1.msra.mxu0 0.0
        %4866 = vmatprep.subr.mxu0 0.0
        %4867 = vmatpush1.msra.mxu0 0.0
        %4868 = vmatprep.subr.mxu0 0.0
        %4869 = vmatpush1.msra.mxu0 0.0
        %4870 = vmatprep.subr.mxu0 0.0
        %4871 = vmatpush1.msra.mxu0 0.0
        %4872 = vmatprep.subr.mxu0 0.0
        %4873 = vmatpush1.msra.mxu0 0.0
        %4874 = vmatprep.subr.mxu0 0.0
        %4875 = vmatpush1.msra.mxu0 0.0
        %4876 = vmatprep.subr.mxu0 0.0
        %4877 = vmatpush1.msra.mxu0 0.0
        %4878 = vmatprep.subr.mxu0 0.0
        %4879 = vmatpush1.msra.mxu0 0.0
        %4880 = vmatprep.subr.mxu0 0.0
        %4881 = vmatpush1.msra.mxu0 0.0
        %4882 = vmatprep.subr.mxu0 0.0
        %4883 = vmatpush1.msra.mxu0 0.0
        %4884 = vmatprep.subr.mxu0 0.0
        %4885 = vmatpush1.msra.mxu0 0.0
        %4886 = vmatprep.subr.mxu0 0.0
        %4887 = vmatpush1.msra.mxu0 0.0
        %4888 = vmatprep.mubr.f32.mxu0 0.0
        %4889 = vmatmul.mubr.f32.gmra.mrb[0].mxu0 %v4813
        %v4890 = vpop.f32.mrb[0].mxu0
        %v4891 = vadd.f32 0.0, %v4890
        %v4892 = vpop.f32.mrb[0].mxu0
        %v4893 = vadd.f32 0.0, %v4892
        %4894 = vmatprep.mubr.f32.mxu0 0.0
        %4895 = vmatmul.mubr.f32.gmra.mrb[0].mxu0 %v4816
        %v4896 = vpop.f32.mrb[0].mxu0
        %v4897 = vadd.f32 0.0, %v4896
        %v4898 = vpop.f32.mrb[0].mxu0
        %v4899 = vadd.f32 0.0, %v4898
        %4900 = vdwg.mxu0
        %4901 = vmatprep.subr.mxu0 0.0
        %4902 = vmatpush1.msra.mxu0 %v4822
        %4903 = vmatprep.subr.mxu0 0.0
        %4904 = vmatpush1.msra.mxu0 0.0
        %4905 = vmatprep.subr.mxu0 0.0
        %4906 = vmatpush1.msra.mxu0 0.0
        %4907 = vmatprep.subr.mxu0 0.0
        %4908 = vmatpush1.msra.mxu0 0.0
        %4909 = vmatprep.subr.mxu0 0.0
        %4910 = vmatpush1.msra.mxu0 0.0
        %4911 = vmatprep.subr.mxu0 0.0
        %4912 = vmatpush1.msra.mxu0 0.0
        %4913 = vmatprep.subr.mxu0 0.0
        %4914 = vmatpush1.msra.mxu0 0.0
        %4915 = vmatprep.subr.mxu0 0.0
        %4916 = vmatpush1.msra.mxu0 0.0
        %4917 = vmatprep.subr.mxu0 0.0
        %4918 = vmatpush1.msra.mxu0 0.0
        %4919 = vmatprep.subr.mxu0 0.0
        %4920 = vmatpush1.msra.mxu0 0.0
        %4921 = vmatprep.subr.mxu0 0.0
        %4922 = vmatpush1.msra.mxu0 0.0
        %4923 = vmatprep.subr.mxu0 0.0
        %4924 = vmatpush1.msra.mxu0 0.0
        %4925 = vmatprep.subr.mxu0 0.0
        %4926 = vmatpush1.msra.mxu0 0.0
        %4927 = vmatprep.subr.mxu0 0.0
        %4928 = vmatpush1.msra.mxu0 0.0
        %4929 = vmatprep.subr.mxu0 0.0
        %4930 = vmatpush1.msra.mxu0 0.0
        %4931 = vmatprep.subr.mxu0 0.0
        %4932 = vmatpush1.msra.mxu0 0.0
        %4933 = vmatprep.subr.mxu0 0.0
        %4934 = vmatpush1.msra.mxu0 0.0
        %4935 = vmatprep.subr.mxu0 0.0
        %4936 = vmatpush1.msra.mxu0 0.0
        %4937 = vmatprep.subr.mxu0 0.0
        %4938 = vmatpush1.msra.mxu0 0.0
        %4939 = vmatprep.subr.mxu0 0.0
        %4940 = vmatpush1.msra.mxu0 0.0
        %4941 = vmatprep.subr.mxu0 0.0
        %4942 = vmatpush1.msra.mxu0 0.0
        %4943 = vmatprep.subr.mxu0 0.0
        %4944 = vmatpush1.msra.mxu0 0.0
        %4945 = vmatprep.subr.mxu0 0.0
        %4946 = vmatpush1.msra.mxu0 0.0
        %4947 = vmatprep.subr.mxu0 0.0
        %4948 = vmatpush1.msra.mxu0 0.0
        %4949 = vmatprep.subr.mxu0 0.0
        %4950 = vmatpush1.msra.mxu0 0.0
        %4951 = vmatprep.subr.mxu0 0.0
        %4952 = vmatpush1.msra.mxu0 0.0
        %4953 = vmatprep.subr.mxu0 0.0
        %4954 = vmatpush1.msra.mxu0 0.0
        %4955 = vmatprep.subr.mxu0 0.0
        %4956 = vmatpush1.msra.mxu0 0.0
        %4957 = vmatprep.subr.mxu0 0.0
        %4958 = vmatpush1.msra.mxu0 0.0
        %4959 = vmatprep.subr.mxu0 0.0
        %4960 = vmatpush1.msra.mxu0 0.0
        %4961 = vmatprep.subr.mxu0 0.0
        %4962 = vmatpush1.msra.mxu0 0.0
        %4963 = vmatprep.subr.mxu0 0.0
        %4964 = vmatpush1.msra.mxu0 0.0
        %4965 = vmatprep.mubr.f32.mxu0 0.0
        %4966 = vmatmul.mubr.f32.gmra.mrb[0].mxu0 %v4813
        %v4967 = vpop.f32.mrb[0].mxu0
        %v4968 = vadd.f32 0.0, %v4967
        %v4969 = vpop.f32.mrb[0].mxu0
        %4970 = vmatprep.mubr.f32.mxu0 0.0
        %4971 = vmatmul.mubr.f32.gmra.mrb[0].mxu0 %v4816
        %v4972 = vpop.f32.mrb[0].mxu0
        %v4973 = vadd.f32 0.0, %v4972
        %v4974 = vpop.f32.mrb[0].mxu0
        %4975 = vdwg.mxu0
        %v4976 = vadd.f32 %v4791, %v4891
        %v4977 = vadd.f32 %v4792, %v4893
        %v4978 = vadd.f32 %v4793, %v4968
        %v4979 = vadd.f32 %v4794, %v4897
        %v4980 = vadd.f32 %v4795, %v4899
        %v4981 = vadd.f32 %v4796, %v4973
        %s4982 = scalar_lea.vmem %s1, 384
        %v4983 = vld [vmem:[%s4982] sm:$0xff]
        %v4984 = vld [vmem:[%s4982 + $0x8] sm:$0xff]
        %4985 = vrot.lane.b32.xlu0 %v614, 44
        %v4986 = vpop.permute.xlu0 %4985
        %4987 = vrot.lane.b32.xlu0 %v615, 44
        %v4988 = vpop.permute.xlu0 %4987
        %4989 = vrot.lane.b32.xlu0 %v616, 44
        %v4990 = vpop.permute.xlu0 %4989
        %4991 = vrot.lane.b32.xlu0 %v617, 44
        %v4992 = vpop.permute.xlu0 %4991
        %vm4993 = vcmask 359424
        %v4994 = vsel %vm4993, %v4986, %v4988
        %v4995 = vsel %vm4993, %v4988, %v4990
        %v4996 = vsel %vm4993, %v4990, %v4992
        %v4998 = vsel %vm635, %v4983, 0
        %v5001 = vsel %vm635, %v4984, 0
        %v5003 = vsel %vm642, %v4994, 0
        %v5005 = vsel %vm642, %v4995, 0
        %v5007 = vsel %vm642, %v4996, 0
        %5009 = vmatprep.subr.mxu0 %v5005
        %5010 = vmatpush1.msra.mxu0 %v5003
        %5011 = vmatprep.subr.mxu0 0.0
        %5012 = vmatpush1.msra.mxu0 0.0
        %5013 = vmatprep.subr.mxu0 0.0
        %5014 = vmatpush1.msra.mxu0 0.0
        %5015 = vmatprep.subr.mxu0 0.0
        %5016 = vmatpush1.msra.mxu0 0.0
        %5017 = vmatprep.subr.mxu0 0.0
        %5018 = vmatpush1.msra.mxu0 0.0
        %5019 = vmatprep.subr.mxu0 0.0
        %5020 = vmatpush1.msra.mxu0 0.0
        %5021 = vmatprep.subr.mxu0 0.0
        %5022 = vmatpush1.msra.mxu0 0.0
        %5023 = vmatprep.subr.mxu0 0.0
        %5024 = vmatpush1.msra.mxu0 0.0
        %5025 = vmatprep.subr.mxu0 0.0
        %5026 = vmatpush1.msra.mxu0 0.0
        %5027 = vmatprep.subr.mxu0 0.0
        %5028 = vmatpush1.msra.mxu0 0.0
        %5029 = vmatprep.subr.mxu0 0.0
        %5030 = vmatpush1.msra.mxu0 0.0
        %5031 = vmatprep.subr.mxu0 0.0
        %5032 = vmatpush1.msra.mxu0 0.0
        %5033 = vmatprep.subr.mxu0 0.0
        %5034 = vmatpush1.msra.mxu0 0.0
        %5035 = vmatprep.subr.mxu0 0.0
        %5036 = vmatpush1.msra.mxu0 0.0
        %5037 = vmatprep.subr.mxu0 0.0
        %5038 = vmatpush1.msra.mxu0 0.0
        %5039 = vmatprep.subr.mxu0 0.0
        %5040 = vmatpush1.msra.mxu0 0.0
        %5041 = vmatprep.subr.mxu0 0.0
        %5042 = vmatpush1.msra.mxu0 0.0
        %5043 = vmatprep.subr.mxu0 0.0
        %5044 = vmatpush1.msra.mxu0 0.0
        %5045 = vmatprep.subr.mxu0 0.0
        %5046 = vmatpush1.msra.mxu0 0.0
        %5047 = vmatprep.subr.mxu0 0.0
        %5048 = vmatpush1.msra.mxu0 0.0
        %5049 = vmatprep.subr.mxu0 0.0
        %5050 = vmatpush1.msra.mxu0 0.0
        %5051 = vmatprep.subr.mxu0 0.0
        %5052 = vmatpush1.msra.mxu0 0.0
        %5053 = vmatprep.subr.mxu0 0.0
        %5054 = vmatpush1.msra.mxu0 0.0
        %5055 = vmatprep.subr.mxu0 0.0
        %5056 = vmatpush1.msra.mxu0 0.0
        %5057 = vmatprep.subr.mxu0 0.0
        %5058 = vmatpush1.msra.mxu0 0.0
        %5059 = vmatprep.subr.mxu0 0.0
        %5060 = vmatpush1.msra.mxu0 0.0
        %5061 = vmatprep.subr.mxu0 0.0
        %5062 = vmatpush1.msra.mxu0 0.0
        %5063 = vmatprep.subr.mxu0 0.0
        %5064 = vmatpush1.msra.mxu0 0.0
        %5065 = vmatprep.subr.mxu0 0.0
        %5066 = vmatpush1.msra.mxu0 0.0
        %5067 = vmatprep.subr.mxu0 0.0
        %5068 = vmatpush1.msra.mxu0 0.0
        %5069 = vmatprep.subr.mxu0 0.0
        %5070 = vmatpush1.msra.mxu0 0.0
        %5071 = vmatprep.subr.mxu0 0.0
        %5072 = vmatpush1.msra.mxu0 0.0
        %5073 = vmatprep.mubr.f32.mxu0 0.0
        %5074 = vmatmul.mubr.f32.gmra.mrb[0].mxu0 %v4998
        %v5075 = vpop.f32.mrb[0].mxu0
        %v5076 = vadd.f32 0.0, %v5075
        %v5077 = vpop.f32.mrb[0].mxu0
        %v5078 = vadd.f32 0.0, %v5077
        %5079 = vmatprep.mubr.f32.mxu0 0.0
        %5080 = vmatmul.mubr.f32.gmra.mrb[0].mxu0 %v5001
        %v5081 = vpop.f32.mrb[0].mxu0
        %v5082 = vadd.f32 0.0, %v5081
        %v5083 = vpop.f32.mrb[0].mxu0
        %v5084 = vadd.f32 0.0, %v5083
        %5085 = vdwg.mxu0
        %5086 = vmatprep.subr.mxu0 0.0
        %5087 = vmatpush1.msra.mxu0 %v5007
        %5088 = vmatprep.subr.mxu0 0.0
        %5089 = vmatpush1.msra.mxu0 0.0
        %5090 = vmatprep.subr.mxu0 0.0
        %5091 = vmatpush1.msra.mxu0 0.0
        %5092 = vmatprep.subr.mxu0 0.0
        %5093 = vmatpush1.msra.mxu0 0.0
        %5094 = vmatprep.subr.mxu0 0.0
        %5095 = vmatpush1.msra.mxu0 0.0
        %5096 = vmatprep.subr.mxu0 0.0
        %5097 = vmatpush1.msra.mxu0 0.0
        %5098 = vmatprep.subr.mxu0 0.0
        %5099 = vmatpush1.msra.mxu0 0.0
        %5100 = vmatprep.subr.mxu0 0.0
        %5101 = vmatpush1.msra.mxu0 0.0
        %5102 = vmatprep.subr.mxu0 0.0
        %5103 = vmatpush1.msra.mxu0 0.0
        %5104 = vmatprep.subr.mxu0 0.0
        %5105 = vmatpush1.msra.mxu0 0.0
        %5106 = vmatprep.subr.mxu0 0.0
        %5107 = vmatpush1.msra.mxu0 0.0
        %5108 = vmatprep.subr.mxu0 0.0
        %5109 = vmatpush1.msra.mxu0 0.0
        %5110 = vmatprep.subr.mxu0 0.0
        %5111 = vmatpush1.msra.mxu0 0.0
        %5112 = vmatprep.subr.mxu0 0.0
        %5113 = vmatpush1.msra.mxu0 0.0
        %5114 = vmatprep.subr.mxu0 0.0
        %5115 = vmatpush1.msra.mxu0 0.0
        %5116 = vmatprep.subr.mxu0 0.0
        %5117 = vmatpush1.msra.mxu0 0.0
        %5118 = vmatprep.subr.mxu0 0.0
        %5119 = vmatpush1.msra.mxu0 0.0
        %5120 = vmatprep.subr.mxu0 0.0
        %5121 = vmatpush1.msra.mxu0 0.0
        %5122 = vmatprep.subr.mxu0 0.0
        %5123 = vmatpush1.msra.mxu0 0.0
        %5124 = vmatprep.subr.mxu0 0.0
        %5125 = vmatpush1.msra.mxu0 0.0
        %5126 = vmatprep.subr.mxu0 0.0
        %5127 = vmatpush1.msra.mxu0 0.0
        %5128 = vmatprep.subr.mxu0 0.0
        %5129 = vmatpush1.msra.mxu0 0.0
        %5130 = vmatprep.subr.mxu0 0.0
        %5131 = vmatpush1.msra.mxu0 0.0
        %5132 = vmatprep.subr.mxu0 0.0
        %5133 = vmatpush1.msra.mxu0 0.0
        %5134 = vmatprep.subr.mxu0 0.0
        %5135 = vmatpush1.msra.mxu0 0.0
        %5136 = vmatprep.subr.mxu0 0.0
        %5137 = vmatpush1.msra.mxu0 0.0
        %5138 = vmatprep.subr.mxu0 0.0
        %5139 = vmatpush1.msra.mxu0 0.0
        %5140 = vmatprep.subr.mxu0 0.0
        %5141 = vmatpush1.msra.mxu0 0.0
        %5142 = vmatprep.subr.mxu0 0.0
        %5143 = vmatpush1.msra.mxu0 0.0
        %5144 = vmatprep.subr.mxu0 0.0
        %5145 = vmatpush1.msra.mxu0 0.0
        %5146 = vmatprep.subr.mxu0 0.0
        %5147 = vmatpush1.msra.mxu0 0.0
        %5148 = vmatprep.subr.mxu0 0.0
        %5149 = vmatpush1.msra.mxu0 0.0
        %5150 = vmatprep.mubr.f32.mxu0 0.0
        %5151 = vmatmul.mubr.f32.gmra.mrb[0].mxu0 %v4998
        %v5152 = vpop.f32.mrb[0].mxu0
        %v5153 = vadd.f32 0.0, %v5152
        %v5154 = vpop.f32.mrb[0].mxu0
        %5155 = vmatprep.mubr.f32.mxu0 0.0
        %5156 = vmatmul.mubr.f32.gmra.mrb[0].mxu0 %v5001
        %v5157 = vpop.f32.mrb[0].mxu0
        %v5158 = vadd.f32 0.0, %v5157
        %v5159 = vpop.f32.mrb[0].mxu0
        %5160 = vdwg.mxu0
        %v5161 = vadd.f32 %v4976, %v5076
        %v5162 = vadd.f32 %v4977, %v5078
        %v5163 = vadd.f32 %v4978, %v5153
        %v5164 = vadd.f32 %v4979, %v5082
        %v5165 = vadd.f32 %v4980, %v5084
        %v5166 = vadd.f32 %v4981, %v5158
        %v5167 = vld [vmem:[%s2] sm:$0xff]
        %v5168 = vld [vmem:[%s2 + $0x8] sm:$0xff]
        %5170 = vset.pattern.permute.xlu0 0
        %5171 = vperm.xlu0 %5170, %v5167
        %v5172 = vpop.permute.xlu0 %5171
        %5175 = vset.pattern.permute.xlu0 0
        %5176 = vperm.xlu0 %5175, %v5168
        %v5177 = vpop.permute.xlu0 %5176
        %v5179 = vadd.f32 %v5161, %v5172
        %v5180 = vadd.f32 %v5162, %v5172
        %v5181 = vadd.f32 %v5163, %v5172
        %v5182 = vadd.f32 %v5164, %v5177
        %v5183 = vadd.f32 %v5165, %v5177
        %v5184 = vadd.f32 %v5166, %v5177
        %v5185 = vmax.f32 %v5179, 0.0
        %v5186 = vmax.f32 %v5180, 0.0
        %v5187 = vmax.f32 %v5181, 0.0
        %v5188 = vmax.f32 %v5182, 0.0
        %v5189 = vmax.f32 %v5183, 0.0
        %v5190 = vmax.f32 %v5184, 0.0
        %v5191 = vld [vmem:[%s3] sm:$0xff]
        %v5192 = vld [vmem:[%s3 + $0x8] sm:$0xff]
        %v5193 = vld [vmem:[%s3 + $0x10] sm:$0xff]
        %v5194 = vld [vmem:[%s3 + $0x18] sm:$0xff]
        %v5195 = vld [vmem:[%s3 + $0x20] sm:$0xff]
        %v5196 = vld [vmem:[%s3 + $0x28] sm:$0xff]
        %v5197 = vld [vmem:[%s3 + $0x30] sm:$0xff]
        %v5198 = vld [vmem:[%s3 + $0x38] sm:$0xff]
        %v5199 = vld [vmem:[%s3 + $0x40] sm:$0xff]
        %v5200 = vld [vmem:[%s3 + $0x48] sm:$0xff]
        %v5201 = vld [vmem:[%s3 + $0x50] sm:$0xff]
        %v5202 = vld [vmem:[%s3 + $0x58] sm:$0xff]
        %v5203 = vld [vmem:[%s3 + $0x60] sm:$0xff]
        %v5204 = vld [vmem:[%s3 + $0x68] sm:$0xff]
        %v5205 = vld [vmem:[%s3 + $0x70] sm:$0xff]
        %v5206 = vld [vmem:[%s3 + $0x78] sm:$0xff]
        %v5207 = vld [vmem:[%s3 + $0x80] sm:$0xff]
        %v5208 = vld [vmem:[%s3 + $0x88] sm:$0xff]
        %v5209 = vld [vmem:[%s3 + $0x90] sm:$0xff]
        %v5210 = vld [vmem:[%s3 + $0x98] sm:$0xff]
        %v5211 = vld [vmem:[%s3 + $0xa0] sm:$0xff]
        %v5212 = vld [vmem:[%s3 + $0xa8] sm:$0xff]
        %v5213 = vld [vmem:[%s3 + $0xb0] sm:$0xff]
        %v5214 = vld [vmem:[%s3 + $0xb8] sm:$0xff]
        %v5215 = vld [vmem:[%s3 + $0xc0] sm:$0xff]
        %v5216 = vld [vmem:[%s3 + $0xc8] sm:$0xff]
        %v5217 = vld [vmem:[%s3 + $0xd0] sm:$0xff]
        %v5218 = vld [vmem:[%s3 + $0xd8] sm:$0xff]
        %v5219 = vld [vmem:[%s3 + $0xe0] sm:$0xff]
        %v5220 = vld [vmem:[%s3 + $0xe8] sm:$0xff]
        %v5221 = vld [vmem:[%s3 + $0xf0] sm:$0xff]
        %v5222 = vld [vmem:[%s3 + $0xf8] sm:$0xff]
        %v5223 = vld [vmem:[%s3 + $0x100] sm:$0xff]
        %v5224 = vld [vmem:[%s3 + $0x108] sm:$0xff]
        %v5225 = vld [vmem:[%s3 + $0x110] sm:$0xff]
        %v5226 = vld [vmem:[%s3 + $0x118] sm:$0xff]
        %v5227 = vld [vmem:[%s3 + $0x120] sm:$0xff]
        %v5228 = vld [vmem:[%s3 + $0x128] sm:$0xff]
        %v5229 = vld [vmem:[%s3 + $0x130] sm:$0xff]
        %v5230 = vld [vmem:[%s3 + $0x138] sm:$0xff]
        %v5231 = vld [vmem:[%s3 + $0x140] sm:$0xff]
        %v5232 = vld [vmem:[%s3 + $0x148] sm:$0xff]
        %v5233 = vld [vmem:[%s3 + $0x150] sm:$0xff]
        %v5234 = vld [vmem:[%s3 + $0x158] sm:$0xff]
        %v5235 = vld [vmem:[%s3 + $0x160] sm:$0xff]
        %v5236 = vld [vmem:[%s3 + $0x168] sm:$0xff]
        %v5237 = vld [vmem:[%s3 + $0x170] sm:$0xff]
        %v5238 = vld [vmem:[%s3 + $0x178] sm:$0xff]
        %v5239 = vld [vmem:[%s3 + $0x180] sm:$0xff]
        %v5240 = vld [vmem:[%s3 + $0x188] sm:$0xff]
        %v5241 = vld [vmem:[%s3 + $0x190] sm:$0xff]
        %v5242 = vld [vmem:[%s3 + $0x198] sm:$0xff]
        %v5243 = vld [vmem:[%s3 + $0x1a0] sm:$0xff]
        %v5244 = vld [vmem:[%s3 + $0x1a8] sm:$0xff]
        %v5245 = vld [vmem:[%s3 + $0x1b0] sm:$0xff]
        %v5246 = vld [vmem:[%s3 + $0x1b8] sm:$0xff]
        %v5247 = vld [vmem:[%s3 + $0x1c0] sm:$0xff]
        %v5248 = vld [vmem:[%s3 + $0x1c8] sm:$0xff]
        %v5249 = vld [vmem:[%s3 + $0x1d0] sm:$0xff]
        %v5250 = vld [vmem:[%s3 + $0x1d8] sm:$0xff]
        %v5251 = vld [vmem:[%s3 + $0x1e0] sm:$0xff]
        %v5252 = vld [vmem:[%s3 + $0x1e8] sm:$0xff]
        %v5253 = vld [vmem:[%s3 + $0x1f0] sm:$0xff]
        %v5254 = vld [vmem:[%s3 + $0x1f8] sm:$0xff]
        %v5255 = vld [vmem:[%s3 + $0x200] sm:$0xff]
        %v5256 = vld [vmem:[%s3 + $0x208] sm:$0xff]
        %v5257 = vld [vmem:[%s3 + $0x210] sm:$0xff]
        %v5258 = vld [vmem:[%s3 + $0x218] sm:$0xff]
        %v5259 = vld [vmem:[%s3 + $0x220] sm:$0xff]
        %v5260 = vld [vmem:[%s3 + $0x228] sm:$0xff]
        %v5261 = vld [vmem:[%s3 + $0x230] sm:$0xff]
        %v5262 = vld [vmem:[%s3 + $0x238] sm:$0xff]
        %v5263 = vld [vmem:[%s3 + $0x240] sm:$0xff]
        %v5264 = vld [vmem:[%s3 + $0x248] sm:$0xff]
        %v5265 = vld [vmem:[%s3 + $0x250] sm:$0xff]
        %v5266 = vld [vmem:[%s3 + $0x258] sm:$0xff]
        %v5267 = vld [vmem:[%s3 + $0x260] sm:$0xff]
        %v5268 = vld [vmem:[%s3 + $0x268] sm:$0xff]
        %v5269 = vld [vmem:[%s3 + $0x270] sm:$0xff]
        %v5270 = vld [vmem:[%s3 + $0x278] sm:$0xff]
        %v5271 = vld [vmem:[%s3 + $0x280] sm:$0xff]
        %v5272 = vld [vmem:[%s3 + $0x288] sm:$0xff]
        %v5273 = vld [vmem:[%s3 + $0x290] sm:$0xff]
        %v5274 = vld [vmem:[%s3 + $0x298] sm:$0xff]
        %v5275 = vld [vmem:[%s3 + $0x2a0] sm:$0xff]
        %v5276 = vld [vmem:[%s3 + $0x2a8] sm:$0xff]
        %v5277 = vld [vmem:[%s3 + $0x2b0] sm:$0xff]
        %v5278 = vld [vmem:[%s3 + $0x2b8] sm:$0xff]
        %v5279 = vld [vmem:[%s3 + $0x2c0] sm:$0xff]
        %v5280 = vld [vmem:[%s3 + $0x2c8] sm:$0xff]
        %v5281 = vld [vmem:[%s3 + $0x2d0] sm:$0xff]
        %v5282 = vld [vmem:[%s3 + $0x2d8] sm:$0xff]
        %v5283 = vld [vmem:[%s3 + $0x2e0] sm:$0xff]
        %v5284 = vld [vmem:[%s3 + $0x2e8] sm:$0xff]
        %v5285 = vld [vmem:[%s3 + $0x2f0] sm:$0xff]
        %v5286 = vld [vmem:[%s3 + $0x2f8] sm:$0xff]
        %v5287 = vld [vmem:[%s3 + $0x300] sm:$0xff]
        %v5288 = vld [vmem:[%s3 + $0x308] sm:$0xff]
        %v5289 = vld [vmem:[%s3 + $0x310] sm:$0xff]
        %v5290 = vld [vmem:[%s3 + $0x318] sm:$0xff]
        %v5291 = vld [vmem:[%s3 + $0x320] sm:$0xff]
        %v5292 = vld [vmem:[%s3 + $0x328] sm:$0xff]
        %v5293 = vld [vmem:[%s3 + $0x330] sm:$0xff]
        %v5294 = vld [vmem:[%s3 + $0x338] sm:$0xff]
        %v5295 = vld [vmem:[%s3 + $0x340] sm:$0xff]
        %v5296 = vld [vmem:[%s3 + $0x348] sm:$0xff]
        %v5297 = vld [vmem:[%s3 + $0x350] sm:$0xff]
        %v5298 = vld [vmem:[%s3 + $0x358] sm:$0xff]
        %v5299 = vld [vmem:[%s3 + $0x360] sm:$0xff]
        %v5300 = vld [vmem:[%s3 + $0x368] sm:$0xff]
        %v5301 = vld [vmem:[%s3 + $0x370] sm:$0xff]
        %v5302 = vld [vmem:[%s3 + $0x378] sm:$0xff]
        %v5303 = vld [vmem:[%s3 + $0x380] sm:$0xff]
        %v5304 = vld [vmem:[%s3 + $0x388] sm:$0xff]
        %v5305 = vld [vmem:[%s3 + $0x390] sm:$0xff]
        %v5306 = vld [vmem:[%s3 + $0x398] sm:$0xff]
        %v5307 = vld [vmem:[%s3 + $0x3a0] sm:$0xff]
        %v5308 = vld [vmem:[%s3 + $0x3a8] sm:$0xff]
        %v5309 = vld [vmem:[%s3 + $0x3b0] sm:$0xff]
        %v5310 = vld [vmem:[%s3 + $0x3b8] sm:$0xff]
        %v5312 = vsel %vm4068, %v5187, 0
        %v5315 = vsel %vm4068, %v5190, 0
        %5317 = vmatprep.subr.mxu0 %v5192
        %5318 = vmatpush1.msra.mxu0 %v5191
        %5319 = vmatprep.subr.mxu0 %v5195
        %5320 = vmatpush1.msra.mxu0 %v5194
        %5321 = vmatprep.subr.mxu0 %v5198
        %5322 = vmatpush1.msra.mxu0 %v5197
        %5323 = vmatprep.subr.mxu0 %v5201
        %5324 = vmatpush1.msra.mxu0 %v5200
        %5325 = vmatprep.subr.mxu0 %v5204
        %5326 = vmatpush1.msra.mxu0 %v5203
        %5327 = vmatprep.subr.mxu0 %v5207
        %5328 = vmatpush1.msra.mxu0 %v5206
        %5329 = vmatprep.subr.mxu0 %v5210
        %5330 = vmatpush1.msra.mxu0 %v5209
        %5331 = vmatprep.subr.mxu0 %v5213
        %5332 = vmatpush1.msra.mxu0 %v5212
        %5333 = vmatprep.subr.mxu0 %v5216
        %5334 = vmatpush1.msra.mxu0 %v5215
        %5335 = vmatprep.subr.mxu0 %v5219
        %5336 = vmatpush1.msra.mxu0 %v5218
        %5337 = vmatprep.subr.mxu0 %v5222
        %5338 = vmatpush1.msra.mxu0 %v5221
        %5339 = vmatprep.subr.mxu0 %v5225
        %5340 = vmatpush1.msra.mxu0 %v5224
        %5341 = vmatprep.subr.mxu0 %v5228
        %5342 = vmatpush1.msra.mxu0 %v5227
        %5343 = vmatprep.subr.mxu0 %v5231
        %5344 = vmatpush1.msra.mxu0 %v5230
        %5345 = vmatprep.subr.mxu0 %v5234
        %5346 = vmatpush1.msra.mxu0 %v5233
        %5347 = vmatprep.subr.mxu0 %v5237
        %5348 = vmatpush1.msra.mxu0 %v5236
        %5349 = vmatprep.subr.mxu0 %v5240
        %5350 = vmatpush1.msra.mxu0 %v5239
        %5351 = vmatprep.subr.mxu0 %v5243
        %5352 = vmatpush1.msra.mxu0 %v5242
        %5353 = vmatprep.subr.mxu0 %v5246
        %5354 = vmatpush1.msra.mxu0 %v5245
        %5355 = vmatprep.subr.mxu0 %v5249
        %5356 = vmatpush1.msra.mxu0 %v5248
        %5357 = vmatprep.subr.mxu0 %v5252
        %5358 = vmatpush1.msra.mxu0 %v5251
        %5359 = vmatprep.subr.mxu0 %v5255
        %5360 = vmatpush1.msra.mxu0 %v5254
        %5361 = vmatprep.subr.mxu0 %v5258
        %5362 = vmatpush1.msra.mxu0 %v5257
        %5363 = vmatprep.subr.mxu0 %v5261
        %5364 = vmatpush1.msra.mxu0 %v5260
        %5365 = vmatprep.subr.mxu0 %v5264
        %5366 = vmatpush1.msra.mxu0 %v5263
        %5367 = vmatprep.subr.mxu0 %v5267
        %5368 = vmatpush1.msra.mxu0 %v5266
        %5369 = vmatprep.subr.mxu0 %v5270
        %5370 = vmatpush1.msra.mxu0 %v5269
        %5371 = vmatprep.subr.mxu0 %v5273
        %5372 = vmatpush1.msra.mxu0 %v5272
        %5373 = vmatprep.subr.mxu0 %v5276
        %5374 = vmatpush1.msra.mxu0 %v5275
        %5375 = vmatprep.subr.mxu0 %v5279
        %5376 = vmatpush1.msra.mxu0 %v5278
        %5377 = vmatprep.subr.mxu0 %v5282
        %5378 = vmatpush1.msra.mxu0 %v5281
        %5379 = vmatprep.subr.mxu0 %v5285
        %5380 = vmatpush1.msra.mxu0 %v5284
        %5381 = vmatprep.mubr.f32.mxu0 %v5186
        %5382 = vmatmul.mubr.f32.gmra.mrb[0].mxu0 %v5185
        %v5383 = vpop.f32.mrb[0].mxu0
        %v5384 = vadd.f32 0.0, %v5383
        %v5385 = vpop.f32.mrb[0].mxu0
        %v5386 = vadd.f32 0.0, %v5385
        %5387 = vmatprep.mubr.f32.mxu0 %v5189
        %5388 = vmatmul.mubr.f32.gmra.mrb[0].mxu0 %v5188
        %v5389 = vpop.f32.mrb[0].mxu0
        %v5390 = vadd.f32 0.0, %v5389
        %v5391 = vpop.f32.mrb[0].mxu0
        %v5392 = vadd.f32 0.0, %v5391
        %5393 = vdwg.mxu0
        %5394 = vmatprep.subr.mxu0 %v5288
        %5395 = vmatpush1.msra.mxu0 %v5287
        %5396 = vmatprep.subr.mxu0 %v5291
        %5397 = vmatpush1.msra.mxu0 %v5290
        %5398 = vmatprep.subr.mxu0 %v5294
        %5399 = vmatpush1.msra.mxu0 %v5293
        %5400 = vmatprep.subr.mxu0 %v5297
        %5401 = vmatpush1.msra.mxu0 %v5296
        %5402 = vmatprep.subr.mxu0 %v5300
        %5403 = vmatpush1.msra.mxu0 %v5299
        %5404 = vmatprep.subr.mxu0 %v5303
        %5405 = vmatpush1.msra.mxu0 %v5302
        %5406 = vmatprep.subr.mxu0 %v5306
        %5407 = vmatpush1.msra.mxu0 %v5305
        %5408 = vmatprep.subr.mxu0 %v5309
        %5409 = vmatpush1.msra.mxu0 %v5308
        %5410 = vmatprep.subr.mxu0 0.0
        %5411 = vmatpush1.msra.mxu0 0.0
        %5412 = vmatprep.subr.mxu0 0.0
        %5413 = vmatpush1.msra.mxu0 0.0
        %5414 = vmatprep.subr.mxu0 0.0
        %5415 = vmatpush1.msra.mxu0 0.0
        %5416 = vmatprep.subr.mxu0 0.0
        %5417 = vmatpush1.msra.mxu0 0.0
        %5418 = vmatprep.subr.mxu0 0.0
        %5419 = vmatpush1.msra.mxu0 0.0
        %5420 = vmatprep.subr.mxu0 0.0
        %5421 = vmatpush1.msra.mxu0 0.0
        %5422 = vmatprep.subr.mxu0 0.0
        %5423 = vmatpush1.msra.mxu0 0.0
        %5424 = vmatprep.subr.mxu0 0.0
        %5425 = vmatpush1.msra.mxu0 0.0
        %5426 = vmatprep.subr.mxu0 0.0
        %5427 = vmatpush1.msra.mxu0 0.0
        %5428 = vmatprep.subr.mxu0 0.0
        %5429 = vmatpush1.msra.mxu0 0.0
        %5430 = vmatprep.subr.mxu0 0.0
        %5431 = vmatpush1.msra.mxu0 0.0
        %5432 = vmatprep.subr.mxu0 0.0
        %5433 = vmatpush1.msra.mxu0 0.0
        %5434 = vmatprep.subr.mxu0 0.0
        %5435 = vmatpush1.msra.mxu0 0.0
        %5436 = vmatprep.subr.mxu0 0.0
        %5437 = vmatpush1.msra.mxu0 0.0
        %5438 = vmatprep.subr.mxu0 0.0
        %5439 = vmatpush1.msra.mxu0 0.0
        %5440 = vmatprep.subr.mxu0 0.0
        %5441 = vmatpush1.msra.mxu0 0.0
        %5442 = vmatprep.subr.mxu0 0.0
        %5443 = vmatpush1.msra.mxu0 0.0
        %5444 = vmatprep.subr.mxu0 0.0
        %5445 = vmatpush1.msra.mxu0 0.0
        %5446 = vmatprep.subr.mxu0 0.0
        %5447 = vmatpush1.msra.mxu0 0.0
        %5448 = vmatprep.subr.mxu0 0.0
        %5449 = vmatpush1.msra.mxu0 0.0
        %5450 = vmatprep.subr.mxu0 0.0
        %5451 = vmatpush1.msra.mxu0 0.0
        %5452 = vmatprep.subr.mxu0 0.0
        %5453 = vmatpush1.msra.mxu0 0.0
        %5454 = vmatprep.subr.mxu0 0.0
        %5455 = vmatpush1.msra.mxu0 0.0
        %5456 = vmatprep.subr.mxu0 0.0
        %5457 = vmatpush1.msra.mxu0 0.0
        %5458 = vmatprep.mubr.f32.mxu0 0.0
        %5459 = vmatmul.mubr.f32.gmra.mrb[0].mxu0 %v5312
        %v5460 = vpop.f32.mrb[0].mxu0
        %v5461 = vadd.f32 %v5384, %v5460
        %v5462 = vpop.f32.mrb[0].mxu0
        %v5463 = vadd.f32 %v5386, %v5462
        %5464 = vmatprep.mubr.f32.mxu0 0.0
        %5465 = vmatmul.mubr.f32.gmra.mrb[0].mxu0 %v5315
        %v5466 = vpop.f32.mrb[0].mxu0
        %v5467 = vadd.f32 %v5390, %v5466
        %v5468 = vpop.f32.mrb[0].mxu0
        %v5469 = vadd.f32 %v5392, %v5468
        %5470 = vdwg.mxu0
        %5471 = vmatprep.subr.mxu0 0.0
        %5472 = vmatpush1.msra.mxu0 %v5193
        %5473 = vmatprep.subr.mxu0 0.0
        %5474 = vmatpush1.msra.mxu0 %v5196
        %5475 = vmatprep.subr.mxu0 0.0
        %5476 = vmatpush1.msra.mxu0 %v5199
        %5477 = vmatprep.subr.mxu0 0.0
        %5478 = vmatpush1.msra.mxu0 %v5202
        %5479 = vmatprep.subr.mxu0 0.0
        %5480 = vmatpush1.msra.mxu0 %v5205
        %5481 = vmatprep.subr.mxu0 0.0
        %5482 = vmatpush1.msra.mxu0 %v5208
        %5483 = vmatprep.subr.mxu0 0.0
        %5484 = vmatpush1.msra.mxu0 %v5211
        %5485 = vmatprep.subr.mxu0 0.0
        %5486 = vmatpush1.msra.mxu0 %v5214
        %5487 = vmatprep.subr.mxu0 0.0
        %5488 = vmatpush1.msra.mxu0 %v5217
        %5489 = vmatprep.subr.mxu0 0.0
        %5490 = vmatpush1.msra.mxu0 %v5220
        %5491 = vmatprep.subr.mxu0 0.0
        %5492 = vmatpush1.msra.mxu0 %v5223
        %5493 = vmatprep.subr.mxu0 0.0
        %5494 = vmatpush1.msra.mxu0 %v5226
        %5495 = vmatprep.subr.mxu0 0.0
        %5496 = vmatpush1.msra.mxu0 %v5229
        %5497 = vmatprep.subr.mxu0 0.0
        %5498 = vmatpush1.msra.mxu0 %v5232
        %5499 = vmatprep.subr.mxu0 0.0
        %5500 = vmatpush1.msra.mxu0 %v5235
        %5501 = vmatprep.subr.mxu0 0.0
        %5502 = vmatpush1.msra.mxu0 %v5238
        %5503 = vmatprep.subr.mxu0 0.0
        %5504 = vmatpush1.msra.mxu0 %v5241
        %5505 = vmatprep.subr.mxu0 0.0
        %5506 = vmatpush1.msra.mxu0 %v5244
        %5507 = vmatprep.subr.mxu0 0.0
        %5508 = vmatpush1.msra.mxu0 %v5247
        %5509 = vmatprep.subr.mxu0 0.0
        %5510 = vmatpush1.msra.mxu0 %v5250
        %5511 = vmatprep.subr.mxu0 0.0
        %5512 = vmatpush1.msra.mxu0 %v5253
        %5513 = vmatprep.subr.mxu0 0.0
        %5514 = vmatpush1.msra.mxu0 %v5256
        %5515 = vmatprep.subr.mxu0 0.0
        %5516 = vmatpush1.msra.mxu0 %v5259
        %5517 = vmatprep.subr.mxu0 0.0
        %5518 = vmatpush1.msra.mxu0 %v5262
        %5519 = vmatprep.subr.mxu0 0.0
        %5520 = vmatpush1.msra.mxu0 %v5265
        %5521 = vmatprep.subr.mxu0 0.0
        %5522 = vmatpush1.msra.mxu0 %v5268
        %5523 = vmatprep.subr.mxu0 0.0
        %5524 = vmatpush1.msra.mxu0 %v5271
        %5525 = vmatprep.subr.mxu0 0.0
        %5526 = vmatpush1.msra.mxu0 %v5274
        %5527 = vmatprep.subr.mxu0 0.0
        %5528 = vmatpush1.msra.mxu0 %v5277
        %5529 = vmatprep.subr.mxu0 0.0
        %5530 = vmatpush1.msra.mxu0 %v5280
        %5531 = vmatprep.subr.mxu0 0.0
        %5532 = vmatpush1.msra.mxu0 %v5283
        %5533 = vmatprep.subr.mxu0 0.0
        %5534 = vmatpush1.msra.mxu0 %v5286
        %5535 = vmatprep.mubr.f32.mxu0 %v5186
        %5536 = vmatmul.mubr.f32.gmra.mrb[0].mxu0 %v5185
        %v5537 = vpop.f32.mrb[0].mxu0
        %v5538 = vadd.f32 0.0, %v5537
        %v5539 = vpop.f32.mrb[0].mxu0
        %5540 = vmatprep.mubr.f32.mxu0 %v5189
        %5541 = vmatmul.mubr.f32.gmra.mrb[0].mxu0 %v5188
        %v5542 = vpop.f32.mrb[0].mxu0
        %v5543 = vadd.f32 0.0, %v5542
        %v5544 = vpop.f32.mrb[0].mxu0
        %5545 = vdwg.mxu0
        %5546 = vmatprep.subr.mxu0 0.0
        %5547 = vmatpush1.msra.mxu0 %v5289
        %5548 = vmatprep.subr.mxu0 0.0
        %5549 = vmatpush1.msra.mxu0 %v5292
        %5550 = vmatprep.subr.mxu0 0.0
        %5551 = vmatpush1.msra.mxu0 %v5295
        %5552 = vmatprep.subr.mxu0 0.0
        %5553 = vmatpush1.msra.mxu0 %v5298
        %5554 = vmatprep.subr.mxu0 0.0
        %5555 = vmatpush1.msra.mxu0 %v5301
        %5556 = vmatprep.subr.mxu0 0.0
        %5557 = vmatpush1.msra.mxu0 %v5304
        %5558 = vmatprep.subr.mxu0 0.0
        %5559 = vmatpush1.msra.mxu0 %v5307
        %5560 = vmatprep.subr.mxu0 0.0
        %5561 = vmatpush1.msra.mxu0 %v5310
        %5562 = vmatprep.subr.mxu0 0.0
        %5563 = vmatpush1.msra.mxu0 0.0
        %5564 = vmatprep.subr.mxu0 0.0
        %5565 = vmatpush1.msra.mxu0 0.0
        %5566 = vmatprep.subr.mxu0 0.0
        %5567 = vmatpush1.msra.mxu0 0.0
        %5568 = vmatprep.subr.mxu0 0.0
        %5569 = vmatpush1.msra.mxu0 0.0
        %5570 = vmatprep.subr.mxu0 0.0
        %5571 = vmatpush1.msra.mxu0 0.0
        %5572 = vmatprep.subr.mxu0 0.0
        %5573 = vmatpush1.msra.mxu0 0.0
        %5574 = vmatprep.subr.mxu0 0.0
        %5575 = vmatpush1.msra.mxu0 0.0
        %5576 = vmatprep.subr.mxu0 0.0
        %5577 = vmatpush1.msra.mxu0 0.0
        %5578 = vmatprep.subr.mxu0 0.0
        %5579 = vmatpush1.msra.mxu0 0.0
        %5580 = vmatprep.subr.mxu0 0.0
        %5581 = vmatpush1.msra.mxu0 0.0
        %5582 = vmatprep.subr.mxu0 0.0
        %5583 = vmatpush1.msra.mxu0 0.0
        %5584 = vmatprep.subr.mxu0 0.0
        %5585 = vmatpush1.msra.mxu0 0.0
        %5586 = vmatprep.subr.mxu0 0.0
        %5587 = vmatpush1.msra.mxu0 0.0
        %5588 = vmatprep.subr.mxu0 0.0
        %5589 = vmatpush1.msra.mxu0 0.0
        %5590 = vmatprep.subr.mxu0 0.0
        %5591 = vmatpush1.msra.mxu0 0.0
        %5592 = vmatprep.subr.mxu0 0.0
        %5593 = vmatpush1.msra.mxu0 0.0
        %5594 = vmatprep.subr.mxu0 0.0
        %5595 = vmatpush1.msra.mxu0 0.0
        %5596 = vmatprep.subr.mxu0 0.0
        %5597 = vmatpush1.msra.mxu0 0.0
        %5598 = vmatprep.subr.mxu0 0.0
        %5599 = vmatpush1.msra.mxu0 0.0
        %5600 = vmatprep.subr.mxu0 0.0
        %5601 = vmatpush1.msra.mxu0 0.0
        %5602 = vmatprep.subr.mxu0 0.0
        %5603 = vmatpush1.msra.mxu0 0.0
        %5604 = vmatprep.subr.mxu0 0.0
        %5605 = vmatpush1.msra.mxu0 0.0
        %5606 = vmatprep.subr.mxu0 0.0
        %5607 = vmatpush1.msra.mxu0 0.0
        %5608 = vmatprep.subr.mxu0 0.0
        %5609 = vmatpush1.msra.mxu0 0.0
        %5610 = vmatprep.mubr.f32.mxu0 0.0
        %5611 = vmatmul.mubr.f32.gmra.mrb[0].mxu0 %v5312
        %v5612 = vpop.f32.mrb[0].mxu0
        %v5613 = vadd.f32 %v5538, %v5612
        %v5614 = vpop.f32.mrb[0].mxu0
        %5615 = vmatprep.mubr.f32.mxu0 0.0
        %5616 = vmatmul.mubr.f32.gmra.mrb[0].mxu0 %v5315
        %v5617 = vpop.f32.mrb[0].mxu0
        %v5618 = vadd.f32 %v5543, %v5617
        %v5619 = vpop.f32.mrb[0].mxu0
        %5620 = vdwg.mxu0
        %v5621 = vld [vmem:[%s4] sm:$0xff]
        %v5622 = vld [vmem:[%s4 + $0x8] sm:$0xff]
        %v5623 = vld [vmem:[%s4 + $0x10] sm:$0xff]
        %v5624 = vld [vmem:[%s4 + $0x18] sm:$0xff]
        %s5625 = scalar_lea.vmem %s4, 32
        %v5626 = vld [vmem:[%s5625] sm:$0xff]
        %v5627 = vld [vmem:[%s5625 + $0x8] sm:$0xff]
        %v5628 = vld [vmem:[%s5625 + $0x10] sm:$0xff]
        %v5629 = vld [vmem:[%s5625 + $0x18] sm:$0xff]
        %5636 = vrot.lane.b32.xlu0 %v5461, 127
        %v5637 = vpop.permute.xlu0 %5636
        %5638 = vrot.lane.b32.xlu0 %v5463, 127
        %v5639 = vpop.permute.xlu0 %5638
        %5640 = vrot.lane.b32.xlu0 %v5613, 127
        %v5641 = vpop.permute.xlu0 %5640
        %5642 = vrot.lane.b32.xlu0 %v5467, 127
        %v5643 = vpop.permute.xlu0 %5642
        %5644 = vrot.lane.b32.xlu0 %v5469, 127
        %v5645 = vpop.permute.xlu0 %5644
        %5646 = vrot.lane.b32.xlu0 %v5618, 127
        %v5647 = vpop.permute.xlu0 %5646
        %v5648 = vsel %vm632, %v5637, %v5639
        %v5649 = vsel %vm632, %v5639, %v5641
        %v5650 = vsel %vm632, %v5643, %v5645
        %v5651 = vsel %vm632, %v5645, %v5647
        %vm5658 = vcmask 130048
        %v5660 = vsel %vm5658, %v5626, 0
        %v5663 = vsel %vm5658, %v5627, 0
        %v5666 = vsel %vm5658, %v5628, 0
        %v5669 = vsel %vm5658, %v5629, 0
        %5671 = vmatprep.subr.mxu0 %v5649
        %5672 = vmatpush1.msra.mxu0 %v5648
        %5673 = vmatprep.subr.mxu0 %v5651
        %5674 = vmatpush1.msra.mxu0 %v5650
        %5675 = vmatprep.subr.mxu0 0.0
        %5676 = vmatpush1.msra.mxu0 0.0
        %5677 = vmatprep.subr.mxu0 0.0
        %5678 = vmatpush1.msra.mxu0 0.0
        %5679 = vmatprep.subr.mxu0 0.0
        %5680 = vmatpush1.msra.mxu0 0.0
        %5681 = vmatprep.subr.mxu0 0.0
        %5682 = vmatpush1.msra.mxu0 0.0
        %5683 = vmatprep.subr.mxu0 0.0
        %5684 = vmatpush1.msra.mxu0 0.0
        %5685 = vmatprep.subr.mxu0 0.0
        %5686 = vmatpush1.msra.mxu0 0.0
        %5687 = vmatprep.subr.mxu0 0.0
        %5688 = vmatpush1.msra.mxu0 0.0
        %5689 = vmatprep.subr.mxu0 0.0
        %5690 = vmatpush1.msra.mxu0 0.0
        %5691 = vmatprep.subr.mxu0 0.0
        %5692 = vmatpush1.msra.mxu0 0.0
        %5693 = vmatprep.subr.mxu0 0.0
        %5694 = vmatpush1.msra.mxu0 0.0
        %5695 = vmatprep.subr.mxu0 0.0
        %5696 = vmatpush1.msra.mxu0 0.0
        %5697 = vmatprep.subr.mxu0 0.0
        %5698 = vmatpush1.msra.mxu0 0.0
        %5699 = vmatprep.subr.mxu0 0.0
        %5700 = vmatpush1.msra.mxu0 0.0
        %5701 = vmatprep.subr.mxu0 0.0
        %5702 = vmatpush1.msra.mxu0 0.0
        %5703 = vmatprep.subr.mxu0 0.0
        %5704 = vmatpush1.msra.mxu0 0.0
        %5705 = vmatprep.subr.mxu0 0.0
        %5706 = vmatpush1.msra.mxu0 0.0
        %5707 = vmatprep.subr.mxu0 0.0
        %5708 = vmatpush1.msra.mxu0 0.0
        %5709 = vmatprep.subr.mxu0 0.0
        %5710 = vmatpush1.msra.mxu0 0.0
        %5711 = vmatprep.subr.mxu0 0.0
        %5712 = vmatpush1.msra.mxu0 0.0
        %5713 = vmatprep.subr.mxu0 0.0
        %5714 = vmatpush1.msra.mxu0 0.0
        %5715 = vmatprep.subr.mxu0 0.0
        %5716 = vmatpush1.msra.mxu0 0.0
        %5717 = vmatprep.subr.mxu0 0.0
        %5718 = vmatpush1.msra.mxu0 0.0
        %5719 = vmatprep.subr.mxu0 0.0
        %5720 = vmatpush1.msra.mxu0 0.0
        %5721 = vmatprep.subr.mxu0 0.0
        %5722 = vmatpush1.msra.mxu0 0.0
        %5723 = vmatprep.subr.mxu0 0.0
        %5724 = vmatpush1.msra.mxu0 0.0
        %5725 = vmatprep.subr.mxu0 0.0
        %5726 = vmatpush1.msra.mxu0 0.0
        %5727 = vmatprep.subr.mxu0 0.0
        %5728 = vmatpush1.msra.mxu0 0.0
        %5729 = vmatprep.subr.mxu0 0.0
        %5730 = vmatpush1.msra.mxu0 0.0
        %5731 = vmatprep.subr.mxu0 0.0
        %5732 = vmatpush1.msra.mxu0 0.0
        %5733 = vmatprep.subr.mxu0 0.0
        %5734 = vmatpush1.msra.mxu0 0.0
        %5735 = vmatprep.mubr.f32.mxu0 0.0
        %5736 = vmatmul.mubr.f32.gmra.mrb[0].mxu0 %v5660
        %v5737 = vpop.f32.mrb[0].mxu0
        %v5738 = vadd.f32 0.0, %v5737
        %v5739 = vpop.f32.mrb[0].mxu0
        %v5740 = vadd.f32 0.0, %v5739
        %5741 = vmatprep.mubr.f32.mxu0 0.0
        %5742 = vmatmul.mubr.f32.gmra.mrb[0].mxu0 %v5663
        %v5743 = vpop.f32.mrb[0].mxu0
        %v5744 = vadd.f32 0.0, %v5743
        %v5745 = vpop.f32.mrb[0].mxu0
        %v5746 = vadd.f32 0.0, %v5745
        %5747 = vmatprep.mubr.f32.mxu0 0.0
        %5748 = vmatmul.mubr.f32.gmra.mrb[0].mxu0 %v5666
        %v5749 = vpop.f32.mrb[0].mxu0
        %v5750 = vadd.f32 0.0, %v5749
        %v5751 = vpop.f32.mrb[0].mxu0
        %v5752 = vadd.f32 0.0, %v5751
        %5753 = vmatprep.mubr.f32.mxu0 0.0
        %5754 = vmatmul.mubr.f32.gmra.mrb[0].mxu0 %v5669
        %v5755 = vpop.f32.mrb[0].mxu0
        %v5756 = vadd.f32 0.0, %v5755
        %v5757 = vpop.f32.mrb[0].mxu0
        %v5758 = vadd.f32 0.0, %v5757
        %5759 = vdwg.mxu0
        %5760 = vmatprep.subr.mxu0 0.0
        %5761 = vmatpush1.msra.mxu0 %v5641
        %5762 = vmatprep.subr.mxu0 0.0
        %5763 = vmatpush1.msra.mxu0 %v5647
        %5764 = vmatprep.subr.mxu0 0.0
        %5765 = vmatpush1.msra.mxu0 0.0
        %5766 = vmatprep.subr.mxu0 0.0
        %5767 = vmatpush1.msra.mxu0 0.0
        %5768 = vmatprep.subr.mxu0 0.0
        %5769 = vmatpush1.msra.mxu0 0.0
        %5770 = vmatprep.subr.mxu0 0.0
        %5771 = vmatpush1.msra.mxu0 0.0
        %5772 = vmatprep.subr.mxu0 0.0
        %5773 = vmatpush1.msra.mxu0 0.0
        %5774 = vmatprep.subr.mxu0 0.0
        %5775 = vmatpush1.msra.mxu0 0.0
        %5776 = vmatprep.subr.mxu0 0.0
        %5777 = vmatpush1.msra.mxu0 0.0
        %5778 = vmatprep.subr.mxu0 0.0
        %5779 = vmatpush1.msra.mxu0 0.0
        %5780 = vmatprep.subr.mxu0 0.0
        %5781 = vmatpush1.msra.mxu0 0.0
        %5782 = vmatprep.subr.mxu0 0.0
        %5783 = vmatpush1.msra.mxu0 0.0
        %5784 = vmatprep.subr.mxu0 0.0
        %5785 = vmatpush1.msra.mxu0 0.0
        %5786 = vmatprep.subr.mxu0 0.0
        %5787 = vmatpush1.msra.mxu0 0.0
        %5788 = vmatprep.subr.mxu0 0.0
        %5789 = vmatpush1.msra.mxu0 0.0
        %5790 = vmatprep.subr.mxu0 0.0
        %5791 = vmatpush1.msra.mxu0 0.0
        %5792 = vmatprep.subr.mxu0 0.0
        %5793 = vmatpush1.msra.mxu0 0.0
        %5794 = vmatprep.subr.mxu0 0.0
        %5795 = vmatpush1.msra.mxu0 0.0
        %5796 = vmatprep.subr.mxu0 0.0
        %5797 = vmatpush1.msra.mxu0 0.0
        %5798 = vmatprep.subr.mxu0 0.0
        %5799 = vmatpush1.msra.mxu0 0.0
        %5800 = vmatprep.subr.mxu0 0.0
        %5801 = vmatpush1.msra.mxu0 0.0
        %5802 = vmatprep.subr.mxu0 0.0
        %5803 = vmatpush1.msra.mxu0 0.0
        %5804 = vmatprep.subr.mxu0 0.0
        %5805 = vmatpush1.msra.mxu0 0.0
        %5806 = vmatprep.subr.mxu0 0.0
        %5807 = vmatpush1.msra.mxu0 0.0
        %5808 = vmatprep.subr.mxu0 0.0
        %5809 = vmatpush1.msra.mxu0 0.0
        %5810 = vmatprep.subr.mxu0 0.0
        %5811 = vmatpush1.msra.mxu0 0.0
        %5812 = vmatprep.subr.mxu0 0.0
        %5813 = vmatpush1.msra.mxu0 0.0
        %5814 = vmatprep.subr.mxu0 0.0
        %5815 = vmatpush1.msra.mxu0 0.0
        %5816 = vmatprep.subr.mxu0 0.0
        %5817 = vmatpush1.msra.mxu0 0.0
        %5818 = vmatprep.subr.mxu0 0.0
        %5819 = vmatpush1.msra.mxu0 0.0
        %5820 = vmatprep.subr.mxu0 0.0
        %5821 = vmatpush1.msra.mxu0 0.0
        %5822 = vmatprep.subr.mxu0 0.0
        %5823 = vmatpush1.msra.mxu0 0.0
        %5824 = vmatprep.mubr.f32.mxu0 0.0
        %5825 = vmatmul.mubr.f32.gmra.mrb[0].mxu0 %v5660
        %v5826 = vpop.f32.mrb[0].mxu0
        %v5827 = vadd.f32 0.0, %v5826
        %v5828 = vpop.f32.mrb[0].mxu0
        %5829 = vmatprep.mubr.f32.mxu0 0.0
        %5830 = vmatmul.mubr.f32.gmra.mrb[0].mxu0 %v5663
        %v5831 = vpop.f32.mrb[0].mxu0
        %v5832 = vadd.f32 0.0, %v5831
        %v5833 = vpop.f32.mrb[0].mxu0
        %5834 = vmatprep.mubr.f32.mxu0 0.0
        %5835 = vmatmul.mubr.f32.gmra.mrb[0].mxu0 %v5666
        %v5836 = vpop.f32.mrb[0].mxu0
        %v5837 = vadd.f32 0.0, %v5836
        %v5838 = vpop.f32.mrb[0].mxu0
        %5839 = vmatprep.mubr.f32.mxu0 0.0
        %5840 = vmatmul.mubr.f32.gmra.mrb[0].mxu0 %v5669
        %v5841 = vpop.f32.mrb[0].mxu0
        %v5842 = vadd.f32 0.0, %v5841
        %v5843 = vpop.f32.mrb[0].mxu0
        %5844 = vdwg.mxu0
        %v5846 = vsel %vm5658, %v5621, 0
        %v5849 = vsel %vm5658, %v5622, 0
        %v5852 = vsel %vm5658, %v5623, 0
        %v5855 = vsel %vm5658, %v5624, 0
        %5857 = vmatprep.subr.mxu0 %v5463
        %5858 = vmatpush1.msra.mxu0 %v5461
        %5859 = vmatprep.subr.mxu0 %v5469
        %5860 = vmatpush1.msra.mxu0 %v5467
        %5861 = vmatprep.subr.mxu0 0.0
        %5862 = vmatpush1.msra.mxu0 0.0
        %5863 = vmatprep.subr.mxu0 0.0
        %5864 = vmatpush1.msra.mxu0 0.0
        %5865 = vmatprep.subr.mxu0 0.0
        %5866 = vmatpush1.msra.mxu0 0.0
        %5867 = vmatprep.subr.mxu0 0.0
        %5868 = vmatpush1.msra.mxu0 0.0
        %5869 = vmatprep.subr.mxu0 0.0
        %5870 = vmatpush1.msra.mxu0 0.0
        %5871 = vmatprep.subr.mxu0 0.0
        %5872 = vmatpush1.msra.mxu0 0.0
        %5873 = vmatprep.subr.mxu0 0.0
        %5874 = vmatpush1.msra.mxu0 0.0
        %5875 = vmatprep.subr.mxu0 0.0
        %5876 = vmatpush1.msra.mxu0 0.0
        %5877 = vmatprep.subr.mxu0 0.0
        %5878 = vmatpush1.msra.mxu0 0.0
        %5879 = vmatprep.subr.mxu0 0.0
        %5880 = vmatpush1.msra.mxu0 0.0
        %5881 = vmatprep.subr.mxu0 0.0
        %5882 = vmatpush1.msra.mxu0 0.0
        %5883 = vmatprep.subr.mxu0 0.0
        %5884 = vmatpush1.msra.mxu0 0.0
        %5885 = vmatprep.subr.mxu0 0.0
        %5886 = vmatpush1.msra.mxu0 0.0
        %5887 = vmatprep.subr.mxu0 0.0
        %5888 = vmatpush1.msra.mxu0 0.0
        %5889 = vmatprep.subr.mxu0 0.0
        %5890 = vmatpush1.msra.mxu0 0.0
        %5891 = vmatprep.subr.mxu0 0.0
        %5892 = vmatpush1.msra.mxu0 0.0
        %5893 = vmatprep.subr.mxu0 0.0
        %5894 = vmatpush1.msra.mxu0 0.0
        %5895 = vmatprep.subr.mxu0 0.0
        %5896 = vmatpush1.msra.mxu0 0.0
        %5897 = vmatprep.subr.mxu0 0.0
        %5898 = vmatpush1.msra.mxu0 0.0
        %5899 = vmatprep.subr.mxu0 0.0
        %5900 = vmatpush1.msra.mxu0 0.0
        %5901 = vmatprep.subr.mxu0 0.0
        %5902 = vmatpush1.msra.mxu0 0.0
        %5903 = vmatprep.subr.mxu0 0.0
        %5904 = vmatpush1.msra.mxu0 0.0
        %5905 = vmatprep.subr.mxu0 0.0
        %5906 = vmatpush1.msra.mxu0 0.0
        %5907 = vmatprep.subr.mxu0 0.0
        %5908 = vmatpush1.msra.mxu0 0.0
        %5909 = vmatprep.subr.mxu0 0.0
        %5910 = vmatpush1.msra.mxu0 0.0
        %5911 = vmatprep.subr.mxu0 0.0
        %5912 = vmatpush1.msra.mxu0 0.0
        %5913 = vmatprep.subr.mxu0 0.0
        %5914 = vmatpush1.msra.mxu0 0.0
        %5915 = vmatprep.subr.mxu0 0.0
        %5916 = vmatpush1.msra.mxu0 0.0
        %5917 = vmatprep.subr.mxu0 0.0
        %5918 = vmatpush1.msra.mxu0 0.0
        %5919 = vmatprep.subr.mxu0 0.0
        %5920 = vmatpush1.msra.mxu0 0.0
        %5921 = vmatprep.mubr.f32.mxu0 0.0
        %5922 = vmatmul.mubr.f32.gmra.mrb[0].mxu0 %v5846
        %v5923 = vpop.f32.mrb[0].mxu0
        %v5924 = vadd.f32 %v5738, %v5923
        %v5925 = vpop.f32.mrb[0].mxu0
        %v5926 = vadd.f32 %v5740, %v5925
        %5927 = vmatprep.mubr.f32.mxu0 0.0
        %5928 = vmatmul.mubr.f32.gmra.mrb[0].mxu0 %v5849
        %v5929 = vpop.f32.mrb[0].mxu0
        %v5930 = vadd.f32 %v5744, %v5929
        %v5931 = vpop.f32.mrb[0].mxu0
        %v5932 = vadd.f32 %v5746, %v5931
        %5933 = vmatprep.mubr.f32.mxu0 0.0
        %5934 = vmatmul.mubr.f32.gmra.mrb[0].mxu0 %v5852
        %v5935 = vpop.f32.mrb[0].mxu0
        %v5936 = vadd.f32 %v5750, %v5935
        %v5937 = vpop.f32.mrb[0].mxu0
        %v5938 = vadd.f32 %v5752, %v5937
        %5939 = vmatprep.mubr.f32.mxu0 0.0
        %5940 = vmatmul.mubr.f32.gmra.mrb[0].mxu0 %v5855
        %v5941 = vpop.f32.mrb[0].mxu0
        %v5942 = vadd.f32 %v5756, %v5941
        %v5943 = vpop.f32.mrb[0].mxu0
        %v5944 = vadd.f32 %v5758, %v5943
        %5945 = vdwg.mxu0
        %5946 = vmatprep.subr.mxu0 0.0
        %5947 = vmatpush1.msra.mxu0 %v5613
        %5948 = vmatprep.subr.mxu0 0.0
        %5949 = vmatpush1.msra.mxu0 %v5618
        %5950 = vmatprep.subr.mxu0 0.0
        %5951 = vmatpush1.msra.mxu0 0.0
        %5952 = vmatprep.subr.mxu0 0.0
        %5953 = vmatpush1.msra.mxu0 0.0
        %5954 = vmatprep.subr.mxu0 0.0
        %5955 = vmatpush1.msra.mxu0 0.0
        %5956 = vmatprep.subr.mxu0 0.0
        %5957 = vmatpush1.msra.mxu0 0.0
        %5958 = vmatprep.subr.mxu0 0.0
        %5959 = vmatpush1.msra.mxu0 0.0
        %5960 = vmatprep.subr.mxu0 0.0
        %5961 = vmatpush1.msra.mxu0 0.0
        %5962 = vmatprep.subr.mxu0 0.0
        %5963 = vmatpush1.msra.mxu0 0.0
        %5964 = vmatprep.subr.mxu0 0.0
        %5965 = vmatpush1.msra.mxu0 0.0
        %5966 = vmatprep.subr.mxu0 0.0
        %5967 = vmatpush1.msra.mxu0 0.0
        %5968 = vmatprep.subr.mxu0 0.0
        %5969 = vmatpush1.msra.mxu0 0.0
        %5970 = vmatprep.subr.mxu0 0.0
        %5971 = vmatpush1.msra.mxu0 0.0
        %5972 = vmatprep.subr.mxu0 0.0
        %5973 = vmatpush1.msra.mxu0 0.0
        %5974 = vmatprep.subr.mxu0 0.0
        %5975 = vmatpush1.msra.mxu0 0.0
        %5976 = vmatprep.subr.mxu0 0.0
        %5977 = vmatpush1.msra.mxu0 0.0
        %5978 = vmatprep.subr.mxu0 0.0
        %5979 = vmatpush1.msra.mxu0 0.0
        %5980 = vmatprep.subr.mxu0 0.0
        %5981 = vmatpush1.msra.mxu0 0.0
        %5982 = vmatprep.subr.mxu0 0.0
        %5983 = vmatpush1.msra.mxu0 0.0
        %5984 = vmatprep.subr.mxu0 0.0
        %5985 = vmatpush1.msra.mxu0 0.0
        %5986 = vmatprep.subr.mxu0 0.0
        %5987 = vmatpush1.msra.mxu0 0.0
        %5988 = vmatprep.subr.mxu0 0.0
        %5989 = vmatpush1.msra.mxu0 0.0
        %5990 = vmatprep.subr.mxu0 0.0
        %5991 = vmatpush1.msra.mxu0 0.0
        %5992 = vmatprep.subr.mxu0 0.0
        %5993 = vmatpush1.msra.mxu0 0.0
        %5994 = vmatprep.subr.mxu0 0.0
        %5995 = vmatpush1.msra.mxu0 0.0
        %5996 = vmatprep.subr.mxu0 0.0
        %5997 = vmatpush1.msra.mxu0 0.0
        %5998 = vmatprep.subr.mxu0 0.0
        %5999 = vmatpush1.msra.mxu0 0.0
        %6000 = vmatprep.subr.mxu0 0.0
        %6001 = vmatpush1.msra.mxu0 0.0
        %6002 = vmatprep.subr.mxu0 0.0
        %6003 = vmatpush1.msra.mxu0 0.0
        %6004 = vmatprep.subr.mxu0 0.0
        %6005 = vmatpush1.msra.mxu0 0.0
        %6006 = vmatprep.subr.mxu0 0.0
        %6007 = vmatpush1.msra.mxu0 0.0
        %6008 = vmatprep.subr.mxu0 0.0
        %6009 = vmatpush1.msra.mxu0 0.0
        %6010 = vmatprep.mubr.f32.mxu0 0.0
        %6011 = vmatmul.mubr.f32.gmra.mrb[0].mxu0 %v5846
        %v6012 = vpop.f32.mrb[0].mxu0
        %v6013 = vadd.f32 %v5827, %v6012
        %v6014 = vpop.f32.mrb[0].mxu0
        %6015 = vmatprep.mubr.f32.mxu0 0.0
        %6016 = vmatmul.mubr.f32.gmra.mrb[0].mxu0 %v5849
        %v6017 = vpop.f32.mrb[0].mxu0
        %v6018 = vadd.f32 %v5832, %v6017
        %v6019 = vpop.f32.mrb[0].mxu0
        %6020 = vmatprep.mubr.f32.mxu0 0.0
        %6021 = vmatmul.mubr.f32.gmra.mrb[0].mxu0 %v5852
        %v6022 = vpop.f32.mrb[0].mxu0
        %v6023 = vadd.f32 %v5837, %v6022
        %v6024 = vpop.f32.mrb[0].mxu0
        %6025 = vmatprep.mubr.f32.mxu0 0.0
        %6026 = vmatmul.mubr.f32.gmra.mrb[0].mxu0 %v5855
        %v6027 = vpop.f32.mrb[0].mxu0
        %v6028 = vadd.f32 %v5842, %v6027
        %v6029 = vpop.f32.mrb[0].mxu0
        %6030 = vdwg.mxu0
        %s6031 = scalar_lea.vmem %s4, 64
        %v6032 = vld [vmem:[%s6031] sm:$0xff]
        %v6033 = vld [vmem:[%s6031 + $0x8] sm:$0xff]
        %v6034 = vld [vmem:[%s6031 + $0x10] sm:$0xff]
        %v6035 = vld [vmem:[%s6031 + $0x18] sm:$0xff]
        %6036 = vrot.lane.b32.xlu0 %v5461, 126
        %v6037 = vpop.permute.xlu0 %6036
        %6038 = vrot.lane.b32.xlu0 %v5463, 126
        %v6039 = vpop.permute.xlu0 %6038
        %6040 = vrot.lane.b32.xlu0 %v5613, 126
        %v6041 = vpop.permute.xlu0 %6040
        %6042 = vrot.lane.b32.xlu0 %v5467, 126
        %v6043 = vpop.permute.xlu0 %6042
        %6044 = vrot.lane.b32.xlu0 %v5469, 126
        %v6045 = vpop.permute.xlu0 %6044
        %6046 = vrot.lane.b32.xlu0 %v5618, 126
        %v6047 = vpop.permute.xlu0 %6046
        %v6048 = vsel %vm974, %v6037, %v6039
        %v6049 = vsel %vm974, %v6039, %v6041
        %v6050 = vsel %vm974, %v6043, %v6045
        %v6051 = vsel %vm974, %v6045, %v6047
        %v6059 = vsel %vm5658, %v6032, 0
        %v6062 = vsel %vm5658, %v6033, 0
        %v6065 = vsel %vm5658, %v6034, 0
        %v6068 = vsel %vm5658, %v6035, 0
        %6070 = vmatprep.subr.mxu0 %v6049
        %6071 = vmatpush1.msra.mxu0 %v6048
        %6072 = vmatprep.subr.mxu0 %v6051
        %6073 = vmatpush1.msra.mxu0 %v6050
        %6074 = vmatprep.subr.mxu0 0.0
        %6075 = vmatpush1.msra.mxu0 0.0
        %6076 = vmatprep.subr.mxu0 0.0
        %6077 = vmatpush1.msra.mxu0 0.0
        %6078 = vmatprep.subr.mxu0 0.0
        %6079 = vmatpush1.msra.mxu0 0.0
        %6080 = vmatprep.subr.mxu0 0.0
        %6081 = vmatpush1.msra.mxu0 0.0
        %6082 = vmatprep.subr.mxu0 0.0
        %6083 = vmatpush1.msra.mxu0 0.0
        %6084 = vmatprep.subr.mxu0 0.0
        %6085 = vmatpush1.msra.mxu0 0.0
        %6086 = vmatprep.subr.mxu0 0.0
        %6087 = vmatpush1.msra.mxu0 0.0
        %6088 = vmatprep.subr.mxu0 0.0
        %6089 = vmatpush1.msra.mxu0 0.0
        %6090 = vmatprep.subr.mxu0 0.0
        %6091 = vmatpush1.msra.mxu0 0.0
        %6092 = vmatprep.subr.mxu0 0.0
        %6093 = vmatpush1.msra.mxu0 0.0
        %6094 = vmatprep.subr.mxu0 0.0
        %6095 = vmatpush1.msra.mxu0 0.0
        %6096 = vmatprep.subr.mxu0 0.0
        %6097 = vmatpush1.msra.mxu0 0.0
        %6098 = vmatprep.subr.mxu0 0.0
        %6099 = vmatpush1.msra.mxu0 0.0
        %6100 = vmatprep.subr.mxu0 0.0
        %6101 = vmatpush1.msra.mxu0 0.0
        %6102 = vmatprep.subr.mxu0 0.0
        %6103 = vmatpush1.msra.mxu0 0.0
        %6104 = vmatprep.subr.mxu0 0.0
        %6105 = vmatpush1.msra.mxu0 0.0
        %6106 = vmatprep.subr.mxu0 0.0
        %6107 = vmatpush1.msra.mxu0 0.0
        %6108 = vmatprep.subr.mxu0 0.0
        %6109 = vmatpush1.msra.mxu0 0.0
        %6110 = vmatprep.subr.mxu0 0.0
        %6111 = vmatpush1.msra.mxu0 0.0
        %6112 = vmatprep.subr.mxu0 0.0
        %6113 = vmatpush1.msra.mxu0 0.0
        %6114 = vmatprep.subr.mxu0 0.0
        %6115 = vmatpush1.msra.mxu0 0.0
        %6116 = vmatprep.subr.mxu0 0.0
        %6117 = vmatpush1.msra.mxu0 0.0
        %6118 = vmatprep.subr.mxu0 0.0
        %6119 = vmatpush1.msra.mxu0 0.0
        %6120 = vmatprep.subr.mxu0 0.0
        %6121 = vmatpush1.msra.mxu0 0.0
        %6122 = vmatprep.subr.mxu0 0.0
        %6123 = vmatpush1.msra.mxu0 0.0
        %6124 = vmatprep.subr.mxu0 0.0
        %6125 = vmatpush1.msra.mxu0 0.0
        %6126 = vmatprep.subr.mxu0 0.0
        %6127 = vmatpush1.msra.mxu0 0.0
        %6128 = vmatprep.subr.mxu0 0.0
        %6129 = vmatpush1.msra.mxu0 0.0
        %6130 = vmatprep.subr.mxu0 0.0
        %6131 = vmatpush1.msra.mxu0 0.0
        %6132 = vmatprep.subr.mxu0 0.0
        %6133 = vmatpush1.msra.mxu0 0.0
        %6134 = vmatprep.mubr.f32.mxu0 0.0
        %6135 = vmatmul.mubr.f32.gmra.mrb[0].mxu0 %v6059
        %v6136 = vpop.f32.mrb[0].mxu0
        %v6137 = vadd.f32 0.0, %v6136
        %v6138 = vpop.f32.mrb[0].mxu0
        %v6139 = vadd.f32 0.0, %v6138
        %6140 = vmatprep.mubr.f32.mxu0 0.0
        %6141 = vmatmul.mubr.f32.gmra.mrb[0].mxu0 %v6062
        %v6142 = vpop.f32.mrb[0].mxu0
        %v6143 = vadd.f32 0.0, %v6142
        %v6144 = vpop.f32.mrb[0].mxu0
        %v6145 = vadd.f32 0.0, %v6144
        %6146 = vmatprep.mubr.f32.mxu0 0.0
        %6147 = vmatmul.mubr.f32.gmra.mrb[0].mxu0 %v6065
        %v6148 = vpop.f32.mrb[0].mxu0
        %v6149 = vadd.f32 0.0, %v6148
        %v6150 = vpop.f32.mrb[0].mxu0
        %v6151 = vadd.f32 0.0, %v6150
        %6152 = vmatprep.mubr.f32.mxu0 0.0
        %6153 = vmatmul.mubr.f32.gmra.mrb[0].mxu0 %v6068
        %v6154 = vpop.f32.mrb[0].mxu0
        %v6155 = vadd.f32 0.0, %v6154
        %v6156 = vpop.f32.mrb[0].mxu0
        %v6157 = vadd.f32 0.0, %v6156
        %6158 = vdwg.mxu0
        %6159 = vmatprep.subr.mxu0 0.0
        %6160 = vmatpush1.msra.mxu0 %v6041
        %6161 = vmatprep.subr.mxu0 0.0
        %6162 = vmatpush1.msra.mxu0 %v6047
        %6163 = vmatprep.subr.mxu0 0.0
        %6164 = vmatpush1.msra.mxu0 0.0
        %6165 = vmatprep.subr.mxu0 0.0
        %6166 = vmatpush1.msra.mxu0 0.0
        %6167 = vmatprep.subr.mxu0 0.0
        %6168 = vmatpush1.msra.mxu0 0.0
        %6169 = vmatprep.subr.mxu0 0.0
        %6170 = vmatpush1.msra.mxu0 0.0
        %6171 = vmatprep.subr.mxu0 0.0
        %6172 = vmatpush1.msra.mxu0 0.0
        %6173 = vmatprep.subr.mxu0 0.0
        %6174 = vmatpush1.msra.mxu0 0.0
        %6175 = vmatprep.subr.mxu0 0.0
        %6176 = vmatpush1.msra.mxu0 0.0
        %6177 = vmatprep.subr.mxu0 0.0
        %6178 = vmatpush1.msra.mxu0 0.0
        %6179 = vmatprep.subr.mxu0 0.0
        %6180 = vmatpush1.msra.mxu0 0.0
        %6181 = vmatprep.subr.mxu0 0.0
        %6182 = vmatpush1.msra.mxu0 0.0
        %6183 = vmatprep.subr.mxu0 0.0
        %6184 = vmatpush1.msra.mxu0 0.0
        %6185 = vmatprep.subr.mxu0 0.0
        %6186 = vmatpush1.msra.mxu0 0.0
        %6187 = vmatprep.subr.mxu0 0.0
        %6188 = vmatpush1.msra.mxu0 0.0
        %6189 = vmatprep.subr.mxu0 0.0
        %6190 = vmatpush1.msra.mxu0 0.0
        %6191 = vmatprep.subr.mxu0 0.0
        %6192 = vmatpush1.msra.mxu0 0.0
        %6193 = vmatprep.subr.mxu0 0.0
        %6194 = vmatpush1.msra.mxu0 0.0
        %6195 = vmatprep.subr.mxu0 0.0
        %6196 = vmatpush1.msra.mxu0 0.0
        %6197 = vmatprep.subr.mxu0 0.0
        %6198 = vmatpush1.msra.mxu0 0.0
        %6199 = vmatprep.subr.mxu0 0.0
        %6200 = vmatpush1.msra.mxu0 0.0
        %6201 = vmatprep.subr.mxu0 0.0
        %6202 = vmatpush1.msra.mxu0 0.0
        %6203 = vmatprep.subr.mxu0 0.0
        %6204 = vmatpush1.msra.mxu0 0.0
        %6205 = vmatprep.subr.mxu0 0.0
        %6206 = vmatpush1.msra.mxu0 0.0
        %6207 = vmatprep.subr.mxu0 0.0
        %6208 = vmatpush1.msra.mxu0 0.0
        %6209 = vmatprep.subr.mxu0 0.0
        %6210 = vmatpush1.msra.mxu0 0.0
        %6211 = vmatprep.subr.mxu0 0.0
        %6212 = vmatpush1.msra.mxu0 0.0
        %6213 = vmatprep.subr.mxu0 0.0
        %6214 = vmatpush1.msra.mxu0 0.0
        %6215 = vmatprep.subr.mxu0 0.0
        %6216 = vmatpush1.msra.mxu0 0.0
        %6217 = vmatprep.subr.mxu0 0.0
        %6218 = vmatpush1.msra.mxu0 0.0
        %6219 = vmatprep.subr.mxu0 0.0
        %6220 = vmatpush1.msra.mxu0 0.0
        %6221 = vmatprep.subr.mxu0 0.0
        %6222 = vmatpush1.msra.mxu0 0.0
        %6223 = vmatprep.mubr.f32.mxu0 0.0
        %6224 = vmatmul.mubr.f32.gmra.mrb[0].mxu0 %v6059
        %v6225 = vpop.f32.mrb[0].mxu0
        %v6226 = vadd.f32 0.0, %v6225
        %v6227 = vpop.f32.mrb[0].mxu0
        %6228 = vmatprep.mubr.f32.mxu0 0.0
        %6229 = vmatmul.mubr.f32.gmra.mrb[0].mxu0 %v6062
        %v6230 = vpop.f32.mrb[0].mxu0
        %v6231 = vadd.f32 0.0, %v6230
        %v6232 = vpop.f32.mrb[0].mxu0
        %6233 = vmatprep.mubr.f32.mxu0 0.0
        %6234 = vmatmul.mubr.f32.gmra.mrb[0].mxu0 %v6065
        %v6235 = vpop.f32.mrb[0].mxu0
        %v6236 = vadd.f32 0.0, %v6235
        %v6237 = vpop.f32.mrb[0].mxu0
        %6238 = vmatprep.mubr.f32.mxu0 0.0
        %6239 = vmatmul.mubr.f32.gmra.mrb[0].mxu0 %v6068
        %v6240 = vpop.f32.mrb[0].mxu0
        %v6241 = vadd.f32 0.0, %v6240
        %v6242 = vpop.f32.mrb[0].mxu0
        %6243 = vdwg.mxu0
        %v6244 = vadd.f32 %v5924, %v6137
        %v6245 = vadd.f32 %v5926, %v6139
        %v6246 = vadd.f32 %v6013, %v6226
        %v6247 = vadd.f32 %v5930, %v6143
        %v6248 = vadd.f32 %v5932, %v6145
        %v6249 = vadd.f32 %v6018, %v6231
        %v6250 = vadd.f32 %v5936, %v6149
        %v6251 = vadd.f32 %v5938, %v6151
        %v6252 = vadd.f32 %v6023, %v6236
        %v6253 = vadd.f32 %v5942, %v6155
        %v6254 = vadd.f32 %v5944, %v6157
        %v6255 = vadd.f32 %v6028, %v6241
        %s6256 = scalar_lea.vmem %s4, 96
        %v6257 = vld [vmem:[%s6256] sm:$0xff]
        %v6258 = vld [vmem:[%s6256 + $0x8] sm:$0xff]
        %v6259 = vld [vmem:[%s6256 + $0x10] sm:$0xff]
        %v6260 = vld [vmem:[%s6256 + $0x18] sm:$0xff]
        %6261 = vrot.lane.b32.xlu0 %v5461, 110
        %v6262 = vpop.permute.xlu0 %6261
        %6263 = vrot.lane.b32.xlu0 %v5463, 110
        %v6264 = vpop.permute.xlu0 %6263
        %6265 = vrot.lane.b32.xlu0 %v5613, 110
        %v6266 = vpop.permute.xlu0 %6265
        %6267 = vrot.lane.b32.xlu0 %v5467, 110
        %v6268 = vpop.permute.xlu0 %6267
        %6269 = vrot.lane.b32.xlu0 %v5469, 110
        %v6270 = vpop.permute.xlu0 %6269
        %6271 = vrot.lane.b32.xlu0 %v5618, 110
        %v6272 = vpop.permute.xlu0 %6271
        %vm6273 = vcmask 900096
        %v6274 = vsel %vm6273, %v6262, %v6264
        %v6275 = vsel %vm6273, %v6264, %v6266
        %v6276 = vsel %vm6273, %v6268, %v6270
        %v6277 = vsel %vm6273, %v6270, %v6272
        %v6285 = vsel %vm5658, %v6257, 0
        %v6288 = vsel %vm5658, %v6258, 0
        %v6291 = vsel %vm5658, %v6259, 0
        %v6294 = vsel %vm5658, %v6260, 0
        %6296 = vmatprep.subr.mxu0 %v6275
        %6297 = vmatpush1.msra.mxu0 %v6274
        %6298 = vmatprep.subr.mxu0 %v6277
        %6299 = vmatpush1.msra.mxu0 %v6276
        %6300 = vmatprep.subr.mxu0 0.0
        %6301 = vmatpush1.msra.mxu0 0.0
        %6302 = vmatprep.subr.mxu0 0.0
        %6303 = vmatpush1.msra.mxu0 0.0
        %6304 = vmatprep.subr.mxu0 0.0
        %6305 = vmatpush1.msra.mxu0 0.0
        %6306 = vmatprep.subr.mxu0 0.0
        %6307 = vmatpush1.msra.mxu0 0.0
        %6308 = vmatprep.subr.mxu0 0.0
        %6309 = vmatpush1.msra.mxu0 0.0
        %6310 = vmatprep.subr.mxu0 0.0
        %6311 = vmatpush1.msra.mxu0 0.0
        %6312 = vmatprep.subr.mxu0 0.0
        %6313 = vmatpush1.msra.mxu0 0.0
        %6314 = vmatprep.subr.mxu0 0.0
        %6315 = vmatpush1.msra.mxu0 0.0
        %6316 = vmatprep.subr.mxu0 0.0
        %6317 = vmatpush1.msra.mxu0 0.0
        %6318 = vmatprep.subr.mxu0 0.0
        %6319 = vmatpush1.msra.mxu0 0.0
        %6320 = vmatprep.subr.mxu0 0.0
        %6321 = vmatpush1.msra.mxu0 0.0
        %6322 = vmatprep.subr.mxu0 0.0
        %6323 = vmatpush1.msra.mxu0 0.0
        %6324 = vmatprep.subr.mxu0 0.0
        %6325 = vmatpush1.msra.mxu0 0.0
        %6326 = vmatprep.subr.mxu0 0.0
        %6327 = vmatpush1.msra.mxu0 0.0
        %6328 = vmatprep.subr.mxu0 0.0
        %6329 = vmatpush1.msra.mxu0 0.0
        %6330 = vmatprep.subr.mxu0 0.0
        %6331 = vmatpush1.msra.mxu0 0.0
        %6332 = vmatprep.subr.mxu0 0.0
        %6333 = vmatpush1.msra.mxu0 0.0
        %6334 = vmatprep.subr.mxu0 0.0
        %6335 = vmatpush1.msra.mxu0 0.0
        %6336 = vmatprep.subr.mxu0 0.0
        %6337 = vmatpush1.msra.mxu0 0.0
        %6338 = vmatprep.subr.mxu0 0.0
        %6339 = vmatpush1.msra.mxu0 0.0
        %6340 = vmatprep.subr.mxu0 0.0
        %6341 = vmatpush1.msra.mxu0 0.0
        %6342 = vmatprep.subr.mxu0 0.0
        %6343 = vmatpush1.msra.mxu0 0.0
        %6344 = vmatprep.subr.mxu0 0.0
        %6345 = vmatpush1.msra.mxu0 0.0
        %6346 = vmatprep.subr.mxu0 0.0
        %6347 = vmatpush1.msra.mxu0 0.0
        %6348 = vmatprep.subr.mxu0 0.0
        %6349 = vmatpush1.msra.mxu0 0.0
        %6350 = vmatprep.subr.mxu0 0.0
        %6351 = vmatpush1.msra.mxu0 0.0
        %6352 = vmatprep.subr.mxu0 0.0
        %6353 = vmatpush1.msra.mxu0 0.0
        %6354 = vmatprep.subr.mxu0 0.0
        %6355 = vmatpush1.msra.mxu0 0.0
        %6356 = vmatprep.subr.mxu0 0.0
        %6357 = vmatpush1.msra.mxu0 0.0
        %6358 = vmatprep.subr.mxu0 0.0
        %6359 = vmatpush1.msra.mxu0 0.0
        %6360 = vmatprep.mubr.f32.mxu0 0.0
        %6361 = vmatmul.mubr.f32.gmra.mrb[0].mxu0 %v6285
        %v6362 = vpop.f32.mrb[0].mxu0
        %v6363 = vadd.f32 0.0, %v6362
        %v6364 = vpop.f32.mrb[0].mxu0
        %v6365 = vadd.f32 0.0, %v6364
        %6366 = vmatprep.mubr.f32.mxu0 0.0
        %6367 = vmatmul.mubr.f32.gmra.mrb[0].mxu0 %v6288
        %v6368 = vpop.f32.mrb[0].mxu0
        %v6369 = vadd.f32 0.0, %v6368
        %v6370 = vpop.f32.mrb[0].mxu0
        %v6371 = vadd.f32 0.0, %v6370
        %6372 = vmatprep.mubr.f32.mxu0 0.0
        %6373 = vmatmul.mubr.f32.gmra.mrb[0].mxu0 %v6291
        %v6374 = vpop.f32.mrb[0].mxu0
        %v6375 = vadd.f32 0.0, %v6374
        %v6376 = vpop.f32.mrb[0].mxu0
        %v6377 = vadd.f32 0.0, %v6376
        %6378 = vmatprep.mubr.f32.mxu0 0.0
        %6379 = vmatmul.mubr.f32.gmra.mrb[0].mxu0 %v6294
        %v6380 = vpop.f32.mrb[0].mxu0
        %v6381 = vadd.f32 0.0, %v6380
        %v6382 = vpop.f32.mrb[0].mxu0
        %v6383 = vadd.f32 0.0, %v6382
        %6384 = vdwg.mxu0
        %6385 = vmatprep.subr.mxu0 0.0
        %6386 = vmatpush1.msra.mxu0 %v6266
        %6387 = vmatprep.subr.mxu0 0.0
        %6388 = vmatpush1.msra.mxu0 %v6272
        %6389 = vmatprep.subr.mxu0 0.0
        %6390 = vmatpush1.msra.mxu0 0.0
        %6391 = vmatprep.subr.mxu0 0.0
        %6392 = vmatpush1.msra.mxu0 0.0
        %6393 = vmatprep.subr.mxu0 0.0
        %6394 = vmatpush1.msra.mxu0 0.0
        %6395 = vmatprep.subr.mxu0 0.0
        %6396 = vmatpush1.msra.mxu0 0.0
        %6397 = vmatprep.subr.mxu0 0.0
        %6398 = vmatpush1.msra.mxu0 0.0
        %6399 = vmatprep.subr.mxu0 0.0
        %6400 = vmatpush1.msra.mxu0 0.0
        %6401 = vmatprep.subr.mxu0 0.0
        %6402 = vmatpush1.msra.mxu0 0.0
        %6403 = vmatprep.subr.mxu0 0.0
        %6404 = vmatpush1.msra.mxu0 0.0
        %6405 = vmatprep.subr.mxu0 0.0
        %6406 = vmatpush1.msra.mxu0 0.0
        %6407 = vmatprep.subr.mxu0 0.0
        %6408 = vmatpush1.msra.mxu0 0.0
        %6409 = vmatprep.subr.mxu0 0.0
        %6410 = vmatpush1.msra.mxu0 0.0
        %6411 = vmatprep.subr.mxu0 0.0
        %6412 = vmatpush1.msra.mxu0 0.0
        %6413 = vmatprep.subr.mxu0 0.0
        %6414 = vmatpush1.msra.mxu0 0.0
        %6415 = vmatprep.subr.mxu0 0.0
        %6416 = vmatpush1.msra.mxu0 0.0
        %6417 = vmatprep.subr.mxu0 0.0
        %6418 = vmatpush1.msra.mxu0 0.0
        %6419 = vmatprep.subr.mxu0 0.0
        %6420 = vmatpush1.msra.mxu0 0.0
        %6421 = vmatprep.subr.mxu0 0.0
        %6422 = vmatpush1.msra.mxu0 0.0
        %6423 = vmatprep.subr.mxu0 0.0
        %6424 = vmatpush1.msra.mxu0 0.0
        %6425 = vmatprep.subr.mxu0 0.0
        %6426 = vmatpush1.msra.mxu0 0.0
        %6427 = vmatprep.subr.mxu0 0.0
        %6428 = vmatpush1.msra.mxu0 0.0
        %6429 = vmatprep.subr.mxu0 0.0
        %6430 = vmatpush1.msra.mxu0 0.0
        %6431 = vmatprep.subr.mxu0 0.0
        %6432 = vmatpush1.msra.mxu0 0.0
        %6433 = vmatprep.subr.mxu0 0.0
        %6434 = vmatpush1.msra.mxu0 0.0
        %6435 = vmatprep.subr.mxu0 0.0
        %6436 = vmatpush1.msra.mxu0 0.0
        %6437 = vmatprep.subr.mxu0 0.0
        %6438 = vmatpush1.msra.mxu0 0.0
        %6439 = vmatprep.subr.mxu0 0.0
        %6440 = vmatpush1.msra.mxu0 0.0
        %6441 = vmatprep.subr.mxu0 0.0
        %6442 = vmatpush1.msra.mxu0 0.0
        %6443 = vmatprep.subr.mxu0 0.0
        %6444 = vmatpush1.msra.mxu0 0.0
        %6445 = vmatprep.subr.mxu0 0.0
        %6446 = vmatpush1.msra.mxu0 0.0
        %6447 = vmatprep.subr.mxu0 0.0
        %6448 = vmatpush1.msra.mxu0 0.0
        %6449 = vmatprep.mubr.f32.mxu0 0.0
        %6450 = vmatmul.mubr.f32.gmra.mrb[0].mxu0 %v6285
        %v6451 = vpop.f32.mrb[0].mxu0
        %v6452 = vadd.f32 0.0, %v6451
        %v6453 = vpop.f32.mrb[0].mxu0
        %6454 = vmatprep.mubr.f32.mxu0 0.0
        %6455 = vmatmul.mubr.f32.gmra.mrb[0].mxu0 %v6288
        %v6456 = vpop.f32.mrb[0].mxu0
        %v6457 = vadd.f32 0.0, %v6456
        %v6458 = vpop.f32.mrb[0].mxu0
        %6459 = vmatprep.mubr.f32.mxu0 0.0
        %6460 = vmatmul.mubr.f32.gmra.mrb[0].mxu0 %v6291
        %v6461 = vpop.f32.mrb[0].mxu0
        %v6462 = vadd.f32 0.0, %v6461
        %v6463 = vpop.f32.mrb[0].mxu0
        %6464 = vmatprep.mubr.f32.mxu0 0.0
        %6465 = vmatmul.mubr.f32.gmra.mrb[0].mxu0 %v6294
        %v6466 = vpop.f32.mrb[0].mxu0
        %v6467 = vadd.f32 0.0, %v6466
        %v6468 = vpop.f32.mrb[0].mxu0
        %6469 = vdwg.mxu0
        %v6470 = vadd.f32 %v6244, %v6363
        %v6471 = vadd.f32 %v6245, %v6365
        %v6472 = vadd.f32 %v6246, %v6452
        %v6473 = vadd.f32 %v6247, %v6369
        %v6474 = vadd.f32 %v6248, %v6371
        %v6475 = vadd.f32 %v6249, %v6457
        %v6476 = vadd.f32 %v6250, %v6375
        %v6477 = vadd.f32 %v6251, %v6377
        %v6478 = vadd.f32 %v6252, %v6462
        %v6479 = vadd.f32 %v6253, %v6381
        %v6480 = vadd.f32 %v6254, %v6383
        %v6481 = vadd.f32 %v6255, %v6467
        %s6482 = scalar_lea.vmem %s4, 128
        %v6483 = vld [vmem:[%s6482] sm:$0xff]
        %v6484 = vld [vmem:[%s6482 + $0x8] sm:$0xff]
        %v6485 = vld [vmem:[%s6482 + $0x10] sm:$0xff]
        %v6486 = vld [vmem:[%s6482 + $0x18] sm:$0xff]
        %6487 = vrot.lane.b32.xlu0 %v5461, 109
        %v6488 = vpop.permute.xlu0 %6487
        %6489 = vrot.lane.b32.xlu0 %v5463, 109
        %v6490 = vpop.permute.xlu0 %6489
        %6491 = vrot.lane.b32.xlu0 %v5613, 109
        %v6492 = vpop.permute.xlu0 %6491
        %6493 = vrot.lane.b32.xlu0 %v5467, 109
        %v6494 = vpop.permute.xlu0 %6493
        %6495 = vrot.lane.b32.xlu0 %v5469, 109
        %v6496 = vpop.permute.xlu0 %6495
        %6497 = vrot.lane.b32.xlu0 %v5618, 109
        %v6498 = vpop.permute.xlu0 %6497
        %vm6499 = vcmask 891904
        %v6500 = vsel %vm6499, %v6488, %v6490
        %v6501 = vsel %vm6499, %v6490, %v6492
        %v6502 = vsel %vm6499, %v6494, %v6496
        %v6503 = vsel %vm6499, %v6496, %v6498
        %v6511 = vsel %vm5658, %v6483, 0
        %v6514 = vsel %vm5658, %v6484, 0
        %v6517 = vsel %vm5658, %v6485, 0
        %v6520 = vsel %vm5658, %v6486, 0
        %6522 = vmatprep.subr.mxu0 %v6501
        %6523 = vmatpush1.msra.mxu0 %v6500
        %6524 = vmatprep.subr.mxu0 %v6503
        %6525 = vmatpush1.msra.mxu0 %v6502
        %6526 = vmatprep.subr.mxu0 0.0
        %6527 = vmatpush1.msra.mxu0 0.0
        %6528 = vmatprep.subr.mxu0 0.0
        %6529 = vmatpush1.msra.mxu0 0.0
        %6530 = vmatprep.subr.mxu0 0.0
        %6531 = vmatpush1.msra.mxu0 0.0
        %6532 = vmatprep.subr.mxu0 0.0
        %6533 = vmatpush1.msra.mxu0 0.0
        %6534 = vmatprep.subr.mxu0 0.0
        %6535 = vmatpush1.msra.mxu0 0.0
        %6536 = vmatprep.subr.mxu0 0.0
        %6537 = vmatpush1.msra.mxu0 0.0
        %6538 = vmatprep.subr.mxu0 0.0
        %6539 = vmatpush1.msra.mxu0 0.0
        %6540 = vmatprep.subr.mxu0 0.0
        %6541 = vmatpush1.msra.mxu0 0.0
        %6542 = vmatprep.subr.mxu0 0.0
        %6543 = vmatpush1.msra.mxu0 0.0
        %6544 = vmatprep.subr.mxu0 0.0
        %6545 = vmatpush1.msra.mxu0 0.0
        %6546 = vmatprep.subr.mxu0 0.0
        %6547 = vmatpush1.msra.mxu0 0.0
        %6548 = vmatprep.subr.mxu0 0.0
        %6549 = vmatpush1.msra.mxu0 0.0
        %6550 = vmatprep.subr.mxu0 0.0
        %6551 = vmatpush1.msra.mxu0 0.0
        %6552 = vmatprep.subr.mxu0 0.0
        %6553 = vmatpush1.msra.mxu0 0.0
        %6554 = vmatprep.subr.mxu0 0.0
        %6555 = vmatpush1.msra.mxu0 0.0
        %6556 = vmatprep.subr.mxu0 0.0
        %6557 = vmatpush1.msra.mxu0 0.0
        %6558 = vmatprep.subr.mxu0 0.0
        %6559 = vmatpush1.msra.mxu0 0.0
        %6560 = vmatprep.subr.mxu0 0.0
        %6561 = vmatpush1.msra.mxu0 0.0
        %6562 = vmatprep.subr.mxu0 0.0
        %6563 = vmatpush1.msra.mxu0 0.0
        %6564 = vmatprep.subr.mxu0 0.0
        %6565 = vmatpush1.msra.mxu0 0.0
        %6566 = vmatprep.subr.mxu0 0.0
        %6567 = vmatpush1.msra.mxu0 0.0
        %6568 = vmatprep.subr.mxu0 0.0
        %6569 = vmatpush1.msra.mxu0 0.0
        %6570 = vmatprep.subr.mxu0 0.0
        %6571 = vmatpush1.msra.mxu0 0.0
        %6572 = vmatprep.subr.mxu0 0.0
        %6573 = vmatpush1.msra.mxu0 0.0
        %6574 = vmatprep.subr.mxu0 0.0
        %6575 = vmatpush1.msra.mxu0 0.0
        %6576 = vmatprep.subr.mxu0 0.0
        %6577 = vmatpush1.msra.mxu0 0.0
        %6578 = vmatprep.subr.mxu0 0.0
        %6579 = vmatpush1.msra.mxu0 0.0
        %6580 = vmatprep.subr.mxu0 0.0
        %6581 = vmatpush1.msra.mxu0 0.0
        %6582 = vmatprep.subr.mxu0 0.0
        %6583 = vmatpush1.msra.mxu0 0.0
        %6584 = vmatprep.subr.mxu0 0.0
        %6585 = vmatpush1.msra.mxu0 0.0
        %6586 = vmatprep.mubr.f32.mxu0 0.0
        %6587 = vmatmul.mubr.f32.gmra.mrb[0].mxu0 %v6511
        %v6588 = vpop.f32.mrb[0].mxu0
        %v6589 = vadd.f32 0.0, %v6588
        %v6590 = vpop.f32.mrb[0].mxu0
        %v6591 = vadd.f32 0.0, %v6590
        %6592 = vmatprep.mubr.f32.mxu0 0.0
        %6593 = vmatmul.mubr.f32.gmra.mrb[0].mxu0 %v6514
        %v6594 = vpop.f32.mrb[0].mxu0
        %v6595 = vadd.f32 0.0, %v6594
        %v6596 = vpop.f32.mrb[0].mxu0
        %v6597 = vadd.f32 0.0, %v6596
        %6598 = vmatprep.mubr.f32.mxu0 0.0
        %6599 = vmatmul.mubr.f32.gmra.mrb[0].mxu0 %v6517
        %v6600 = vpop.f32.mrb[0].mxu0
        %v6601 = vadd.f32 0.0, %v6600
        %v6602 = vpop.f32.mrb[0].mxu0
        %v6603 = vadd.f32 0.0, %v6602
        %6604 = vmatprep.mubr.f32.mxu0 0.0
        %6605 = vmatmul.mubr.f32.gmra.mrb[0].mxu0 %v6520
        %v6606 = vpop.f32.mrb[0].mxu0
        %v6607 = vadd.f32 0.0, %v6606
        %v6608 = vpop.f32.mrb[0].mxu0
        %v6609 = vadd.f32 0.0, %v6608
        %6610 = vdwg.mxu0
        %6611 = vmatprep.subr.mxu0 0.0
        %6612 = vmatpush1.msra.mxu0 %v6492
        %6613 = vmatprep.subr.mxu0 0.0
        %6614 = vmatpush1.msra.mxu0 %v6498
        %6615 = vmatprep.subr.mxu0 0.0
        %6616 = vmatpush1.msra.mxu0 0.0
        %6617 = vmatprep.subr.mxu0 0.0
        %6618 = vmatpush1.msra.mxu0 0.0
        %6619 = vmatprep.subr.mxu0 0.0
        %6620 = vmatpush1.msra.mxu0 0.0
        %6621 = vmatprep.subr.mxu0 0.0
        %6622 = vmatpush1.msra.mxu0 0.0
        %6623 = vmatprep.subr.mxu0 0.0
        %6624 = vmatpush1.msra.mxu0 0.0
        %6625 = vmatprep.subr.mxu0 0.0
        %6626 = vmatpush1.msra.mxu0 0.0
        %6627 = vmatprep.subr.mxu0 0.0
        %6628 = vmatpush1.msra.mxu0 0.0
        %6629 = vmatprep.subr.mxu0 0.0
        %6630 = vmatpush1.msra.mxu0 0.0
        %6631 = vmatprep.subr.mxu0 0.0
        %6632 = vmatpush1.msra.mxu0 0.0
        %6633 = vmatprep.subr.mxu0 0.0
        %6634 = vmatpush1.msra.mxu0 0.0
        %6635 = vmatprep.subr.mxu0 0.0
        %6636 = vmatpush1.msra.mxu0 0.0
        %6637 = vmatprep.subr.mxu0 0.0
        %6638 = vmatpush1.msra.mxu0 0.0
        %6639 = vmatprep.subr.mxu0 0.0
        %6640 = vmatpush1.msra.mxu0 0.0
        %6641 = vmatprep.subr.mxu0 0.0
        %6642 = vmatpush1.msra.mxu0 0.0
        %6643 = vmatprep.subr.mxu0 0.0
        %6644 = vmatpush1.msra.mxu0 0.0
        %6645 = vmatprep.subr.mxu0 0.0
        %6646 = vmatpush1.msra.mxu0 0.0
        %6647 = vmatprep.subr.mxu0 0.0
        %6648 = vmatpush1.msra.mxu0 0.0
        %6649 = vmatprep.subr.mxu0 0.0
        %6650 = vmatpush1.msra.mxu0 0.0
        %6651 = vmatprep.subr.mxu0 0.0
        %6652 = vmatpush1.msra.mxu0 0.0
        %6653 = vmatprep.subr.mxu0 0.0
        %6654 = vmatpush1.msra.mxu0 0.0
        %6655 = vmatprep.subr.mxu0 0.0
        %6656 = vmatpush1.msra.mxu0 0.0
        %6657 = vmatprep.subr.mxu0 0.0
        %6658 = vmatpush1.msra.mxu0 0.0
        %6659 = vmatprep.subr.mxu0 0.0
        %6660 = vmatpush1.msra.mxu0 0.0
        %6661 = vmatprep.subr.mxu0 0.0
        %6662 = vmatpush1.msra.mxu0 0.0
        %6663 = vmatprep.subr.mxu0 0.0
        %6664 = vmatpush1.msra.mxu0 0.0
        %6665 = vmatprep.subr.mxu0 0.0
        %6666 = vmatpush1.msra.mxu0 0.0
        %6667 = vmatprep.subr.mxu0 0.0
        %6668 = vmatpush1.msra.mxu0 0.0
        %6669 = vmatprep.subr.mxu0 0.0
        %6670 = vmatpush1.msra.mxu0 0.0
        %6671 = vmatprep.subr.mxu0 0.0
        %6672 = vmatpush1.msra.mxu0 0.0
        %6673 = vmatprep.subr.mxu0 0.0
        %6674 = vmatpush1.msra.mxu0 0.0
        %6675 = vmatprep.mubr.f32.mxu0 0.0
        %6676 = vmatmul.mubr.f32.gmra.mrb[0].mxu0 %v6511
        %v6677 = vpop.f32.mrb[0].mxu0
        %v6678 = vadd.f32 0.0, %v6677
        %v6679 = vpop.f32.mrb[0].mxu0
        %6680 = vmatprep.mubr.f32.mxu0 0.0
        %6681 = vmatmul.mubr.f32.gmra.mrb[0].mxu0 %v6514
        %v6682 = vpop.f32.mrb[0].mxu0
        %v6683 = vadd.f32 0.0, %v6682
        %v6684 = vpop.f32.mrb[0].mxu0
        %6685 = vmatprep.mubr.f32.mxu0 0.0
        %6686 = vmatmul.mubr.f32.gmra.mrb[0].mxu0 %v6517
        %v6687 = vpop.f32.mrb[0].mxu0
        %v6688 = vadd.f32 0.0, %v6687
        %v6689 = vpop.f32.mrb[0].mxu0
        %6690 = vmatprep.mubr.f32.mxu0 0.0
        %6691 = vmatmul.mubr.f32.gmra.mrb[0].mxu0 %v6520
        %v6692 = vpop.f32.mrb[0].mxu0
        %v6693 = vadd.f32 0.0, %v6692
        %v6694 = vpop.f32.mrb[0].mxu0
        %6695 = vdwg.mxu0
        %v6696 = vadd.f32 %v6470, %v6589
        %v6697 = vadd.f32 %v6471, %v6591
        %v6698 = vadd.f32 %v6472, %v6678
        %v6699 = vadd.f32 %v6473, %v6595
        %v6700 = vadd.f32 %v6474, %v6597
        %v6701 = vadd.f32 %v6475, %v6683
        %v6702 = vadd.f32 %v6476, %v6601
        %v6703 = vadd.f32 %v6477, %v6603
        %v6704 = vadd.f32 %v6478, %v6688
        %v6705 = vadd.f32 %v6479, %v6607
        %v6706 = vadd.f32 %v6480, %v6609
        %v6707 = vadd.f32 %v6481, %v6693
        %s6708 = scalar_lea.vmem %s4, 160
        %v6709 = vld [vmem:[%s6708] sm:$0xff]
        %v6710 = vld [vmem:[%s6708 + $0x8] sm:$0xff]
        %v6711 = vld [vmem:[%s6708 + $0x10] sm:$0xff]
        %v6712 = vld [vmem:[%s6708 + $0x18] sm:$0xff]
        %6713 = vrot.lane.b32.xlu0 %v5461, 108
        %v6714 = vpop.permute.xlu0 %6713
        %6715 = vrot.lane.b32.xlu0 %v5463, 108
        %v6716 = vpop.permute.xlu0 %6715
        %6717 = vrot.lane.b32.xlu0 %v5613, 108
        %v6718 = vpop.permute.xlu0 %6717
        %6719 = vrot.lane.b32.xlu0 %v5467, 108
        %v6720 = vpop.permute.xlu0 %6719
        %6721 = vrot.lane.b32.xlu0 %v5469, 108
        %v6722 = vpop.permute.xlu0 %6721
        %6723 = vrot.lane.b32.xlu0 %v5618, 108
        %v6724 = vpop.permute.xlu0 %6723
        %v6725 = vsel %vm1520, %v6714, %v6716
        %v6726 = vsel %vm1520, %v6716, %v6718
        %v6727 = vsel %vm1520, %v6720, %v6722
        %v6728 = vsel %vm1520, %v6722, %v6724
        %v6736 = vsel %vm5658, %v6709, 0
        %v6739 = vsel %vm5658, %v6710, 0
        %v6742 = vsel %vm5658, %v6711, 0
        %v6745 = vsel %vm5658, %v6712, 0
        %6747 = vmatprep.subr.mxu0 %v6726
        %6748 = vmatpush1.msra.mxu0 %v6725
        %6749 = vmatprep.subr.mxu0 %v6728
        %6750 = vmatpush1.msra.mxu0 %v6727
        %6751 = vmatprep.subr.mxu0 0.0
        %6752 = vmatpush1.msra.mxu0 0.0
        %6753 = vmatprep.subr.mxu0 0.0
        %6754 = vmatpush1.msra.mxu0 0.0
        %6755 = vmatprep.subr.mxu0 0.0
        %6756 = vmatpush1.msra.mxu0 0.0
        %6757 = vmatprep.subr.mxu0 0.0
        %6758 = vmatpush1.msra.mxu0 0.0
        %6759 = vmatprep.subr.mxu0 0.0
        %6760 = vmatpush1.msra.mxu0 0.0
        %6761 = vmatprep.subr.mxu0 0.0
        %6762 = vmatpush1.msra.mxu0 0.0
        %6763 = vmatprep.subr.mxu0 0.0
        %6764 = vmatpush1.msra.mxu0 0.0
        %6765 = vmatprep.subr.mxu0 0.0
        %6766 = vmatpush1.msra.mxu0 0.0
        %6767 = vmatprep.subr.mxu0 0.0
        %6768 = vmatpush1.msra.mxu0 0.0
        %6769 = vmatprep.subr.mxu0 0.0
        %6770 = vmatpush1.msra.mxu0 0.0
        %6771 = vmatprep.subr.mxu0 0.0
        %6772 = vmatpush1.msra.mxu0 0.0
        %6773 = vmatprep.subr.mxu0 0.0
        %6774 = vmatpush1.msra.mxu0 0.0
        %6775 = vmatprep.subr.mxu0 0.0
        %6776 = vmatpush1.msra.mxu0 0.0
        %6777 = vmatprep.subr.mxu0 0.0
        %6778 = vmatpush1.msra.mxu0 0.0
        %6779 = vmatprep.subr.mxu0 0.0
        %6780 = vmatpush1.msra.mxu0 0.0
        %6781 = vmatprep.subr.mxu0 0.0
        %6782 = vmatpush1.msra.mxu0 0.0
        %6783 = vmatprep.subr.mxu0 0.0
        %6784 = vmatpush1.msra.mxu0 0.0
        %6785 = vmatprep.subr.mxu0 0.0
        %6786 = vmatpush1.msra.mxu0 0.0
        %6787 = vmatprep.subr.mxu0 0.0
        %6788 = vmatpush1.msra.mxu0 0.0
        %6789 = vmatprep.subr.mxu0 0.0
        %6790 = vmatpush1.msra.mxu0 0.0
        %6791 = vmatprep.subr.mxu0 0.0
        %6792 = vmatpush1.msra.mxu0 0.0
        %6793 = vmatprep.subr.mxu0 0.0
        %6794 = vmatpush1.msra.mxu0 0.0
        %6795 = vmatprep.subr.mxu0 0.0
        %6796 = vmatpush1.msra.mxu0 0.0
        %6797 = vmatprep.subr.mxu0 0.0
        %6798 = vmatpush1.msra.mxu0 0.0
        %6799 = vmatprep.subr.mxu0 0.0
        %6800 = vmatpush1.msra.mxu0 0.0
        %6801 = vmatprep.subr.mxu0 0.0
        %6802 = vmatpush1.msra.mxu0 0.0
        %6803 = vmatprep.subr.mxu0 0.0
        %6804 = vmatpush1.msra.mxu0 0.0
        %6805 = vmatprep.subr.mxu0 0.0
        %6806 = vmatpush1.msra.mxu0 0.0
        %6807 = vmatprep.subr.mxu0 0.0
        %6808 = vmatpush1.msra.mxu0 0.0
        %6809 = vmatprep.subr.mxu0 0.0
        %6810 = vmatpush1.msra.mxu0 0.0
        %6811 = vmatprep.mubr.f32.mxu0 0.0
        %6812 = vmatmul.mubr.f32.gmra.mrb[0].mxu0 %v6736
        %v6813 = vpop.f32.mrb[0].mxu0
        %v6814 = vadd.f32 0.0, %v6813
        %v6815 = vpop.f32.mrb[0].mxu0
        %v6816 = vadd.f32 0.0, %v6815
        %6817 = vmatprep.mubr.f32.mxu0 0.0
        %6818 = vmatmul.mubr.f32.gmra.mrb[0].mxu0 %v6739
        %v6819 = vpop.f32.mrb[0].mxu0
        %v6820 = vadd.f32 0.0, %v6819
        %v6821 = vpop.f32.mrb[0].mxu0
        %v6822 = vadd.f32 0.0, %v6821
        %6823 = vmatprep.mubr.f32.mxu0 0.0
        %6824 = vmatmul.mubr.f32.gmra.mrb[0].mxu0 %v6742
        %v6825 = vpop.f32.mrb[0].mxu0
        %v6826 = vadd.f32 0.0, %v6825
        %v6827 = vpop.f32.mrb[0].mxu0
        %v6828 = vadd.f32 0.0, %v6827
        %6829 = vmatprep.mubr.f32.mxu0 0.0
        %6830 = vmatmul.mubr.f32.gmra.mrb[0].mxu0 %v6745
        %v6831 = vpop.f32.mrb[0].mxu0
        %v6832 = vadd.f32 0.0, %v6831
        %v6833 = vpop.f32.mrb[0].mxu0
        %v6834 = vadd.f32 0.0, %v6833
        %6835 = vdwg.mxu0
        %6836 = vmatprep.subr.mxu0 0.0
        %6837 = vmatpush1.msra.mxu0 %v6718
        %6838 = vmatprep.subr.mxu0 0.0
        %6839 = vmatpush1.msra.mxu0 %v6724
        %6840 = vmatprep.subr.mxu0 0.0
        %6841 = vmatpush1.msra.mxu0 0.0
        %6842 = vmatprep.subr.mxu0 0.0
        %6843 = vmatpush1.msra.mxu0 0.0
        %6844 = vmatprep.subr.mxu0 0.0
        %6845 = vmatpush1.msra.mxu0 0.0
        %6846 = vmatprep.subr.mxu0 0.0
        %6847 = vmatpush1.msra.mxu0 0.0
        %6848 = vmatprep.subr.mxu0 0.0
        %6849 = vmatpush1.msra.mxu0 0.0
        %6850 = vmatprep.subr.mxu0 0.0
        %6851 = vmatpush1.msra.mxu0 0.0
        %6852 = vmatprep.subr.mxu0 0.0
        %6853 = vmatpush1.msra.mxu0 0.0
        %6854 = vmatprep.subr.mxu0 0.0
        %6855 = vmatpush1.msra.mxu0 0.0
        %6856 = vmatprep.subr.mxu0 0.0
        %6857 = vmatpush1.msra.mxu0 0.0
        %6858 = vmatprep.subr.mxu0 0.0
        %6859 = vmatpush1.msra.mxu0 0.0
        %6860 = vmatprep.subr.mxu0 0.0
        %6861 = vmatpush1.msra.mxu0 0.0
        %6862 = vmatprep.subr.mxu0 0.0
        %6863 = vmatpush1.msra.mxu0 0.0
        %6864 = vmatprep.subr.mxu0 0.0
        %6865 = vmatpush1.msra.mxu0 0.0
        %6866 = vmatprep.subr.mxu0 0.0
        %6867 = vmatpush1.msra.mxu0 0.0
        %6868 = vmatprep.subr.mxu0 0.0
        %6869 = vmatpush1.msra.mxu0 0.0
        %6870 = vmatprep.subr.mxu0 0.0
        %6871 = vmatpush1.msra.mxu0 0.0
        %6872 = vmatprep.subr.mxu0 0.0
        %6873 = vmatpush1.msra.mxu0 0.0
        %6874 = vmatprep.subr.mxu0 0.0
        %6875 = vmatpush1.msra.mxu0 0.0
        %6876 = vmatprep.subr.mxu0 0.0
        %6877 = vmatpush1.msra.mxu0 0.0
        %6878 = vmatprep.subr.mxu0 0.0
        %6879 = vmatpush1.msra.mxu0 0.0
        %6880 = vmatprep.subr.mxu0 0.0
        %6881 = vmatpush1.msra.mxu0 0.0
        %6882 = vmatprep.subr.mxu0 0.0
        %6883 = vmatpush1.msra.mxu0 0.0
        %6884 = vmatprep.subr.mxu0 0.0
        %6885 = vmatpush1.msra.mxu0 0.0
        %6886 = vmatprep.subr.mxu0 0.0
        %6887 = vmatpush1.msra.mxu0 0.0
        %6888 = vmatprep.subr.mxu0 0.0
        %6889 = vmatpush1.msra.mxu0 0.0
        %6890 = vmatprep.subr.mxu0 0.0
        %6891 = vmatpush1.msra.mxu0 0.0
        %6892 = vmatprep.subr.mxu0 0.0
        %6893 = vmatpush1.msra.mxu0 0.0
        %6894 = vmatprep.subr.mxu0 0.0
        %6895 = vmatpush1.msra.mxu0 0.0
        %6896 = vmatprep.subr.mxu0 0.0
        %6897 = vmatpush1.msra.mxu0 0.0
        %6898 = vmatprep.subr.mxu0 0.0
        %6899 = vmatpush1.msra.mxu0 0.0
        %6900 = vmatprep.mubr.f32.mxu0 0.0
        %6901 = vmatmul.mubr.f32.gmra.mrb[0].mxu0 %v6736
        %v6902 = vpop.f32.mrb[0].mxu0
        %v6903 = vadd.f32 0.0, %v6902
        %v6904 = vpop.f32.mrb[0].mxu0
        %6905 = vmatprep.mubr.f32.mxu0 0.0
        %6906 = vmatmul.mubr.f32.gmra.mrb[0].mxu0 %v6739
        %v6907 = vpop.f32.mrb[0].mxu0
        %v6908 = vadd.f32 0.0, %v6907
        %v6909 = vpop.f32.mrb[0].mxu0
        %6910 = vmatprep.mubr.f32.mxu0 0.0
        %6911 = vmatmul.mubr.f32.gmra.mrb[0].mxu0 %v6742
        %v6912 = vpop.f32.mrb[0].mxu0
        %v6913 = vadd.f32 0.0, %v6912
        %v6914 = vpop.f32.mrb[0].mxu0
        %6915 = vmatprep.mubr.f32.mxu0 0.0
        %6916 = vmatmul.mubr.f32.gmra.mrb[0].mxu0 %v6745
        %v6917 = vpop.f32.mrb[0].mxu0
        %v6918 = vadd.f32 0.0, %v6917
        %v6919 = vpop.f32.mrb[0].mxu0
        %6920 = vdwg.mxu0
        %v6921 = vadd.f32 %v6696, %v6814
        %v6922 = vadd.f32 %v6697, %v6816
        %v6923 = vadd.f32 %v6698, %v6903
        %v6924 = vadd.f32 %v6699, %v6820
        %v6925 = vadd.f32 %v6700, %v6822
        %v6926 = vadd.f32 %v6701, %v6908
        %v6927 = vadd.f32 %v6702, %v6826
        %v6928 = vadd.f32 %v6703, %v6828
        %v6929 = vadd.f32 %v6704, %v6913
        %v6930 = vadd.f32 %v6705, %v6832
        %v6931 = vadd.f32 %v6706, %v6834
        %v6932 = vadd.f32 %v6707, %v6918
        %s6933 = scalar_lea.vmem %s4, 192
        %v6934 = vld [vmem:[%s6933] sm:$0xff]
        %v6935 = vld [vmem:[%s6933 + $0x8] sm:$0xff]
        %v6936 = vld [vmem:[%s6933 + $0x10] sm:$0xff]
        %v6937 = vld [vmem:[%s6933 + $0x18] sm:$0xff]
        %6938 = vrot.lane.b32.xlu0 %v5461, 92
        %v6939 = vpop.permute.xlu0 %6938
        %6940 = vrot.lane.b32.xlu0 %v5463, 92
        %v6941 = vpop.permute.xlu0 %6940
        %6942 = vrot.lane.b32.xlu0 %v5613, 92
        %v6943 = vpop.permute.xlu0 %6942
        %6944 = vrot.lane.b32.xlu0 %v5467, 92
        %v6945 = vpop.permute.xlu0 %6944
        %6946 = vrot.lane.b32.xlu0 %v5469, 92
        %v6947 = vpop.permute.xlu0 %6946
        %6948 = vrot.lane.b32.xlu0 %v5618, 92
        %v6949 = vpop.permute.xlu0 %6948
        %vm6950 = vcmask 752640
        %v6951 = vsel %vm6950, %v6939, %v6941
        %v6952 = vsel %vm6950, %v6941, %v6943
        %v6953 = vsel %vm6950, %v6945, %v6947
        %v6954 = vsel %vm6950, %v6947, %v6949
        %v6962 = vsel %vm5658, %v6934, 0
        %v6965 = vsel %vm5658, %v6935, 0
        %v6968 = vsel %vm5658, %v6936, 0
        %v6971 = vsel %vm5658, %v6937, 0
        %6973 = vmatprep.subr.mxu0 %v6952
        %6974 = vmatpush1.msra.mxu0 %v6951
        %6975 = vmatprep.subr.mxu0 %v6954
        %6976 = vmatpush1.msra.mxu0 %v6953
        %6977 = vmatprep.subr.mxu0 0.0
        %6978 = vmatpush1.msra.mxu0 0.0
        %6979 = vmatprep.subr.mxu0 0.0
        %6980 = vmatpush1.msra.mxu0 0.0
        %6981 = vmatprep.subr.mxu0 0.0
        %6982 = vmatpush1.msra.mxu0 0.0
        %6983 = vmatprep.subr.mxu0 0.0
        %6984 = vmatpush1.msra.mxu0 0.0
        %6985 = vmatprep.subr.mxu0 0.0
        %6986 = vmatpush1.msra.mxu0 0.0
        %6987 = vmatprep.subr.mxu0 0.0
        %6988 = vmatpush1.msra.mxu0 0.0
        %6989 = vmatprep.subr.mxu0 0.0
        %6990 = vmatpush1.msra.mxu0 0.0
        %6991 = vmatprep.subr.mxu0 0.0
        %6992 = vmatpush1.msra.mxu0 0.0
        %6993 = vmatprep.subr.mxu0 0.0
        %6994 = vmatpush1.msra.mxu0 0.0
        %6995 = vmatprep.subr.mxu0 0.0
        %6996 = vmatpush1.msra.mxu0 0.0
        %6997 = vmatprep.subr.mxu0 0.0
        %6998 = vmatpush1.msra.mxu0 0.0
        %6999 = vmatprep.subr.mxu0 0.0
        %7000 = vmatpush1.msra.mxu0 0.0
        %7001 = vmatprep.subr.mxu0 0.0
        %7002 = vmatpush1.msra.mxu0 0.0
        %7003 = vmatprep.subr.mxu0 0.0
        %7004 = vmatpush1.msra.mxu0 0.0
        %7005 = vmatprep.subr.mxu0 0.0
        %7006 = vmatpush1.msra.mxu0 0.0
        %7007 = vmatprep.subr.mxu0 0.0
        %7008 = vmatpush1.msra.mxu0 0.0
        %7009 = vmatprep.subr.mxu0 0.0
        %7010 = vmatpush1.msra.mxu0 0.0
        %7011 = vmatprep.subr.mxu0 0.0
        %7012 = vmatpush1.msra.mxu0 0.0
        %7013 = vmatprep.subr.mxu0 0.0
        %7014 = vmatpush1.msra.mxu0 0.0
        %7015 = vmatprep.subr.mxu0 0.0
        %7016 = vmatpush1.msra.mxu0 0.0
        %7017 = vmatprep.subr.mxu0 0.0
        %7018 = vmatpush1.msra.mxu0 0.0
        %7019 = vmatprep.subr.mxu0 0.0
        %7020 = vmatpush1.msra.mxu0 0.0
        %7021 = vmatprep.subr.mxu0 0.0
        %7022 = vmatpush1.msra.mxu0 0.0
        %7023 = vmatprep.subr.mxu0 0.0
        %7024 = vmatpush1.msra.mxu0 0.0
        %7025 = vmatprep.subr.mxu0 0.0
        %7026 = vmatpush1.msra.mxu0 0.0
        %7027 = vmatprep.subr.mxu0 0.0
        %7028 = vmatpush1.msra.mxu0 0.0
        %7029 = vmatprep.subr.mxu0 0.0
        %7030 = vmatpush1.msra.mxu0 0.0
        %7031 = vmatprep.subr.mxu0 0.0
        %7032 = vmatpush1.msra.mxu0 0.0
        %7033 = vmatprep.subr.mxu0 0.0
        %7034 = vmatpush1.msra.mxu0 0.0
        %7035 = vmatprep.subr.mxu0 0.0
        %7036 = vmatpush1.msra.mxu0 0.0
        %7037 = vmatprep.mubr.f32.mxu0 0.0
        %7038 = vmatmul.mubr.f32.gmra.mrb[0].mxu0 %v6962
        %v7039 = vpop.f32.mrb[0].mxu0
        %v7040 = vadd.f32 0.0, %v7039
        %v7041 = vpop.f32.mrb[0].mxu0
        %v7042 = vadd.f32 0.0, %v7041
        %7043 = vmatprep.mubr.f32.mxu0 0.0
        %7044 = vmatmul.mubr.f32.gmra.mrb[0].mxu0 %v6965
        %v7045 = vpop.f32.mrb[0].mxu0
        %v7046 = vadd.f32 0.0, %v7045
        %v7047 = vpop.f32.mrb[0].mxu0
        %v7048 = vadd.f32 0.0, %v7047
        %7049 = vmatprep.mubr.f32.mxu0 0.0
        %7050 = vmatmul.mubr.f32.gmra.mrb[0].mxu0 %v6968
        %v7051 = vpop.f32.mrb[0].mxu0
        %v7052 = vadd.f32 0.0, %v7051
        %v7053 = vpop.f32.mrb[0].mxu0
        %v7054 = vadd.f32 0.0, %v7053
        %7055 = vmatprep.mubr.f32.mxu0 0.0
        %7056 = vmatmul.mubr.f32.gmra.mrb[0].mxu0 %v6971
        %v7057 = vpop.f32.mrb[0].mxu0
        %v7058 = vadd.f32 0.0, %v7057
        %v7059 = vpop.f32.mrb[0].mxu0
        %v7060 = vadd.f32 0.0, %v7059
        %7061 = vdwg.mxu0
        %7062 = vmatprep.subr.mxu0 0.0
        %7063 = vmatpush1.msra.mxu0 %v6943
        %7064 = vmatprep.subr.mxu0 0.0
        %7065 = vmatpush1.msra.mxu0 %v6949
        %7066 = vmatprep.subr.mxu0 0.0
        %7067 = vmatpush1.msra.mxu0 0.0
        %7068 = vmatprep.subr.mxu0 0.0
        %7069 = vmatpush1.msra.mxu0 0.0
        %7070 = vmatprep.subr.mxu0 0.0
        %7071 = vmatpush1.msra.mxu0 0.0
        %7072 = vmatprep.subr.mxu0 0.0
        %7073 = vmatpush1.msra.mxu0 0.0
        %7074 = vmatprep.subr.mxu0 0.0
        %7075 = vmatpush1.msra.mxu0 0.0
        %7076 = vmatprep.subr.mxu0 0.0
        %7077 = vmatpush1.msra.mxu0 0.0
        %7078 = vmatprep.subr.mxu0 0.0
        %7079 = vmatpush1.msra.mxu0 0.0
        %7080 = vmatprep.subr.mxu0 0.0
        %7081 = vmatpush1.msra.mxu0 0.0
        %7082 = vmatprep.subr.mxu0 0.0
        %7083 = vmatpush1.msra.mxu0 0.0
        %7084 = vmatprep.subr.mxu0 0.0
        %7085 = vmatpush1.msra.mxu0 0.0
        %7086 = vmatprep.subr.mxu0 0.0
        %7087 = vmatpush1.msra.mxu0 0.0
        %7088 = vmatprep.subr.mxu0 0.0
        %7089 = vmatpush1.msra.mxu0 0.0
        %7090 = vmatprep.subr.mxu0 0.0
        %7091 = vmatpush1.msra.mxu0 0.0
        %7092 = vmatprep.subr.mxu0 0.0
        %7093 = vmatpush1.msra.mxu0 0.0
        %7094 = vmatprep.subr.mxu0 0.0
        %7095 = vmatpush1.msra.mxu0 0.0
        %7096 = vmatprep.subr.mxu0 0.0
        %7097 = vmatpush1.msra.mxu0 0.0
        %7098 = vmatprep.subr.mxu0 0.0
        %7099 = vmatpush1.msra.mxu0 0.0
        %7100 = vmatprep.subr.mxu0 0.0
        %7101 = vmatpush1.msra.mxu0 0.0
        %7102 = vmatprep.subr.mxu0 0.0
        %7103 = vmatpush1.msra.mxu0 0.0
        %7104 = vmatprep.subr.mxu0 0.0
        %7105 = vmatpush1.msra.mxu0 0.0
        %7106 = vmatprep.subr.mxu0 0.0
        %7107 = vmatpush1.msra.mxu0 0.0
        %7108 = vmatprep.subr.mxu0 0.0
        %7109 = vmatpush1.msra.mxu0 0.0
        %7110 = vmatprep.subr.mxu0 0.0
        %7111 = vmatpush1.msra.mxu0 0.0
        %7112 = vmatprep.subr.mxu0 0.0
        %7113 = vmatpush1.msra.mxu0 0.0
        %7114 = vmatprep.subr.mxu0 0.0
        %7115 = vmatpush1.msra.mxu0 0.0
        %7116 = vmatprep.subr.mxu0 0.0
        %7117 = vmatpush1.msra.mxu0 0.0
        %7118 = vmatprep.subr.mxu0 0.0
        %7119 = vmatpush1.msra.mxu0 0.0
        %7120 = vmatprep.subr.mxu0 0.0
        %7121 = vmatpush1.msra.mxu0 0.0
        %7122 = vmatprep.subr.mxu0 0.0
        %7123 = vmatpush1.msra.mxu0 0.0
        %7124 = vmatprep.subr.mxu0 0.0
        %7125 = vmatpush1.msra.mxu0 0.0
        %7126 = vmatprep.mubr.f32.mxu0 0.0
        %7127 = vmatmul.mubr.f32.gmra.mrb[0].mxu0 %v6962
        %v7128 = vpop.f32.mrb[0].mxu0
        %v7129 = vadd.f32 0.0, %v7128
        %v7130 = vpop.f32.mrb[0].mxu0
        %7131 = vmatprep.mubr.f32.mxu0 0.0
        %7132 = vmatmul.mubr.f32.gmra.mrb[0].mxu0 %v6965
        %v7133 = vpop.f32.mrb[0].mxu0
        %v7134 = vadd.f32 0.0, %v7133
        %v7135 = vpop.f32.mrb[0].mxu0
        %7136 = vmatprep.mubr.f32.mxu0 0.0
        %7137 = vmatmul.mubr.f32.gmra.mrb[0].mxu0 %v6968
        %v7138 = vpop.f32.mrb[0].mxu0
        %v7139 = vadd.f32 0.0, %v7138
        %v7140 = vpop.f32.mrb[0].mxu0
        %7141 = vmatprep.mubr.f32.mxu0 0.0
        %7142 = vmatmul.mubr.f32.gmra.mrb[0].mxu0 %v6971
        %v7143 = vpop.f32.mrb[0].mxu0
        %v7144 = vadd.f32 0.0, %v7143
        %v7145 = vpop.f32.mrb[0].mxu0
        %7146 = vdwg.mxu0
        %v7147 = vadd.f32 %v6921, %v7040
        %v7148 = vadd.f32 %v6922, %v7042
        %v7149 = vadd.f32 %v6923, %v7129
        %v7150 = vadd.f32 %v6924, %v7046
        %v7151 = vadd.f32 %v6925, %v7048
        %v7152 = vadd.f32 %v6926, %v7134
        %v7153 = vadd.f32 %v6927, %v7052
        %v7154 = vadd.f32 %v6928, %v7054
        %v7155 = vadd.f32 %v6929, %v7139
        %v7156 = vadd.f32 %v6930, %v7058
        %v7157 = vadd.f32 %v6931, %v7060
        %v7158 = vadd.f32 %v6932, %v7144
        %s7159 = scalar_lea.vmem %s4, 224
        %v7160 = vld [vmem:[%s7159] sm:$0xff]
        %v7161 = vld [vmem:[%s7159 + $0x8] sm:$0xff]
        %v7162 = vld [vmem:[%s7159 + $0x10] sm:$0xff]
        %v7163 = vld [vmem:[%s7159 + $0x18] sm:$0xff]
        %7164 = vrot.lane.b32.xlu0 %v5461, 91
        %v7165 = vpop.permute.xlu0 %7164
        %7166 = vrot.lane.b32.xlu0 %v5463, 91
        %v7167 = vpop.permute.xlu0 %7166
        %7168 = vrot.lane.b32.xlu0 %v5613, 91
        %v7169 = vpop.permute.xlu0 %7168
        %7170 = vrot.lane.b32.xlu0 %v5467, 91
        %v7171 = vpop.permute.xlu0 %7170
        %7172 = vrot.lane.b32.xlu0 %v5469, 91
        %v7173 = vpop.permute.xlu0 %7172
        %7174 = vrot.lane.b32.xlu0 %v5618, 91
        %v7175 = vpop.permute.xlu0 %7174
        %vm7176 = vcmask 744448
        %v7177 = vsel %vm7176, %v7165, %v7167
        %v7178 = vsel %vm7176, %v7167, %v7169
        %v7179 = vsel %vm7176, %v7171, %v7173
        %v7180 = vsel %vm7176, %v7173, %v7175
        %v7188 = vsel %vm5658, %v7160, 0
        %v7191 = vsel %vm5658, %v7161, 0
        %v7194 = vsel %vm5658, %v7162, 0
        %v7197 = vsel %vm5658, %v7163, 0
        %7199 = vmatprep.subr.mxu0 %v7178
        %7200 = vmatpush1.msra.mxu0 %v7177
        %7201 = vmatprep.subr.mxu0 %v7180
        %7202 = vmatpush1.msra.mxu0 %v7179
        %7203 = vmatprep.subr.mxu0 0.0
        %7204 = vmatpush1.msra.mxu0 0.0
        %7205 = vmatprep.subr.mxu0 0.0
        %7206 = vmatpush1.msra.mxu0 0.0
        %7207 = vmatprep.subr.mxu0 0.0
        %7208 = vmatpush1.msra.mxu0 0.0
        %7209 = vmatprep.subr.mxu0 0.0
        %7210 = vmatpush1.msra.mxu0 0.0
        %7211 = vmatprep.subr.mxu0 0.0
        %7212 = vmatpush1.msra.mxu0 0.0
        %7213 = vmatprep.subr.mxu0 0.0
        %7214 = vmatpush1.msra.mxu0 0.0
        %7215 = vmatprep.subr.mxu0 0.0
        %7216 = vmatpush1.msra.mxu0 0.0
        %7217 = vmatprep.subr.mxu0 0.0
        %7218 = vmatpush1.msra.mxu0 0.0
        %7219 = vmatprep.subr.mxu0 0.0
        %7220 = vmatpush1.msra.mxu0 0.0
        %7221 = vmatprep.subr.mxu0 0.0
        %7222 = vmatpush1.msra.mxu0 0.0
        %7223 = vmatprep.subr.mxu0 0.0
        %7224 = vmatpush1.msra.mxu0 0.0
        %7225 = vmatprep.subr.mxu0 0.0
        %7226 = vmatpush1.msra.mxu0 0.0
        %7227 = vmatprep.subr.mxu0 0.0
        %7228 = vmatpush1.msra.mxu0 0.0
        %7229 = vmatprep.subr.mxu0 0.0
        %7230 = vmatpush1.msra.mxu0 0.0
        %7231 = vmatprep.subr.mxu0 0.0
        %7232 = vmatpush1.msra.mxu0 0.0
        %7233 = vmatprep.subr.mxu0 0.0
        %7234 = vmatpush1.msra.mxu0 0.0
        %7235 = vmatprep.subr.mxu0 0.0
        %7236 = vmatpush1.msra.mxu0 0.0
        %7237 = vmatprep.subr.mxu0 0.0
        %7238 = vmatpush1.msra.mxu0 0.0
        %7239 = vmatprep.subr.mxu0 0.0
        %7240 = vmatpush1.msra.mxu0 0.0
        %7241 = vmatprep.subr.mxu0 0.0
        %7242 = vmatpush1.msra.mxu0 0.0
        %7243 = vmatprep.subr.mxu0 0.0
        %7244 = vmatpush1.msra.mxu0 0.0
        %7245 = vmatprep.subr.mxu0 0.0
        %7246 = vmatpush1.msra.mxu0 0.0
        %7247 = vmatprep.subr.mxu0 0.0
        %7248 = vmatpush1.msra.mxu0 0.0
        %7249 = vmatprep.subr.mxu0 0.0
        %7250 = vmatpush1.msra.mxu0 0.0
        %7251 = vmatprep.subr.mxu0 0.0
        %7252 = vmatpush1.msra.mxu0 0.0
        %7253 = vmatprep.subr.mxu0 0.0
        %7254 = vmatpush1.msra.mxu0 0.0
        %7255 = vmatprep.subr.mxu0 0.0
        %7256 = vmatpush1.msra.mxu0 0.0
        %7257 = vmatprep.subr.mxu0 0.0
        %7258 = vmatpush1.msra.mxu0 0.0
        %7259 = vmatprep.subr.mxu0 0.0
        %7260 = vmatpush1.msra.mxu0 0.0
        %7261 = vmatprep.subr.mxu0 0.0
        %7262 = vmatpush1.msra.mxu0 0.0
        %7263 = vmatprep.mubr.f32.mxu0 0.0
        %7264 = vmatmul.mubr.f32.gmra.mrb[0].mxu0 %v7188
        %v7265 = vpop.f32.mrb[0].mxu0
        %v7266 = vadd.f32 0.0, %v7265
        %v7267 = vpop.f32.mrb[0].mxu0
        %v7268 = vadd.f32 0.0, %v7267
        %7269 = vmatprep.mubr.f32.mxu0 0.0
        %7270 = vmatmul.mubr.f32.gmra.mrb[0].mxu0 %v7191
        %v7271 = vpop.f32.mrb[0].mxu0
        %v7272 = vadd.f32 0.0, %v7271
        %v7273 = vpop.f32.mrb[0].mxu0
        %v7274 = vadd.f32 0.0, %v7273
        %7275 = vmatprep.mubr.f32.mxu0 0.0
        %7276 = vmatmul.mubr.f32.gmra.mrb[0].mxu0 %v7194
        %v7277 = vpop.f32.mrb[0].mxu0
        %v7278 = vadd.f32 0.0, %v7277
        %v7279 = vpop.f32.mrb[0].mxu0
        %v7280 = vadd.f32 0.0, %v7279
        %7281 = vmatprep.mubr.f32.mxu0 0.0
        %7282 = vmatmul.mubr.f32.gmra.mrb[0].mxu0 %v7197
        %v7283 = vpop.f32.mrb[0].mxu0
        %v7284 = vadd.f32 0.0, %v7283
        %v7285 = vpop.f32.mrb[0].mxu0
        %v7286 = vadd.f32 0.0, %v7285
        %7287 = vdwg.mxu0
        %7288 = vmatprep.subr.mxu0 0.0
        %7289 = vmatpush1.msra.mxu0 %v7169
        %7290 = vmatprep.subr.mxu0 0.0
        %7291 = vmatpush1.msra.mxu0 %v7175
        %7292 = vmatprep.subr.mxu0 0.0
        %7293 = vmatpush1.msra.mxu0 0.0
        %7294 = vmatprep.subr.mxu0 0.0
        %7295 = vmatpush1.msra.mxu0 0.0
        %7296 = vmatprep.subr.mxu0 0.0
        %7297 = vmatpush1.msra.mxu0 0.0
        %7298 = vmatprep.subr.mxu0 0.0
        %7299 = vmatpush1.msra.mxu0 0.0
        %7300 = vmatprep.subr.mxu0 0.0
        %7301 = vmatpush1.msra.mxu0 0.0
        %7302 = vmatprep.subr.mxu0 0.0
        %7303 = vmatpush1.msra.mxu0 0.0
        %7304 = vmatprep.subr.mxu0 0.0
        %7305 = vmatpush1.msra.mxu0 0.0
        %7306 = vmatprep.subr.mxu0 0.0
        %7307 = vmatpush1.msra.mxu0 0.0
        %7308 = vmatprep.subr.mxu0 0.0
        %7309 = vmatpush1.msra.mxu0 0.0
        %7310 = vmatprep.subr.mxu0 0.0
        %7311 = vmatpush1.msra.mxu0 0.0
        %7312 = vmatprep.subr.mxu0 0.0
        %7313 = vmatpush1.msra.mxu0 0.0
        %7314 = vmatprep.subr.mxu0 0.0
        %7315 = vmatpush1.msra.mxu0 0.0
        %7316 = vmatprep.subr.mxu0 0.0
        %7317 = vmatpush1.msra.mxu0 0.0
        %7318 = vmatprep.subr.mxu0 0.0
        %7319 = vmatpush1.msra.mxu0 0.0
        %7320 = vmatprep.subr.mxu0 0.0
        %7321 = vmatpush1.msra.mxu0 0.0
        %7322 = vmatprep.subr.mxu0 0.0
        %7323 = vmatpush1.msra.mxu0 0.0
        %7324 = vmatprep.subr.mxu0 0.0
        %7325 = vmatpush1.msra.mxu0 0.0
        %7326 = vmatprep.subr.mxu0 0.0
        %7327 = vmatpush1.msra.mxu0 0.0
        %7328 = vmatprep.subr.mxu0 0.0
        %7329 = vmatpush1.msra.mxu0 0.0
        %7330 = vmatprep.subr.mxu0 0.0
        %7331 = vmatpush1.msra.mxu0 0.0
        %7332 = vmatprep.subr.mxu0 0.0
        %7333 = vmatpush1.msra.mxu0 0.0
        %7334 = vmatprep.subr.mxu0 0.0
        %7335 = vmatpush1.msra.mxu0 0.0
        %7336 = vmatprep.subr.mxu0 0.0
        %7337 = vmatpush1.msra.mxu0 0.0
        %7338 = vmatprep.subr.mxu0 0.0
        %7339 = vmatpush1.msra.mxu0 0.0
        %7340 = vmatprep.subr.mxu0 0.0
        %7341 = vmatpush1.msra.mxu0 0.0
        %7342 = vmatprep.subr.mxu0 0.0
        %7343 = vmatpush1.msra.mxu0 0.0
        %7344 = vmatprep.subr.mxu0 0.0
        %7345 = vmatpush1.msra.mxu0 0.0
        %7346 = vmatprep.subr.mxu0 0.0
        %7347 = vmatpush1.msra.mxu0 0.0
        %7348 = vmatprep.subr.mxu0 0.0
        %7349 = vmatpush1.msra.mxu0 0.0
        %7350 = vmatprep.subr.mxu0 0.0
        %7351 = vmatpush1.msra.mxu0 0.0
        %7352 = vmatprep.mubr.f32.mxu0 0.0
        %7353 = vmatmul.mubr.f32.gmra.mrb[0].mxu0 %v7188
        %v7354 = vpop.f32.mrb[0].mxu0
        %v7355 = vadd.f32 0.0, %v7354
        %v7356 = vpop.f32.mrb[0].mxu0
        %7357 = vmatprep.mubr.f32.mxu0 0.0
        %7358 = vmatmul.mubr.f32.gmra.mrb[0].mxu0 %v7191
        %v7359 = vpop.f32.mrb[0].mxu0
        %v7360 = vadd.f32 0.0, %v7359
        %v7361 = vpop.f32.mrb[0].mxu0
        %7362 = vmatprep.mubr.f32.mxu0 0.0
        %7363 = vmatmul.mubr.f32.gmra.mrb[0].mxu0 %v7194
        %v7364 = vpop.f32.mrb[0].mxu0
        %v7365 = vadd.f32 0.0, %v7364
        %v7366 = vpop.f32.mrb[0].mxu0
        %7367 = vmatprep.mubr.f32.mxu0 0.0
        %7368 = vmatmul.mubr.f32.gmra.mrb[0].mxu0 %v7197
        %v7369 = vpop.f32.mrb[0].mxu0
        %v7370 = vadd.f32 0.0, %v7369
        %v7371 = vpop.f32.mrb[0].mxu0
        %7372 = vdwg.mxu0
        %v7373 = vadd.f32 %v7147, %v7266
        %v7374 = vadd.f32 %v7148, %v7268
        %v7375 = vadd.f32 %v7149, %v7355
        %v7376 = vadd.f32 %v7150, %v7272
        %v7377 = vadd.f32 %v7151, %v7274
        %v7378 = vadd.f32 %v7152, %v7360
        %v7379 = vadd.f32 %v7153, %v7278
        %v7380 = vadd.f32 %v7154, %v7280
        %v7381 = vadd.f32 %v7155, %v7365
        %v7382 = vadd.f32 %v7156, %v7284
        %v7383 = vadd.f32 %v7157, %v7286
        %v7384 = vadd.f32 %v7158, %v7370
        %s7385 = scalar_lea.vmem %s4, 256
        %v7386 = vld [vmem:[%s7385] sm:$0xff]
        %v7387 = vld [vmem:[%s7385 + $0x8] sm:$0xff]
        %v7388 = vld [vmem:[%s7385 + $0x10] sm:$0xff]
        %v7389 = vld [vmem:[%s7385 + $0x18] sm:$0xff]
        %7390 = vrot.lane.b32.xlu0 %v5461, 90
        %v7391 = vpop.permute.xlu0 %7390
        %7392 = vrot.lane.b32.xlu0 %v5463, 90
        %v7393 = vpop.permute.xlu0 %7392
        %7394 = vrot.lane.b32.xlu0 %v5613, 90
        %v7395 = vpop.permute.xlu0 %7394
        %7396 = vrot.lane.b32.xlu0 %v5467, 90
        %v7397 = vpop.permute.xlu0 %7396
        %7398 = vrot.lane.b32.xlu0 %v5469, 90
        %v7399 = vpop.permute.xlu0 %7398
        %7400 = vrot.lane.b32.xlu0 %v5618, 90
        %v7401 = vpop.permute.xlu0 %7400
        %vm7402 = vcmask 736256
        %v7403 = vsel %vm7402, %v7391, %v7393
        %v7404 = vsel %vm7402, %v7393, %v7395
        %v7405 = vsel %vm7402, %v7397, %v7399
        %v7406 = vsel %vm7402, %v7399, %v7401
        %v7414 = vsel %vm5658, %v7386, 0
        %v7417 = vsel %vm5658, %v7387, 0
        %v7420 = vsel %vm5658, %v7388, 0
        %v7423 = vsel %vm5658, %v7389, 0
        %7425 = vmatprep.subr.mxu0 %v7404
        %7426 = vmatpush1.msra.mxu0 %v7403
        %7427 = vmatprep.subr.mxu0 %v7406
        %7428 = vmatpush1.msra.mxu0 %v7405
        %7429 = vmatprep.subr.mxu0 0.0
        %7430 = vmatpush1.msra.mxu0 0.0
        %7431 = vmatprep.subr.mxu0 0.0
        %7432 = vmatpush1.msra.mxu0 0.0
        %7433 = vmatprep.subr.mxu0 0.0
        %7434 = vmatpush1.msra.mxu0 0.0
        %7435 = vmatprep.subr.mxu0 0.0
        %7436 = vmatpush1.msra.mxu0 0.0
        %7437 = vmatprep.subr.mxu0 0.0
        %7438 = vmatpush1.msra.mxu0 0.0
        %7439 = vmatprep.subr.mxu0 0.0
        %7440 = vmatpush1.msra.mxu0 0.0
        %7441 = vmatprep.subr.mxu0 0.0
        %7442 = vmatpush1.msra.mxu0 0.0
        %7443 = vmatprep.subr.mxu0 0.0
        %7444 = vmatpush1.msra.mxu0 0.0
        %7445 = vmatprep.subr.mxu0 0.0
        %7446 = vmatpush1.msra.mxu0 0.0
        %7447 = vmatprep.subr.mxu0 0.0
        %7448 = vmatpush1.msra.mxu0 0.0
        %7449 = vmatprep.subr.mxu0 0.0
        %7450 = vmatpush1.msra.mxu0 0.0
        %7451 = vmatprep.subr.mxu0 0.0
        %7452 = vmatpush1.msra.mxu0 0.0
        %7453 = vmatprep.subr.mxu0 0.0
        %7454 = vmatpush1.msra.mxu0 0.0
        %7455 = vmatprep.subr.mxu0 0.0
        %7456 = vmatpush1.msra.mxu0 0.0
        %7457 = vmatprep.subr.mxu0 0.0
        %7458 = vmatpush1.msra.mxu0 0.0
        %7459 = vmatprep.subr.mxu0 0.0
        %7460 = vmatpush1.msra.mxu0 0.0
        %7461 = vmatprep.subr.mxu0 0.0
        %7462 = vmatpush1.msra.mxu0 0.0
        %7463 = vmatprep.subr.mxu0 0.0
        %7464 = vmatpush1.msra.mxu0 0.0
        %7465 = vmatprep.subr.mxu0 0.0
        %7466 = vmatpush1.msra.mxu0 0.0
        %7467 = vmatprep.subr.mxu0 0.0
        %7468 = vmatpush1.msra.mxu0 0.0
        %7469 = vmatprep.subr.mxu0 0.0
        %7470 = vmatpush1.msra.mxu0 0.0
        %7471 = vmatprep.subr.mxu0 0.0
        %7472 = vmatpush1.msra.mxu0 0.0
        %7473 = vmatprep.subr.mxu0 0.0
        %7474 = vmatpush1.msra.mxu0 0.0
        %7475 = vmatprep.subr.mxu0 0.0
        %7476 = vmatpush1.msra.mxu0 0.0
        %7477 = vmatprep.subr.mxu0 0.0
        %7478 = vmatpush1.msra.mxu0 0.0
        %7479 = vmatprep.subr.mxu0 0.0
        %7480 = vmatpush1.msra.mxu0 0.0
        %7481 = vmatprep.subr.mxu0 0.0
        %7482 = vmatpush1.msra.mxu0 0.0
        %7483 = vmatprep.subr.mxu0 0.0
        %7484 = vmatpush1.msra.mxu0 0.0
        %7485 = vmatprep.subr.mxu0 0.0
        %7486 = vmatpush1.msra.mxu0 0.0
        %7487 = vmatprep.subr.mxu0 0.0
        %7488 = vmatpush1.msra.mxu0 0.0
        %7489 = vmatprep.mubr.f32.mxu0 0.0
        %7490 = vmatmul.mubr.f32.gmra.mrb[0].mxu0 %v7414
        %v7491 = vpop.f32.mrb[0].mxu0
        %v7492 = vadd.f32 0.0, %v7491
        %v7493 = vpop.f32.mrb[0].mxu0
        %v7494 = vadd.f32 0.0, %v7493
        %7495 = vmatprep.mubr.f32.mxu0 0.0
        %7496 = vmatmul.mubr.f32.gmra.mrb[0].mxu0 %v7417
        %v7497 = vpop.f32.mrb[0].mxu0
        %v7498 = vadd.f32 0.0, %v7497
        %v7499 = vpop.f32.mrb[0].mxu0
        %v7500 = vadd.f32 0.0, %v7499
        %7501 = vmatprep.mubr.f32.mxu0 0.0
        %7502 = vmatmul.mubr.f32.gmra.mrb[0].mxu0 %v7420
        %v7503 = vpop.f32.mrb[0].mxu0
        %v7504 = vadd.f32 0.0, %v7503
        %v7505 = vpop.f32.mrb[0].mxu0
        %v7506 = vadd.f32 0.0, %v7505
        %7507 = vmatprep.mubr.f32.mxu0 0.0
        %7508 = vmatmul.mubr.f32.gmra.mrb[0].mxu0 %v7423
        %v7509 = vpop.f32.mrb[0].mxu0
        %v7510 = vadd.f32 0.0, %v7509
        %v7511 = vpop.f32.mrb[0].mxu0
        %v7512 = vadd.f32 0.0, %v7511
        %7513 = vdwg.mxu0
        %7514 = vmatprep.subr.mxu0 0.0
        %7515 = vmatpush1.msra.mxu0 %v7395
        %7516 = vmatprep.subr.mxu0 0.0
        %7517 = vmatpush1.msra.mxu0 %v7401
        %7518 = vmatprep.subr.mxu0 0.0
        %7519 = vmatpush1.msra.mxu0 0.0
        %7520 = vmatprep.subr.mxu0 0.0
        %7521 = vmatpush1.msra.mxu0 0.0
        %7522 = vmatprep.subr.mxu0 0.0
        %7523 = vmatpush1.msra.mxu0 0.0
        %7524 = vmatprep.subr.mxu0 0.0
        %7525 = vmatpush1.msra.mxu0 0.0
        %7526 = vmatprep.subr.mxu0 0.0
        %7527 = vmatpush1.msra.mxu0 0.0
        %7528 = vmatprep.subr.mxu0 0.0
        %7529 = vmatpush1.msra.mxu0 0.0
        %7530 = vmatprep.subr.mxu0 0.0
        %7531 = vmatpush1.msra.mxu0 0.0
        %7532 = vmatprep.subr.mxu0 0.0
        %7533 = vmatpush1.msra.mxu0 0.0
        %7534 = vmatprep.subr.mxu0 0.0
        %7535 = vmatpush1.msra.mxu0 0.0
        %7536 = vmatprep.subr.mxu0 0.0
        %7537 = vmatpush1.msra.mxu0 0.0
        %7538 = vmatprep.subr.mxu0 0.0
        %7539 = vmatpush1.msra.mxu0 0.0
        %7540 = vmatprep.subr.mxu0 0.0
        %7541 = vmatpush1.msra.mxu0 0.0
        %7542 = vmatprep.subr.mxu0 0.0
        %7543 = vmatpush1.msra.mxu0 0.0
        %7544 = vmatprep.subr.mxu0 0.0
        %7545 = vmatpush1.msra.mxu0 0.0
        %7546 = vmatprep.subr.mxu0 0.0
        %7547 = vmatpush1.msra.mxu0 0.0
        %7548 = vmatprep.subr.mxu0 0.0
        %7549 = vmatpush1.msra.mxu0 0.0
        %7550 = vmatprep.subr.mxu0 0.0
        %7551 = vmatpush1.msra.mxu0 0.0
        %7552 = vmatprep.subr.mxu0 0.0
        %7553 = vmatpush1.msra.mxu0 0.0
        %7554 = vmatprep.subr.mxu0 0.0
        %7555 = vmatpush1.msra.mxu0 0.0
        %7556 = vmatprep.subr.mxu0 0.0
        %7557 = vmatpush1.msra.mxu0 0.0
        %7558 = vmatprep.subr.mxu0 0.0
        %7559 = vmatpush1.msra.mxu0 0.0
        %7560 = vmatprep.subr.mxu0 0.0
        %7561 = vmatpush1.msra.mxu0 0.0
        %7562 = vmatprep.subr.mxu0 0.0
        %7563 = vmatpush1.msra.mxu0 0.0
        %7564 = vmatprep.subr.mxu0 0.0
        %7565 = vmatpush1.msra.mxu0 0.0
        %7566 = vmatprep.subr.mxu0 0.0
        %7567 = vmatpush1.msra.mxu0 0.0
        %7568 = vmatprep.subr.mxu0 0.0
        %7569 = vmatpush1.msra.mxu0 0.0
        %7570 = vmatprep.subr.mxu0 0.0
        %7571 = vmatpush1.msra.mxu0 0.0
        %7572 = vmatprep.subr.mxu0 0.0
        %7573 = vmatpush1.msra.mxu0 0.0
        %7574 = vmatprep.subr.mxu0 0.0
        %7575 = vmatpush1.msra.mxu0 0.0
        %7576 = vmatprep.subr.mxu0 0.0
        %7577 = vmatpush1.msra.mxu0 0.0
        %7578 = vmatprep.mubr.f32.mxu0 0.0
        %7579 = vmatmul.mubr.f32.gmra.mrb[0].mxu0 %v7414
        %v7580 = vpop.f32.mrb[0].mxu0
        %v7581 = vadd.f32 0.0, %v7580
        %v7582 = vpop.f32.mrb[0].mxu0
        %7583 = vmatprep.mubr.f32.mxu0 0.0
        %7584 = vmatmul.mubr.f32.gmra.mrb[0].mxu0 %v7417
        %v7585 = vpop.f32.mrb[0].mxu0
        %v7586 = vadd.f32 0.0, %v7585
        %v7587 = vpop.f32.mrb[0].mxu0
        %7588 = vmatprep.mubr.f32.mxu0 0.0
        %7589 = vmatmul.mubr.f32.gmra.mrb[0].mxu0 %v7420
        %v7590 = vpop.f32.mrb[0].mxu0
        %v7591 = vadd.f32 0.0, %v7590
        %v7592 = vpop.f32.mrb[0].mxu0
        %7593 = vmatprep.mubr.f32.mxu0 0.0
        %7594 = vmatmul.mubr.f32.gmra.mrb[0].mxu0 %v7423
        %v7595 = vpop.f32.mrb[0].mxu0
        %v7596 = vadd.f32 0.0, %v7595
        %v7597 = vpop.f32.mrb[0].mxu0
        %7598 = vdwg.mxu0
        %v7599 = vadd.f32 %v7373, %v7492
        %v7600 = vadd.f32 %v7374, %v7494
        %v7601 = vadd.f32 %v7375, %v7581
        %v7602 = vadd.f32 %v7376, %v7498
        %v7603 = vadd.f32 %v7377, %v7500
        %v7604 = vadd.f32 %v7378, %v7586
        %v7605 = vadd.f32 %v7379, %v7504
        %v7606 = vadd.f32 %v7380, %v7506
        %v7607 = vadd.f32 %v7381, %v7591
        %v7608 = vadd.f32 %v7382, %v7510
        %v7609 = vadd.f32 %v7383, %v7512
        %v7610 = vadd.f32 %v7384, %v7596
        %v7611 = vld [vmem:[%s5] sm:$0xff]
        %v7612 = vld [vmem:[%s5 + $0x8] sm:$0xff]
        %v7613 = vld [vmem:[%s5 + $0x10] sm:$0xff]
        %v7614 = vld [vmem:[%s5 + $0x18] sm:$0xff]
        %7616 = vset.pattern.permute.xlu0 0
        %7617 = vperm.xlu0 %7616, %v7611
        %v7618 = vpop.permute.xlu0 %7617
        %7621 = vset.pattern.permute.xlu0 0
        %7622 = vperm.xlu0 %7621, %v7612
        %v7623 = vpop.permute.xlu0 %7622
        %7626 = vset.pattern.permute.xlu0 0
        %7627 = vperm.xlu0 %7626, %v7613
        %v7628 = vpop.permute.xlu0 %7627
        %7631 = vset.pattern.permute.xlu0 0
        %7632 = vperm.xlu0 %7631, %v7614
        %v7633 = vpop.permute.xlu0 %7632
        %v7635 = vadd.f32 %v7599, %v7618
        %v7636 = vadd.f32 %v7600, %v7618
        %v7637 = vadd.f32 %v7601, %v7618
        %v7638 = vadd.f32 %v7602, %v7623
        %v7639 = vadd.f32 %v7603, %v7623
        %v7640 = vadd.f32 %v7604, %v7623
        %v7641 = vadd.f32 %v7605, %v7628
        %v7642 = vadd.f32 %v7606, %v7628
        %v7643 = vadd.f32 %v7607, %v7628
        %v7644 = vadd.f32 %v7608, %v7633
        %v7645 = vadd.f32 %v7609, %v7633
        %v7646 = vadd.f32 %v7610, %v7633
        %v7647 = vmax.f32 %v7635, 0.0
        %v7648 = vmax.f32 %v7636, 0.0
        %v7649 = vmax.f32 %v7637, 0.0
        %v7650 = vmax.f32 %v7638, 0.0
        %v7651 = vmax.f32 %v7639, 0.0
        %v7652 = vmax.f32 %v7640, 0.0
        %v7653 = vmax.f32 %v7641, 0.0
        %v7654 = vmax.f32 %v7642, 0.0
        %v7655 = vmax.f32 %v7643, 0.0
        %v7656 = vmax.f32 %v7644, 0.0
        %v7657 = vmax.f32 %v7645, 0.0
        %v7658 = vmax.f32 %v7646, 0.0
        %v7659 = vld [vmem:[%s6] sm:$0x7]
        %v7661 = vlaneseq
        %v7662 = vshrl.u32 %v7661, 7
        %v7663 = vsub.s32 0, %v7662
        %v7664 = vrot.slane %v7659, %v7663
        %v7665 = vlaneseq
        %v7666 = vshrl.u32 %v7665, 7
        %v7667 = vsub.s32 1, %v7666
        %v7668 = vrot.slane %v7659, %v7667
        %v7669 = vlaneseq
        %v7670 = vshrl.u32 %v7669, 7
        %v7671 = vsub.s32 2, %v7670
        %v7672 = vrot.slane %v7659, %v7671
        %v7676 = vadd.f32 %v7647, %v7664
        %v7677 = vadd.f32 %v7648, %v7668
        %v7678 = vadd.f32 %v7649, %v7672
        %v7679 = vadd.f32 %v7650, %v7664
        %v7680 = vadd.f32 %v7651, %v7668
        %v7681 = vadd.f32 %v7652, %v7672
        %v7682 = vadd.f32 %v7653, %v7664
        %v7683 = vadd.f32 %v7654, %v7668
        %v7684 = vadd.f32 %v7655, %v7672
        %v7685 = vadd.f32 %v7656, %v7664
        %v7686 = vadd.f32 %v7657, %v7668
        %v7687 = vadd.f32 %v7658, %v7672
        %v7688 = vmax.f32 %v7676, %v7677
        %vm7689 = vcmask 261120
        %v7690 = vsel %vm7689, %v7678, -inf
        %v7691 = vmax.f32 %v7688, %v7690
        %7692 = vmax.xlane.f32.xlu0 %v7691
        %v7693 = vpop.xlane.xlu0 %7692
        %v7694 = vmax.f32 %v7679, %v7680
        %v7695 = vsel %vm7689, %v7681, -inf
        %v7696 = vmax.f32 %v7694, %v7695
        %7697 = vmax.xlane.f32.xlu0 %v7696
        %v7698 = vpop.xlane.xlu0 %7697
        %v7699 = vmax.f32 %v7682, %v7683
        %v7700 = vsel %vm7689, %v7684, -inf
        %v7701 = vmax.f32 %v7699, %v7700
        %7702 = vmax.xlane.f32.xlu0 %v7701
        %v7703 = vpop.xlane.xlu0 %7702
        %v7704 = vmax.f32 %v7685, %v7686
        %v7705 = vsel %vm7689, %v7687, -inf
        %v7706 = vmax.f32 %v7704, %v7705
        %7707 = vmax.xlane.f32.xlu0 %v7706
        %v7708 = vpop.xlane.xlu0 %7707
        %v7709 = vsub.f32 %v7676, %v7693
        %v7710 = vsub.f32 %v7677, %v7693
        %v7711 = vsub.f32 %v7678, %v7693
        %v7712 = vsub.f32 %v7679, %v7698
        %v7713 = vsub.f32 %v7680, %v7698
        %v7714 = vsub.f32 %v7681, %v7698
        %v7715 = vsub.f32 %v7682, %v7703
        %v7716 = vsub.f32 %v7683, %v7703
        %v7717 = vsub.f32 %v7684, %v7703
        %v7718 = vsub.f32 %v7685, %v7708
        %v7719 = vsub.f32 %v7686, %v7708
        %v7720 = vsub.f32 %v7687, %v7708
        %v7721 = vmul.f32 %v7709, 1.442695
        %v7722 = vpow.pop %v7721
        %v7723 = vmul.f32 %v7710, 1.442695
        %v7724 = vpow.pop %v7723
        %v7725 = vmul.f32 %v7711, 1.442695
        %v7726 = vpow.pop %v7725
        %v7727 = vmul.f32 %v7712, 1.442695
        %v7728 = vpow.pop %v7727
        %v7729 = vmul.f32 %v7713, 1.442695
        %v7730 = vpow.pop %v7729
        %v7731 = vmul.f32 %v7714, 1.442695
        %v7732 = vpow.pop %v7731
        %v7733 = vmul.f32 %v7715, 1.442695
        %v7734 = vpow.pop %v7733
        %v7735 = vmul.f32 %v7716, 1.442695
        %v7736 = vpow.pop %v7735
        %v7737 = vmul.f32 %v7717, 1.442695
        %v7738 = vpow.pop %v7737
        %v7739 = vmul.f32 %v7718, 1.442695
        %v7740 = vpow.pop %v7739
        %v7741 = vmul.f32 %v7719, 1.442695
        %v7742 = vpow.pop %v7741
        %v7743 = vmul.f32 %v7720, 1.442695
        %v7744 = vpow.pop %v7743
        %v7745 = vadd.f32 %v7722, %v7724
        %v7746 = vsel %vm7689, %v7726, 0.0
        %v7747 = vadd.f32 %v7745, %v7746
        %7748 = vadd.xlane.f32.xlu0 %v7747
        %v7749 = vpop.xlane.xlu0 %7748
        %v7750 = vadd.f32 %v7728, %v7730
        %v7751 = vsel %vm7689, %v7732, 0.0
        %v7752 = vadd.f32 %v7750, %v7751
        %7753 = vadd.xlane.f32.xlu0 %v7752
        %v7754 = vpop.xlane.xlu0 %7753
        %v7755 = vadd.f32 %v7734, %v7736
        %v7756 = vsel %vm7689, %v7738, 0.0
        %v7757 = vadd.f32 %v7755, %v7756
        %7758 = vadd.xlane.f32.xlu0 %v7757
        %v7759 = vpop.xlane.xlu0 %7758
        %v7760 = vadd.f32 %v7740, %v7742
        %v7761 = vsel %vm7689, %v7744, 0.0
        %v7762 = vadd.f32 %v7760, %v7761
        %7763 = vadd.xlane.f32.xlu0 %v7762
        %v7764 = vpop.xlane.xlu0 %7763
        %v7765 = vld [vmem:[%s7] sm:$0xff]
        %v7766 = vld [vmem:[%s7 + $0x8] sm:$0xff]
        %v7767 = vld [vmem:[%s7 + $0x10] sm:$0xff]
        %v7768 = vld [vmem:[%s7 + $0x18] sm:$0xff]
        %v7769 = vld [vmem:[%s7 + $0x20] sm:$0xff]
        %v7770 = vld [vmem:[%s7 + $0x28] sm:$0xff]
        %v7771 = vld [vmem:[%s7 + $0x30] sm:$0xff]
        %v7772 = vld [vmem:[%s7 + $0x38] sm:$0xff]
        %v7773 = vld [vmem:[%s7 + $0x40] sm:$0xff]
        %v7774 = vld [vmem:[%s7 + $0x48] sm:$0xff]
        %v7775 = vld [vmem:[%s7 + $0x50] sm:$0xff]
        %v7776 = vld [vmem:[%s7 + $0x58] sm:$0xff]
        %v7777 = vld [vmem:[%s7 + $0x60] sm:$0xff]
        %v7778 = vld [vmem:[%s7 + $0x68] sm:$0xff]
        %v7779 = vld [vmem:[%s7 + $0x70] sm:$0xff]
        %v7780 = vld [vmem:[%s7 + $0x78] sm:$0xff]
        %v7781 = vld [vmem:[%s7 + $0x80] sm:$0xff]
        %v7782 = vld [vmem:[%s7 + $0x88] sm:$0xff]
        %v7783 = vld [vmem:[%s7 + $0x90] sm:$0xff]
        %v7784 = vld [vmem:[%s7 + $0x98] sm:$0xff]
        %v7785 = vld [vmem:[%s7 + $0xa0] sm:$0xff]
        %v7786 = vld [vmem:[%s7 + $0xa8] sm:$0xff]
        %v7787 = vld [vmem:[%s7 + $0xb0] sm:$0xff]
        %v7788 = vld [vmem:[%s7 + $0xb8] sm:$0xff]
        %v7789 = vld [vmem:[%s7 + $0xc0] sm:$0xff]
        %v7790 = vld [vmem:[%s7 + $0xc8] sm:$0xff]
        %v7791 = vld [vmem:[%s7 + $0xd0] sm:$0xff]
        %v7792 = vld [vmem:[%s7 + $0xd8] sm:$0xff]
        %v7793 = vld [vmem:[%s7 + $0xe0] sm:$0xff]
        %v7794 = vld [vmem:[%s7 + $0xe8] sm:$0xff]
        %v7795 = vld [vmem:[%s7 + $0xf0] sm:$0xff]
        %v7796 = vld [vmem:[%s7 + $0xf8] sm:$0xff]
        %v7797 = vld [vmem:[%s7 + $0x100] sm:$0xff]
        %v7798 = vld [vmem:[%s7 + $0x108] sm:$0xff]
        %v7799 = vld [vmem:[%s7 + $0x110] sm:$0xff]
        %v7800 = vld [vmem:[%s7 + $0x118] sm:$0xff]
        %v7802 = vsel %vm7689, %v7726, 0
        %v7805 = vsel %vm7689, %v7732, 0
        %v7808 = vsel %vm7689, %v7738, 0
        %v7811 = vsel %vm7689, %v7744, 0
        %7813 = vmatprep.subr.mxu0 0.0
        %7814 = vmatpush1.msra.mxu0 %v7765
        %7815 = vmatprep.subr.mxu0 0.0
        %7816 = vmatpush1.msra.mxu0 %v7766
        %7817 = vmatprep.subr.mxu0 0.0
        %7818 = vmatpush1.msra.mxu0 %v7767
        %7819 = vmatprep.subr.mxu0 0.0
        %7820 = vmatpush1.msra.mxu0 %v7768
        %7821 = vmatprep.subr.mxu0 0.0
        %7822 = vmatpush1.msra.mxu0 %v7769
        %7823 = vmatprep.subr.mxu0 0.0
        %7824 = vmatpush1.msra.mxu0 %v7770
        %7825 = vmatprep.subr.mxu0 0.0
        %7826 = vmatpush1.msra.mxu0 %v7771
        %7827 = vmatprep.subr.mxu0 0.0
        %7828 = vmatpush1.msra.mxu0 %v7772
        %7829 = vmatprep.subr.mxu0 0.0
        %7830 = vmatpush1.msra.mxu0 %v7773
        %7831 = vmatprep.subr.mxu0 0.0
        %7832 = vmatpush1.msra.mxu0 %v7774
        %7833 = vmatprep.subr.mxu0 0.0
        %7834 = vmatpush1.msra.mxu0 %v7775
        %7835 = vmatprep.subr.mxu0 0.0
        %7836 = vmatpush1.msra.mxu0 %v7776
        %7837 = vmatprep.subr.mxu0 0.0
        %7838 = vmatpush1.msra.mxu0 %v7777
        %7839 = vmatprep.subr.mxu0 0.0
        %7840 = vmatpush1.msra.mxu0 %v7778
        %7841 = vmatprep.subr.mxu0 0.0
        %7842 = vmatpush1.msra.mxu0 %v7779
        %7843 = vmatprep.subr.mxu0 0.0
        %7844 = vmatpush1.msra.mxu0 %v7780
        %7845 = vmatprep.subr.mxu0 0.0
        %7846 = vmatpush1.msra.mxu0 %v7781
        %7847 = vmatprep.subr.mxu0 0.0
        %7848 = vmatpush1.msra.mxu0 %v7782
        %7849 = vmatprep.subr.mxu0 0.0
        %7850 = vmatpush1.msra.mxu0 %v7783
        %7851 = vmatprep.subr.mxu0 0.0
        %7852 = vmatpush1.msra.mxu0 %v7784
        %7853 = vmatprep.subr.mxu0 0.0
        %7854 = vmatpush1.msra.mxu0 %v7785
        %7855 = vmatprep.subr.mxu0 0.0
        %7856 = vmatpush1.msra.mxu0 %v7786
        %7857 = vmatprep.subr.mxu0 0.0
        %7858 = vmatpush1.msra.mxu0 %v7787
        %7859 = vmatprep.subr.mxu0 0.0
        %7860 = vmatpush1.msra.mxu0 %v7788
        %7861 = vmatprep.subr.mxu0 0.0
        %7862 = vmatpush1.msra.mxu0 %v7789
        %7863 = vmatprep.subr.mxu0 0.0
        %7864 = vmatpush1.msra.mxu0 %v7790
        %7865 = vmatprep.subr.mxu0 0.0
        %7866 = vmatpush1.msra.mxu0 %v7791
        %7867 = vmatprep.subr.mxu0 0.0
        %7868 = vmatpush1.msra.mxu0 %v7792
        %7869 = vmatprep.subr.mxu0 0.0
        %7870 = vmatpush1.msra.mxu0 %v7793
        %7871 = vmatprep.subr.mxu0 0.0
        %7872 = vmatpush1.msra.mxu0 %v7794
        %7873 = vmatprep.subr.mxu0 0.0
        %7874 = vmatpush1.msra.mxu0 %v7795
        %7875 = vmatprep.subr.mxu0 0.0
        %7876 = vmatpush1.msra.mxu0 %v7796
        %7877 = vmatprep.mubr.f32.mxu0 %v7724
        %7878 = vmatmul.mubr.f32.gmra.mrb[0].mxu0 %v7722
        %v7879 = vpop.f32.mrb[0].mxu0
        %v7880 = vadd.f32 0.0, %v7879
        %v7881 = vpop.f32.mrb[0].mxu0
        %7882 = vmatprep.mubr.f32.mxu0 %v7730
        %7883 = vmatmul.mubr.f32.gmra.mrb[0].mxu0 %v7728
        %v7884 = vpop.f32.mrb[0].mxu0
        %v7885 = vadd.f32 0.0, %v7884
        %v7886 = vpop.f32.mrb[0].mxu0
        %7887 = vmatprep.mubr.f32.mxu0 %v7736
        %7888 = vmatmul.mubr.f32.gmra.mrb[0].mxu0 %v7734
        %v7889 = vpop.f32.mrb[0].mxu0
        %v7890 = vadd.f32 0.0, %v7889
        %v7891 = vpop.f32.mrb[0].mxu0
        %7892 = vmatprep.mubr.f32.mxu0 %v7742
        %7893 = vmatmul.mubr.f32.gmra.mrb[0].mxu0 %v7740
        %v7894 = vpop.f32.mrb[0].mxu0
        %v7895 = vadd.f32 0.0, %v7894
        %v7896 = vpop.f32.mrb[0].mxu0
        %7897 = vdwg.mxu0
        %7898 = vmatprep.subr.mxu0 0.0
        %7899 = vmatpush1.msra.mxu0 %v7797
        %7900 = vmatprep.subr.mxu0 0.0
        %7901 = vmatpush1.msra.mxu0 %v7798
        %7902 = vmatprep.subr.mxu0 0.0
        %7903 = vmatpush1.msra.mxu0 %v7799
        %7904 = vmatprep.subr.mxu0 0.0
        %7905 = vmatpush1.msra.mxu0 %v7800
        %7906 = vmatprep.subr.mxu0 0.0
        %7907 = vmatpush1.msra.mxu0 0.0
        %7908 = vmatprep.subr.mxu0 0.0
        %7909 = vmatpush1.msra.mxu0 0.0
        %7910 = vmatprep.subr.mxu0 0.0
        %7911 = vmatpush1.msra.mxu0 0.0
        %7912 = vmatprep.subr.mxu0 0.0
        %7913 = vmatpush1.msra.mxu0 0.0
        %7914 = vmatprep.subr.mxu0 0.0
        %7915 = vmatpush1.msra.mxu0 0.0
        %7916 = vmatprep.subr.mxu0 0.0
        %7917 = vmatpush1.msra.mxu0 0.0
        %7918 = vmatprep.subr.mxu0 0.0
        %7919 = vmatpush1.msra.mxu0 0.0
        %7920 = vmatprep.subr.mxu0 0.0
        %7921 = vmatpush1.msra.mxu0 0.0
        %7922 = vmatprep.subr.mxu0 0.0
        %7923 = vmatpush1.msra.mxu0 0.0
        %7924 = vmatprep.subr.mxu0 0.0
        %7925 = vmatpush1.msra.mxu0 0.0
        %7926 = vmatprep.subr.mxu0 0.0
        %7927 = vmatpush1.msra.mxu0 0.0
        %7928 = vmatprep.subr.mxu0 0.0
        %7929 = vmatpush1.msra.mxu0 0.0
        %7930 = vmatprep.subr.mxu0 0.0
        %7931 = vmatpush1.msra.mxu0 0.0
        %7932 = vmatprep.subr.mxu0 0.0
        %7933 = vmatpush1.msra.mxu0 0.0
        %7934 = vmatprep.subr.mxu0 0.0
        %7935 = vmatpush1.msra.mxu0 0.0
        %7936 = vmatprep.subr.mxu0 0.0
        %7937 = vmatpush1.msra.mxu0 0.0
        %7938 = vmatprep.subr.mxu0 0.0
        %7939 = vmatpush1.msra.mxu0 0.0
        %7940 = vmatprep.subr.mxu0 0.0
        %7941 = vmatpush1.msra.mxu0 0.0
        %7942 = vmatprep.subr.mxu0 0.0
        %7943 = vmatpush1.msra.mxu0 0.0
        %7944 = vmatprep.subr.mxu0 0.0
        %7945 = vmatpush1.msra.mxu0 0.0
        %7946 = vmatprep.subr.mxu0 0.0
        %7947 = vmatpush1.msra.mxu0 0.0
        %7948 = vmatprep.subr.mxu0 0.0
        %7949 = vmatpush1.msra.mxu0 0.0
        %7950 = vmatprep.subr.mxu0 0.0
        %7951 = vmatpush1.msra.mxu0 0.0
        %7952 = vmatprep.subr.mxu0 0.0
        %7953 = vmatpush1.msra.mxu0 0.0
        %7954 = vmatprep.subr.mxu0 0.0
        %7955 = vmatpush1.msra.mxu0 0.0
        %7956 = vmatprep.subr.mxu0 0.0
        %7957 = vmatpush1.msra.mxu0 0.0
        %7958 = vmatprep.subr.mxu0 0.0
        %7959 = vmatpush1.msra.mxu0 0.0
        %7960 = vmatprep.subr.mxu0 0.0
        %7961 = vmatpush1.msra.mxu0 0.0
        %7962 = vmatprep.mubr.f32.mxu0 0.0
        %7963 = vmatmul.mubr.f32.gmra.mrb[0].mxu0 %v7802
        %v7964 = vpop.f32.mrb[0].mxu0
        %v7965 = vadd.f32 %v7880, %v7964
        %v7966 = vpop.f32.mrb[0].mxu0
        %7967 = vmatprep.mubr.f32.mxu0 0.0
        %7968 = vmatmul.mubr.f32.gmra.mrb[0].mxu0 %v7805
        %v7969 = vpop.f32.mrb[0].mxu0
        %v7970 = vadd.f32 %v7885, %v7969
        %v7971 = vpop.f32.mrb[0].mxu0
        %7972 = vmatprep.mubr.f32.mxu0 0.0
        %7973 = vmatmul.mubr.f32.gmra.mrb[0].mxu0 %v7808
        %v7974 = vpop.f32.mrb[0].mxu0
        %v7975 = vadd.f32 %v7890, %v7974
        %v7976 = vpop.f32.mrb[0].mxu0
        %7977 = vmatprep.mubr.f32.mxu0 0.0
        %7978 = vmatmul.mubr.f32.gmra.mrb[0].mxu0 %v7811
        %v7979 = vpop.f32.mrb[0].mxu0
        %v7980 = vadd.f32 %v7895, %v7979
        %v7981 = vpop.f32.mrb[0].mxu0
        %7982 = vdwg.mxu0
        %v7983 = vrcp.pop %v7749
        %v7984 = vrcp.pop %v7754
        %v7985 = vrcp.pop %v7759
        %v7986 = vrcp.pop %v7764
        %v7987 = vmul.f32 %v7965, %v7983
        %v7988 = vmul.f32 %v7970, %v7984
        %v7989 = vmul.f32 %v7975, %v7985
        %v7990 = vmul.f32 %v7980, %v7986
        %v7991 = vld [vmem:[%s9] sm:$0xff]
        %v7992 = vld [vmem:[%s9 + $0x8] sm:$0xff]
        %v7993 = vld [vmem:[%s9 + $0x10] sm:$0xff]
        %v7994 = vld [vmem:[%s9 + $0x18] sm:$0xff]
        %7996 = vset.pattern.permute.xlu0 0
        %7997 = vperm.xlu0 %7996, %v7987
        %v7998 = vpop.permute.xlu0 %7997
        %8001 = vset.pattern.permute.xlu0 0
        %8002 = vperm.xlu0 %8001, %v7988
        %v8003 = vpop.permute.xlu0 %8002
        %8006 = vset.pattern.permute.xlu0 0
        %8007 = vperm.xlu0 %8006, %v7989
        %v8008 = vpop.permute.xlu0 %8007
        %8011 = vset.pattern.permute.xlu0 0
        %8012 = vperm.xlu0 %8011, %v7990
        %v8013 = vpop.permute.xlu0 %8012
        %v8015 = vmul.f32 %v7998, %v7991
        %v8016 = vmul.f32 %v8003, %v7992
        %v8017 = vmul.f32 %v8008, %v7993
        %v8018 = vmul.f32 %v8013, %v7994
        %v8019 = vld [vmem:[%s10] sm:$0xff]
        %v8020 = vld [vmem:[%s10 + $0x8] sm:$0xff]
        %v8021 = vld [vmem:[%s10 + $0x10] sm:$0xff]
        %v8022 = vld [vmem:[%s10 + $0x18] sm:$0xff]
        %8023 = vset.pattern.permute.xlu0 1
        %8024 = vperm.xlu0 %8023, %v7987
        %v8025 = vpop.permute.xlu0 %8024
        %8027 = vset.pattern.permute.xlu0 1
        %8028 = vperm.xlu0 %8027, %v7988
        %v8029 = vpop.permute.xlu0 %8028
        %8031 = vset.pattern.permute.xlu0 1
        %8032 = vperm.xlu0 %8031, %v7989
        %v8033 = vpop.permute.xlu0 %8032
        %8035 = vset.pattern.permute.xlu0 1
        %8036 = vperm.xlu0 %8035, %v7990
        %v8037 = vpop.permute.xlu0 %8036
        %v8039 = vmul.f32 %v8025, %v8019
        %v8040 = vmul.f32 %v8029, %v8020
        %v8041 = vmul.f32 %v8033, %v8021
        %v8042 = vmul.f32 %v8037, %v8022
        %v8043 = vadd.f32 %v8015, %v8039
        %v8044 = vadd.f32 %v8016, %v8040
        %v8045 = vadd.f32 %v8017, %v8041
        %v8046 = vadd.f32 %v8018, %v8042
        %v8047 = vadd.f32 %v8043, %v8044
        %v8048 = vadd.f32 %v8047, %v8045
        %v8049 = vadd.f32 %v8048, %v8046
        %v8050 = vrot.slane %v8049, 4
        %v8051 = vadd.f32 %v8049, %v8050
        %v8052 = vrot.slane %v8051, 2
        %v8053 = vadd.f32 %v8051, %v8052
        %v8054 = vrot.slane %v8053, 1
        %v8055 = vadd.f32 %v8053, %v8054
        %v8056 = vld [vmem:[%s613] sm:$0x1]
        %v8057 = vld [vmem:[%s11] sm:$0xf]
        %vm8058 = vcmask 31744
        %v8060 = vsel %vm8058, %v8056, 0
        %vm8062 = vcmask 1043456
        %v8064 = vsel %vm8062, %v8057, 0
        %8066 = vmatprep.subr.mxu0 0.0
        %8067 = vmatpush1.msra.mxu0 %v8064
        %8068 = vmatprep.subr.mxu0 0.0
        %8069 = vmatpush1.msra.mxu0 0.0
        %8070 = vmatprep.subr.mxu0 0.0
        %8071 = vmatpush1.msra.mxu0 0.0
        %8072 = vmatprep.subr.mxu0 0.0
        %8073 = vmatpush1.msra.mxu0 0.0
        %8074 = vmatprep.subr.mxu0 0.0
        %8075 = vmatpush1.msra.mxu0 0.0
        %8076 = vmatprep.subr.mxu0 0.0
        %8077 = vmatpush1.msra.mxu0 0.0
        %8078 = vmatprep.subr.mxu0 0.0
        %8079 = vmatpush1.msra.mxu0 0.0
        %8080 = vmatprep.subr.mxu0 0.0
        %8081 = vmatpush1.msra.mxu0 0.0
        %8082 = vmatprep.subr.mxu0 0.0
        %8083 = vmatpush1.msra.mxu0 0.0
        %8084 = vmatprep.subr.mxu0 0.0
        %8085 = vmatpush1.msra.mxu0 0.0
        %8086 = vmatprep.subr.mxu0 0.0
        %8087 = vmatpush1.msra.mxu0 0.0
        %8088 = vmatprep.subr.mxu0 0.0
        %8089 = vmatpush1.msra.mxu0 0.0
        %8090 = vmatprep.subr.mxu0 0.0
        %8091 = vmatpush1.msra.mxu0 0.0
        %8092 = vmatprep.subr.mxu0 0.0
        %8093 = vmatpush1.msra.mxu0 0.0
        %8094 = vmatprep.subr.mxu0 0.0
        %8095 = vmatpush1.msra.mxu0 0.0
        %8096 = vmatprep.subr.mxu0 0.0
        %8097 = vmatpush1.msra.mxu0 0.0
        %8098 = vmatprep.subr.mxu0 0.0
        %8099 = vmatpush1.msra.mxu0 0.0
        %8100 = vmatprep.subr.mxu0 0.0
        %8101 = vmatpush1.msra.mxu0 0.0
        %8102 = vmatprep.subr.mxu0 0.0
        %8103 = vmatpush1.msra.mxu0 0.0
        %8104 = vmatprep.subr.mxu0 0.0
        %8105 = vmatpush1.msra.mxu0 0.0
        %8106 = vmatprep.subr.mxu0 0.0
        %8107 = vmatpush1.msra.mxu0 0.0
        %8108 = vmatprep.subr.mxu0 0.0
        %8109 = vmatpush1.msra.mxu0 0.0
        %8110 = vmatprep.subr.mxu0 0.0
        %8111 = vmatpush1.msra.mxu0 0.0
        %8112 = vmatprep.subr.mxu0 0.0
        %8113 = vmatpush1.msra.mxu0 0.0
        %8114 = vmatprep.subr.mxu0 0.0
        %8115 = vmatpush1.msra.mxu0 0.0
        %8116 = vmatprep.subr.mxu0 0.0
        %8117 = vmatpush1.msra.mxu0 0.0
        %8118 = vmatprep.subr.mxu0 0.0
        %8119 = vmatpush1.msra.mxu0 0.0
        %8120 = vmatprep.subr.mxu0 0.0
        %8121 = vmatpush1.msra.mxu0 0.0
        %8122 = vmatprep.subr.mxu0 0.0
        %8123 = vmatpush1.msra.mxu0 0.0
        %8124 = vmatprep.subr.mxu0 0.0
        %8125 = vmatpush1.msra.mxu0 0.0
        %8126 = vmatprep.subr.mxu0 0.0
        %8127 = vmatpush1.msra.mxu0 0.0
        %8128 = vmatprep.subr.mxu0 0.0
        %8129 = vmatpush1.msra.mxu0 0.0
        %8130 = vmatprep.mubr.f32.mxu0 0.0
        %8131 = vmatmul.mubr.f32.gmra.mrb[0].mxu0 %v8060
        %v8132 = vpop.f32.mrb[0].mxu0
        %v8133 = vadd.f32 0.0, %v8132
        %v8134 = vpop.f32.mrb[0].mxu0
        %8135 = vdwg.mxu0
        %v8136 = vadd.f32 %v8055, %v8133
        %v8137 = vld [vmem:[%s12] sm:$0x1]
        %v8138 = vadd.f32 %v8136, %v8137
        %v8139 = vmax.f32 %v8138, 0.0
        %v8140 = vld [vmem:[%s13] sm:$0xff]
        %v8141 = vld [vmem:[%s13 + $0x8] sm:$0xff]
        %v8142 = vld [vmem:[%s13 + $0x10] sm:$0xff]
        %v8143 = vld [vmem:[%s13 + $0x18] sm:$0xff]
        %v8144 = vld [vmem:[%s13 + $0x20] sm:$0xff]
        %v8145 = vld [vmem:[%s13 + $0x28] sm:$0xff]
        %v8146 = vld [vmem:[%s13 + $0x30] sm:$0xff]
        %v8147 = vld [vmem:[%s13 + $0x38] sm:$0xff]
        %v8148 = vld [vmem:[%s13 + $0x40] sm:$0xff]
        %v8149 = vld [vmem:[%s13 + $0x48] sm:$0xff]
        %v8150 = vld [vmem:[%s13 + $0x50] sm:$0xff]
        %v8151 = vld [vmem:[%s13 + $0x58] sm:$0xff]
        %v8152 = vld [vmem:[%s13 + $0x60] sm:$0xff]
        %v8153 = vld [vmem:[%s13 + $0x68] sm:$0xff]
        %v8154 = vld [vmem:[%s13 + $0x70] sm:$0xff]
        %v8155 = vld [vmem:[%s13 + $0x78] sm:$0xff]
        %v8156 = vld [vmem:[%s14] sm:$0x1]
        %8157 = vmatprep.subr.mxu0 0.0
        %8158 = vmatpush1.msra.mxu0 %v8140
        %8159 = vmatprep.subr.mxu0 0.0
        %8160 = vmatpush1.msra.mxu0 %v8141
        %8161 = vmatprep.subr.mxu0 0.0
        %8162 = vmatpush1.msra.mxu0 %v8142
        %8163 = vmatprep.subr.mxu0 0.0
        %8164 = vmatpush1.msra.mxu0 %v8143
        %8165 = vmatprep.subr.mxu0 0.0
        %8166 = vmatpush1.msra.mxu0 %v8144
        %8167 = vmatprep.subr.mxu0 0.0
        %8168 = vmatpush1.msra.mxu0 %v8145
        %8169 = vmatprep.subr.mxu0 0.0
        %8170 = vmatpush1.msra.mxu0 %v8146
        %8171 = vmatprep.subr.mxu0 0.0
        %8172 = vmatpush1.msra.mxu0 %v8147
        %8173 = vmatprep.subr.mxu0 0.0
        %8174 = vmatpush1.msra.mxu0 %v8148
        %8175 = vmatprep.subr.mxu0 0.0
        %8176 = vmatpush1.msra.mxu0 %v8149
        %8177 = vmatprep.subr.mxu0 0.0
        %8178 = vmatpush1.msra.mxu0 %v8150
        %8179 = vmatprep.subr.mxu0 0.0
        %8180 = vmatpush1.msra.mxu0 %v8151
        %8181 = vmatprep.subr.mxu0 0.0
        %8182 = vmatpush1.msra.mxu0 %v8152
        %8183 = vmatprep.subr.mxu0 0.0
        %8184 = vmatpush1.msra.mxu0 %v8153
        %8185 = vmatprep.subr.mxu0 0.0
        %8186 = vmatpush1.msra.mxu0 %v8154
        %8187 = vmatprep.subr.mxu0 0.0
        %8188 = vmatpush1.msra.mxu0 %v8155
        %8189 = vmatprep.subr.mxu0 0.0
        %8190 = vmatpush1.msra.mxu0 0.0
        %8191 = vmatprep.subr.mxu0 0.0
        %8192 = vmatpush1.msra.mxu0 0.0
        %8193 = vmatprep.subr.mxu0 0.0
        %8194 = vmatpush1.msra.mxu0 0.0
        %8195 = vmatprep.subr.mxu0 0.0
        %8196 = vmatpush1.msra.mxu0 0.0
        %8197 = vmatprep.subr.mxu0 0.0
        %8198 = vmatpush1.msra.mxu0 0.0
        %8199 = vmatprep.subr.mxu0 0.0
        %8200 = vmatpush1.msra.mxu0 0.0
        %8201 = vmatprep.subr.mxu0 0.0
        %8202 = vmatpush1.msra.mxu0 0.0
        %8203 = vmatprep.subr.mxu0 0.0
        %8204 = vmatpush1.msra.mxu0 0.0
        %8205 = vmatprep.subr.mxu0 0.0
        %8206 = vmatpush1.msra.mxu0 0.0
        %8207 = vmatprep.subr.mxu0 0.0
        %8208 = vmatpush1.msra.mxu0 0.0
        %8209 = vmatprep.subr.mxu0 0.0
        %8210 = vmatpush1.msra.mxu0 0.0
        %8211 = vmatprep.subr.mxu0 0.0
        %8212 = vmatpush1.msra.mxu0 0.0
        %8213 = vmatprep.subr.mxu0 0.0
        %8214 = vmatpush1.msra.mxu0 0.0
        %8215 = vmatprep.subr.mxu0 0.0
        %8216 = vmatpush1.msra.mxu0 0.0
        %8217 = vmatprep.subr.mxu0 0.0
        %8218 = vmatpush1.msra.mxu0 0.0
        %8219 = vmatprep.subr.mxu0 0.0
        %8220 = vmatpush1.msra.mxu0 0.0
        %8221 = vmatprep.mubr.f32.mxu0 0.0
        %8222 = vmatmul.mubr.f32.gmra.mrb[0].mxu0 %v8139
        %v8223 = vpop.f32.mrb[0].mxu0
        %v8224 = vadd.f32 %v8156, %v8223
        %v8225 = vpop.f32.mrb[0].mxu0
        %8226 = vdwg.mxu0
        %v8227 = vmax.f32 %v8224, 0.0
        %v8228 = vld [vmem:[%s15] sm:$0xff]
        %v8229 = vld [vmem:[%s15 + $0x8] sm:$0xff]
        %v8230 = vld [vmem:[%s15 + $0x10] sm:$0xff]
        %v8231 = vld [vmem:[%s15 + $0x18] sm:$0xff]
        %v8232 = vld [vmem:[%s15 + $0x20] sm:$0xff]
        %v8233 = vld [vmem:[%s15 + $0x28] sm:$0xff]
        %v8234 = vld [vmem:[%s15 + $0x30] sm:$0xff]
        %v8235 = vld [vmem:[%s15 + $0x38] sm:$0xff]
        %v8236 = vld [vmem:[%s15 + $0x40] sm:$0xff]
        %v8237 = vld [vmem:[%s15 + $0x48] sm:$0xff]
        %v8238 = vld [vmem:[%s15 + $0x50] sm:$0xff]
        %v8239 = vld [vmem:[%s15 + $0x58] sm:$0xff]
        %v8240 = vld [vmem:[%s15 + $0x60] sm:$0xff]
        %v8241 = vld [vmem:[%s15 + $0x68] sm:$0xff]
        %v8242 = vld [vmem:[%s15 + $0x70] sm:$0xff]
        %v8243 = vld [vmem:[%s15 + $0x78] sm:$0xff]
        %v8244 = vld [vmem:[%s16] sm:$0x1]
        %8245 = vmatprep.subr.mxu0 0.0
        %8246 = vmatpush1.msra.mxu0 %v8228
        %8247 = vmatprep.subr.mxu0 0.0
        %8248 = vmatpush1.msra.mxu0 %v8229
        %8249 = vmatprep.subr.mxu0 0.0
        %8250 = vmatpush1.msra.mxu0 %v8230
        %8251 = vmatprep.subr.mxu0 0.0
        %8252 = vmatpush1.msra.mxu0 %v8231
        %8253 = vmatprep.subr.mxu0 0.0
        %8254 = vmatpush1.msra.mxu0 %v8232
        %8255 = vmatprep.subr.mxu0 0.0
        %8256 = vmatpush1.msra.mxu0 %v8233
        %8257 = vmatprep.subr.mxu0 0.0
        %8258 = vmatpush1.msra.mxu0 %v8234
        %8259 = vmatprep.subr.mxu0 0.0
        %8260 = vmatpush1.msra.mxu0 %v8235
        %8261 = vmatprep.subr.mxu0 0.0
        %8262 = vmatpush1.msra.mxu0 %v8236
        %8263 = vmatprep.subr.mxu0 0.0
        %8264 = vmatpush1.msra.mxu0 %v8237
        %8265 = vmatprep.subr.mxu0 0.0
        %8266 = vmatpush1.msra.mxu0 %v8238
        %8267 = vmatprep.subr.mxu0 0.0
        %8268 = vmatpush1.msra.mxu0 %v8239
        %8269 = vmatprep.subr.mxu0 0.0
        %8270 = vmatpush1.msra.mxu0 %v8240
        %8271 = vmatprep.subr.mxu0 0.0
        %8272 = vmatpush1.msra.mxu0 %v8241
        %8273 = vmatprep.subr.mxu0 0.0
        %8274 = vmatpush1.msra.mxu0 %v8242
        %8275 = vmatprep.subr.mxu0 0.0
        %8276 = vmatpush1.msra.mxu0 %v8243
        %8277 = vmatprep.subr.mxu0 0.0
        %8278 = vmatpush1.msra.mxu0 0.0
        %8279 = vmatprep.subr.mxu0 0.0
        %8280 = vmatpush1.msra.mxu0 0.0
        %8281 = vmatprep.subr.mxu0 0.0
        %8282 = vmatpush1.msra.mxu0 0.0
        %8283 = vmatprep.subr.mxu0 0.0
        %8284 = vmatpush1.msra.mxu0 0.0
        %8285 = vmatprep.subr.mxu0 0.0
        %8286 = vmatpush1.msra.mxu0 0.0
        %8287 = vmatprep.subr.mxu0 0.0
        %8288 = vmatpush1.msra.mxu0 0.0
        %8289 = vmatprep.subr.mxu0 0.0
        %8290 = vmatpush1.msra.mxu0 0.0
        %8291 = vmatprep.subr.mxu0 0.0
        %8292 = vmatpush1.msra.mxu0 0.0
        %8293 = vmatprep.subr.mxu0 0.0
        %8294 = vmatpush1.msra.mxu0 0.0
        %8295 = vmatprep.subr.mxu0 0.0
        %8296 = vmatpush1.msra.mxu0 0.0
        %8297 = vmatprep.subr.mxu0 0.0
        %8298 = vmatpush1.msra.mxu0 0.0
        %8299 = vmatprep.subr.mxu0 0.0
        %8300 = vmatpush1.msra.mxu0 0.0
        %8301 = vmatprep.subr.mxu0 0.0
        %8302 = vmatpush1.msra.mxu0 0.0
        %8303 = vmatprep.subr.mxu0 0.0
        %8304 = vmatpush1.msra.mxu0 0.0
        %8305 = vmatprep.subr.mxu0 0.0
        %8306 = vmatpush1.msra.mxu0 0.0
        %8307 = vmatprep.subr.mxu0 0.0
        %8308 = vmatpush1.msra.mxu0 0.0
        %8309 = vmatprep.mubr.f32.mxu0 0.0
        %8310 = vmatmul.mubr.f32.gmra.mrb[0].mxu0 %v8227
        %v8311 = vpop.f32.mrb[0].mxu0
        %v8312 = vadd.f32 %v8244, %v8311
        %v8313 = vpop.f32.mrb[0].mxu0
        %8314 = vdwg.mxu0
        %v8315 = vmax.f32 %v8312, 0.0
        %v8316 = vld [vmem:[%s17] sm:$0xff]
        %v8317 = vld [vmem:[%s17 + $0x8] sm:$0xff]
        %v8318 = vld [vmem:[%s17 + $0x10] sm:$0xff]
        %v8319 = vld [vmem:[%s17 + $0x18] sm:$0xff]
        %v8320 = vld [vmem:[%s17 + $0x20] sm:$0xff]
        %v8321 = vld [vmem:[%s17 + $0x28] sm:$0xff]
        %v8322 = vld [vmem:[%s17 + $0x30] sm:$0xff]
        %v8323 = vld [vmem:[%s17 + $0x38] sm:$0xff]
        %v8324 = vld [vmem:[%s17 + $0x40] sm:$0xff]
        %v8325 = vld [vmem:[%s17 + $0x48] sm:$0xff]
        %v8326 = vld [vmem:[%s17 + $0x50] sm:$0xff]
        %v8327 = vld [vmem:[%s17 + $0x58] sm:$0xff]
        %v8328 = vld [vmem:[%s17 + $0x60] sm:$0xff]
        %v8329 = vld [vmem:[%s17 + $0x68] sm:$0xff]
        %v8330 = vld [vmem:[%s17 + $0x70] sm:$0xff]
        %v8331 = vld [vmem:[%s17 + $0x78] sm:$0xff]
        %v8332 = vld [vmem:[%s18] sm:$0x1]
        %8333 = vmatprep.subr.mxu0 0.0
        %8334 = vmatpush1.msra.mxu0 %v8316
        %8335 = vmatprep.subr.mxu0 0.0
        %8336 = vmatpush1.msra.mxu0 %v8317
        %8337 = vmatprep.subr.mxu0 0.0
        %8338 = vmatpush1.msra.mxu0 %v8318
        %8339 = vmatprep.subr.mxu0 0.0
        %8340 = vmatpush1.msra.mxu0 %v8319
        %8341 = vmatprep.subr.mxu0 0.0
        %8342 = vmatpush1.msra.mxu0 %v8320
        %8343 = vmatprep.subr.mxu0 0.0
        %8344 = vmatpush1.msra.mxu0 %v8321
        %8345 = vmatprep.subr.mxu0 0.0
        %8346 = vmatpush1.msra.mxu0 %v8322
        %8347 = vmatprep.subr.mxu0 0.0
        %8348 = vmatpush1.msra.mxu0 %v8323
        %8349 = vmatprep.subr.mxu0 0.0
        %8350 = vmatpush1.msra.mxu0 %v8324
        %8351 = vmatprep.subr.mxu0 0.0
        %8352 = vmatpush1.msra.mxu0 %v8325
        %8353 = vmatprep.subr.mxu0 0.0
        %8354 = vmatpush1.msra.mxu0 %v8326
        %8355 = vmatprep.subr.mxu0 0.0
        %8356 = vmatpush1.msra.mxu0 %v8327
        %8357 = vmatprep.subr.mxu0 0.0
        %8358 = vmatpush1.msra.mxu0 %v8328
        %8359 = vmatprep.subr.mxu0 0.0
        %8360 = vmatpush1.msra.mxu0 %v8329
        %8361 = vmatprep.subr.mxu0 0.0
        %8362 = vmatpush1.msra.mxu0 %v8330
        %8363 = vmatprep.subr.mxu0 0.0
        %8364 = vmatpush1.msra.mxu0 %v8331
        %8365 = vmatprep.subr.mxu0 0.0
        %8366 = vmatpush1.msra.mxu0 0.0
        %8367 = vmatprep.subr.mxu0 0.0
        %8368 = vmatpush1.msra.mxu0 0.0
        %8369 = vmatprep.subr.mxu0 0.0
        %8370 = vmatpush1.msra.mxu0 0.0
        %8371 = vmatprep.subr.mxu0 0.0
        %8372 = vmatpush1.msra.mxu0 0.0
        %8373 = vmatprep.subr.mxu0 0.0
        %8374 = vmatpush1.msra.mxu0 0.0
        %8375 = vmatprep.subr.mxu0 0.0
        %8376 = vmatpush1.msra.mxu0 0.0
        %8377 = vmatprep.subr.mxu0 0.0
        %8378 = vmatpush1.msra.mxu0 0.0
        %8379 = vmatprep.subr.mxu0 0.0
        %8380 = vmatpush1.msra.mxu0 0.0
        %8381 = vmatprep.subr.mxu0 0.0
        %8382 = vmatpush1.msra.mxu0 0.0
        %8383 = vmatprep.subr.mxu0 0.0
        %8384 = vmatpush1.msra.mxu0 0.0
        %8385 = vmatprep.subr.mxu0 0.0
        %8386 = vmatpush1.msra.mxu0 0.0
        %8387 = vmatprep.subr.mxu0 0.0
        %8388 = vmatpush1.msra.mxu0 0.0
        %8389 = vmatprep.subr.mxu0 0.0
        %8390 = vmatpush1.msra.mxu0 0.0
        %8391 = vmatprep.subr.mxu0 0.0
        %8392 = vmatpush1.msra.mxu0 0.0
        %8393 = vmatprep.subr.mxu0 0.0
        %8394 = vmatpush1.msra.mxu0 0.0
        %8395 = vmatprep.subr.mxu0 0.0
        %8396 = vmatpush1.msra.mxu0 0.0
        %8397 = vmatprep.mubr.f32.mxu0 0.0
        %8398 = vmatmul.mubr.f32.gmra.mrb[0].mxu0 %v8315
        %v8399 = vpop.f32.mrb[0].mxu0
        %v8400 = vadd.f32 %v8332, %v8399
        %v8401 = vpop.f32.mrb[0].mxu0
        %8402 = vdwg.mxu0
        %vm8403 = vcmask 32768
        %8404 = vst.msk [vmem:[%s605] sm:$0x1] %vm8403, %v8400
        %s8405 = sand.u32 %s450, 1
        %s8406 = scalar_lea.sflag [#allocation3], %s8405
        %s8407 = sand.u32 %s450, 1
        %s8408 = scalar_lea.vmem [#allocation2], %s8407
        // Predicated region
        $region97: #{policy_net_forward.1} parent=95 // pred_check
          %p8409 = pneg %p460
        $region98: #{policy_net_forward.1} parent=95 // pred_check_branch
          %8411 = sbr.rel (%p8409) target = $region100
        $region99: #{policy_net_forward.1} parent=95 // pred_region
          %s8413 = ssub.s32 16, 16
          %8414 = vsyncadd %s8406, %s8413
          %s8415 = smul.addr %s33, 16
          %s8416 = scalar_lea.hbm %s19, %s8415
          %s8418 = sshll.u32 %s8408, 4
          %s8419 = int_to_ptr.vmem [resolvable:$true] %s8418
          %8421 = dma.vmem_to_hbm [thread:$0]  %s8419, 16, %s8416, %s8406
        $region100: #{policy_net_forward.1} parent=95 // pred_fallthru
          _
      $region96: #{policy_net_forward.1} parent=5 // pred_fallthru
        _
      %p8422 = scmp.le.s32.totalorder 2, %s28
      // Predicated region
      $region101: #{policy_net_forward.1} parent=5 // pred_check
        %p8423 = pneg %p8422
      $region102: #{policy_net_forward.1} parent=5 // pred_check_branch
        %8425 = sbr.rel (%p8423) target = $region104
      $region103: #{policy_net_forward.1} parent=5 // pred_region
        %s8426 = ssub.s32 %s28, 2
        // Predicated region
        $region105: #{policy_net_forward.1} parent=103 // pred_check
          %p8427 = pneg %p466
        $region106: #{policy_net_forward.1} parent=103 // pred_check_branch
          %8429 = sbr.rel (%p8427) target = $region108
        $region107: #{policy_net_forward.1} parent=103 // pred_region
          %s8430 = sand.u32 %s451, 1
          %s8431 = scalar_lea.sflag [#allocation3], %s8430
          %s8432 = sand.u32 %s451, 1
          %s8433 = scalar_lea.vmem [#allocation2], %s8432
          %8434 = dma.done %s8431, 16
        $region108: #{policy_net_forward.1} parent=103 // pred_fallthru
          _
      $region104: #{policy_net_forward.1} parent=5 // pred_fallthru
        _
    $region6: #{policy_net_forward.1} parent=1 // loop_footer
      %s32 = sadd.s32 1, %s28
    $region7: #{policy_net_forward.1} parent=1 // loop_footer_branch
      %27 = sbr.rel target = $region3
    $region8: #{policy_net_forward.1} parent=1 // loop_exit
      _
    %8435 = vsyncpa [#allocation3], 1
    %s8436 = scalar_lea.sflag [#allocation3], 1
    %8437 = vsyncpa %s8436, 1

</llo_original>
